<compile_context>
chip_gen: v7x
topology: tpu7x:2x2x1
jax: 0.10.0
libtpu: 0.0.40
codegen_flags: <defaults>
</compile_context>

<pallas_src>
import functools

import jax
import jax.numpy as jnp
from jax.experimental import pallas as pl
from jax.experimental.pallas import tpu as pltpu


# ----------------------------------------------------------------------------
# Kernel A: per-channel partial sums for the stage-1 GroupNorm statistics.
# Grid (N, D // TD), both axes "parallel"; every grid step owns its own output
# block (no cross-step accumulation), so this stays race-free on megacore.
# ----------------------------------------------------------------------------
def _gn_stats_kernel(x_ref, sum_ref, sq_ref):
    x = x_ref[0].astype(jnp.float32)                     # [TD, H, W, C]
    sum_ref[...] = jnp.sum(x, axis=(0, 1, 2)).reshape(1, 1, 1, -1)
    sq_ref[...] = jnp.sum(x * x, axis=(0, 1, 2)).reshape(1, 1, 1, -1)


def _pick_td(d, h, w, c, itemsize, budget_bytes=4 * 1024 * 1024):
    """Largest divisor of d whose (td, H, W, C) tile stays under budget."""
    td = d
    while td > 1 and td * h * w * c * itemsize > budget_bytes:
        td -= 1
        while td > 1 and d % td:
            td -= 1
    return max(td, 1)


def _gn_stats(t):
    """t: [N, D, H, W, C] -> (sum, sumsq) over (D, H, W), each [N, C] float32."""
    n, d, h, w, c = t.shape
    td = _pick_td(d, h, w, c, t.dtype.itemsize)
    nchunks = d // td
    sums, sqs = pl.pallas_call(
        _gn_stats_kernel,
        out_shape=(jax.ShapeDtypeStruct((n, nchunks, 1, c), jnp.float32),
                   jax.ShapeDtypeStruct((n, nchunks, 1, c), jnp.float32)),
        grid=(n, nchunks),
        in_specs=[pl.BlockSpec((1, td, h, w, c), lambda i, j: (i, j, 0, 0, 0))],
        out_specs=(pl.BlockSpec((1, 1, 1, c), lambda i, j: (i, j, 0, 0)),
                   pl.BlockSpec((1, 1, 1, c), lambda i, j: (i, j, 0, 0))),
        compiler_params=pltpu.CompilerParams(
            dimension_semantics=("parallel", "parallel")),
    )(t)
    return sums.sum(axis=(1, 2)), sqs.sum(axis=(1, 2))


# ----------------------------------------------------------------------------
# Kernel B (fused): GroupNorm affine + 3x3x3 Conv3d (no bias) + ReLU, plus the
# per-channel sum / sum-of-squares of the ReLU output for the NEXT GroupNorm.
#
# Grid (N, D+1) with the z axis "arbitrary" (sequential):
#   step s:  DMA un-padded slice min(s, D-1); normalize once; stage it into the
#            3-slot padded VMEM ring at slot s%3 (or stage zeros when s == D,
#            the bottom z-halo); for s >= 1 compute output slice z = s-1 from
#            ring slots (s+1+dz)%3, dz = 0..2.
# ----------------------------------------------------------------------------
def _gn_conv_relu_kernel(x_ref, ab_ref, w_hbm, y_ref, sum_ref, sq_ref,
                         xpad_ref, w_ref):
    # x_ref   : (1, 1, H, W, Cin)   bf16  activation slice  min(s, D-1)
    # ab_ref  : (1, 2, Cin)         f32   per-sample GN scale / shift
    # w_hbm   : (3, 3, 3*Cin, Cout) bf16  packed conv taps, left in HBM (pl.ANY)
    # y_ref   : (1, 1, H, W, Cout)        output slice  max(s-1, 0)
    # sum/sq  : (1, 1, Cout)        f32   fused next-stage GN statistics
    # xpad_ref: (3, H+2, W+2, Cin)  bf16  revolving ring of normalized padded slices
    # w_ref   : (3, 3, 3*Cin, Cout) bf16  single resident VMEM copy of the weights
    s = pl.program_id(1)
    d = pl.num_programs(1) - 1
    h, w = y_ref.shape[2], y_ref.shape[3]
    cin = x_ref.shape[4]
    cout = y_ref.shape[4]

    # ---- once per sample: zero ring / stats, fetch weights into VMEM --------
    @pl.when(s == 0)
    def _():
        xpad_ref[...] = jnp.zeros_like(xpad_ref)     # halo ring stays 0 forever
        sum_ref[...] = jnp.zeros_like(sum_ref)
        sq_ref[...] = jnp.zeros_like(sq_ref)
        y_ref[...] = jnp.zeros_like(y_ref)           # deterministic first buffer
        pltpu.sync_copy(w_hbm, w_ref)                # exactly one weight buffer

    # ---- stage the incoming slice s into ring slot s % 3 --------------------
    slot_in = s % 3

    @pl.when(s < d)
    def _():
        a = ab_ref[0, 0:1, :]                        # (1, Cin) f32
        b = ab_ref[0, 1:2, :]
        x = x_ref[0, 0].astype(jnp.float32)          # (H, W, Cin)
        xpad_ref[slot_in, pl.ds(1, h), pl.ds(1, w), :] = (
            x * a + b).astype(xpad_ref.dtype)

    @pl.when(s >= d)                                 # "slice D" zero z-halo
    def _():
        xpad_ref[slot_in, pl.ds(1, h), pl.ds(1, w), :] = jnp.zeros(
            (h, w, cin), xpad_ref.dtype)

    # ---- conv + ReLU (+ fused stats) for output slice z = s - 1 -------------
    @pl.when(s >= 1)
    def _():
        th = min(h, max(1, 256 // w))                # ~256-row matmul tiles
        for y0 in range(0, h, th):
            rows = min(th, h - y0)
            acc = jnp.zeros((rows * w, cout), jnp.float32)
            for dz in range(3):
                slot = (s + 1 + dz) % 3              # ring slot of slice z-1+dz
                for dy in range(3):
                    slab = xpad_ref[slot, pl.ds(y0 + dy, rows), :, :]
                    patch = jnp.concatenate(         # K-packed: K = 3 * Cin
                        [slab[:, 0:w, :],
                         slab[:, 1:w + 1, :],
                         slab[:, 2:w + 2, :]], axis=-1).reshape(rows * w, 3 * cin)
                    acc = acc + jnp.dot(patch, w_ref[dz, dy],
                                        preferred_element_type=jnp.float32)
            y = jnp.maximum(acc, 0.0).astype(y_ref.dtype).reshape(rows, w, cout)
            y_ref[0, 0, pl.ds(y0, rows), :, :] = y
            yf = y.astype(jnp.float32)               # stats on the stored values
            sum_ref[...] += jnp.sum(yf, axis=(0, 1)).reshape(1, 1, cout)
            sq_ref[...] += jnp.sum(yf * yf, axis=(0, 1)).reshape(1, 1, cout)


def _gn_conv_relu_call(t, ab, w_packed, out_dtype):
    """t: [N, D, H, W, Cin] bf16; ab: [N, 2, Cin] f32; w_packed: [3,3,3*Cin,Cout] bf16."""
    n, d, h, w_sp, cin = t.shape
    cout = w_packed.shape[-1]
    y, ssum, ssq = pl.pallas_call(
        _gn_conv_relu_kernel,
        out_shape=(jax.ShapeDtypeStruct((n, d, h, w_sp, cout), out_dtype),
                   jax.ShapeDtypeStruct((n, 1, cout), jnp.float32),
                   jax.ShapeDtypeStruct((n, 1, cout), jnp.float32)),
        grid=(n, d + 1),
        in_specs=[
            pl.BlockSpec((1, 1, h, w_sp, cin),
                         lambda i, z: (i, jnp.minimum(z, d - 1), 0, 0, 0)),
            pl.BlockSpec((1, 2, cin), lambda i, z: (i, 0, 0)),
            pl.BlockSpec(memory_space=pl.ANY),       # weights: manual resident copy
        ],
        out_specs=(
            pl.BlockSpec((1, 1, h, w_sp, cout),
                         lambda i, z: (i, jnp.maximum(z - 1, 0), 0, 0, 0)),
            pl.BlockSpec((1, 1, cout), lambda i, z: (i, 0, 0)),
            pl.BlockSpec((1, 1, cout), lambda i, z: (i, 0, 0)),
        ),
        scratch_shapes=[
            pltpu.VMEM((3, h + 2, w_sp + 2, cin), jnp.bfloat16),
            pltpu.VMEM(w_packed.shape, jnp.bfloat16),
        ],
        compiler_params=pltpu.CompilerParams(
            dimension_semantics=("parallel", "arbitrary")),
    )(t, ab, w_packed)
    return y, ssum[:, 0, :], ssq[:, 0, :]


def _stage(t, sums, sqs, gamma, beta, w, num_groups, eps, out_dtype):
    """One (GroupNorm -> Conv3d(3, pad=1, no bias) -> ReLU) stage.

    Takes precomputed per-channel sum / sumsq so stage-2 can reuse the stats
    fused into stage-1's conv kernel.  Returns (y, next_sum, next_sumsq).
    """
    n, d, h, w_sp, c = t.shape
    g = num_groups
    cg = c // g
    cnt = jnp.float32(d * h * w_sp * cg)
    gsum = sums.reshape(n, g, cg).sum(-1)
    gsq = sqs.reshape(n, g, cg).sum(-1)
    mean = gsum / cnt
    var = jnp.maximum(gsq / cnt - mean * mean, 0.0)
    rstd = jax.lax.rsqrt(var + eps)
    mean_c = jnp.repeat(mean, cg, axis=1)                 # [N, C]
    rstd_c = jnp.repeat(rstd, cg, axis=1)                 # [N, C]
    a = rstd_c * gamma[None, :].astype(jnp.float32)
    b = beta[None, :].astype(jnp.float32) - mean_c * a
    ab = jnp.stack([a, b], axis=1)                        # [N, 2, C] f32

    cout = w.shape[-1]
    w_packed = w.reshape(3, 3, 3 * c, cout).astype(jnp.bfloat16)
    return _gn_conv_relu_call(t, ab, w_packed, out_dtype)


# ----------------------------------------------------------------------------
# Full UNetDecoder forward
# ----------------------------------------------------------------------------
def _nearest_upsample_ncdhw(x, size):
    """Matches F.interpolate(mode='nearest'): src = floor(dst * in / out)."""
    _, _, d, h, w = x.shape
    od, oh, ow = size
    zi = (jnp.arange(od) * d) // od
    yi = (jnp.arange(oh) * h) // oh
    xi = (jnp.arange(ow) * w) // ow
    return x[:, :, zi][:, :, :, yi][:, :, :, :, xi]


@functools.partial(jax.jit, static_argnames=("num_groups",))
def unet_decoder_forward(enc, x, params, *, num_groups, eps=1e-5):
    """enc: [N, C_enc, D, H, W], x: [N, C_x, d, h, w]  (PyTorch NCDHW layout).

    params = (gamma1[Cin], beta1[Cin], w1[3,3,3,Cin,Cout],
              gamma2[Cout], beta2[Cout], w2[3,3,3,Cout,Cout])
    Returns [N, Cout, D, H, W] float32.
    """
    gamma1, beta1, w1, gamma2, beta2, w2 = params

    # Pure data movement in the wrapper: upsample + concat + channels-last, bf16.
    xu = _nearest_upsample_ncdhw(x, enc.shape[2:])
    t = jnp.concatenate([enc, xu], axis=1)                # [N, Cin, D, H, W]
    t = jnp.transpose(t, (0, 2, 3, 4, 1)).astype(jnp.bfloat16)   # [N, D, H, W, Cin]

    # Stage 1: stats pass + fused GN/conv/ReLU (emits stage-2 stats for free).
    s1, q1 = _gn_stats(t)
    y1, s2, q2 = _stage(t, s1, q1, gamma1, beta1, w1, num_groups, eps,
                        jnp.bfloat16)
    # Stage 2: reuses the fused stats; final output in f32.
    y2, _, _ = _stage(y1, s2, q2, gamma2, beta2, w2, num_groups, eps,
                      jnp.float32)

    return jnp.transpose(y2, (0, 4, 1, 2, 3))             # back to NCDHW


# ----------------------------------------------------------------------------
# Pure-JAX reference (mirrors the PyTorch module; bf16_matmul=True mirrors the
# kernel's mixed-precision rounding points for a tight comparison).
# ----------------------------------------------------------------------------
def _reference(enc, x, params, *, num_groups, eps=1e-5, bf16_matmul=True):
    gamma1, beta1, w1, gamma2, beta2, w2 = params

    def rnd(v):
        return v.astype(jnp.bfloat16).astype(jnp.float32) if bf16_matmul else v

    xu = _nearest_upsample_ncdhw(x, enc.shape[2:])
    t = rnd(jnp.concatenate([enc, xu], axis=1))

    def gn(v, gamma, beta):
        n, c, d, h, w = v.shape
        g = num_groups
        vr = v.reshape(n, g, c // g, d, h, w)
        mean = vr.mean(axis=(2, 3, 4, 5), keepdims=True)
        var = vr.var(axis=(2, 3, 4, 5), keepdims=True)
        vn = ((vr - mean) * jax.lax.rsqrt(var + eps)).reshape(n, c, d, h, w)
        return (vn * gamma[None, :, None, None, None]
                + beta[None, :, None, None, None])

    def conv(v, w):
        wt = jnp.transpose(rnd(w), (4, 3, 0, 1, 2))       # OIDHW
        return jax.lax.conv_general_dilated(
            v, wt, window_strides=(1, 1, 1),
            padding=((1, 1), (1, 1), (1, 1)),
            dimension_numbers=("NCDHW", "OIDHW", "NCDHW"),
            precision=jax.lax.Precision.HIGHEST)

    h1 = rnd(jnp.maximum(conv(rnd(gn(t, gamma1, beta1)), w1), 0.0))
    h2 = jnp.maximum(conv(rnd(gn(h1, gamma2, beta2)), w2), 0.0)
    return h2


if __name__ == "__main__":
    key = jax.random.PRNGKey(0)
    k1, k2, k3, k4, k5, k6, k7, k8 = jax.random.split(key, 8)

    N = 2
    C_ENC, C_X = 16, 16
    IN_CH = C_ENC + C_X          # channels after concat == in_channels
    OUT_CH = 32
    GROUPS = 8
    D = H = W = 8                # encoder spatial size; x comes in at half res

    enc = jax.random.normal(k1, (N, C_ENC, D, H, W), jnp.float32)
    x = jax.random.normal(k2, (N, C_X, D // 2, H // 2, W // 2), jnp.float32)

    gamma1 = 1.0 + 0.1 * jax.random.normal(k3, (IN_CH,), jnp.float32)
    beta1 = 0.1 * jax.random.normal(k4, (IN_CH,), jnp.float32)
    w1 = jax.random.normal(k5, (3, 3, 3, IN_CH, OUT_CH), jnp.float32) / (27 * IN_CH) ** 0.5
    gamma2 = 1.0 + 0.1 * jax.random.normal(k6, (OUT_CH,), jnp.float32)
    beta2 = 0.1 * jax.random.normal(k7, (OUT_CH,), jnp.float32)
    w2 = jax.random.normal(k8, (3, 3, 3, OUT_CH, OUT_CH), jnp.float32) / (27 * OUT_CH) ** 0.5
    params = (gamma1, beta1, w1, gamma2, beta2, w2)

    out = unet_decoder_forward(enc, x, params, num_groups=GROUPS)
    out = jax.block_until_ready(out)
    assert out.shape == (N, OUT_CH, D, H, W), out.shape

    # Tight check vs. a reference that mirrors the kernel's bf16 rounding points.
    ref_mixed = _reference(enc, x, params, num_groups=GROUPS, bf16_matmul=True)
    err_mixed = float(jnp.max(jnp.abs(out - ref_mixed)))
    assert jnp.allclose(out, ref_mixed, atol=3e-3, rtol=3e-3), err_mixed

    # Loose sanity check vs. the pure-f32 PyTorch-equivalent reference.
    ref_f32 = _reference(enc, x, params, num_groups=GROUPS, bf16_matmul=False)
    err_f32 = float(jnp.max(jnp.abs(out - ref_f32)))
    assert jnp.allclose(out, ref_f32, atol=1e-1, rtol=1e-1), err_f32

    print("KERNEL_OK")
</pallas_src>

<mosaic_0001>
module attributes {stable_mosaic.version = 11 : i64} {
  func.func @_gn_stats_kernel(%arg0: i32, %arg1: i32, %arg2: memref<1x8x8x8x32xbf16, #tpu.memory_space<vmem>>, %arg3: memref<1x1x1x32xf32, #tpu.memory_space<vmem>>, %arg4: memref<1x1x1x32xf32, #tpu.memory_space<vmem>>) attributes {dimension_semantics = [#tpu.dimension_semantics<parallel>, #tpu.dimension_semantics<parallel>], iteration_bounds = array<i64: 2, 1>, scalar_prefetch = 0 : i64, scratch_operands = 0 : i64, tpu.core_type = #tpu.core_type<tc>, window_params = [{transform_indices = @transform_0, window_bounds = array<i64: 1, 8, 8, 8, 32>}, {transform_indices = @transform_1, window_bounds = array<i64: 1, 1, 1, 32>}, {transform_indices = @transform_2, window_bounds = array<i64: 1, 1, 1, 32>}]} {
    %c0 = arith.constant 0 : index
    %c0_0 = arith.constant 0 : index
    %c0_1 = arith.constant 0 : index
    %c0_2 = arith.constant 0 : index
    %c0_3 = arith.constant 0 : index
    %0 = vector.load %arg2[%c0, %c0_0, %c0_1, %c0_2, %c0_3] : memref<1x8x8x8x32xbf16, #tpu.memory_space<vmem>>, vector<1x8x8x8x32xbf16>
    %1 = vector.shape_cast %0 : vector<1x8x8x8x32xbf16> to vector<8x8x8x32xbf16>
    %2 = arith.extf %1 : vector<8x8x8x32xbf16> to vector<8x8x8x32xf32>
    %cst = arith.constant dense<0.000000e+00> : vector<32xf32>
    %3 = vector.multi_reduction <add>, %2, %cst [0, 1, 2] : vector<8x8x8x32xf32> to vector<32xf32>
    %4 = vector.shape_cast %3 : vector<32xf32> to vector<1x1x1x32xf32>
    %c0_4 = arith.constant 0 : index
    %c0_5 = arith.constant 0 : index
    %c0_6 = arith.constant 0 : index
    %c0_7 = arith.constant 0 : index
    %5 = vector.load %arg3[%c0_4, %c0_5, %c0_6, %c0_7] : memref<1x1x1x32xf32, #tpu.memory_space<vmem>>, vector<1x1x1x32xf32>
    tpu.vector_store %arg3[%c0_4, %c0_5, %c0_6, %c0_7], %4 {strides = array<i32>} : memref<1x1x1x32xf32, #tpu.memory_space<vmem>>, vector<1x1x1x32xf32>,
    %6 = arith.mulf %2, %2 : vector<8x8x8x32xf32>
    %cst_8 = arith.constant dense<0.000000e+00> : vector<32xf32>
    %7 = vector.multi_reduction <add>, %6, %cst_8 [0, 1, 2] : vector<8x8x8x32xf32> to vector<32xf32>
    %8 = vector.shape_cast %7 : vector<32xf32> to vector<1x1x1x32xf32>
    %c0_9 = arith.constant 0 : index
    %c0_10 = arith.constant 0 : index
    %c0_11 = arith.constant 0 : index
    %c0_12 = arith.constant 0 : index
    %9 = vector.load %arg4[%c0_9, %c0_10, %c0_11, %c0_12] : memref<1x1x1x32xf32, #tpu.memory_space<vmem>>, vector<1x1x1x32xf32>
    tpu.vector_store %arg4[%c0_9, %c0_10, %c0_11, %c0_12], %8 {strides = array<i32>} : memref<1x1x1x32xf32, #tpu.memory_space<vmem>>, vector<1x1x1x32xf32>,
    return
  }
  func.func @transform_0(%arg0: i32, %arg1: i32) -> (i32, i32, i32, i32, i32) {
    %c0_i32 = arith.constant 0 : i32
    %c0_i32_0 = arith.constant 0 : i32
    %c0_i32_1 = arith.constant 0 : i32
    %c0_i32_2 = arith.constant 0 : i32
    return %arg0, %arg1, %c0_i32, %c0_i32_0, %c0_i32_1 : i32, i32, i32, i32, i32
  }
  func.func @transform_1(%arg0: i32, %arg1: i32) -> (i32, i32, i32, i32) {
    %c0_i32 = arith.constant 0 : i32
    %c0_i32_0 = arith.constant 0 : i32
    %c0_i32_1 = arith.constant 0 : i32
    return %arg0, %arg1, %c0_i32, %c0_i32_0 : i32, i32, i32, i32
  }
  func.func @transform_2(%arg0: i32, %arg1: i32) -> (i32, i32, i32, i32) {
    %c0_i32 = arith.constant 0 : i32
    %c0_i32_0 = arith.constant 0 : i32
    %c0_i32_1 = arith.constant 0 : i32
    return %arg0, %arg1, %c0_i32, %c0_i32_0 : i32, i32, i32, i32
  }
}

module attributes {stable_mosaic.version = 11 : i64} {
  func.func @_gn_conv_relu_kernel(%arg0: i32, %arg1: i32, %arg2: memref<1x1x8x8x32xbf16, #tpu.memory_space<vmem>>, %arg3: memref<1x2x32xf32, #tpu.memory_space<vmem>>, %arg4: memref<3x3x96x32xbf16, #tpu.memory_space<any>>, %arg5: memref<1x1x8x8x32xbf16, #tpu.memory_space<vmem>>, %arg6: memref<1x1x32xf32, #tpu.memory_space<vmem>>, %arg7: memref<1x1x32xf32, #tpu.memory_space<vmem>>, %arg8: memref<3x10x10x32xbf16, #tpu.memory_space<vmem>>, %arg9: memref<3x3x96x32xbf16, #tpu.memory_space<vmem>>) attributes {dimension_semantics = [#tpu.dimension_semantics<parallel>, #tpu.dimension_semantics<arbitrary>], iteration_bounds = array<i64: 2, 9>, scalar_prefetch = 0 : i64, scratch_operands = 2 : i64, tpu.core_type = #tpu.core_type<tc>, window_params = [{transform_indices = @transform_0, window_bounds = array<i64: 1, 1, 8, 8, 32>}, {transform_indices = @transform_1, window_bounds = array<i64: 1, 2, 32>}, {}, {transform_indices = @transform_3, window_bounds = array<i64: 1, 1, 8, 8, 32>}, {transform_indices = @transform_4, window_bounds = array<i64: 1, 1, 32>}, {transform_indices = @transform_5, window_bounds = array<i64: 1, 1, 32>}]} {
    %c0_i32 = arith.constant 0 : i32
    %0 = arith.cmpi eq, %arg1, %c0_i32 : i32
    %1 = arith.extui %0 : i1 to i32
    %c0_i32_0 = arith.constant 0 : i32
    %2 = arith.cmpi ne, %1, %c0_i32_0 : i32
    scf.if %2 {
      %cst = arith.constant 0.000000e+00 : bf16
      %22 = vector.broadcast %cst : bf16 to vector<3x10x10x32xbf16>
      %c0 = arith.constant 0 : index
      %c0_10 = arith.constant 0 : index
      %c0_11 = arith.constant 0 : index
      %c0_12 = arith.constant 0 : index
      %23 = vector.load %arg8[%c0, %c0_10, %c0_11, %c0_12] : memref<3x10x10x32xbf16, #tpu.memory_space<vmem>>, vector<3x10x10x32xbf16>
      tpu.vector_store %arg8[%c0, %c0_10, %c0_11, %c0_12], %22 {strides = array<i32>} : memref<3x10x10x32xbf16, #tpu.memory_space<vmem>>, vector<3x10x10x32xbf16>,
      %cst_13 = arith.constant 0.000000e+00 : f32
      %24 = vector.broadcast %cst_13 : f32 to vector<1x1x32xf32>
      %c0_14 = arith.constant 0 : index
      %c0_15 = arith.constant 0 : index
      %c0_16 = arith.constant 0 : index
      %25 = vector.load %arg6[%c0_14, %c0_15, %c0_16] : memref<1x1x32xf32, #tpu.memory_space<vmem>>, vector<1x1x32xf32>
      tpu.vector_store %arg6[%c0_14, %c0_15, %c0_16], %24 {strides = array<i32>} : memref<1x1x32xf32, #tpu.memory_space<vmem>>, vector<1x1x32xf32>,
      %cst_17 = arith.constant 0.000000e+00 : f32
      %26 = vector.broadcast %cst_17 : f32 to vector<1x1x32xf32>
      %c0_18 = arith.constant 0 : index
      %c0_19 = arith.constant 0 : index
      %c0_20 = arith.constant 0 : index
      %27 = vector.load %arg7[%c0_18, %c0_19, %c0_20] : memref<1x1x32xf32, #tpu.memory_space<vmem>>, vector<1x1x32xf32>
      tpu.vector_store %arg7[%c0_18, %c0_19, %c0_20], %26 {strides = array<i32>} : memref<1x1x32xf32, #tpu.memory_space<vmem>>, vector<1x1x32xf32>,
      %cst_21 = arith.constant 0.000000e+00 : bf16
      %28 = vector.broadcast %cst_21 : bf16 to vector<1x1x8x8x32xbf16>
      %c0_22 = arith.constant 0 : index
      %c0_23 = arith.constant 0 : index
      %c0_24 = arith.constant 0 : index
      %c0_25 = arith.constant 0 : index
      %c0_26 = arith.constant 0 : index
      %29 = vector.load %arg5[%c0_22, %c0_23, %c0_24, %c0_25, %c0_26] : memref<1x1x8x8x32xbf16, #tpu.memory_space<vmem>>, vector<1x1x8x8x32xbf16>
      tpu.vector_store %arg5[%c0_22, %c0_23, %c0_24, %c0_25, %c0_26], %28 {strides = array<i32>} : memref<1x1x8x8x32xbf16, #tpu.memory_space<vmem>>, vector<1x1x8x8x32xbf16>,
      "tpu.region"() ({
        %30 = tpu.sem_alloc : memref<!tpu.dma_semaphore, #tpu.memory_space<semaphore_mem>>
        tpu.enqueue_dma source(%arg4 : memref<3x3x96x32xbf16, #tpu.memory_space<any>>) target(%arg9 : memref<3x3x96x32xbf16, #tpu.memory_space<vmem>>) target_semaphore(%30 : memref<!tpu.dma_semaphore, #tpu.memory_space<semaphore_mem>>)
        tpu.wait_dma2 semaphore(%30 : memref<!tpu.dma_semaphore, #tpu.memory_space<semaphore_mem>>) src(%arg4 : memref<3x3x96x32xbf16, #tpu.memory_space<any>>) dst(%arg9 : memref<3x3x96x32xbf16, #tpu.memory_space<vmem>>)
        tpu.yield
      }) : () -> ()
    } else {
    }
    %c3_i32 = arith.constant 3 : i32
    %c0_i32_1 = arith.constant 0 : i32
    %3 = arith.cmpi eq, %c3_i32, %c0_i32_1 : i32
    %c1_i32 = arith.constant 1 : i32
    %4 = arith.select %3, %c1_i32, %c3_i32 : i32
    %5 = arith.remsi %arg1, %4 : i32
    %c0_i32_2 = arith.constant 0 : i32
    %6 = arith.cmpi ne, %5, %c0_i32_2 : i32
    %c0_i32_3 = arith.constant 0 : i32
    %7 = arith.cmpi slt, %5, %c0_i32_3 : i32
    %c0_i32_4 = arith.constant 0 : i32
    %8 = arith.cmpi slt, %4, %c0_i32_4 : i32
    %9 = arith.xori %7, %8 : i1
    %10 = arith.andi %9, %6 : i1
    %11 = arith.addi %5, %4 : i32
    %12 = arith.select %10, %11, %5 : i32
    %c8_i32 = arith.constant 8 : i32
    %13 = arith.cmpi slt, %arg1, %c8_i32 : i32
    %14 = arith.extui %13 : i1 to i32
    %c0_i32_5 = arith.constant 0 : i32
    %15 = arith.cmpi ne, %14, %c0_i32_5 : i32
    scf.if %15 {
      %c0 = arith.constant 0 : index
      %c0_10 = arith.constant 0 : index
      %c0_11 = arith.constant 0 : index
      %22 = vector.load %arg3[%c0, %c0_10, %c0_11] : memref<1x2x32xf32, #tpu.memory_space<vmem>>, vector<1x1x32xf32>
      %23 = vector.shape_cast %22 : vector<1x1x32xf32> to vector<1x32xf32>
      %c0_12 = arith.constant 0 : index
      %c1 = arith.constant 1 : index
      %c0_13 = arith.constant 0 : index
      %24 = vector.load %arg3[%c0_12, %c1, %c0_13] : memref<1x2x32xf32, #tpu.memory_space<vmem>>, vector<1x1x32xf32>
      %25 = vector.shape_cast %24 : vector<1x1x32xf32> to vector<1x32xf32>
      %c0_14 = arith.constant 0 : index
      %c0_15 = arith.constant 0 : index
      %c0_16 = arith.constant 0 : index
      %c0_17 = arith.constant 0 : index
      %c0_18 = arith.constant 0 : index
      %26 = vector.load %arg2[%c0_14, %c0_15, %c0_16, %c0_17, %c0_18] : memref<1x1x8x8x32xbf16, #tpu.memory_space<vmem>>, vector<1x1x8x8x32xbf16>
      %27 = vector.shape_cast %26 : vector<1x1x8x8x32xbf16> to vector<8x8x32xbf16>
      %28 = arith.extf %27 : vector<8x8x32xbf16> to vector<8x8x32xf32>
      %29 = vector.shape_cast %23 : vector<1x32xf32> to vector<1x1x32xf32>
      %30 = vector.broadcast %29 : vector<1x1x32xf32> to vector<8x8x32xf32>
      %31 = arith.mulf %28, %30 : vector<8x8x32xf32>
      %32 = vector.shape_cast %25 : vector<1x32xf32> to vector<1x1x32xf32>
      %33 = vector.broadcast %32 : vector<1x1x32xf32> to vector<8x8x32xf32>
      %34 = arith.addf %31, %33 : vector<8x8x32xf32>
      %35 = arith.truncf %34 : vector<8x8x32xf32> to vector<8x8x32xbf16>
      %36 = arith.index_cast %12 : i32 to index
      %c1_19 = arith.constant 1 : index
      %c1_20 = arith.constant 1 : index
      %c0_21 = arith.constant 0 : index
      %37 = vector.load %arg8[%36, %c1_19, %c1_20, %c0_21] : memref<3x10x10x32xbf16, #tpu.memory_space<vmem>>, vector<1x8x8x32xbf16>
      %38 = vector.shape_cast %37 : vector<1x8x8x32xbf16> to vector<8x8x32xbf16>
      %39 = vector.shape_cast %35 : vector<8x8x32xbf16> to vector<1x8x8x32xbf16>
      tpu.vector_store %arg8[%36, %c1_19, %c1_20, %c0_21], %39 {strides = array<i32>} : memref<3x10x10x32xbf16, #tpu.memory_space<vmem>>, vector<1x8x8x32xbf16>,
    } else {
    }
    %c8_i32_6 = arith.constant 8 : i32
    %16 = arith.cmpi sge, %arg1, %c8_i32_6 : i32
    %17 = arith.extui %16 : i1 to i32
    %c0_i32_7 = arith.constant 0 : i32
    %18 = arith.cmpi ne, %17, %c0_i32_7 : i32
    scf.if %18 {
      %cst = arith.constant 0.000000e+00 : bf16
      %22 = vector.broadcast %cst : bf16 to vector<8x8x32xbf16>
      %23 = arith.index_cast %12 : i32 to index
      %c1 = arith.constant 1 : index
      %c1_10 = arith.constant 1 : index
      %c0 = arith.constant 0 : index
      %24 = vector.load %arg8[%23, %c1, %c1_10, %c0] : memref<3x10x10x32xbf16, #tpu.memory_space<vmem>>, vector<1x8x8x32xbf16>
      %25 = vector.shape_cast %24 : vector<1x8x8x32xbf16> to vector<8x8x32xbf16>
      %26 = vector.shape_cast %22 : vector<8x8x32xbf16> to vector<1x8x8x32xbf16>
      tpu.vector_store %arg8[%23, %c1, %c1_10, %c0], %26 {strides = array<i32>} : memref<3x10x10x32xbf16, #tpu.memory_space<vmem>>, vector<1x8x8x32xbf16>,
    } else {
    }
    %c1_i32_8 = arith.constant 1 : i32
    %19 = arith.cmpi sge, %arg1, %c1_i32_8 : i32
    %20 = arith.extui %19 : i1 to i32
    %c0_i32_9 = arith.constant 0 : i32
    %21 = arith.cmpi ne, %20, %c0_i32_9 : i32
    scf.if %21 {
      %cst = arith.constant 0.000000e+00 : f32
      %22 = vector.broadcast %cst : f32 to vector<64x32xf32>
      %c1_i32_10 = arith.constant 1 : i32
      %23 = arith.addi %arg1, %c1_i32_10 : i32
      %c0_i32_11 = arith.constant 0 : i32
      %24 = arith.addi %23, %c0_i32_11 : i32
      %c3_i32_12 = arith.constant 3 : i32
      %c0_i32_13 = arith.constant 0 : i32
      %25 = arith.cmpi eq, %c3_i32_12, %c0_i32_13 : i32
      %c1_i32_14 = arith.constant 1 : i32
      %26 = arith.select %25, %c1_i32_14, %c3_i32_12 : i32
      %27 = arith.remsi %24, %26 : i32
      %c0_i32_15 = arith.constant 0 : i32
      %28 = arith.cmpi ne, %27, %c0_i32_15 : i32
      %c0_i32_16 = arith.constant 0 : i32
      %29 = arith.cmpi slt, %27, %c0_i32_16 : i32
      %c0_i32_17 = arith.constant 0 : i32
      %30 = arith.cmpi slt, %26, %c0_i32_17 : i32
      %31 = arith.xori %29, %30 : i1
      %32 = arith.andi %31, %28 : i1
      %33 = arith.addi %27, %26 : i32
      %34 = arith.select %32, %33, %27 : i32
      %35 = arith.index_cast %34 : i32 to index
      %c0 = arith.constant 0 : index
      %c0_18 = arith.constant 0 : index
      %c0_19 = arith.constant 0 : index
      %36 = vector.load %arg8[%35, %c0, %c0_18, %c0_19] : memref<3x10x10x32xbf16, #tpu.memory_space<vmem>>, vector<1x8x10x32xbf16>
      %37 = vector.shape_cast %36 : vector<1x8x10x32xbf16> to vector<8x10x32xbf16>
      %38 = vector.extract_strided_slice %37 {offsets = [0, 0, 0], sizes = [8, 8, 32], strides = [1, 1, 1]} : vector<8x10x32xbf16> to vector<8x8x32xbf16>
      %39 = vector.extract_strided_slice %37 {offsets = [0, 1, 0], sizes = [8, 8, 32], strides = [1, 1, 1]} : vector<8x10x32xbf16> to vector<8x8x32xbf16>
      %40 = vector.extract_strided_slice %37 {offsets = [0, 2, 0], sizes = [8, 8, 32], strides = [1, 1, 1]} : vector<8x10x32xbf16> to vector<8x8x32xbf16>
      %41 = tpu.concatenate %38, %39, %40 in 2 : vector<8x8x32xbf16>, vector<8x8x32xbf16>, vector<8x8x32xbf16> -> vector<8x8x96xbf16>
      %42 = vector.shape_cast %41 : vector<8x8x96xbf16> to vector<64x96xbf16>
      %c0_20 = arith.constant 0 : index
      %c0_21 = arith.constant 0 : index
      %c0_22 = arith.constant 0 : index
      %c0_23 = arith.constant 0 : index
      %43 = vector.load %arg9[%c0_20, %c0_21, %c0_22, %c0_23] : memref<3x3x96x32xbf16, #tpu.memory_space<vmem>>, vector<1x1x96x32xbf16>
      %44 = vector.shape_cast %43 : vector<1x1x96x32xbf16> to vector<96x32xbf16>
      %cst_24 = arith.constant dense<0.000000e+00> : vector<64x32xf32>
      %45 = tpu.matmul %42, %44, %cst_24 {dimension_numbers = #tpu.dot_dimension_numbers<[1], [0], [0], [1], [0, 0, 1, 1], [], []>} : vector<64x96xbf16>, vector<96x32xbf16>, vector<64x32xf32> -> vector<64x32xf32>
      %46 = arith.addf %22, %45 : vector<64x32xf32>
      %47 = arith.index_cast %34 : i32 to index
      %c1 = arith.constant 1 : index
      %c0_25 = arith.constant 0 : index
      %c0_26 = arith.constant 0 : index
      %48 = vector.load %arg8[%47, %c1, %c0_25, %c0_26] : memref<3x10x10x32xbf16, #tpu.memory_space<vmem>>, vector<1x8x10x32xbf16>
      %49 = vector.shape_cast %48 : vector<1x8x10x32xbf16> to vector<8x10x32xbf16>
      %50 = vector.extract_strided_slice %49 {offsets = [0, 0, 0], sizes = [8, 8, 32], strides = [1, 1, 1]} : vector<8x10x32xbf16> to vector<8x8x32xbf16>
      %51 = vector.extract_strided_slice %49 {offsets = [0, 1, 0], sizes = [8, 8, 32], strides = [1, 1, 1]} : vector<8x10x32xbf16> to vector<8x8x32xbf16>
      %52 = vector.extract_strided_slice %49 {offsets = [0, 2, 0], sizes = [8, 8, 32], strides = [1, 1, 1]} : vector<8x10x32xbf16> to vector<8x8x32xbf16>
      %53 = tpu.concatenate %50, %51, %52 in 2 : vector<8x8x32xbf16>, vector<8x8x32xbf16>, vector<8x8x32xbf16> -> vector<8x8x96xbf16>
      %54 = vector.shape_cast %53 : vector<8x8x96xbf16> to vector<64x96xbf16>
      %c0_27 = arith.constant 0 : index
      %c1_28 = arith.constant 1 : index
      %c0_29 = arith.constant 0 : index
      %c0_30 = arith.constant 0 : index
      %55 = vector.load %arg9[%c0_27, %c1_28, %c0_29, %c0_30] : memref<3x3x96x32xbf16, #tpu.memory_space<vmem>>, vector<1x1x96x32xbf16>
      %56 = vector.shape_cast %55 : vector<1x1x96x32xbf16> to vector<96x32xbf16>
      %cst_31 = arith.constant dense<0.000000e+00> : vector<64x32xf32>
      %57 = tpu.matmul %54, %56, %cst_31 {dimension_numbers = #tpu.dot_dimension_numbers<[1], [0], [0], [1], [0, 0, 1, 1], [], []>} : vector<64x96xbf16>, vector<96x32xbf16>, vector<64x32xf32> -> vector<64x32xf32>
      %58 = arith.addf %46, %57 : vector<64x32xf32>
      %59 = arith.index_cast %34 : i32 to index
      %c2 = arith.constant 2 : index
      %c0_32 = arith.constant 0 : index
      %c0_33 = arith.constant 0 : index
      %60 = vector.load %arg8[%59, %c2, %c0_32, %c0_33] : memref<3x10x10x32xbf16, #tpu.memory_space<vmem>>, vector<1x8x10x32xbf16>
      %61 = vector.shape_cast %60 : vector<1x8x10x32xbf16> to vector<8x10x32xbf16>
      %62 = vector.extract_strided_slice %61 {offsets = [0, 0, 0], sizes = [8, 8, 32], strides = [1, 1, 1]} : vector<8x10x32xbf16> to vector<8x8x32xbf16>
      %63 = vector.extract_strided_slice %61 {offsets = [0, 1, 0], sizes = [8, 8, 32], strides = [1, 1, 1]} : vector<8x10x32xbf16> to vector<8x8x32xbf16>
      %64 = vector.extract_strided_slice %61 {offsets = [0, 2, 0], sizes = [8, 8, 32], strides = [1, 1, 1]} : vector<8x10x32xbf16> to vector<8x8x32xbf16>
      %65 = tpu.concatenate %62, %63, %64 in 2 : vector<8x8x32xbf16>, vector<8x8x32xbf16>, vector<8x8x32xbf16> -> vector<8x8x96xbf16>
      %66 = vector.shape_cast %65 : vector<8x8x96xbf16> to vector<64x96xbf16>
      %c0_34 = arith.constant 0 : index
      %c2_35 = arith.constant 2 : index
      %c0_36 = arith.constant 0 : index
      %c0_37 = arith.constant 0 : index
      %67 = vector.load %arg9[%c0_34, %c2_35, %c0_36, %c0_37] : memref<3x3x96x32xbf16, #tpu.memory_space<vmem>>, vector<1x1x96x32xbf16>
      %68 = vector.shape_cast %67 : vector<1x1x96x32xbf16> to vector<96x32xbf16>
      %cst_38 = arith.constant dense<0.000000e+00> : vector<64x32xf32>
      %69 = tpu.matmul %66, %68, %cst_38 {dimension_numbers = #tpu.dot_dimension_numbers<[1], [0], [0], [1], [0, 0, 1, 1], [], []>} : vector<64x96xbf16>, vector<96x32xbf16>, vector<64x32xf32> -> vector<64x32xf32>
      %70 = arith.addf %58, %69 : vector<64x32xf32>
      %c1_i32_39 = arith.constant 1 : i32
      %71 = arith.addi %arg1, %c1_i32_39 : i32
      %c1_i32_40 = arith.constant 1 : i32
      %72 = arith.addi %71, %c1_i32_40 : i32
      %c3_i32_41 = arith.constant 3 : i32
      %c0_i32_42 = arith.constant 0 : i32
      %73 = arith.cmpi eq, %c3_i32_41, %c0_i32_42 : i32
      %c1_i32_43 = arith.constant 1 : i32
      %74 = arith.select %73, %c1_i32_43, %c3_i32_41 : i32
      %75 = arith.remsi %72, %74 : i32
      %c0_i32_44 = arith.constant 0 : i32
      %76 = arith.cmpi ne, %75, %c0_i32_44 : i32
      %c0_i32_45 = arith.constant 0 : i32
      %77 = arith.cmpi slt, %75, %c0_i32_45 : i32
      %c0_i32_46 = arith.constant 0 : i32
      %78 = arith.cmpi slt, %74, %c0_i32_46 : i32
      %79 = arith.xori %77, %78 : i1
      %80 = arith.andi %79, %76 : i1
      %81 = arith.addi %75, %74 : i32
      %82 = arith.select %80, %81, %75 : i32
      %83 = arith.index_cast %82 : i32 to index
      %c0_47 = arith.constant 0 : index
      %c0_48 = arith.constant 0 : index
      %c0_49 = arith.constant 0 : index
      %84 = vector.load %arg8[%83, %c0_47, %c0_48, %c0_49] : memref<3x10x10x32xbf16, #tpu.memory_space<vmem>>, vector<1x8x10x32xbf16>
      %85 = vector.shape_cast %84 : vector<1x8x10x32xbf16> to vector<8x10x32xbf16>
      %86 = vector.extract_strided_slice %85 {offsets = [0, 0, 0], sizes = [8, 8, 32], strides = [1, 1, 1]} : vector<8x10x32xbf16> to vector<8x8x32xbf16>
      %87 = vector.extract_strided_slice %85 {offsets = [0, 1, 0], sizes = [8, 8, 32], strides = [1, 1, 1]} : vector<8x10x32xbf16> to vector<8x8x32xbf16>
      %88 = vector.extract_strided_slice %85 {offsets = [0, 2, 0], sizes = [8, 8, 32], strides = [1, 1, 1]} : vector<8x10x32xbf16> to vector<8x8x32xbf16>
      %89 = tpu.concatenate %86, %87, %88 in 2 : vector<8x8x32xbf16>, vector<8x8x32xbf16>, vector<8x8x32xbf16> -> vector<8x8x96xbf16>
      %90 = vector.shape_cast %89 : vector<8x8x96xbf16> to vector<64x96xbf16>
      %c1_50 = arith.constant 1 : index
      %c0_51 = arith.constant 0 : index
      %c0_52 = arith.constant 0 : index
      %c0_53 = arith.constant 0 : index
      %91 = vector.load %arg9[%c1_50, %c0_51, %c0_52, %c0_53] : memref<3x3x96x32xbf16, #tpu.memory_space<vmem>>, vector<1x1x96x32xbf16>
      %92 = vector.shape_cast %91 : vector<1x1x96x32xbf16> to vector<96x32xbf16>
      %cst_54 = arith.constant dense<0.000000e+00> : vector<64x32xf32>
      %93 = tpu.matmul %90, %92, %cst_54 {dimension_numbers = #tpu.dot_dimension_numbers<[1], [0], [0], [1], [0, 0, 1, 1], [], []>} : vector<64x96xbf16>, vector<96x32xbf16>, vector<64x32xf32> -> vector<64x32xf32>
      %94 = arith.addf %70, %93 : vector<64x32xf32>
      %95 = arith.index_cast %82 : i32 to index
      %c1_55 = arith.constant 1 : index
      %c0_56 = arith.constant 0 : index
      %c0_57 = arith.constant 0 : index
      %96 = vector.load %arg8[%95, %c1_55, %c0_56, %c0_57] : memref<3x10x10x32xbf16, #tpu.memory_space<vmem>>, vector<1x8x10x32xbf16>
      %97 = vector.shape_cast %96 : vector<1x8x10x32xbf16> to vector<8x10x32xbf16>
      %98 = vector.extract_strided_slice %97 {offsets = [0, 0, 0], sizes = [8, 8, 32], strides = [1, 1, 1]} : vector<8x10x32xbf16> to vector<8x8x32xbf16>
      %99 = vector.extract_strided_slice %97 {offsets = [0, 1, 0], sizes = [8, 8, 32], strides = [1, 1, 1]} : vector<8x10x32xbf16> to vector<8x8x32xbf16>
      %100 = vector.extract_strided_slice %97 {offsets = [0, 2, 0], sizes = [8, 8, 32], strides = [1, 1, 1]} : vector<8x10x32xbf16> to vector<8x8x32xbf16>
      %101 = tpu.concatenate %98, %99, %100 in 2 : vector<8x8x32xbf16>, vector<8x8x32xbf16>, vector<8x8x32xbf16> -> vector<8x8x96xbf16>
      %102 = vector.shape_cast %101 : vector<8x8x96xbf16> to vector<64x96xbf16>
      %c1_58 = arith.constant 1 : index
      %c1_59 = arith.constant 1 : index
      %c0_60 = arith.constant 0 : index
      %c0_61 = arith.constant 0 : index
      %103 = vector.load %arg9[%c1_58, %c1_59, %c0_60, %c0_61] : memref<3x3x96x32xbf16, #tpu.memory_space<vmem>>, vector<1x1x96x32xbf16>
      %104 = vector.shape_cast %103 : vector<1x1x96x32xbf16> to vector<96x32xbf16>
      %cst_62 = arith.constant dense<0.000000e+00> : vector<64x32xf32>
      %105 = tpu.matmul %102, %104, %cst_62 {dimension_numbers = #tpu.dot_dimension_numbers<[1], [0], [0], [1], [0, 0, 1, 1], [], []>} : vector<64x96xbf16>, vector<96x32xbf16>, vector<64x32xf32> -> vector<64x32xf32>
      %106 = arith.addf %94, %105 : vector<64x32xf32>
      %107 = arith.index_cast %82 : i32 to index
      %c2_63 = arith.constant 2 : index
      %c0_64 = arith.constant 0 : index
      %c0_65 = arith.constant 0 : index
      %108 = vector.load %arg8[%107, %c2_63, %c0_64, %c0_65] : memref<3x10x10x32xbf16, #tpu.memory_space<vmem>>, vector<1x8x10x32xbf16>
      %109 = vector.shape_cast %108 : vector<1x8x10x32xbf16> to vector<8x10x32xbf16>
      %110 = vector.extract_strided_slice %109 {offsets = [0, 0, 0], sizes = [8, 8, 32], strides = [1, 1, 1]} : vector<8x10x32xbf16> to vector<8x8x32xbf16>
      %111 = vector.extract_strided_slice %109 {offsets = [0, 1, 0], sizes = [8, 8, 32], strides = [1, 1, 1]} : vector<8x10x32xbf16> to vector<8x8x32xbf16>
      %112 = vector.extract_strided_slice %109 {offsets = [0, 2, 0], sizes = [8, 8, 32], strides = [1, 1, 1]} : vector<8x10x32xbf16> to vector<8x8x32xbf16>
      %113 = tpu.concatenate %110, %111, %112 in 2 : vector<8x8x32xbf16>, vector<8x8x32xbf16>, vector<8x8x32xbf16> -> vector<8x8x96xbf16>
      %114 = vector.shape_cast %113 : vector<8x8x96xbf16> to vector<64x96xbf16>
      %c1_66 = arith.constant 1 : index
      %c2_67 = arith.constant 2 : index
      %c0_68 = arith.constant 0 : index
      %c0_69 = arith.constant 0 : index
      %115 = vector.load %arg9[%c1_66, %c2_67, %c0_68, %c0_69] : memref<3x3x96x32xbf16, #tpu.memory_space<vmem>>, vector<1x1x96x32xbf16>
      %116 = vector.shape_cast %115 : vector<1x1x96x32xbf16> to vector<96x32xbf16>
      %cst_70 = arith.constant dense<0.000000e+00> : vector<64x32xf32>
      %117 = tpu.matmul %114, %116, %cst_70 {dimension_numbers = #tpu.dot_dimension_numbers<[1], [0], [0], [1], [0, 0, 1, 1], [], []>} : vector<64x96xbf16>, vector<96x32xbf16>, vector<64x32xf32> -> vector<64x32xf32>
      %118 = arith.addf %106, %117 : vector<64x32xf32>
      %c1_i32_71 = arith.constant 1 : i32
      %119 = arith.addi %arg1, %c1_i32_71 : i32
      %c2_i32 = arith.constant 2 : i32
      %120 = arith.addi %119, %c2_i32 : i32
      %c3_i32_72 = arith.constant 3 : i32
      %c0_i32_73 = arith.constant 0 : i32
      %121 = arith.cmpi eq, %c3_i32_72, %c0_i32_73 : i32
      %c1_i32_74 = arith.constant 1 : i32
      %122 = arith.select %121, %c1_i32_74, %c3_i32_72 : i32
      %123 = arith.remsi %120, %122 : i32
      %c0_i32_75 = arith.constant 0 : i32
      %124 = arith.cmpi ne, %123, %c0_i32_75 : i32
      %c0_i32_76 = arith.constant 0 : i32
      %125 = arith.cmpi slt, %123, %c0_i32_76 : i32
      %c0_i32_77 = arith.constant 0 : i32
      %126 = arith.cmpi slt, %122, %c0_i32_77 : i32
      %127 = arith.xori %125, %126 : i1
      %128 = arith.andi %127, %124 : i1
      %129 = arith.addi %123, %122 : i32
      %130 = arith.select %128, %129, %123 : i32
      %131 = arith.index_cast %130 : i32 to index
      %c0_78 = arith.constant 0 : index
      %c0_79 = arith.constant 0 : index
      %c0_80 = arith.constant 0 : index
      %132 = vector.load %arg8[%131, %c0_78, %c0_79, %c0_80] : memref<3x10x10x32xbf16, #tpu.memory_space<vmem>>, vector<1x8x10x32xbf16>
      %133 = vector.shape_cast %132 : vector<1x8x10x32xbf16> to vector<8x10x32xbf16>
      %134 = vector.extract_strided_slice %133 {offsets = [0, 0, 0], sizes = [8, 8, 32], strides = [1, 1, 1]} : vector<8x10x32xbf16> to vector<8x8x32xbf16>
      %135 = vector.extract_strided_slice %133 {offsets = [0, 1, 0], sizes = [8, 8, 32], strides = [1, 1, 1]} : vector<8x10x32xbf16> to vector<8x8x32xbf16>
      %136 = vector.extract_strided_slice %133 {offsets = [0, 2, 0], sizes = [8, 8, 32], strides = [1, 1, 1]} : vector<8x10x32xbf16> to vector<8x8x32xbf16>
      %137 = tpu.concatenate %134, %135, %136 in 2 : vector<8x8x32xbf16>, vector<8x8x32xbf16>, vector<8x8x32xbf16> -> vector<8x8x96xbf16>
      %138 = vector.shape_cast %137 : vector<8x8x96xbf16> to vector<64x96xbf16>
      %c2_81 = arith.constant 2 : index
      %c0_82 = arith.constant 0 : index
      %c0_83 = arith.constant 0 : index
      %c0_84 = arith.constant 0 : index
      %139 = vector.load %arg9[%c2_81, %c0_82, %c0_83, %c0_84] : memref<3x3x96x32xbf16, #tpu.memory_space<vmem>>, vector<1x1x96x32xbf16>
      %140 = vector.shape_cast %139 : vector<1x1x96x32xbf16> to vector<96x32xbf16>
      %cst_85 = arith.constant dense<0.000000e+00> : vector<64x32xf32>
      %141 = tpu.matmul %138, %140, %cst_85 {dimension_numbers = #tpu.dot_dimension_numbers<[1], [0], [0], [1], [0, 0, 1, 1], [], []>} : vector<64x96xbf16>, vector<96x32xbf16>, vector<64x32xf32> -> vector<64x32xf32>
      %142 = arith.addf %118, %141 : vector<64x32xf32>
      %143 = arith.index_cast %130 : i32 to index
      %c1_86 = arith.constant 1 : index
      %c0_87 = arith.constant 0 : index
      %c0_88 = arith.constant 0 : index
      %144 = vector.load %arg8[%143, %c1_86, %c0_87, %c0_88] : memref<3x10x10x32xbf16, #tpu.memory_space<vmem>>, vector<1x8x10x32xbf16>
      %145 = vector.shape_cast %144 : vector<1x8x10x32xbf16> to vector<8x10x32xbf16>
      %146 = vector.extract_strided_slice %145 {offsets = [0, 0, 0], sizes = [8, 8, 32], strides = [1, 1, 1]} : vector<8x10x32xbf16> to vector<8x8x32xbf16>
      %147 = vector.extract_strided_slice %145 {offsets = [0, 1, 0], sizes = [8, 8, 32], strides = [1, 1, 1]} : vector<8x10x32xbf16> to vector<8x8x32xbf16>
      %148 = vector.extract_strided_slice %145 {offsets = [0, 2, 0], sizes = [8, 8, 32], strides = [1, 1, 1]} : vector<8x10x32xbf16> to vector<8x8x32xbf16>
      %149 = tpu.concatenate %146, %147, %148 in 2 : vector<8x8x32xbf16>, vector<8x8x32xbf16>, vector<8x8x32xbf16> -> vector<8x8x96xbf16>
      %150 = vector.shape_cast %149 : vector<8x8x96xbf16> to vector<64x96xbf16>
      %c2_89 = arith.constant 2 : index
      %c1_90 = arith.constant 1 : index
      %c0_91 = arith.constant 0 : index
      %c0_92 = arith.constant 0 : index
      %151 = vector.load %arg9[%c2_89, %c1_90, %c0_91, %c0_92] : memref<3x3x96x32xbf16, #tpu.memory_space<vmem>>, vector<1x1x96x32xbf16>
      %152 = vector.shape_cast %151 : vector<1x1x96x32xbf16> to vector<96x32xbf16>
      %cst_93 = arith.constant dense<0.000000e+00> : vector<64x32xf32>
      %153 = tpu.matmul %150, %152, %cst_93 {dimension_numbers = #tpu.dot_dimension_numbers<[1], [0], [0], [1], [0, 0, 1, 1], [], []>} : vector<64x96xbf16>, vector<96x32xbf16>, vector<64x32xf32> -> vector<64x32xf32>
      %154 = arith.addf %142, %153 : vector<64x32xf32>
      %155 = arith.index_cast %130 : i32 to index
      %c2_94 = arith.constant 2 : index
      %c0_95 = arith.constant 0 : index
      %c0_96 = arith.constant 0 : index
      %156 = vector.load %arg8[%155, %c2_94, %c0_95, %c0_96] : memref<3x10x10x32xbf16, #tpu.memory_space<vmem>>, vector<1x8x10x32xbf16>
      %157 = vector.shape_cast %156 : vector<1x8x10x32xbf16> to vector<8x10x32xbf16>
      %158 = vector.extract_strided_slice %157 {offsets = [0, 0, 0], sizes = [8, 8, 32], strides = [1, 1, 1]} : vector<8x10x32xbf16> to vector<8x8x32xbf16>
      %159 = vector.extract_strided_slice %157 {offsets = [0, 1, 0], sizes = [8, 8, 32], strides = [1, 1, 1]} : vector<8x10x32xbf16> to vector<8x8x32xbf16>
      %160 = vector.extract_strided_slice %157 {offsets = [0, 2, 0], sizes = [8, 8, 32], strides = [1, 1, 1]} : vector<8x10x32xbf16> to vector<8x8x32xbf16>
      %161 = tpu.concatenate %158, %159, %160 in 2 : vector<8x8x32xbf16>, vector<8x8x32xbf16>, vector<8x8x32xbf16> -> vector<8x8x96xbf16>
      %162 = vector.shape_cast %161 : vector<8x8x96xbf16> to vector<64x96xbf16>
      %c2_97 = arith.constant 2 : index
      %c2_98 = arith.constant 2 : index
      %c0_99 = arith.constant 0 : index
      %c0_100 = arith.constant 0 : index
      %163 = vector.load %arg9[%c2_97, %c2_98, %c0_99, %c0_100] : memref<3x3x96x32xbf16, #tpu.memory_space<vmem>>, vector<1x1x96x32xbf16>
      %164 = vector.shape_cast %163 : vector<1x1x96x32xbf16> to vector<96x32xbf16>
      %cst_101 = arith.constant dense<0.000000e+00> : vector<64x32xf32>
      %165 = tpu.matmul %162, %164, %cst_101 {dimension_numbers = #tpu.dot_dimension_numbers<[1], [0], [0], [1], [0, 0, 1, 1], [], []>} : vector<64x96xbf16>, vector<96x32xbf16>, vector<64x32xf32> -> vector<64x32xf32>
      %166 = arith.addf %154, %165 : vector<64x32xf32>
      %cst_102 = arith.constant 0.000000e+00 : f32
      %167 = vector.broadcast %cst_102 : f32 to vector<64x32xf32>
      %168 = arith.maximumf %166, %167 : vector<64x32xf32>
      %169 = arith.truncf %168 : vector<64x32xf32> to vector<64x32xbf16>
      %170 = vector.shape_cast %169 : vector<64x32xbf16> to vector<8x8x32xbf16>
      %c0_103 = arith.constant 0 : index
      %c0_104 = arith.constant 0 : index
      %c0_105 = arith.constant 0 : index
      %c0_106 = arith.constant 0 : index
      %c0_107 = arith.constant 0 : index
      %171 = vector.load %arg5[%c0_103, %c0_104, %c0_105, %c0_106, %c0_107] : memref<1x1x8x8x32xbf16, #tpu.memory_space<vmem>>, vector<1x1x8x8x32xbf16>
      %172 = vector.shape_cast %171 : vector<1x1x8x8x32xbf16> to vector<8x8x32xbf16>
      %173 = vector.shape_cast %170 : vector<8x8x32xbf16> to vector<1x1x8x8x32xbf16>
      tpu.vector_store %arg5[%c0_103, %c0_104, %c0_105, %c0_106, %c0_107], %173 {strides = array<i32>} : memref<1x1x8x8x32xbf16, #tpu.memory_space<vmem>>, vector<1x1x8x8x32xbf16>,
      %174 = arith.extf %170 : vector<8x8x32xbf16> to vector<8x8x32xf32>
      %c0_108 = arith.constant 0 : index
      %c0_109 = arith.constant 0 : index
      %c0_110 = arith.constant 0 : index
      %175 = vector.load %arg6[%c0_108, %c0_109, %c0_110] : memref<1x1x32xf32, #tpu.memory_space<vmem>>, vector<1x1x32xf32>
      %cst_111 = arith.constant dense<0.000000e+00> : vector<32xf32>
      %176 = vector.multi_reduction <add>, %174, %cst_111 [0, 1] : vector<8x8x32xf32> to vector<32xf32>
      %177 = vector.shape_cast %176 : vector<32xf32> to vector<1x1x32xf32>
      %178 = arith.addf %175, %177 : vector<1x1x32xf32>
      %c0_112 = arith.constant 0 : index
      %c0_113 = arith.constant 0 : index
      %c0_114 = arith.constant 0 : index
      %179 = vector.load %arg6[%c0_112, %c0_113, %c0_114] : memref<1x1x32xf32, #tpu.memory_space<vmem>>, vector<1x1x32xf32>
      tpu.vector_store %arg6[%c0_112, %c0_113, %c0_114], %178 {strides = array<i32>} : memref<1x1x32xf32, #tpu.memory_space<vmem>>, vector<1x1x32xf32>,
      %c0_115 = arith.constant 0 : index
      %c0_116 = arith.constant 0 : index
      %c0_117 = arith.constant 0 : index
      %180 = vector.load %arg7[%c0_115, %c0_116, %c0_117] : memref<1x1x32xf32, #tpu.memory_space<vmem>>, vector<1x1x32xf32>
      %181 = arith.mulf %174, %174 : vector<8x8x32xf32>
      %cst_118 = arith.constant dense<0.000000e+00> : vector<32xf32>
      %182 = vector.multi_reduction <add>, %181, %cst_118 [0, 1] : vector<8x8x32xf32> to vector<32xf32>
      %183 = vector.shape_cast %182 : vector<32xf32> to vector<1x1x32xf32>
      %184 = arith.addf %180, %183 : vector<1x1x32xf32>
      %c0_119 = arith.constant 0 : index
      %c0_120 = arith.constant 0 : index
      %c0_121 = arith.constant 0 : index
      %185 = vector.load %arg7[%c0_119, %c0_120, %c0_121] : memref<1x1x32xf32, #tpu.memory_space<vmem>>, vector<1x1x32xf32>
      tpu.vector_store %arg7[%c0_119, %c0_120, %c0_121], %184 {strides = array<i32>} : memref<1x1x32xf32, #tpu.memory_space<vmem>>, vector<1x1x32xf32>,
    } else {
    }
    return
  }
  func.func @transform_0(%arg0: i32, %arg1: i32) -> (i32, i32, i32, i32, i32) {
    %c7_i32 = arith.constant 7 : i32
    %0 = arith.minsi %arg1, %c7_i32 : i32
    %c0_i32 = arith.constant 0 : i32
    %c0_i32_0 = arith.constant 0 : i32
    %c0_i32_1 = arith.constant 0 : i32
    %c0_i32_2 = arith.constant 0 : i32
    return %arg0, %0, %c0_i32, %c0_i32_0, %c0_i32_1 : i32, i32, i32, i32, i32
  }
  func.func @transform_1(%arg0: i32, %arg1: i32) -> (i32, i32, i32) {
    %c0_i32 = arith.constant 0 : i32
    %c0_i32_0 = arith.constant 0 : i32
    %c0_i32_1 = arith.constant 0 : i32
    return %arg0, %c0_i32, %c0_i32_0 : i32, i32, i32
  }
  func.func @transform_3(%arg0: i32, %arg1: i32) -> (i32, i32, i32, i32, i32) {
    %c1_i32 = arith.constant 1 : i32
    %0 = arith.subi %arg1, %c1_i32 : i32
    %c0_i32 = arith.constant 0 : i32
    %1 = arith.maxsi %0, %c0_i32 : i32
    %c0_i32_0 = arith.constant 0 : i32
    %c0_i32_1 = arith.constant 0 : i32
    %c0_i32_2 = arith.constant 0 : i32
    %c0_i32_3 = arith.constant 0 : i32
    return %arg0, %1, %c0_i32_0, %c0_i32_1, %c0_i32_2 : i32, i32, i32, i32, i32
  }
  func.func @transform_4(%arg0: i32, %arg1: i32) -> (i32, i32, i32) {
    %c0_i32 = arith.constant 0 : i32
    %c0_i32_0 = arith.constant 0 : i32
    %c0_i32_1 = arith.constant 0 : i32
    return %arg0, %c0_i32, %c0_i32_0 : i32, i32, i32
  }
  func.func @transform_5(%arg0: i32, %arg1: i32) -> (i32, i32, i32) {
    %c0_i32 = arith.constant 0 : i32
    %c0_i32_0 = arith.constant 0 : i32
    %c0_i32_1 = arith.constant 0 : i32
    return %arg0, %c0_i32, %c0_i32_0 : i32, i32, i32
  }
}

module attributes {stable_mosaic.version = 11 : i64} {
  func.func @_gn_conv_relu_kernel(%arg0: i32, %arg1: i32, %arg2: memref<1x1x8x8x32xbf16, #tpu.memory_space<vmem>>, %arg3: memref<1x2x32xf32, #tpu.memory_space<vmem>>, %arg4: memref<3x3x96x32xbf16, #tpu.memory_space<any>>, %arg5: memref<1x1x8x8x32xf32, #tpu.memory_space<vmem>>, %arg6: memref<1x1x32xf32, #tpu.memory_space<vmem>>, %arg7: memref<1x1x32xf32, #tpu.memory_space<vmem>>, %arg8: memref<3x10x10x32xbf16, #tpu.memory_space<vmem>>, %arg9: memref<3x3x96x32xbf16, #tpu.memory_space<vmem>>) attributes {dimension_semantics = [#tpu.dimension_semantics<parallel>, #tpu.dimension_semantics<arbitrary>], iteration_bounds = array<i64: 2, 9>, scalar_prefetch = 0 : i64, scratch_operands = 2 : i64, tpu.core_type = #tpu.core_type<tc>, window_params = [{transform_indices = @transform_0, window_bounds = array<i64: 1, 1, 8, 8, 32>}, {transform_indices = @transform_1, window_bounds = array<i64: 1, 2, 32>}, {}, {transform_indices = @transform_3, window_bounds = array<i64: 1, 1, 8, 8, 32>}, {transform_indices = @transform_4, window_bounds = array<i64: 1, 1, 32>}, {transform_indices = @transform_5, window_bounds = array<i64: 1, 1, 32>}]} {
    %c0_i32 = arith.constant 0 : i32
    %0 = arith.cmpi eq, %arg1, %c0_i32 : i32
    %1 = arith.extui %0 : i1 to i32
    %c0_i32_0 = arith.constant 0 : i32
    %2 = arith.cmpi ne, %1, %c0_i32_0 : i32
    scf.if %2 {
      %cst = arith.constant 0.000000e+00 : bf16
      %22 = vector.broadcast %cst : bf16 to vector<3x10x10x32xbf16>
      %c0 = arith.constant 0 : index
      %c0_10 = arith.constant 0 : index
      %c0_11 = arith.constant 0 : index
      %c0_12 = arith.constant 0 : index
      %23 = vector.load %arg8[%c0, %c0_10, %c0_11, %c0_12] : memref<3x10x10x32xbf16, #tpu.memory_space<vmem>>, vector<3x10x10x32xbf16>
      tpu.vector_store %arg8[%c0, %c0_10, %c0_11, %c0_12], %22 {strides = array<i32>} : memref<3x10x10x32xbf16, #tpu.memory_space<vmem>>, vector<3x10x10x32xbf16>,
      %cst_13 = arith.constant 0.000000e+00 : f32
      %24 = vector.broadcast %cst_13 : f32 to vector<1x1x32xf32>
      %c0_14 = arith.constant 0 : index
      %c0_15 = arith.constant 0 : index
      %c0_16 = arith.constant 0 : index
      %25 = vector.load %arg6[%c0_14, %c0_15, %c0_16] : memref<1x1x32xf32, #tpu.memory_space<vmem>>, vector<1x1x32xf32>
      tpu.vector_store %arg6[%c0_14, %c0_15, %c0_16], %24 {strides = array<i32>} : memref<1x1x32xf32, #tpu.memory_space<vmem>>, vector<1x1x32xf32>,
      %cst_17 = arith.constant 0.000000e+00 : f32
      %26 = vector.broadcast %cst_17 : f32 to vector<1x1x32xf32>
      %c0_18 = arith.constant 0 : index
      %c0_19 = arith.constant 0 : index
      %c0_20 = arith.constant 0 : index
      %27 = vector.load %arg7[%c0_18, %c0_19, %c0_20] : memref<1x1x32xf32, #tpu.memory_space<vmem>>, vector<1x1x32xf32>
      tpu.vector_store %arg7[%c0_18, %c0_19, %c0_20], %26 {strides = array<i32>} : memref<1x1x32xf32, #tpu.memory_space<vmem>>, vector<1x1x32xf32>,
      %cst_21 = arith.constant 0.000000e+00 : f32
      %28 = vector.broadcast %cst_21 : f32 to vector<1x1x8x8x32xf32>
      %c0_22 = arith.constant 0 : index
      %c0_23 = arith.constant 0 : index
      %c0_24 = arith.constant 0 : index
      %c0_25 = arith.constant 0 : index
      %c0_26 = arith.constant 0 : index
      %29 = vector.load %arg5[%c0_22, %c0_23, %c0_24, %c0_25, %c0_26] : memref<1x1x8x8x32xf32, #tpu.memory_space<vmem>>, vector<1x1x8x8x32xf32>
      tpu.vector_store %arg5[%c0_22, %c0_23, %c0_24, %c0_25, %c0_26], %28 {strides = array<i32>} : memref<1x1x8x8x32xf32, #tpu.memory_space<vmem>>, vector<1x1x8x8x32xf32>,
      "tpu.region"() ({
        %30 = tpu.sem_alloc : memref<!tpu.dma_semaphore, #tpu.memory_space<semaphore_mem>>
        tpu.enqueue_dma source(%arg4 : memref<3x3x96x32xbf16, #tpu.memory_space<any>>) target(%arg9 : memref<3x3x96x32xbf16, #tpu.memory_space<vmem>>) target_semaphore(%30 : memref<!tpu.dma_semaphore, #tpu.memory_space<semaphore_mem>>)
        tpu.wait_dma2 semaphore(%30 : memref<!tpu.dma_semaphore, #tpu.memory_space<semaphore_mem>>) src(%arg4 : memref<3x3x96x32xbf16, #tpu.memory_space<any>>) dst(%arg9 : memref<3x3x96x32xbf16, #tpu.memory_space<vmem>>)
        tpu.yield
      }) : () -> ()
    } else {
    }
    %c3_i32 = arith.constant 3 : i32
    %c0_i32_1 = arith.constant 0 : i32
    %3 = arith.cmpi eq, %c3_i32, %c0_i32_1 : i32
    %c1_i32 = arith.constant 1 : i32
    %4 = arith.select %3, %c1_i32, %c3_i32 : i32
    %5 = arith.remsi %arg1, %4 : i32
    %c0_i32_2 = arith.constant 0 : i32
    %6 = arith.cmpi ne, %5, %c0_i32_2 : i32
    %c0_i32_3 = arith.constant 0 : i32
    %7 = arith.cmpi slt, %5, %c0_i32_3 : i32
    %c0_i32_4 = arith.constant 0 : i32
    %8 = arith.cmpi slt, %4, %c0_i32_4 : i32
    %9 = arith.xori %7, %8 : i1
    %10 = arith.andi %9, %6 : i1
    %11 = arith.addi %5, %4 : i32
    %12 = arith.select %10, %11, %5 : i32
    %c8_i32 = arith.constant 8 : i32
    %13 = arith.cmpi slt, %arg1, %c8_i32 : i32
    %14 = arith.extui %13 : i1 to i32
    %c0_i32_5 = arith.constant 0 : i32
    %15 = arith.cmpi ne, %14, %c0_i32_5 : i32
    scf.if %15 {
      %c0 = arith.constant 0 : index
      %c0_10 = arith.constant 0 : index
      %c0_11 = arith.constant 0 : index
      %22 = vector.load %arg3[%c0, %c0_10, %c0_11] : memref<1x2x32xf32, #tpu.memory_space<vmem>>, vector<1x1x32xf32>
      %23 = vector.shape_cast %22 : vector<1x1x32xf32> to vector<1x32xf32>
      %c0_12 = arith.constant 0 : index
      %c1 = arith.constant 1 : index
      %c0_13 = arith.constant 0 : index
      %24 = vector.load %arg3[%c0_12, %c1, %c0_13] : memref<1x2x32xf32, #tpu.memory_space<vmem>>, vector<1x1x32xf32>
      %25 = vector.shape_cast %24 : vector<1x1x32xf32> to vector<1x32xf32>
      %c0_14 = arith.constant 0 : index
      %c0_15 = arith.constant 0 : index
      %c0_16 = arith.constant 0 : index
      %c0_17 = arith.constant 0 : index
      %c0_18 = arith.constant 0 : index
      %26 = vector.load %arg2[%c0_14, %c0_15, %c0_16, %c0_17, %c0_18] : memref<1x1x8x8x32xbf16, #tpu.memory_space<vmem>>, vector<1x1x8x8x32xbf16>
      %27 = vector.shape_cast %26 : vector<1x1x8x8x32xbf16> to vector<8x8x32xbf16>
      %28 = arith.extf %27 : vector<8x8x32xbf16> to vector<8x8x32xf32>
      %29 = vector.shape_cast %23 : vector<1x32xf32> to vector<1x1x32xf32>
      %30 = vector.broadcast %29 : vector<1x1x32xf32> to vector<8x8x32xf32>
      %31 = arith.mulf %28, %30 : vector<8x8x32xf32>
      %32 = vector.shape_cast %25 : vector<1x32xf32> to vector<1x1x32xf32>
      %33 = vector.broadcast %32 : vector<1x1x32xf32> to vector<8x8x32xf32>
      %34 = arith.addf %31, %33 : vector<8x8x32xf32>
      %35 = arith.truncf %34 : vector<8x8x32xf32> to vector<8x8x32xbf16>
      %36 = arith.index_cast %12 : i32 to index
      %c1_19 = arith.constant 1 : index
      %c1_20 = arith.constant 1 : index
      %c0_21 = arith.constant 0 : index
      %37 = vector.load %arg8[%36, %c1_19, %c1_20, %c0_21] : memref<3x10x10x32xbf16, #tpu.memory_space<vmem>>, vector<1x8x8x32xbf16>
      %38 = vector.shape_cast %37 : vector<1x8x8x32xbf16> to vector<8x8x32xbf16>
      %39 = vector.shape_cast %35 : vector<8x8x32xbf16> to vector<1x8x8x32xbf16>
      tpu.vector_store %arg8[%36, %c1_19, %c1_20, %c0_21], %39 {strides = array<i32>} : memref<3x10x10x32xbf16, #tpu.memory_space<vmem>>, vector<1x8x8x32xbf16>,
    } else {
    }
    %c8_i32_6 = arith.constant 8 : i32
    %16 = arith.cmpi sge, %arg1, %c8_i32_6 : i32
    %17 = arith.extui %16 : i1 to i32
    %c0_i32_7 = arith.constant 0 : i32
    %18 = arith.cmpi ne, %17, %c0_i32_7 : i32
    scf.if %18 {
      %cst = arith.constant 0.000000e+00 : bf16
      %22 = vector.broadcast %cst : bf16 to vector<8x8x32xbf16>
      %23 = arith.index_cast %12 : i32 to index
      %c1 = arith.constant 1 : index
      %c1_10 = arith.constant 1 : index
      %c0 = arith.constant 0 : index
      %24 = vector.load %arg8[%23, %c1, %c1_10, %c0] : memref<3x10x10x32xbf16, #tpu.memory_space<vmem>>, vector<1x8x8x32xbf16>
      %25 = vector.shape_cast %24 : vector<1x8x8x32xbf16> to vector<8x8x32xbf16>
      %26 = vector.shape_cast %22 : vector<8x8x32xbf16> to vector<1x8x8x32xbf16>
      tpu.vector_store %arg8[%23, %c1, %c1_10, %c0], %26 {strides = array<i32>} : memref<3x10x10x32xbf16, #tpu.memory_space<vmem>>, vector<1x8x8x32xbf16>,
    } else {
    }
    %c1_i32_8 = arith.constant 1 : i32
    %19 = arith.cmpi sge, %arg1, %c1_i32_8 : i32
    %20 = arith.extui %19 : i1 to i32
    %c0_i32_9 = arith.constant 0 : i32
    %21 = arith.cmpi ne, %20, %c0_i32_9 : i32
    scf.if %21 {
      %cst = arith.constant 0.000000e+00 : f32
      %22 = vector.broadcast %cst : f32 to vector<64x32xf32>
      %c1_i32_10 = arith.constant 1 : i32
      %23 = arith.addi %arg1, %c1_i32_10 : i32
      %c0_i32_11 = arith.constant 0 : i32
      %24 = arith.addi %23, %c0_i32_11 : i32
      %c3_i32_12 = arith.constant 3 : i32
      %c0_i32_13 = arith.constant 0 : i32
      %25 = arith.cmpi eq, %c3_i32_12, %c0_i32_13 : i32
      %c1_i32_14 = arith.constant 1 : i32
      %26 = arith.select %25, %c1_i32_14, %c3_i32_12 : i32
      %27 = arith.remsi %24, %26 : i32
      %c0_i32_15 = arith.constant 0 : i32
      %28 = arith.cmpi ne, %27, %c0_i32_15 : i32
      %c0_i32_16 = arith.constant 0 : i32
      %29 = arith.cmpi slt, %27, %c0_i32_16 : i32
      %c0_i32_17 = arith.constant 0 : i32
      %30 = arith.cmpi slt, %26, %c0_i32_17 : i32
      %31 = arith.xori %29, %30 : i1
      %32 = arith.andi %31, %28 : i1
      %33 = arith.addi %27, %26 : i32
      %34 = arith.select %32, %33, %27 : i32
      %35 = arith.index_cast %34 : i32 to index
      %c0 = arith.constant 0 : index
      %c0_18 = arith.constant 0 : index
      %c0_19 = arith.constant 0 : index
      %36 = vector.load %arg8[%35, %c0, %c0_18, %c0_19] : memref<3x10x10x32xbf16, #tpu.memory_space<vmem>>, vector<1x8x10x32xbf16>
      %37 = vector.shape_cast %36 : vector<1x8x10x32xbf16> to vector<8x10x32xbf16>
      %38 = vector.extract_strided_slice %37 {offsets = [0, 0, 0], sizes = [8, 8, 32], strides = [1, 1, 1]} : vector<8x10x32xbf16> to vector<8x8x32xbf16>
      %39 = vector.extract_strided_slice %37 {offsets = [0, 1, 0], sizes = [8, 8, 32], strides = [1, 1, 1]} : vector<8x10x32xbf16> to vector<8x8x32xbf16>
      %40 = vector.extract_strided_slice %37 {offsets = [0, 2, 0], sizes = [8, 8, 32], strides = [1, 1, 1]} : vector<8x10x32xbf16> to vector<8x8x32xbf16>
      %41 = tpu.concatenate %38, %39, %40 in 2 : vector<8x8x32xbf16>, vector<8x8x32xbf16>, vector<8x8x32xbf16> -> vector<8x8x96xbf16>
      %42 = vector.shape_cast %41 : vector<8x8x96xbf16> to vector<64x96xbf16>
      %c0_20 = arith.constant 0 : index
      %c0_21 = arith.constant 0 : index
      %c0_22 = arith.constant 0 : index
      %c0_23 = arith.constant 0 : index
      %43 = vector.load %arg9[%c0_20, %c0_21, %c0_22, %c0_23] : memref<3x3x96x32xbf16, #tpu.memory_space<vmem>>, vector<1x1x96x32xbf16>
      %44 = vector.shape_cast %43 : vector<1x1x96x32xbf16> to vector<96x32xbf16>
      %cst_24 = arith.constant dense<0.000000e+00> : vector<64x32xf32>
      %45 = tpu.matmul %42, %44, %cst_24 {dimension_numbers = #tpu.dot_dimension_numbers<[1], [0], [0], [1], [0, 0, 1, 1], [], []>} : vector<64x96xbf16>, vector<96x32xbf16>, vector<64x32xf32> -> vector<64x32xf32>
      %46 = arith.addf %22, %45 : vector<64x32xf32>
      %47 = arith.index_cast %34 : i32 to index
      %c1 = arith.constant 1 : index
      %c0_25 = arith.constant 0 : index
      %c0_26 = arith.constant 0 : index
      %48 = vector.load %arg8[%47, %c1, %c0_25, %c0_26] : memref<3x10x10x32xbf16, #tpu.memory_space<vmem>>, vector<1x8x10x32xbf16>
      %49 = vector.shape_cast %48 : vector<1x8x10x32xbf16> to vector<8x10x32xbf16>
      %50 = vector.extract_strided_slice %49 {offsets = [0, 0, 0], sizes = [8, 8, 32], strides = [1, 1, 1]} : vector<8x10x32xbf16> to vector<8x8x32xbf16>
      %51 = vector.extract_strided_slice %49 {offsets = [0, 1, 0], sizes = [8, 8, 32], strides = [1, 1, 1]} : vector<8x10x32xbf16> to vector<8x8x32xbf16>
      %52 = vector.extract_strided_slice %49 {offsets = [0, 2, 0], sizes = [8, 8, 32], strides = [1, 1, 1]} : vector<8x10x32xbf16> to vector<8x8x32xbf16>
      %53 = tpu.concatenate %50, %51, %52 in 2 : vector<8x8x32xbf16>, vector<8x8x32xbf16>, vector<8x8x32xbf16> -> vector<8x8x96xbf16>
      %54 = vector.shape_cast %53 : vector<8x8x96xbf16> to vector<64x96xbf16>
      %c0_27 = arith.constant 0 : index
      %c1_28 = arith.constant 1 : index
      %c0_29 = arith.constant 0 : index
      %c0_30 = arith.constant 0 : index
      %55 = vector.load %arg9[%c0_27, %c1_28, %c0_29, %c0_30] : memref<3x3x96x32xbf16, #tpu.memory_space<vmem>>, vector<1x1x96x32xbf16>
      %56 = vector.shape_cast %55 : vector<1x1x96x32xbf16> to vector<96x32xbf16>
      %cst_31 = arith.constant dense<0.000000e+00> : vector<64x32xf32>
      %57 = tpu.matmul %54, %56, %cst_31 {dimension_numbers = #tpu.dot_dimension_numbers<[1], [0], [0], [1], [0, 0, 1, 1], [], []>} : vector<64x96xbf16>, vector<96x32xbf16>, vector<64x32xf32> -> vector<64x32xf32>
      %58 = arith.addf %46, %57 : vector<64x32xf32>
      %59 = arith.index_cast %34 : i32 to index
      %c2 = arith.constant 2 : index
      %c0_32 = arith.constant 0 : index
      %c0_33 = arith.constant 0 : index
      %60 = vector.load %arg8[%59, %c2, %c0_32, %c0_33] : memref<3x10x10x32xbf16, #tpu.memory_space<vmem>>, vector<1x8x10x32xbf16>
      %61 = vector.shape_cast %60 : vector<1x8x10x32xbf16> to vector<8x10x32xbf16>
      %62 = vector.extract_strided_slice %61 {offsets = [0, 0, 0], sizes = [8, 8, 32], strides = [1, 1, 1]} : vector<8x10x32xbf16> to vector<8x8x32xbf16>
      %63 = vector.extract_strided_slice %61 {offsets = [0, 1, 0], sizes = [8, 8, 32], strides = [1, 1, 1]} : vector<8x10x32xbf16> to vector<8x8x32xbf16>
      %64 = vector.extract_strided_slice %61 {offsets = [0, 2, 0], sizes = [8, 8, 32], strides = [1, 1, 1]} : vector<8x10x32xbf16> to vector<8x8x32xbf16>
      %65 = tpu.concatenate %62, %63, %64 in 2 : vector<8x8x32xbf16>, vector<8x8x32xbf16>, vector<8x8x32xbf16> -> vector<8x8x96xbf16>
      %66 = vector.shape_cast %65 : vector<8x8x96xbf16> to vector<64x96xbf16>
      %c0_34 = arith.constant 0 : index
      %c2_35 = arith.constant 2 : index
      %c0_36 = arith.constant 0 : index
      %c0_37 = arith.constant 0 : index
      %67 = vector.load %arg9[%c0_34, %c2_35, %c0_36, %c0_37] : memref<3x3x96x32xbf16, #tpu.memory_space<vmem>>, vector<1x1x96x32xbf16>
      %68 = vector.shape_cast %67 : vector<1x1x96x32xbf16> to vector<96x32xbf16>
      %cst_38 = arith.constant dense<0.000000e+00> : vector<64x32xf32>
      %69 = tpu.matmul %66, %68, %cst_38 {dimension_numbers = #tpu.dot_dimension_numbers<[1], [0], [0], [1], [0, 0, 1, 1], [], []>} : vector<64x96xbf16>, vector<96x32xbf16>, vector<64x32xf32> -> vector<64x32xf32>
      %70 = arith.addf %58, %69 : vector<64x32xf32>
      %c1_i32_39 = arith.constant 1 : i32
      %71 = arith.addi %arg1, %c1_i32_39 : i32
      %c1_i32_40 = arith.constant 1 : i32
      %72 = arith.addi %71, %c1_i32_40 : i32
      %c3_i32_41 = arith.constant 3 : i32
      %c0_i32_42 = arith.constant 0 : i32
      %73 = arith.cmpi eq, %c3_i32_41, %c0_i32_42 : i32
      %c1_i32_43 = arith.constant 1 : i32
      %74 = arith.select %73, %c1_i32_43, %c3_i32_41 : i32
      %75 = arith.remsi %72, %74 : i32
      %c0_i32_44 = arith.constant 0 : i32
      %76 = arith.cmpi ne, %75, %c0_i32_44 : i32
      %c0_i32_45 = arith.constant 0 : i32
      %77 = arith.cmpi slt, %75, %c0_i32_45 : i32
      %c0_i32_46 = arith.constant 0 : i32
      %78 = arith.cmpi slt, %74, %c0_i32_46 : i32
      %79 = arith.xori %77, %78 : i1
      %80 = arith.andi %79, %76 : i1
      %81 = arith.addi %75, %74 : i32
      %82 = arith.select %80, %81, %75 : i32
      %83 = arith.index_cast %82 : i32 to index
      %c0_47 = arith.constant 0 : index
      %c0_48 = arith.constant 0 : index
      %c0_49 = arith.constant 0 : index
      %84 = vector.load %arg8[%83, %c0_47, %c0_48, %c0_49] : memref<3x10x10x32xbf16, #tpu.memory_space<vmem>>, vector<1x8x10x32xbf16>
      %85 = vector.shape_cast %84 : vector<1x8x10x32xbf16> to vector<8x10x32xbf16>
      %86 = vector.extract_strided_slice %85 {offsets = [0, 0, 0], sizes = [8, 8, 32], strides = [1, 1, 1]} : vector<8x10x32xbf16> to vector<8x8x32xbf16>
      %87 = vector.extract_strided_slice %85 {offsets = [0, 1, 0], sizes = [8, 8, 32], strides = [1, 1, 1]} : vector<8x10x32xbf16> to vector<8x8x32xbf16>
      %88 = vector.extract_strided_slice %85 {offsets = [0, 2, 0], sizes = [8, 8, 32], strides = [1, 1, 1]} : vector<8x10x32xbf16> to vector<8x8x32xbf16>
      %89 = tpu.concatenate %86, %87, %88 in 2 : vector<8x8x32xbf16>, vector<8x8x32xbf16>, vector<8x8x32xbf16> -> vector<8x8x96xbf16>
      %90 = vector.shape_cast %89 : vector<8x8x96xbf16> to vector<64x96xbf16>
      %c1_50 = arith.constant 1 : index
      %c0_51 = arith.constant 0 : index
      %c0_52 = arith.constant 0 : index
      %c0_53 = arith.constant 0 : index
      %91 = vector.load %arg9[%c1_50, %c0_51, %c0_52, %c0_53] : memref<3x3x96x32xbf16, #tpu.memory_space<vmem>>, vector<1x1x96x32xbf16>
      %92 = vector.shape_cast %91 : vector<1x1x96x32xbf16> to vector<96x32xbf16>
      %cst_54 = arith.constant dense<0.000000e+00> : vector<64x32xf32>
      %93 = tpu.matmul %90, %92, %cst_54 {dimension_numbers = #tpu.dot_dimension_numbers<[1], [0], [0], [1], [0, 0, 1, 1], [], []>} : vector<64x96xbf16>, vector<96x32xbf16>, vector<64x32xf32> -> vector<64x32xf32>
      %94 = arith.addf %70, %93 : vector<64x32xf32>
      %95 = arith.index_cast %82 : i32 to index
      %c1_55 = arith.constant 1 : index
      %c0_56 = arith.constant 0 : index
      %c0_57 = arith.constant 0 : index
      %96 = vector.load %arg8[%95, %c1_55, %c0_56, %c0_57] : memref<3x10x10x32xbf16, #tpu.memory_space<vmem>>, vector<1x8x10x32xbf16>
      %97 = vector.shape_cast %96 : vector<1x8x10x32xbf16> to vector<8x10x32xbf16>
      %98 = vector.extract_strided_slice %97 {offsets = [0, 0, 0], sizes = [8, 8, 32], strides = [1, 1, 1]} : vector<8x10x32xbf16> to vector<8x8x32xbf16>
      %99 = vector.extract_strided_slice %97 {offsets = [0, 1, 0], sizes = [8, 8, 32], strides = [1, 1, 1]} : vector<8x10x32xbf16> to vector<8x8x32xbf16>
      %100 = vector.extract_strided_slice %97 {offsets = [0, 2, 0], sizes = [8, 8, 32], strides = [1, 1, 1]} : vector<8x10x32xbf16> to vector<8x8x32xbf16>
      %101 = tpu.concatenate %98, %99, %100 in 2 : vector<8x8x32xbf16>, vector<8x8x32xbf16>, vector<8x8x32xbf16> -> vector<8x8x96xbf16>
      %102 = vector.shape_cast %101 : vector<8x8x96xbf16> to vector<64x96xbf16>
      %c1_58 = arith.constant 1 : index
      %c1_59 = arith.constant 1 : index
      %c0_60 = arith.constant 0 : index
      %c0_61 = arith.constant 0 : index
      %103 = vector.load %arg9[%c1_58, %c1_59, %c0_60, %c0_61] : memref<3x3x96x32xbf16, #tpu.memory_space<vmem>>, vector<1x1x96x32xbf16>
      %104 = vector.shape_cast %103 : vector<1x1x96x32xbf16> to vector<96x32xbf16>
      %cst_62 = arith.constant dense<0.000000e+00> : vector<64x32xf32>
      %105 = tpu.matmul %102, %104, %cst_62 {dimension_numbers = #tpu.dot_dimension_numbers<[1], [0], [0], [1], [0, 0, 1, 1], [], []>} : vector<64x96xbf16>, vector<96x32xbf16>, vector<64x32xf32> -> vector<64x32xf32>
      %106 = arith.addf %94, %105 : vector<64x32xf32>
      %107 = arith.index_cast %82 : i32 to index
      %c2_63 = arith.constant 2 : index
      %c0_64 = arith.constant 0 : index
      %c0_65 = arith.constant 0 : index
      %108 = vector.load %arg8[%107, %c2_63, %c0_64, %c0_65] : memref<3x10x10x32xbf16, #tpu.memory_space<vmem>>, vector<1x8x10x32xbf16>
      %109 = vector.shape_cast %108 : vector<1x8x10x32xbf16> to vector<8x10x32xbf16>
      %110 = vector.extract_strided_slice %109 {offsets = [0, 0, 0], sizes = [8, 8, 32], strides = [1, 1, 1]} : vector<8x10x32xbf16> to vector<8x8x32xbf16>
      %111 = vector.extract_strided_slice %109 {offsets = [0, 1, 0], sizes = [8, 8, 32], strides = [1, 1, 1]} : vector<8x10x32xbf16> to vector<8x8x32xbf16>
      %112 = vector.extract_strided_slice %109 {offsets = [0, 2, 0], sizes = [8, 8, 32], strides = [1, 1, 1]} : vector<8x10x32xbf16> to vector<8x8x32xbf16>
      %113 = tpu.concatenate %110, %111, %112 in 2 : vector<8x8x32xbf16>, vector<8x8x32xbf16>, vector<8x8x32xbf16> -> vector<8x8x96xbf16>
      %114 = vector.shape_cast %113 : vector<8x8x96xbf16> to vector<64x96xbf16>
      %c1_66 = arith.constant 1 : index
      %c2_67 = arith.constant 2 : index
      %c0_68 = arith.constant 0 : index
      %c0_69 = arith.constant 0 : index
      %115 = vector.load %arg9[%c1_66, %c2_67, %c0_68, %c0_69] : memref<3x3x96x32xbf16, #tpu.memory_space<vmem>>, vector<1x1x96x32xbf16>
      %116 = vector.shape_cast %115 : vector<1x1x96x32xbf16> to vector<96x32xbf16>
      %cst_70 = arith.constant dense<0.000000e+00> : vector<64x32xf32>
      %117 = tpu.matmul %114, %116, %cst_70 {dimension_numbers = #tpu.dot_dimension_numbers<[1], [0], [0], [1], [0, 0, 1, 1], [], []>} : vector<64x96xbf16>, vector<96x32xbf16>, vector<64x32xf32> -> vector<64x32xf32>
      %118 = arith.addf %106, %117 : vector<64x32xf32>
      %c1_i32_71 = arith.constant 1 : i32
      %119 = arith.addi %arg1, %c1_i32_71 : i32
      %c2_i32 = arith.constant 2 : i32
      %120 = arith.addi %119, %c2_i32 : i32
      %c3_i32_72 = arith.constant 3 : i32
      %c0_i32_73 = arith.constant 0 : i32
      %121 = arith.cmpi eq, %c3_i32_72, %c0_i32_73 : i32
      %c1_i32_74 = arith.constant 1 : i32
      %122 = arith.select %121, %c1_i32_74, %c3_i32_72 : i32
      %123 = arith.remsi %120, %122 : i32
      %c0_i32_75 = arith.constant 0 : i32
      %124 = arith.cmpi ne, %123, %c0_i32_75 : i32
      %c0_i32_76 = arith.constant 0 : i32
      %125 = arith.cmpi slt, %123, %c0_i32_76 : i32
      %c0_i32_77 = arith.constant 0 : i32
      %126 = arith.cmpi slt, %122, %c0_i32_77 : i32
      %127 = arith.xori %125, %126 : i1
      %128 = arith.andi %127, %124 : i1
      %129 = arith.addi %123, %122 : i32
      %130 = arith.select %128, %129, %123 : i32
      %131 = arith.index_cast %130 : i32 to index
      %c0_78 = arith.constant 0 : index
      %c0_79 = arith.constant 0 : index
      %c0_80 = arith.constant 0 : index
      %132 = vector.load %arg8[%131, %c0_78, %c0_79, %c0_80] : memref<3x10x10x32xbf16, #tpu.memory_space<vmem>>, vector<1x8x10x32xbf16>
      %133 = vector.shape_cast %132 : vector<1x8x10x32xbf16> to vector<8x10x32xbf16>
      %134 = vector.extract_strided_slice %133 {offsets = [0, 0, 0], sizes = [8, 8, 32], strides = [1, 1, 1]} : vector<8x10x32xbf16> to vector<8x8x32xbf16>
      %135 = vector.extract_strided_slice %133 {offsets = [0, 1, 0], sizes = [8, 8, 32], strides = [1, 1, 1]} : vector<8x10x32xbf16> to vector<8x8x32xbf16>
      %136 = vector.extract_strided_slice %133 {offsets = [0, 2, 0], sizes = [8, 8, 32], strides = [1, 1, 1]} : vector<8x10x32xbf16> to vector<8x8x32xbf16>
      %137 = tpu.concatenate %134, %135, %136 in 2 : vector<8x8x32xbf16>, vector<8x8x32xbf16>, vector<8x8x32xbf16> -> vector<8x8x96xbf16>
      %138 = vector.shape_cast %137 : vector<8x8x96xbf16> to vector<64x96xbf16>
      %c2_81 = arith.constant 2 : index
      %c0_82 = arith.constant 0 : index
      %c0_83 = arith.constant 0 : index
      %c0_84 = arith.constant 0 : index
      %139 = vector.load %arg9[%c2_81, %c0_82, %c0_83, %c0_84] : memref<3x3x96x32xbf16, #tpu.memory_space<vmem>>, vector<1x1x96x32xbf16>
      %140 = vector.shape_cast %139 : vector<1x1x96x32xbf16> to vector<96x32xbf16>
      %cst_85 = arith.constant dense<0.000000e+00> : vector<64x32xf32>
      %141 = tpu.matmul %138, %140, %cst_85 {dimension_numbers = #tpu.dot_dimension_numbers<[1], [0], [0], [1], [0, 0, 1, 1], [], []>} : vector<64x96xbf16>, vector<96x32xbf16>, vector<64x32xf32> -> vector<64x32xf32>
      %142 = arith.addf %118, %141 : vector<64x32xf32>
      %143 = arith.index_cast %130 : i32 to index
      %c1_86 = arith.constant 1 : index
      %c0_87 = arith.constant 0 : index
      %c0_88 = arith.constant 0 : index
      %144 = vector.load %arg8[%143, %c1_86, %c0_87, %c0_88] : memref<3x10x10x32xbf16, #tpu.memory_space<vmem>>, vector<1x8x10x32xbf16>
      %145 = vector.shape_cast %144 : vector<1x8x10x32xbf16> to vector<8x10x32xbf16>
      %146 = vector.extract_strided_slice %145 {offsets = [0, 0, 0], sizes = [8, 8, 32], strides = [1, 1, 1]} : vector<8x10x32xbf16> to vector<8x8x32xbf16>
      %147 = vector.extract_strided_slice %145 {offsets = [0, 1, 0], sizes = [8, 8, 32], strides = [1, 1, 1]} : vector<8x10x32xbf16> to vector<8x8x32xbf16>
      %148 = vector.extract_strided_slice %145 {offsets = [0, 2, 0], sizes = [8, 8, 32], strides = [1, 1, 1]} : vector<8x10x32xbf16> to vector<8x8x32xbf16>
      %149 = tpu.concatenate %146, %147, %148 in 2 : vector<8x8x32xbf16>, vector<8x8x32xbf16>, vector<8x8x32xbf16> -> vector<8x8x96xbf16>
      %150 = vector.shape_cast %149 : vector<8x8x96xbf16> to vector<64x96xbf16>
      %c2_89 = arith.constant 2 : index
      %c1_90 = arith.constant 1 : index
      %c0_91 = arith.constant 0 : index
      %c0_92 = arith.constant 0 : index
      %151 = vector.load %arg9[%c2_89, %c1_90, %c0_91, %c0_92] : memref<3x3x96x32xbf16, #tpu.memory_space<vmem>>, vector<1x1x96x32xbf16>
      %152 = vector.shape_cast %151 : vector<1x1x96x32xbf16> to vector<96x32xbf16>
      %cst_93 = arith.constant dense<0.000000e+00> : vector<64x32xf32>
      %153 = tpu.matmul %150, %152, %cst_93 {dimension_numbers = #tpu.dot_dimension_numbers<[1], [0], [0], [1], [0, 0, 1, 1], [], []>} : vector<64x96xbf16>, vector<96x32xbf16>, vector<64x32xf32> -> vector<64x32xf32>
      %154 = arith.addf %142, %153 : vector<64x32xf32>
      %155 = arith.index_cast %130 : i32 to index
      %c2_94 = arith.constant 2 : index
      %c0_95 = arith.constant 0 : index
      %c0_96 = arith.constant 0 : index
      %156 = vector.load %arg8[%155, %c2_94, %c0_95, %c0_96] : memref<3x10x10x32xbf16, #tpu.memory_space<vmem>>, vector<1x8x10x32xbf16>
      %157 = vector.shape_cast %156 : vector<1x8x10x32xbf16> to vector<8x10x32xbf16>
      %158 = vector.extract_strided_slice %157 {offsets = [0, 0, 0], sizes = [8, 8, 32], strides = [1, 1, 1]} : vector<8x10x32xbf16> to vector<8x8x32xbf16>
      %159 = vector.extract_strided_slice %157 {offsets = [0, 1, 0], sizes = [8, 8, 32], strides = [1, 1, 1]} : vector<8x10x32xbf16> to vector<8x8x32xbf16>
      %160 = vector.extract_strided_slice %157 {offsets = [0, 2, 0], sizes = [8, 8, 32], strides = [1, 1, 1]} : vector<8x10x32xbf16> to vector<8x8x32xbf16>
      %161 = tpu.concatenate %158, %159, %160 in 2 : vector<8x8x32xbf16>, vector<8x8x32xbf16>, vector<8x8x32xbf16> -> vector<8x8x96xbf16>
      %162 = vector.shape_cast %161 : vector<8x8x96xbf16> to vector<64x96xbf16>
      %c2_97 = arith.constant 2 : index
      %c2_98 = arith.constant 2 : index
      %c0_99 = arith.constant 0 : index
      %c0_100 = arith.constant 0 : index
      %163 = vector.load %arg9[%c2_97, %c2_98, %c0_99, %c0_100] : memref<3x3x96x32xbf16, #tpu.memory_space<vmem>>, vector<1x1x96x32xbf16>
      %164 = vector.shape_cast %163 : vector<1x1x96x32xbf16> to vector<96x32xbf16>
      %cst_101 = arith.constant dense<0.000000e+00> : vector<64x32xf32>
      %165 = tpu.matmul %162, %164, %cst_101 {dimension_numbers = #tpu.dot_dimension_numbers<[1], [0], [0], [1], [0, 0, 1, 1], [], []>} : vector<64x96xbf16>, vector<96x32xbf16>, vector<64x32xf32> -> vector<64x32xf32>
      %166 = arith.addf %154, %165 : vector<64x32xf32>
      %cst_102 = arith.constant 0.000000e+00 : f32
      %167 = vector.broadcast %cst_102 : f32 to vector<64x32xf32>
      %168 = arith.maximumf %166, %167 : vector<64x32xf32>
      %169 = vector.shape_cast %168 : vector<64x32xf32> to vector<8x8x32xf32>
      %c0_103 = arith.constant 0 : index
      %c0_104 = arith.constant 0 : index
      %c0_105 = arith.constant 0 : index
      %c0_106 = arith.constant 0 : index
      %c0_107 = arith.constant 0 : index
      %170 = vector.load %arg5[%c0_103, %c0_104, %c0_105, %c0_106, %c0_107] : memref<1x1x8x8x32xf32, #tpu.memory_space<vmem>>, vector<1x1x8x8x32xf32>
      %171 = vector.shape_cast %170 : vector<1x1x8x8x32xf32> to vector<8x8x32xf32>
      %172 = vector.shape_cast %169 : vector<8x8x32xf32> to vector<1x1x8x8x32xf32>
      tpu.vector_store %arg5[%c0_103, %c0_104, %c0_105, %c0_106, %c0_107], %172 {strides = array<i32>} : memref<1x1x8x8x32xf32, #tpu.memory_space<vmem>>, vector<1x1x8x8x32xf32>,
      %c0_108 = arith.constant 0 : index
      %c0_109 = arith.constant 0 : index
      %c0_110 = arith.constant 0 : index
      %173 = vector.load %arg6[%c0_108, %c0_109, %c0_110] : memref<1x1x32xf32, #tpu.memory_space<vmem>>, vector<1x1x32xf32>
      %cst_111 = arith.constant dense<0.000000e+00> : vector<32xf32>
      %174 = vector.multi_reduction <add>, %169, %cst_111 [0, 1] : vector<8x8x32xf32> to vector<32xf32>
      %175 = vector.shape_cast %174 : vector<32xf32> to vector<1x1x32xf32>
      %176 = arith.addf %173, %175 : vector<1x1x32xf32>
      %c0_112 = arith.constant 0 : index
      %c0_113 = arith.constant 0 : index
      %c0_114 = arith.constant 0 : index
      %177 = vector.load %arg6[%c0_112, %c0_113, %c0_114] : memref<1x1x32xf32, #tpu.memory_space<vmem>>, vector<1x1x32xf32>
      tpu.vector_store %arg6[%c0_112, %c0_113, %c0_114], %176 {strides = array<i32>} : memref<1x1x32xf32, #tpu.memory_space<vmem>>, vector<1x1x32xf32>,
      %c0_115 = arith.constant 0 : index
      %c0_116 = arith.constant 0 : index
      %c0_117 = arith.constant 0 : index
      %178 = vector.load %arg7[%c0_115, %c0_116, %c0_117] : memref<1x1x32xf32, #tpu.memory_space<vmem>>, vector<1x1x32xf32>
      %179 = arith.mulf %169, %169 : vector<8x8x32xf32>
      %cst_118 = arith.constant dense<0.000000e+00> : vector<32xf32>
      %180 = vector.multi_reduction <add>, %179, %cst_118 [0, 1] : vector<8x8x32xf32> to vector<32xf32>
      %181 = vector.shape_cast %180 : vector<32xf32> to vector<1x1x32xf32>
      %182 = arith.addf %178, %181 : vector<1x1x32xf32>
      %c0_119 = arith.constant 0 : index
      %c0_120 = arith.constant 0 : index
      %c0_121 = arith.constant 0 : index
      %183 = vector.load %arg7[%c0_119, %c0_120, %c0_121] : memref<1x1x32xf32, #tpu.memory_space<vmem>>, vector<1x1x32xf32>
      tpu.vector_store %arg7[%c0_119, %c0_120, %c0_121], %182 {strides = array<i32>} : memref<1x1x32xf32, #tpu.memory_space<vmem>>, vector<1x1x32xf32>,
    } else {
    }
    return
  }
  func.func @transform_0(%arg0: i32, %arg1: i32) -> (i32, i32, i32, i32, i32) {
    %c7_i32 = arith.constant 7 : i32
    %0 = arith.minsi %arg1, %c7_i32 : i32
    %c0_i32 = arith.constant 0 : i32
    %c0_i32_0 = arith.constant 0 : i32
    %c0_i32_1 = arith.constant 0 : i32
    %c0_i32_2 = arith.constant 0 : i32
    return %arg0, %0, %c0_i32, %c0_i32_0, %c0_i32_1 : i32, i32, i32, i32, i32
  }
  func.func @transform_1(%arg0: i32, %arg1: i32) -> (i32, i32, i32) {
    %c0_i32 = arith.constant 0 : i32
    %c0_i32_0 = arith.constant 0 : i32
    %c0_i32_1 = arith.constant 0 : i32
    return %arg0, %c0_i32, %c0_i32_0 : i32, i32, i32
  }
  func.func @transform_3(%arg0: i32, %arg1: i32) -> (i32, i32, i32, i32, i32) {
    %c1_i32 = arith.constant 1 : i32
    %0 = arith.subi %arg1, %c1_i32 : i32
    %c0_i32 = arith.constant 0 : i32
    %1 = arith.maxsi %0, %c0_i32 : i32
    %c0_i32_0 = arith.constant 0 : i32
    %c0_i32_1 = arith.constant 0 : i32
    %c0_i32_2 = arith.constant 0 : i32
    %c0_i32_3 = arith.constant 0 : i32
    return %arg0, %1, %c0_i32_0, %c0_i32_1, %c0_i32_2 : i32, i32, i32, i32, i32
  }
  func.func @transform_4(%arg0: i32, %arg1: i32) -> (i32, i32, i32) {
    %c0_i32 = arith.constant 0 : i32
    %c0_i32_0 = arith.constant 0 : i32
    %c0_i32_1 = arith.constant 0 : i32
    return %arg0, %c0_i32, %c0_i32_0 : i32, i32, i32
  }
  func.func @transform_5(%arg0: i32, %arg1: i32) -> (i32, i32, i32) {
    %c0_i32 = arith.constant 0 : i32
    %c0_i32_0 = arith.constant 0 : i32
    %c0_i32_1 = arith.constant 0 : i32
    return %arg0, %c0_i32, %c0_i32_0 : i32, i32, i32
  }
}

</mosaic_0001>

<llo_original>
// kernel: unet_decoder_forward.3
$region0: #{unet_decoder_forward.3}
  #allocation0 [shape = 'u32[]', space=smem, size = 0x4, offset = 0x4, fixed_abs, tag = 'smem constant byte address 0x4 - core index']
  #allocation1 [shape = 'u32[144,128]{1,0:T(1,128)}', space=vmem, size = 0x12000, scoped, tag = 'internal scratch']
  %s0 = inlined_call_operand.vmem [shape: bf16[2,8,8,8,32], index: 0, kind: input, shape index: {}]
  %s1 = inlined_call_operand.vmem [shape: f32[2,1,1,32], index: 1, kind: output, shape index: {0}]
  %s2 = inlined_call_operand.vmem [shape: f32[2,1,1,32], index: 2, kind: output, shape index: {1}]
  %3 = xla_tuple %s1, %s2
  %s4 = sld [smem:[#allocation0]]
  $region45: #{unet_decoder_forward.3} parent=0
    _
  %s6 = ssub.s32 1, %s4
  %s7 = scalar_select 0, %s6, %s4
  loop: start=0, step=1, limit=4
  $region2: #{unet_decoder_forward.3} parent=0 // loop_pre_header
    _
  $region3: #{unet_decoder_forward.3} parent=0 // loop_header
    %s9 = sphi 0, %s13
    %p10 = scmp.ge.s32.totalorder %s9, 4
    %s16 = sphi 0, %s28
    %s17 = sphi 0, %s24
    %s18 = sphi 0, %s16
    %s19 = sphi 0, %s17
    %s20 = sphi 0, %s18
    %s21 = sphi 0, %s19
    %s33 = sphi 0, %s35
    %s36 = sphi 0, %s33
    %s37 = sphi 0, %s36
    %s53 = sphi 0, %s37
    %s61 = sphi 0, %s63
    %s64 = sphi 0, %s61
    %s65 = sphi 0, %s64
    %s81 = sphi 0, %s65
    %s89 = sphi 0, %s91
    %s92 = sphi 0, %s89
    %s93 = sphi 0, %s92
    %s109 = sphi 0, %s93
  $region4: #{unet_decoder_forward.3} parent=0 // loop_header_branch
    %12 = sbr.rel (%p10) target = $region8
  $region5: #{unet_decoder_forward.3} parent=0 // loop_body
    %s14 = ssub.s32 %s9, 1
    %s15 = ssub.s32 %s9, 2
    %s22 = sadd.s32 1, %s17
    %p23 = scmp.ge.s32.totalorder %s22, 1
    %s24 = scalar_select %p23, 0, %s22
    %s25 = sadd.s32 1, %s16
    %s26 = scalar_select %p23, %s25, %s16
    %p27 = scmp.ge.s32.totalorder %s26, 2
    %s28 = scalar_select %p27, 0, %s26
    %s29 = ssub.s32 %s16, %s28
    %s30 = ssub.s32 %s17, %s24
    %s31 = sor.u32 %s29, %s30
    %p32 = scmp.eq.s32.totalorder %s31, 0
    %s34 = sadd.s32 %s33, 1
    %s35 = scalar_select %p32, %s33, %s34
    %p38 = pneg %p32
    %p39 = scmp.eq.s32.totalorder %s9, 1
    %p40 = por %p38, %p39
    %p41 = scmp.ne.s32.totalorder %s33, %s36
    %p42 = scmp.eq.s32.totalorder %s9, 0
    %p43 = por %p41, %p42
    %p44 = scmp.ne.s32.totalorder %s33, %s36
    %p45 = scmp.eq.s32.totalorder %s14, 1
    %p46 = por %p44, %p45
    %p47 = scmp.ne.s32.totalorder %s36, %s37
    %p48 = scmp.eq.s32.totalorder %s14, 0
    %p49 = por %p47, %p48
    %p50 = scmp.ne.s32.totalorder %s36, %s37
    %p51 = scmp.eq.s32.totalorder %s15, 1
    %p52 = por %p50, %p51
    %p54 = scmp.ne.s32.totalorder %s37, %s53
    %p55 = scmp.eq.s32.totalorder %s15, 0
    %p56 = por %p54, %p55
    %s57 = ssub.s32 %s16, %s28
    %s58 = ssub.s32 %s17, %s24
    %s59 = sor.u32 %s57, %s58
    %p60 = scmp.eq.s32.totalorder %s59, 0
    %s62 = sadd.s32 %s61, 1
    %s63 = scalar_select %p60, %s61, %s62
    %p66 = pneg %p60
    %p67 = scmp.eq.s32.totalorder %s9, 1
    %p68 = por %p66, %p67
    %p69 = scmp.ne.s32.totalorder %s61, %s64
    %p70 = scmp.eq.s32.totalorder %s9, 0
    %p71 = por %p69, %p70
    %p72 = scmp.ne.s32.totalorder %s61, %s64
    %p73 = scmp.eq.s32.totalorder %s14, 1
    %p74 = por %p72, %p73
    %p75 = scmp.ne.s32.totalorder %s64, %s65
    %p76 = scmp.eq.s32.totalorder %s14, 0
    %p77 = por %p75, %p76
    %p78 = scmp.ne.s32.totalorder %s64, %s65
    %p79 = scmp.eq.s32.totalorder %s15, 1
    %p80 = por %p78, %p79
    %p82 = scmp.ne.s32.totalorder %s65, %s81
    %p83 = scmp.eq.s32.totalorder %s15, 0
    %p84 = por %p82, %p83
    %s85 = ssub.s32 %s16, %s28
    %s86 = ssub.s32 %s17, %s24
    %s87 = sor.u32 %s85, %s86
    %p88 = scmp.eq.s32.totalorder %s87, 0
    %s90 = sadd.s32 %s89, 1
    %s91 = scalar_select %p88, %s89, %s90
    %p94 = pneg %p88
    %p95 = scmp.eq.s32.totalorder %s9, 1
    %p96 = por %p94, %p95
    %p97 = scmp.ne.s32.totalorder %s89, %s92
    %p98 = scmp.eq.s32.totalorder %s9, 0
    %p99 = por %p97, %p98
    %p100 = scmp.ne.s32.totalorder %s89, %s92
    %p101 = scmp.eq.s32.totalorder %s14, 1
    %p102 = por %p100, %p101
    %p103 = scmp.ne.s32.totalorder %s92, %s93
    %p104 = scmp.eq.s32.totalorder %s14, 0
    %p105 = por %p103, %p104
    %p106 = scmp.ne.s32.totalorder %s92, %s93
    %p107 = scmp.eq.s32.totalorder %s15, 1
    %p108 = por %p106, %p107
    %p110 = scmp.ne.s32.totalorder %s93, %s109
    %p111 = scmp.eq.s32.totalorder %s15, 0
    %p112 = por %p110, %p111
    %p113 = scmp.le.s32.totalorder 1, %s9
    %p114 = scmp.lt.s32.totalorder %s9, 3
    %p115 = pnand %p113, %p114
    %p116 = pneg %p115
    // Predicated region
    $region9: #{unet_decoder_forward.3} parent=5 // pred_check
      _
    $region10: #{unet_decoder_forward.3} parent=5 // pred_check_branch
      %118 = sbr.rel (%p115) target = $region12
    $region11: #{unet_decoder_forward.3} parent=5 // pred_region
      %s119 = ssub.s32 %s9, 1
    $region12: #{unet_decoder_forward.3} parent=5 // pred_fallthru
      _
    %p120 = scmp.lt.s32.totalorder %s9, 2
    // Predicated region
    $region13: #{unet_decoder_forward.3} parent=5 // pred_check
      %p121 = pneg %p120
    $region14: #{unet_decoder_forward.3} parent=5 // pred_check_branch
      %123 = sbr.rel (%p121) target = $region16
    $region15: #{unet_decoder_forward.3} parent=5 // pred_region
      // Predicated region
      $region17: #{unet_decoder_forward.3} parent=15 // pred_check
        %p124 = pneg %p43
      $region18: #{unet_decoder_forward.3} parent=15 // pred_check_branch
        %126 = sbr.rel (%p124) target = $region20
      $region19: #{unet_decoder_forward.3} parent=15 // pred_region
        %s127 = smul.u32 8, %s17
        %p128 = scmp.lt.s32.totalorder %s16, 1
        %s129 = scalar_select %p128, %s16, 1
        %p130 = scmp.lt.s32.totalorder %s127, 7
        %s131 = scalar_select %p130, %s127, 7
        %s132 = smul.addr %s131, 8
        %s133 = smul.addr %s129, 64
        %s134 = sadd.s32 %s132, %s133
        %s135 = smul.addr %s134, 4
        %s136 = scalar_lea.vmem %s0, %s135
        %s137 = smul.u32 8, %s17
      $region20: #{unet_decoder_forward.3} parent=15 // pred_fallthru
        _
    $region16: #{unet_decoder_forward.3} parent=5 // pred_fallthru
      _
    %p138 = scmp.le.s32.totalorder 1, %s9
    %p139 = scmp.lt.s32.totalorder %s9, 3
    %p140 = pnand %p138, %p139
    %p141 = pneg %p140
    // Predicated region
    $region21: #{unet_decoder_forward.3} parent=5 // pred_check
      _
    $region22: #{unet_decoder_forward.3} parent=5 // pred_check_branch
      %143 = sbr.rel (%p140) target = $region24
    $region23: #{unet_decoder_forward.3} parent=5 // pred_region
      %s144 = ssub.s32 %s9, 1
      %s145 = smul.u32 8, %s19
      %p146 = scmp.lt.s32.totalorder %s18, 1
      %s147 = scalar_select %p146, %s18, 1
      %p148 = scmp.lt.s32.totalorder %s145, 7
      %s149 = scalar_select %p148, %s145, 7
      %s150 = smul.addr %s149, 8
      %s151 = smul.addr %s147, 64
      %s152 = sadd.s32 %s150, %s151
      %s153 = smul.addr %s152, 4
      %s154 = scalar_lea.vmem %s0, %s153
      %p155 = pneg %p49
      %p156 = pneg %p46
      %p157 = pneg %p77
      %p158 = pneg %p74
      %p159 = scmp.lt.s32.totalorder %s18, 1
      %s160 = scalar_select %p159, %s18, 1
      %p161 = scmp.lt.s32.totalorder %s19, 0
      %s162 = scalar_select %p161, %s19, 0
      %s163 = sadd.s32 %s162, %s160
      %s164 = scalar_lea.vmem %s1, %s163
      %p165 = pneg %p105
      %p166 = pneg %p102
      %p167 = scmp.lt.s32.totalorder %s18, 1
      %s168 = scalar_select %p167, %s18, 1
      %p169 = scmp.lt.s32.totalorder %s19, 0
      %s170 = scalar_select %p169, %s19, 0
      %s171 = sadd.s32 %s170, %s168
      %s172 = scalar_lea.vmem %s2, %s171
      %s173 = smul.u32 8, %s19
      %p174 = scmp.lt.s32.totalorder %s18, 1
      %s175 = scalar_select %p174, %s18, 1
      %p176 = scmp.lt.s32.totalorder %s173, 7
      %s177 = scalar_select %p176, %s173, 7
      %s178 = smul.addr %s177, 8
      %s179 = smul.addr %s175, 64
      %s180 = sadd.s32 %s178, %s179
      %s181 = smul.addr %s180, 4
      %s182 = scalar_lea.vmem %s0, %s181
      %s183 = smul.u32 8, %s19
      %p184 = scmp.lt.s32.totalorder %s18, 1
      %s185 = scalar_select %p184, %s18, 1
      %p186 = scmp.lt.s32.totalorder %s19, 0
      %s187 = scalar_select %p186, %s19, 0
      %s188 = sadd.s32 %s187, %s185
      %s189 = scalar_lea.vmem %s1, %s188
      %p190 = scmp.lt.s32.totalorder %s18, 1
      %s191 = scalar_select %p190, %s18, 1
      %p192 = scmp.lt.s32.totalorder %s19, 0
      %s193 = scalar_select %p192, %s19, 0
      %s194 = sadd.s32 %s193, %s191
      %s195 = scalar_lea.vmem %s2, %s194
      %v196 = vld [vmem:[%s182] sm:$0xf]
      %v197 = vld [vmem:[%s182 + $0x4] sm:$0xf]
      %v198 = vld [vmem:[%s182 + $0x8] sm:$0xf]
      %v199 = vld [vmem:[%s182 + $0xc] sm:$0xf]
      %v200 = vld [vmem:[%s182 + $0x10] sm:$0xf]
      %v201 = vld [vmem:[%s182 + $0x14] sm:$0xf]
      %v202 = vld [vmem:[%s182 + $0x18] sm:$0xf]
      %v203 = vld [vmem:[%s182 + $0x1c] sm:$0xf]
      %v204 = vld [vmem:[%s182 + $0x20] sm:$0xf]
      %v205 = vld [vmem:[%s182 + $0x24] sm:$0xf]
      %v206 = vld [vmem:[%s182 + $0x28] sm:$0xf]
      %v207 = vld [vmem:[%s182 + $0x2c] sm:$0xf]
      %v208 = vld [vmem:[%s182 + $0x30] sm:$0xf]
      %v209 = vld [vmem:[%s182 + $0x34] sm:$0xf]
      %v210 = vld [vmem:[%s182 + $0x38] sm:$0xf]
      %v211 = vld [vmem:[%s182 + $0x3c] sm:$0xf]
      %v212 = vld [vmem:[%s182 + $0x40] sm:$0xf]
      %v213 = vld [vmem:[%s182 + $0x44] sm:$0xf]
      %v214 = vld [vmem:[%s182 + $0x48] sm:$0xf]
      %v215 = vld [vmem:[%s182 + $0x4c] sm:$0xf]
      %v216 = vld [vmem:[%s182 + $0x50] sm:$0xf]
      %v217 = vld [vmem:[%s182 + $0x54] sm:$0xf]
      %v218 = vld [vmem:[%s182 + $0x58] sm:$0xf]
      %v219 = vld [vmem:[%s182 + $0x5c] sm:$0xf]
      %v220 = vld [vmem:[%s182 + $0x60] sm:$0xf]
      %v221 = vld [vmem:[%s182 + $0x64] sm:$0xf]
      %v222 = vld [vmem:[%s182 + $0x68] sm:$0xf]
      %v223 = vld [vmem:[%s182 + $0x6c] sm:$0xf]
      %v224 = vld [vmem:[%s182 + $0x70] sm:$0xf]
      %v225 = vld [vmem:[%s182 + $0x74] sm:$0xf]
      %v226 = vld [vmem:[%s182 + $0x78] sm:$0xf]
      %v227 = vld [vmem:[%s182 + $0x7c] sm:$0xf]
      %v228 = vld [vmem:[%s182 + $0x80] sm:$0xf]
      %v229 = vld [vmem:[%s182 + $0x84] sm:$0xf]
      %v230 = vld [vmem:[%s182 + $0x88] sm:$0xf]
      %v231 = vld [vmem:[%s182 + $0x8c] sm:$0xf]
      %v232 = vld [vmem:[%s182 + $0x90] sm:$0xf]
      %v233 = vld [vmem:[%s182 + $0x94] sm:$0xf]
      %v234 = vld [vmem:[%s182 + $0x98] sm:$0xf]
      %v235 = vld [vmem:[%s182 + $0x9c] sm:$0xf]
      %v236 = vld [vmem:[%s182 + $0xa0] sm:$0xf]
      %v237 = vld [vmem:[%s182 + $0xa4] sm:$0xf]
      %v238 = vld [vmem:[%s182 + $0xa8] sm:$0xf]
      %v239 = vld [vmem:[%s182 + $0xac] sm:$0xf]
      %v240 = vld [vmem:[%s182 + $0xb0] sm:$0xf]
      %v241 = vld [vmem:[%s182 + $0xb4] sm:$0xf]
      %v242 = vld [vmem:[%s182 + $0xb8] sm:$0xf]
      %v243 = vld [vmem:[%s182 + $0xbc] sm:$0xf]
      %v244 = vld [vmem:[%s182 + $0xc0] sm:$0xf]
      %v245 = vld [vmem:[%s182 + $0xc4] sm:$0xf]
      %v246 = vld [vmem:[%s182 + $0xc8] sm:$0xf]
      %v247 = vld [vmem:[%s182 + $0xcc] sm:$0xf]
      %v248 = vld [vmem:[%s182 + $0xd0] sm:$0xf]
      %v249 = vld [vmem:[%s182 + $0xd4] sm:$0xf]
      %v250 = vld [vmem:[%s182 + $0xd8] sm:$0xf]
      %v251 = vld [vmem:[%s182 + $0xdc] sm:$0xf]
      %v252 = vld [vmem:[%s182 + $0xe0] sm:$0xf]
      %v253 = vld [vmem:[%s182 + $0xe4] sm:$0xf]
      %v254 = vld [vmem:[%s182 + $0xe8] sm:$0xf]
      %v255 = vld [vmem:[%s182 + $0xec] sm:$0xf]
      %v256 = vld [vmem:[%s182 + $0xf0] sm:$0xf]
      %v257 = vld [vmem:[%s182 + $0xf4] sm:$0xf]
      %v258 = vld [vmem:[%s182 + $0xf8] sm:$0xf]
      %v259 = vld [vmem:[%s182 + $0xfc] sm:$0xf]
      %v260 = vunpack.c.l.bf16 %v196
      %v261 = vunpack.c.l.bf16 %v197
      %v262 = vunpack.c.l.bf16 %v198
      %v263 = vunpack.c.l.bf16 %v199
      %v264 = vunpack.c.l.bf16 %v200
      %v265 = vunpack.c.l.bf16 %v201
      %v266 = vunpack.c.l.bf16 %v202
      %v267 = vunpack.c.l.bf16 %v203
      %v268 = vunpack.c.l.bf16 %v204
      %v269 = vunpack.c.l.bf16 %v205
      %v270 = vunpack.c.l.bf16 %v206
      %v271 = vunpack.c.l.bf16 %v207
      %v272 = vunpack.c.l.bf16 %v208
      %v273 = vunpack.c.l.bf16 %v209
      %v274 = vunpack.c.l.bf16 %v210
      %v275 = vunpack.c.l.bf16 %v211
      %v276 = vunpack.c.l.bf16 %v212
      %v277 = vunpack.c.l.bf16 %v213
      %v278 = vunpack.c.l.bf16 %v214
      %v279 = vunpack.c.l.bf16 %v215
      %v280 = vunpack.c.l.bf16 %v216
      %v281 = vunpack.c.l.bf16 %v217
      %v282 = vunpack.c.l.bf16 %v218
      %v283 = vunpack.c.l.bf16 %v219
      %v284 = vunpack.c.l.bf16 %v220
      %v285 = vunpack.c.l.bf16 %v221
      %v286 = vunpack.c.l.bf16 %v222
      %v287 = vunpack.c.l.bf16 %v223
      %v288 = vunpack.c.l.bf16 %v224
      %v289 = vunpack.c.l.bf16 %v225
      %v290 = vunpack.c.l.bf16 %v226
      %v291 = vunpack.c.l.bf16 %v227
      %v292 = vunpack.c.l.bf16 %v228
      %v293 = vunpack.c.l.bf16 %v229
      %v294 = vunpack.c.l.bf16 %v230
      %v295 = vunpack.c.l.bf16 %v231
      %v296 = vunpack.c.l.bf16 %v232
      %v297 = vunpack.c.l.bf16 %v233
      %v298 = vunpack.c.l.bf16 %v234
      %v299 = vunpack.c.l.bf16 %v235
      %v300 = vunpack.c.l.bf16 %v236
      %v301 = vunpack.c.l.bf16 %v237
      %v302 = vunpack.c.l.bf16 %v238
      %v303 = vunpack.c.l.bf16 %v239
      %v304 = vunpack.c.l.bf16 %v240
      %v305 = vunpack.c.l.bf16 %v241
      %v306 = vunpack.c.l.bf16 %v242
      %v307 = vunpack.c.l.bf16 %v243
      %v308 = vunpack.c.l.bf16 %v244
      %v309 = vunpack.c.l.bf16 %v245
      %v310 = vunpack.c.l.bf16 %v246
      %v311 = vunpack.c.l.bf16 %v247
      %v312 = vunpack.c.l.bf16 %v248
      %v313 = vunpack.c.l.bf16 %v249
      %v314 = vunpack.c.l.bf16 %v250
      %v315 = vunpack.c.l.bf16 %v251
      %v316 = vunpack.c.l.bf16 %v252
      %v317 = vunpack.c.l.bf16 %v253
      %v318 = vunpack.c.l.bf16 %v254
      %v319 = vunpack.c.l.bf16 %v255
      %v320 = vunpack.c.l.bf16 %v256
      %v321 = vunpack.c.l.bf16 %v257
      %v322 = vunpack.c.l.bf16 %v258
      %v323 = vunpack.c.l.bf16 %v259
      %vm324 = vcmask 261120
      %v325 = vsel %vm324, %v260, 0.0
      %v326 = vsel %vm324, %v261, 0.0
      %v327 = vadd.f32 %v325, %v326
      %v328 = vsel %vm324, %v262, 0.0
      %v329 = vadd.f32 %v327, %v328
      %v330 = vsel %vm324, %v263, 0.0
      %v331 = vadd.f32 %v329, %v330
      %v332 = vsel %vm324, %v264, 0.0
      %v333 = vadd.f32 %v331, %v332
      %v334 = vsel %vm324, %v265, 0.0
      %v335 = vadd.f32 %v333, %v334
      %v336 = vsel %vm324, %v266, 0.0
      %v337 = vadd.f32 %v335, %v336
      %v338 = vsel %vm324, %v267, 0.0
      %v339 = vadd.f32 %v337, %v338
      %v340 = vsel %vm324, %v268, 0.0
      %v341 = vadd.f32 %v339, %v340
      %v342 = vsel %vm324, %v269, 0.0
      %v343 = vadd.f32 %v341, %v342
      %v344 = vsel %vm324, %v270, 0.0
      %v345 = vadd.f32 %v343, %v344
      %v346 = vsel %vm324, %v271, 0.0
      %v347 = vadd.f32 %v345, %v346
      %v348 = vsel %vm324, %v272, 0.0
      %v349 = vadd.f32 %v347, %v348
      %v350 = vsel %vm324, %v273, 0.0
      %v351 = vadd.f32 %v349, %v350
      %v352 = vsel %vm324, %v274, 0.0
      %v353 = vadd.f32 %v351, %v352
      %v354 = vsel %vm324, %v275, 0.0
      %v355 = vadd.f32 %v353, %v354
      %v356 = vsel %vm324, %v276, 0.0
      %v357 = vadd.f32 %v355, %v356
      %v358 = vsel %vm324, %v277, 0.0
      %v359 = vadd.f32 %v357, %v358
      %v360 = vsel %vm324, %v278, 0.0
      %v361 = vadd.f32 %v359, %v360
      %v362 = vsel %vm324, %v279, 0.0
      %v363 = vadd.f32 %v361, %v362
      %v364 = vsel %vm324, %v280, 0.0
      %v365 = vadd.f32 %v363, %v364
      %v366 = vsel %vm324, %v281, 0.0
      %v367 = vadd.f32 %v365, %v366
      %v368 = vsel %vm324, %v282, 0.0
      %v369 = vadd.f32 %v367, %v368
      %v370 = vsel %vm324, %v283, 0.0
      %v371 = vadd.f32 %v369, %v370
      %v372 = vsel %vm324, %v284, 0.0
      %v373 = vadd.f32 %v371, %v372
      %v374 = vsel %vm324, %v285, 0.0
      %v375 = vadd.f32 %v373, %v374
      %v376 = vsel %vm324, %v286, 0.0
      %v377 = vadd.f32 %v375, %v376
      %v378 = vsel %vm324, %v287, 0.0
      %v379 = vadd.f32 %v377, %v378
      %v380 = vsel %vm324, %v288, 0.0
      %v381 = vadd.f32 %v379, %v380
      %v382 = vsel %vm324, %v289, 0.0
      %v383 = vadd.f32 %v381, %v382
      %v384 = vsel %vm324, %v290, 0.0
      %v385 = vadd.f32 %v383, %v384
      %v386 = vsel %vm324, %v291, 0.0
      %v387 = vadd.f32 %v385, %v386
      %v388 = vsel %vm324, %v292, 0.0
      %v389 = vadd.f32 %v387, %v388
      %v390 = vsel %vm324, %v293, 0.0
      %v391 = vadd.f32 %v389, %v390
      %v392 = vsel %vm324, %v294, 0.0
      %v393 = vadd.f32 %v391, %v392
      %v394 = vsel %vm324, %v295, 0.0
      %v395 = vadd.f32 %v393, %v394
      %v396 = vsel %vm324, %v296, 0.0
      %v397 = vadd.f32 %v395, %v396
      %v398 = vsel %vm324, %v297, 0.0
      %v399 = vadd.f32 %v397, %v398
      %v400 = vsel %vm324, %v298, 0.0
      %v401 = vadd.f32 %v399, %v400
      %v402 = vsel %vm324, %v299, 0.0
      %v403 = vadd.f32 %v401, %v402
      %v404 = vsel %vm324, %v300, 0.0
      %v405 = vadd.f32 %v403, %v404
      %v406 = vsel %vm324, %v301, 0.0
      %v407 = vadd.f32 %v405, %v406
      %v408 = vsel %vm324, %v302, 0.0
      %v409 = vadd.f32 %v407, %v408
      %v410 = vsel %vm324, %v303, 0.0
      %v411 = vadd.f32 %v409, %v410
      %v412 = vsel %vm324, %v304, 0.0
      %v413 = vadd.f32 %v411, %v412
      %v414 = vsel %vm324, %v305, 0.0
      %v415 = vadd.f32 %v413, %v414
      %v416 = vsel %vm324, %v306, 0.0
      %v417 = vadd.f32 %v415, %v416
      %v418 = vsel %vm324, %v307, 0.0
      %v419 = vadd.f32 %v417, %v418
      %v420 = vsel %vm324, %v308, 0.0
      %v421 = vadd.f32 %v419, %v420
      %v422 = vsel %vm324, %v309, 0.0
      %v423 = vadd.f32 %v421, %v422
      %v424 = vsel %vm324, %v310, 0.0
      %v425 = vadd.f32 %v423, %v424
      %v426 = vsel %vm324, %v311, 0.0
      %v427 = vadd.f32 %v425, %v426
      %v428 = vsel %vm324, %v312, 0.0
      %v429 = vadd.f32 %v427, %v428
      %v430 = vsel %vm324, %v313, 0.0
      %v431 = vadd.f32 %v429, %v430
      %v432 = vsel %vm324, %v314, 0.0
      %v433 = vadd.f32 %v431, %v432
      %v434 = vsel %vm324, %v315, 0.0
      %v435 = vadd.f32 %v433, %v434
      %v436 = vsel %vm324, %v316, 0.0
      %v437 = vadd.f32 %v435, %v436
      %v438 = vsel %vm324, %v317, 0.0
      %v439 = vadd.f32 %v437, %v438
      %v440 = vsel %vm324, %v318, 0.0
      %v441 = vadd.f32 %v439, %v440
      %v442 = vsel %vm324, %v319, 0.0
      %v443 = vadd.f32 %v441, %v442
      %v444 = vsel %vm324, %v320, 0.0
      %v445 = vadd.f32 %v443, %v444
      %v446 = vsel %vm324, %v321, 0.0
      %v447 = vadd.f32 %v445, %v446
      %v448 = vsel %vm324, %v322, 0.0
      %v449 = vadd.f32 %v447, %v448
      %v450 = vsel %vm324, %v323, 0.0
      %v451 = vadd.f32 %v449, %v450
      %v452 = vrot.slane %v451, 4
      %v453 = vadd.f32 %v451, %v452
      %v454 = vrot.slane %v453, 2
      %v455 = vadd.f32 %v453, %v454
      %v456 = vrot.slane %v455, 1
      %v457 = vadd.f32 %v455, %v456
      %vm458 = vcmask 253952
      %459 = vst.msk [vmem:[%s189] sm:$0x1] %vm458, %v457
      %v460 = vmul.f32 %v260, %v260
      %v461 = vmul.f32 %v261, %v261
      %v462 = vmul.f32 %v262, %v262
      %v463 = vmul.f32 %v263, %v263
      %v464 = vmul.f32 %v264, %v264
      %v465 = vmul.f32 %v265, %v265
      %v466 = vmul.f32 %v266, %v266
      %v467 = vmul.f32 %v267, %v267
      %v468 = vmul.f32 %v268, %v268
      %v469 = vmul.f32 %v269, %v269
      %v470 = vmul.f32 %v270, %v270
      %v471 = vmul.f32 %v271, %v271
      %v472 = vmul.f32 %v272, %v272
      %v473 = vmul.f32 %v273, %v273
      %v474 = vmul.f32 %v274, %v274
      %v475 = vmul.f32 %v275, %v275
      %v476 = vmul.f32 %v276, %v276
      %v477 = vmul.f32 %v277, %v277
      %v478 = vmul.f32 %v278, %v278
      %v479 = vmul.f32 %v279, %v279
      %v480 = vmul.f32 %v280, %v280
      %v481 = vmul.f32 %v281, %v281
      %v482 = vmul.f32 %v282, %v282
      %v483 = vmul.f32 %v283, %v283
      %v484 = vmul.f32 %v284, %v284
      %v485 = vmul.f32 %v285, %v285
      %v486 = vmul.f32 %v286, %v286
      %v487 = vmul.f32 %v287, %v287
      %v488 = vmul.f32 %v288, %v288
      %v489 = vmul.f32 %v289, %v289
      %v490 = vmul.f32 %v290, %v290
      %v491 = vmul.f32 %v291, %v291
      %v492 = vmul.f32 %v292, %v292
      %v493 = vmul.f32 %v293, %v293
      %v494 = vmul.f32 %v294, %v294
      %v495 = vmul.f32 %v295, %v295
      %v496 = vmul.f32 %v296, %v296
      %v497 = vmul.f32 %v297, %v297
      %v498 = vmul.f32 %v298, %v298
      %v499 = vmul.f32 %v299, %v299
      %v500 = vmul.f32 %v300, %v300
      %v501 = vmul.f32 %v301, %v301
      %v502 = vmul.f32 %v302, %v302
      %v503 = vmul.f32 %v303, %v303
      %v504 = vmul.f32 %v304, %v304
      %v505 = vmul.f32 %v305, %v305
      %v506 = vmul.f32 %v306, %v306
      %v507 = vmul.f32 %v307, %v307
      %v508 = vmul.f32 %v308, %v308
      %v509 = vmul.f32 %v309, %v309
      %v510 = vmul.f32 %v310, %v310
      %v511 = vmul.f32 %v311, %v311
      %v512 = vmul.f32 %v312, %v312
      %v513 = vmul.f32 %v313, %v313
      %v514 = vmul.f32 %v314, %v314
      %v515 = vmul.f32 %v315, %v315
      %v516 = vmul.f32 %v316, %v316
      %v517 = vmul.f32 %v317, %v317
      %v518 = vmul.f32 %v318, %v318
      %v519 = vmul.f32 %v319, %v319
      %v520 = vmul.f32 %v320, %v320
      %v521 = vmul.f32 %v321, %v321
      %v522 = vmul.f32 %v322, %v322
      %v523 = vmul.f32 %v323, %v323
      %v524 = vsel %vm324, %v460, 0.0
      %v525 = vsel %vm324, %v461, 0.0
      %v526 = vadd.f32 %v524, %v525
      %v527 = vsel %vm324, %v462, 0.0
      %v528 = vadd.f32 %v526, %v527
      %v529 = vsel %vm324, %v463, 0.0
      %v530 = vadd.f32 %v528, %v529
      %v531 = vsel %vm324, %v464, 0.0
      %v532 = vadd.f32 %v530, %v531
      %v533 = vsel %vm324, %v465, 0.0
      %v534 = vadd.f32 %v532, %v533
      %v535 = vsel %vm324, %v466, 0.0
      %v536 = vadd.f32 %v534, %v535
      %v537 = vsel %vm324, %v467, 0.0
      %v538 = vadd.f32 %v536, %v537
      %v539 = vsel %vm324, %v468, 0.0
      %v540 = vadd.f32 %v538, %v539
      %v541 = vsel %vm324, %v469, 0.0
      %v542 = vadd.f32 %v540, %v541
      %v543 = vsel %vm324, %v470, 0.0
      %v544 = vadd.f32 %v542, %v543
      %v545 = vsel %vm324, %v471, 0.0
      %v546 = vadd.f32 %v544, %v545
      %v547 = vsel %vm324, %v472, 0.0
      %v548 = vadd.f32 %v546, %v547
      %v549 = vsel %vm324, %v473, 0.0
      %v550 = vadd.f32 %v548, %v549
      %v551 = vsel %vm324, %v474, 0.0
      %v552 = vadd.f32 %v550, %v551
      %v553 = vsel %vm324, %v475, 0.0
      %v554 = vadd.f32 %v552, %v553
      %v555 = vsel %vm324, %v476, 0.0
      %v556 = vadd.f32 %v554, %v555
      %v557 = vsel %vm324, %v477, 0.0
      %v558 = vadd.f32 %v556, %v557
      %v559 = vsel %vm324, %v478, 0.0
      %v560 = vadd.f32 %v558, %v559
      %v561 = vsel %vm324, %v479, 0.0
      %v562 = vadd.f32 %v560, %v561
      %v563 = vsel %vm324, %v480, 0.0
      %v564 = vadd.f32 %v562, %v563
      %v565 = vsel %vm324, %v481, 0.0
      %v566 = vadd.f32 %v564, %v565
      %v567 = vsel %vm324, %v482, 0.0
      %v568 = vadd.f32 %v566, %v567
      %v569 = vsel %vm324, %v483, 0.0
      %v570 = vadd.f32 %v568, %v569
      %v571 = vsel %vm324, %v484, 0.0
      %v572 = vadd.f32 %v570, %v571
      %v573 = vsel %vm324, %v485, 0.0
      %v574 = vadd.f32 %v572, %v573
      %v575 = vsel %vm324, %v486, 0.0
      %v576 = vadd.f32 %v574, %v575
      %v577 = vsel %vm324, %v487, 0.0
      %v578 = vadd.f32 %v576, %v577
      %v579 = vsel %vm324, %v488, 0.0
      %v580 = vadd.f32 %v578, %v579
      %v581 = vsel %vm324, %v489, 0.0
      %v582 = vadd.f32 %v580, %v581
      %v583 = vsel %vm324, %v490, 0.0
      %v584 = vadd.f32 %v582, %v583
      %v585 = vsel %vm324, %v491, 0.0
      %v586 = vadd.f32 %v584, %v585
      %v587 = vsel %vm324, %v492, 0.0
      %v588 = vadd.f32 %v586, %v587
      %v589 = vsel %vm324, %v493, 0.0
      %v590 = vadd.f32 %v588, %v589
      %v591 = vsel %vm324, %v494, 0.0
      %v592 = vadd.f32 %v590, %v591
      %v593 = vsel %vm324, %v495, 0.0
      %v594 = vadd.f32 %v592, %v593
      %v595 = vsel %vm324, %v496, 0.0
      %v596 = vadd.f32 %v594, %v595
      %v597 = vsel %vm324, %v497, 0.0
      %v598 = vadd.f32 %v596, %v597
      %v599 = vsel %vm324, %v498, 0.0
      %v600 = vadd.f32 %v598, %v599
      %v601 = vsel %vm324, %v499, 0.0
      %v602 = vadd.f32 %v600, %v601
      %v603 = vsel %vm324, %v500, 0.0
      %v604 = vadd.f32 %v602, %v603
      %v605 = vsel %vm324, %v501, 0.0
      %v606 = vadd.f32 %v604, %v605
      %v607 = vsel %vm324, %v502, 0.0
      %v608 = vadd.f32 %v606, %v607
      %v609 = vsel %vm324, %v503, 0.0
      %v610 = vadd.f32 %v608, %v609
      %v611 = vsel %vm324, %v504, 0.0
      %v612 = vadd.f32 %v610, %v611
      %v613 = vsel %vm324, %v505, 0.0
      %v614 = vadd.f32 %v612, %v613
      %v615 = vsel %vm324, %v506, 0.0
      %v616 = vadd.f32 %v614, %v615
      %v617 = vsel %vm324, %v507, 0.0
      %v618 = vadd.f32 %v616, %v617
      %v619 = vsel %vm324, %v508, 0.0
      %v620 = vadd.f32 %v618, %v619
      %v621 = vsel %vm324, %v509, 0.0
      %v622 = vadd.f32 %v620, %v621
      %v623 = vsel %vm324, %v510, 0.0
      %v624 = vadd.f32 %v622, %v623
      %v625 = vsel %vm324, %v511, 0.0
      %v626 = vadd.f32 %v624, %v625
      %v627 = vsel %vm324, %v512, 0.0
      %v628 = vadd.f32 %v626, %v627
      %v629 = vsel %vm324, %v513, 0.0
      %v630 = vadd.f32 %v628, %v629
      %v631 = vsel %vm324, %v514, 0.0
      %v632 = vadd.f32 %v630, %v631
      %v633 = vsel %vm324, %v515, 0.0
      %v634 = vadd.f32 %v632, %v633
      %v635 = vsel %vm324, %v516, 0.0
      %v636 = vadd.f32 %v634, %v635
      %v637 = vsel %vm324, %v517, 0.0
      %v638 = vadd.f32 %v636, %v637
      %v639 = vsel %vm324, %v518, 0.0
      %v640 = vadd.f32 %v638, %v639
      %v641 = vsel %vm324, %v519, 0.0
      %v642 = vadd.f32 %v640, %v641
      %v643 = vsel %vm324, %v520, 0.0
      %v644 = vadd.f32 %v642, %v643
      %v645 = vsel %vm324, %v521, 0.0
      %v646 = vadd.f32 %v644, %v645
      %v647 = vsel %vm324, %v522, 0.0
      %v648 = vadd.f32 %v646, %v647
      %v649 = vsel %vm324, %v523, 0.0
      %v650 = vadd.f32 %v648, %v649
      %v651 = vrot.slane %v650, 4
      %v652 = vadd.f32 %v650, %v651
      %v653 = vrot.slane %v652, 2
      %v654 = vadd.f32 %v652, %v653
      %v655 = vrot.slane %v654, 1
      %v656 = vadd.f32 %v654, %v655
      %657 = vst.msk [vmem:[%s195] sm:$0x1] %vm458, %v656
      %p658 = scmp.lt.s32.totalorder %s18, 1
      %s659 = scalar_select %p658, %s18, 1
      %p660 = scmp.lt.s32.totalorder %s19, 0
      %s661 = scalar_select %p660, %s19, 0
      %s662 = sadd.s32 %s661, %s659
      %s663 = scalar_lea.vmem %s1, %s662
      %p664 = scmp.lt.s32.totalorder %s18, 1
      %s665 = scalar_select %p664, %s18, 1
      %p666 = scmp.lt.s32.totalorder %s19, 0
      %s667 = scalar_select %p666, %s19, 0
      %s668 = sadd.s32 %s667, %s665
      %s669 = scalar_lea.vmem %s2, %s668
      // Predicated region
      $region25: #{unet_decoder_forward.3} parent=23 // pred_check
        %p670 = pneg %p74
      $region26: #{unet_decoder_forward.3} parent=23 // pred_check_branch
        %672 = sbr.rel (%p670) target = $region28
      $region27: #{unet_decoder_forward.3} parent=23 // pred_region
        _
      $region28: #{unet_decoder_forward.3} parent=23 // pred_fallthru
        _
      // Predicated region
      $region29: #{unet_decoder_forward.3} parent=23 // pred_check
        %p673 = pneg %p102
      $region30: #{unet_decoder_forward.3} parent=23 // pred_check_branch
        %675 = sbr.rel (%p673) target = $region32
      $region31: #{unet_decoder_forward.3} parent=23 // pred_region
        _
      $region32: #{unet_decoder_forward.3} parent=23 // pred_fallthru
        _
    $region24: #{unet_decoder_forward.3} parent=5 // pred_fallthru
      _
    %p676 = scmp.le.s32.totalorder 2, %s9
    // Predicated region
    $region33: #{unet_decoder_forward.3} parent=5 // pred_check
      %p677 = pneg %p676
    $region34: #{unet_decoder_forward.3} parent=5 // pred_check_branch
      %679 = sbr.rel (%p677) target = $region36
    $region35: #{unet_decoder_forward.3} parent=5 // pred_region
      %s680 = ssub.s32 %s9, 2
      // Predicated region
      $region37: #{unet_decoder_forward.3} parent=35 // pred_check
        %p681 = pneg %p80
      $region38: #{unet_decoder_forward.3} parent=35 // pred_check_branch
        %683 = sbr.rel (%p681) target = $region40
      $region39: #{unet_decoder_forward.3} parent=35 // pred_region
        %p684 = scmp.lt.s32.totalorder %s20, 1
        %s685 = scalar_select %p684, %s20, 1
        %p686 = scmp.lt.s32.totalorder %s21, 0
        %s687 = scalar_select %p686, %s21, 0
        %s688 = sadd.s32 %s687, %s685
        %s689 = scalar_lea.vmem %s1, %s688
      $region40: #{unet_decoder_forward.3} parent=35 // pred_fallthru
        _
      // Predicated region
      $region41: #{unet_decoder_forward.3} parent=35 // pred_check
        %p690 = pneg %p108
      $region42: #{unet_decoder_forward.3} parent=35 // pred_check_branch
        %692 = sbr.rel (%p690) target = $region44
      $region43: #{unet_decoder_forward.3} parent=35 // pred_region
        %p693 = scmp.lt.s32.totalorder %s20, 1
        %s694 = scalar_select %p693, %s20, 1
        %p695 = scmp.lt.s32.totalorder %s21, 0
        %s696 = scalar_select %p695, %s21, 0
        %s697 = sadd.s32 %s696, %s694
        %s698 = scalar_lea.vmem %s2, %s697
      $region44: #{unet_decoder_forward.3} parent=35 // pred_fallthru
        _
    $region36: #{unet_decoder_forward.3} parent=5 // pred_fallthru
      _
  $region6: #{unet_decoder_forward.3} parent=0 // loop_footer
    %s13 = sadd.s32 1, %s9
  $region7: #{unet_decoder_forward.3} parent=0 // loop_footer_branch
    %8 = sbr.rel target = $region3
  $region8: #{unet_decoder_forward.3} parent=0 // loop_exit
    _

// kernel: unet_decoder_forward.5
$region0: #{unet_decoder_forward.5}
  #allocation0 [shape = 'u32[]', space=smem, size = 0x4, offset = 0x4, fixed_abs, tag = 'smem constant byte address 0x4 - core index']
  #allocation1 [shape = 'u32[144,128]{1,0:T(1,128)}', space=vmem, size = 0x12000, scoped, tag = 'internal scratch']
  #allocation2 [shape = 'bf16[3,10,10,32]{3,2,1,0:T(8,128)(2,1)}', space=vmem, size = 0x1e000, scoped, tag = 'scratch operand']
  #allocation3 [shape = 'bf16[3,3,96,32]{3,2,1,0:T(16,128)(2,1)}', space=vmem, size = 0x36000, scoped, tag = 'scratch operand']
  #allocation10 [shape = 's32[]', space=sflag, size = 0x4, offset = 0, fixed_abs, tag = 'sflag constant byte address 0x0 - dummy sync flag']
  %s0 = inlined_call_operand.vmem [shape: bf16[2,8,8,8,32], index: 0, kind: input, shape index: {}]
  %s1 = inlined_call_operand.vmem [shape: f32[2,2,32], index: 1, kind: input, shape index: {}]
  %s2 = inlined_call_operand.vmem [shape: bf16[3,3,96,32], index: 2, kind: input, shape index: {}]
  %s3 = inlined_call_operand.hbm [shape: f32[2,8,8,8,32], index: 3, kind: output, shape index: {0}]
  %s4 = inlined_call_operand.hbm [shape: f32[2,1,32], index: 4, kind: output, shape index: {1}]
  %s5 = inlined_call_operand.hbm [shape: f32[2,1,32], index: 5, kind: output, shape index: {2}]
  %6 = xla_tuple %s3, %s4, %s5
  %s7 = sld [smem:[#allocation0]]
  $region108: #{unet_decoder_forward.5} parent=0
    _
  %s9 = ssub.s32 1, %s7
  %s10 = scalar_select 0, %s9, %s7
  $region1: #{unet_decoder_forward.5} parent=0
    #allocation4 [shape = 'u8[65536]{0}', space=vmem, size = 0x10000, scoped, tag = 'output window, operand 0']
    #allocation5 [shape = 's32[2]{0}', space=sflag, size = 0x8, scoped, tag = 'scoped memory for unet_decoder_forward.5']
    #allocation6 [shape = 'u8[1024]{0}', space=vmem, size = 0x400, scoped, tag = 'output window, operand 1']
    #allocation7 [shape = 's32[2]{0}', space=sflag, size = 0x8, scoped, tag = 'scoped memory for unet_decoder_forward.5']
    #allocation8 [shape = 'u8[1024]{0}', space=vmem, size = 0x400, scoped, tag = 'output window, operand 2']
    %11 = vsyncpa [#allocation5], 0
    %s12 = scalar_lea.sflag [#allocation5], 1
    %13 = vsyncpa %s12, 0
    %14 = vsyncpa [#allocation7], 0
    %s15 = scalar_lea.sflag [#allocation7], 1
    %16 = vsyncpa %s15, 0
    loop: start=0, step=1, limit=20
    $region2: #{unet_decoder_forward.5} parent=1 // loop_pre_header
      _
    $region3: #{unet_decoder_forward.5} parent=1 // loop_header
      %s18 = sphi 0, %s22
      %p19 = scmp.ge.s32.totalorder %s18, 20
      %s25 = sphi 0, %s37
      %s26 = sphi 0, %s33
      %s27 = sphi 0, %s25
      %s28 = sphi 0, %s26
      %s29 = sphi 0, %s27
      %s30 = sphi 0, %s28
      %s46 = sphi 0, %s48
      %s49 = sphi 0, %s46
      %s50 = sphi 0, %s49
      %s66 = sphi 0, %s50
      %s72 = sphi 0, %s74
      %s75 = sphi 0, %s72
      %s76 = sphi 0, %s75
      %s92 = sphi 0, %s76
      %s106 = sphi 0, %s108
      %s109 = sphi 0, %s106
      %s110 = sphi 0, %s109
      %s126 = sphi 0, %s110
      %s132 = sphi 0, %s134
      %s135 = sphi 0, %s132
      %s136 = sphi 0, %s135
      %s152 = sphi 0, %s136
      %s158 = sphi 0, %s160
      %s161 = sphi 0, %s158
      %s162 = sphi 0, %s161
      %s178 = sphi 0, %s162
    $region4: #{unet_decoder_forward.5} parent=1 // loop_header_branch
      %21 = sbr.rel (%p19) target = $region8
    $region5: #{unet_decoder_forward.5} parent=1 // loop_body
      %s23 = ssub.s32 %s18, 1
      %s24 = ssub.s32 %s18, 2
      %s31 = sadd.s32 1, %s26
      %p32 = scmp.ge.s32.totalorder %s31, 9
      %s33 = scalar_select %p32, 0, %s31
      %s34 = sadd.s32 1, %s25
      %s35 = scalar_select %p32, %s34, %s25
      %p36 = scmp.ge.s32.totalorder %s35, 2
      %s37 = scalar_select %p36, 0, %s35
      %p38 = scmp.lt.s32.totalorder %s26, 7
      %s39 = scalar_select %p38, %s26, 7
      %p40 = scmp.lt.s32.totalorder %s33, 7
      %s41 = scalar_select %p40, %s33, 7
      %s42 = ssub.s32 %s25, %s37
      %s43 = ssub.s32 %s39, %s41
      %s44 = sor.u32 %s42, %s43
      %p45 = scmp.eq.s32.totalorder %s44, 0
      %s47 = sadd.s32 %s46, 1
      %s48 = scalar_select %p45, %s46, %s47
      %p51 = pneg %p45
      %p52 = scmp.eq.s32.totalorder %s18, 17
      %p53 = por %p51, %p52
      %p54 = scmp.ne.s32.totalorder %s46, %s49
      %p55 = scmp.eq.s32.totalorder %s18, 0
      %p56 = por %p54, %p55
      %p57 = scmp.ne.s32.totalorder %s46, %s49
      %p58 = scmp.eq.s32.totalorder %s23, 17
      %p59 = por %p57, %p58
      %p60 = scmp.ne.s32.totalorder %s49, %s50
      %p61 = scmp.eq.s32.totalorder %s23, 0
      %p62 = por %p60, %p61
      %p63 = scmp.ne.s32.totalorder %s49, %s50
      %p64 = scmp.eq.s32.totalorder %s24, 17
      %p65 = por %p63, %p64
      %p67 = scmp.ne.s32.totalorder %s50, %s66
      %p68 = scmp.eq.s32.totalorder %s24, 0
      %p69 = por %p67, %p68
      %s70 = ssub.s32 %s25, %s37
      %p71 = scmp.eq.s32.totalorder %s70, 0
      %s73 = sadd.s32 %s72, 1
      %s74 = scalar_select %p71, %s72, %s73
      %p77 = pneg %p71
      %p78 = scmp.eq.s32.totalorder %s18, 17
      %p79 = por %p77, %p78
      %p80 = scmp.ne.s32.totalorder %s72, %s75
      %p81 = scmp.eq.s32.totalorder %s18, 0
      %p82 = por %p80, %p81
      %p83 = scmp.ne.s32.totalorder %s72, %s75
      %p84 = scmp.eq.s32.totalorder %s23, 17
      %p85 = por %p83, %p84
      %p86 = scmp.ne.s32.totalorder %s75, %s76
      %p87 = scmp.eq.s32.totalorder %s23, 0
      %p88 = por %p86, %p87
      %p89 = scmp.ne.s32.totalorder %s75, %s76
      %p90 = scmp.eq.s32.totalorder %s24, 17
      %p91 = por %p89, %p90
      %p93 = scmp.ne.s32.totalorder %s76, %s92
      %p94 = scmp.eq.s32.totalorder %s24, 0
      %p95 = por %p93, %p94
      %s96 = ssub.s32 %s26, 1
      %p97 = scmp.gt.s32.totalorder %s96, 0
      %s98 = scalar_select %p97, %s96, 0
      %s99 = ssub.s32 %s33, 1
      %p100 = scmp.gt.s32.totalorder %s99, 0
      %s101 = scalar_select %p100, %s99, 0
      %s102 = ssub.s32 %s25, %s37
      %s103 = ssub.s32 %s98, %s101
      %s104 = sor.u32 %s102, %s103
      %p105 = scmp.eq.s32.totalorder %s104, 0
      %s107 = sadd.s32 %s106, 1
      %s108 = scalar_select %p105, %s106, %s107
      %p111 = pneg %p105
      %p112 = scmp.eq.s32.totalorder %s18, 17
      %p113 = por %p111, %p112
      %p114 = scmp.ne.s32.totalorder %s106, %s109
      %p115 = scmp.eq.s32.totalorder %s18, 0
      %p116 = por %p114, %p115
      %p117 = scmp.ne.s32.totalorder %s106, %s109
      %p118 = scmp.eq.s32.totalorder %s23, 17
      %p119 = por %p117, %p118
      %p120 = scmp.ne.s32.totalorder %s109, %s110
      %p121 = scmp.eq.s32.totalorder %s23, 0
      %p122 = por %p120, %p121
      %p123 = scmp.ne.s32.totalorder %s109, %s110
      %p124 = scmp.eq.s32.totalorder %s24, 17
      %p125 = por %p123, %p124
      %p127 = scmp.ne.s32.totalorder %s110, %s126
      %p128 = scmp.eq.s32.totalorder %s24, 0
      %p129 = por %p127, %p128
      %s130 = ssub.s32 %s25, %s37
      %p131 = scmp.eq.s32.totalorder %s130, 0
      %s133 = sadd.s32 %s132, 1
      %s134 = scalar_select %p131, %s132, %s133
      %p137 = pneg %p131
      %p138 = scmp.eq.s32.totalorder %s18, 17
      %p139 = por %p137, %p138
      %p140 = scmp.ne.s32.totalorder %s132, %s135
      %p141 = scmp.eq.s32.totalorder %s18, 0
      %p142 = por %p140, %p141
      %p143 = scmp.ne.s32.totalorder %s132, %s135
      %p144 = scmp.eq.s32.totalorder %s23, 17
      %p145 = por %p143, %p144
      %p146 = scmp.ne.s32.totalorder %s135, %s136
      %p147 = scmp.eq.s32.totalorder %s23, 0
      %p148 = por %p146, %p147
      %p149 = scmp.ne.s32.totalorder %s135, %s136
      %p150 = scmp.eq.s32.totalorder %s24, 17
      %p151 = por %p149, %p150
      %p153 = scmp.ne.s32.totalorder %s136, %s152
      %p154 = scmp.eq.s32.totalorder %s24, 0
      %p155 = por %p153, %p154
      %s156 = ssub.s32 %s25, %s37
      %p157 = scmp.eq.s32.totalorder %s156, 0
      %s159 = sadd.s32 %s158, 1
      %s160 = scalar_select %p157, %s158, %s159
      %p163 = pneg %p157
      %p164 = scmp.eq.s32.totalorder %s18, 17
      %p165 = por %p163, %p164
      %p166 = scmp.ne.s32.totalorder %s158, %s161
      %p167 = scmp.eq.s32.totalorder %s18, 0
      %p168 = por %p166, %p167
      %p169 = scmp.ne.s32.totalorder %s158, %s161
      %p170 = scmp.eq.s32.totalorder %s23, 17
      %p171 = por %p169, %p170
      %p172 = scmp.ne.s32.totalorder %s161, %s162
      %p173 = scmp.eq.s32.totalorder %s23, 0
      %p174 = por %p172, %p173
      %p175 = scmp.ne.s32.totalorder %s161, %s162
      %p176 = scmp.eq.s32.totalorder %s24, 17
      %p177 = por %p175, %p176
      %p179 = scmp.ne.s32.totalorder %s162, %s178
      %p180 = scmp.eq.s32.totalorder %s24, 0
      %p181 = por %p179, %p180
      %p182 = scmp.le.s32.totalorder 1, %s18
      %p183 = scmp.lt.s32.totalorder %s18, 19
      %p184 = pnand %p182, %p183
      %p185 = pneg %p184
      // Predicated region
      $region9: #{unet_decoder_forward.5} parent=5 // pred_check
        _
      $region10: #{unet_decoder_forward.5} parent=5 // pred_check_branch
        %187 = sbr.rel (%p184) target = $region12
      $region11: #{unet_decoder_forward.5} parent=5 // pred_region
        %s188 = ssub.s32 %s18, 1
      $region12: #{unet_decoder_forward.5} parent=5 // pred_fallthru
        _
      %p189 = scmp.lt.s32.totalorder %s18, 18
      // Predicated region
      $region13: #{unet_decoder_forward.5} parent=5 // pred_check
        %p190 = pneg %p189
      $region14: #{unet_decoder_forward.5} parent=5 // pred_check_branch
        %192 = sbr.rel (%p190) target = $region16
      $region15: #{unet_decoder_forward.5} parent=5 // pred_region
        // Predicated region
        $region17: #{unet_decoder_forward.5} parent=15 // pred_check
          %p193 = pneg %p56
        $region18: #{unet_decoder_forward.5} parent=15 // pred_check_branch
          %195 = sbr.rel (%p193) target = $region20
        $region19: #{unet_decoder_forward.5} parent=15 // pred_region
          %p196 = scmp.lt.s32.totalorder %s26, 7
          %s197 = scalar_select %p196, %s26, 7
          %p198 = scmp.lt.s32.totalorder %s25, 1
          %s199 = scalar_select %p198, %s25, 1
          %p200 = scmp.lt.s32.totalorder %s197, 7
          %s201 = scalar_select %p200, %s197, 7
          %s202 = smul.addr %s201, 8
          %s203 = smul.addr %s199, 64
          %s204 = sadd.s32 %s202, %s203
          %s205 = smul.addr %s204, 4
          %s206 = scalar_lea.vmem %s0, %s205
          %p207 = scmp.lt.s32.totalorder %s26, 7
          %s208 = scalar_select %p207, %s26, 7
        $region20: #{unet_decoder_forward.5} parent=15 // pred_fallthru
          _
        // Predicated region
        $region21: #{unet_decoder_forward.5} parent=15 // pred_check
          %p209 = pneg %p82
        $region22: #{unet_decoder_forward.5} parent=15 // pred_check_branch
          %211 = sbr.rel (%p209) target = $region24
        $region23: #{unet_decoder_forward.5} parent=15 // pred_region
          %p212 = scmp.lt.s32.totalorder %s25, 1
          %s213 = scalar_select %p212, %s25, 1
          %s214 = smul.addr %s213, 2
          %s215 = scalar_lea.vmem %s1, %s214
        $region24: #{unet_decoder_forward.5} parent=15 // pred_fallthru
          _
      $region16: #{unet_decoder_forward.5} parent=5 // pred_fallthru
        _
      %p216 = scmp.le.s32.totalorder 1, %s18
      %p217 = scmp.lt.s32.totalorder %s18, 19
      %p218 = pnand %p216, %p217
      %p219 = pneg %p218
      // Predicated region
      $region25: #{unet_decoder_forward.5} parent=5 // pred_check
        _
      $region26: #{unet_decoder_forward.5} parent=5 // pred_check_branch
        %221 = sbr.rel (%p218) target = $region28
      $region27: #{unet_decoder_forward.5} parent=5 // pred_region
        %s222 = ssub.s32 %s18, 1
        %p223 = scmp.lt.s32.totalorder %s28, 7
        %s224 = scalar_select %p223, %s28, 7
        %p225 = scmp.lt.s32.totalorder %s27, 1
        %s226 = scalar_select %p225, %s27, 1
        %p227 = scmp.lt.s32.totalorder %s224, 7
        %s228 = scalar_select %p227, %s224, 7
        %s229 = smul.addr %s228, 8
        %s230 = smul.addr %s226, 64
        %s231 = sadd.s32 %s229, %s230
        %s232 = smul.addr %s231, 4
        %s233 = scalar_lea.vmem %s0, %s232
        %p234 = pneg %p62
        %p235 = pneg %p59
        %p236 = scmp.lt.s32.totalorder %s27, 1
        %s237 = scalar_select %p236, %s27, 1
        %s238 = smul.addr %s237, 2
        %s239 = scalar_lea.vmem %s1, %s238
        %p240 = pneg %p88
        %p241 = pneg %p85
        %p242 = pneg %p122
        %p243 = pneg %p119
        %s244 = sand.u32 %s109, 1
        %s245 = scalar_lea.sflag [#allocation5], %s244
        %s246 = sand.u32 %s109, 1
        %s247 = smul.addr %s246, 64
        %s248 = scalar_lea.vmem [#allocation4], %s247
        %p249 = pneg %p148
        %p250 = pneg %p145
        %s251 = sand.u32 %s23, 1
        %s252 = scalar_lea.sflag [#allocation7], %s251
        %s253 = sand.u32 %s135, 1
        %s254 = scalar_lea.vmem [#allocation6], %s253
        %p255 = pneg %p174
        %p256 = pneg %p171
        %s257 = sand.u32 %s23, 1
        %s258 = scalar_lea.sflag [#allocation7], %s257
        %s259 = sand.u32 %s161, 1
        %s260 = scalar_lea.vmem [#allocation8], %s259
        %p261 = scmp.lt.s32.totalorder %s28, 7
        %s262 = scalar_select %p261, %s28, 7
        %p263 = scmp.lt.s32.totalorder %s27, 1
        %s264 = scalar_select %p263, %s27, 1
        %p265 = scmp.lt.s32.totalorder %s262, 7
        %s266 = scalar_select %p265, %s262, 7
        %s267 = smul.addr %s266, 8
        %s268 = smul.addr %s264, 64
        %s269 = sadd.s32 %s267, %s268
        %s270 = smul.addr %s269, 4
        %s271 = scalar_lea.vmem %s0, %s270
        %p272 = scmp.lt.s32.totalorder %s28, 7
        %s273 = scalar_select %p272, %s28, 7
        %p274 = scmp.lt.s32.totalorder %s27, 1
        %s275 = scalar_select %p274, %s27, 1
        %s276 = smul.addr %s275, 2
        %s277 = scalar_lea.vmem %s1, %s276
        %s278 = ssub.s32 %s28, 1
        %p279 = scmp.gt.s32.totalorder %s278, 0
        %s280 = scalar_select %p279, %s278, 0
        %p282 = scmp.eq.s32.totalorder %s28, 0
        // Predicated region
        $region29: #{unet_decoder_forward.5} parent=27 // pred_check
          %p283 = pneg %p282
        $region30: #{unet_decoder_forward.5} parent=27 // pred_check_branch
          %285 = sbr.rel (%p283) target = $region32
        $region31: #{unet_decoder_forward.5} parent=27 // pred_region
          %vm286 = vcmask 257024
          %287 = vst.msk [vmem:[#allocation2] sm:$0xf] %vm286, 0
          %vm288 = vcmask 253952
          %289 = vst.msk [vmem:[#allocation2 + $0x4] sm:$0x1] %vm288, 0
          %290 = vst.msk [vmem:[#allocation2 + $0x8] sm:$0xf] %vm286, 0
          %291 = vst.msk [vmem:[#allocation2 + $0xc] sm:$0x1] %vm288, 0
          %292 = vst.msk [vmem:[#allocation2 + $0x10] sm:$0xf] %vm286, 0
          %293 = vst.msk [vmem:[#allocation2 + $0x14] sm:$0x1] %vm288, 0
          %294 = vst.msk [vmem:[#allocation2 + $0x18] sm:$0xf] %vm286, 0
          %295 = vst.msk [vmem:[#allocation2 + $0x1c] sm:$0x1] %vm288, 0
          %296 = vst.msk [vmem:[#allocation2 + $0x20] sm:$0xf] %vm286, 0
          %297 = vst.msk [vmem:[#allocation2 + $0x24] sm:$0x1] %vm288, 0
          %298 = vst.msk [vmem:[#allocation2 + $0x28] sm:$0xf] %vm286, 0
          %299 = vst.msk [vmem:[#allocation2 + $0x2c] sm:$0x1] %vm288, 0
          %300 = vst.msk [vmem:[#allocation2 + $0x30] sm:$0xf] %vm286, 0
          %301 = vst.msk [vmem:[#allocation2 + $0x34] sm:$0x1] %vm288, 0
          %302 = vst.msk [vmem:[#allocation2 + $0x38] sm:$0xf] %vm286, 0
          %303 = vst.msk [vmem:[#allocation2 + $0x3c] sm:$0x1] %vm288, 0
          %304 = vst.msk [vmem:[#allocation2 + $0x40] sm:$0xf] %vm286, 0
          %305 = vst.msk [vmem:[#allocation2 + $0x44] sm:$0x1] %vm288, 0
          %306 = vst.msk [vmem:[#allocation2 + $0x48] sm:$0xf] %vm286, 0
          %307 = vst.msk [vmem:[#allocation2 + $0x4c] sm:$0x1] %vm288, 0
          %308 = vst.msk [vmem:[#allocation2 + $0x50] sm:$0xf] %vm286, 0
          %309 = vst.msk [vmem:[#allocation2 + $0x54] sm:$0x1] %vm288, 0
          %310 = vst.msk [vmem:[#allocation2 + $0x58] sm:$0xf] %vm286, 0
          %311 = vst.msk [vmem:[#allocation2 + $0x5c] sm:$0x1] %vm288, 0
          %312 = vst.msk [vmem:[#allocation2 + $0x60] sm:$0xf] %vm286, 0
          %313 = vst.msk [vmem:[#allocation2 + $0x64] sm:$0x1] %vm288, 0
          %314 = vst.msk [vmem:[#allocation2 + $0x68] sm:$0xf] %vm286, 0
          %315 = vst.msk [vmem:[#allocation2 + $0x6c] sm:$0x1] %vm288, 0
          %316 = vst.msk [vmem:[#allocation2 + $0x70] sm:$0xf] %vm286, 0
          %317 = vst.msk [vmem:[#allocation2 + $0x74] sm:$0x1] %vm288, 0
          %318 = vst.msk [vmem:[#allocation2 + $0x78] sm:$0xf] %vm286, 0
          %319 = vst.msk [vmem:[#allocation2 + $0x7c] sm:$0x1] %vm288, 0
          %320 = vst.msk [vmem:[#allocation2 + $0x80] sm:$0xf] %vm286, 0
          %321 = vst.msk [vmem:[#allocation2 + $0x84] sm:$0x1] %vm288, 0
          %322 = vst.msk [vmem:[#allocation2 + $0x88] sm:$0xf] %vm286, 0
          %323 = vst.msk [vmem:[#allocation2 + $0x8c] sm:$0x1] %vm288, 0
          %324 = vst.msk [vmem:[#allocation2 + $0x90] sm:$0xf] %vm286, 0
          %325 = vst.msk [vmem:[#allocation2 + $0x94] sm:$0x1] %vm288, 0
          %326 = vst.msk [vmem:[#allocation2 + $0x98] sm:$0xf] %vm286, 0
          %327 = vst.msk [vmem:[#allocation2 + $0x9c] sm:$0x1] %vm288, 0
          %328 = vst.msk [vmem:[#allocation2 + $0xa0] sm:$0xf] %vm286, 0
          %329 = vst.msk [vmem:[#allocation2 + $0xa4] sm:$0x1] %vm288, 0
          %330 = vst.msk [vmem:[#allocation2 + $0xa8] sm:$0xf] %vm286, 0
          %331 = vst.msk [vmem:[#allocation2 + $0xac] sm:$0x1] %vm288, 0
          %332 = vst.msk [vmem:[#allocation2 + $0xb0] sm:$0xf] %vm286, 0
          %333 = vst.msk [vmem:[#allocation2 + $0xb4] sm:$0x1] %vm288, 0
          %334 = vst.msk [vmem:[#allocation2 + $0xb8] sm:$0xf] %vm286, 0
          %335 = vst.msk [vmem:[#allocation2 + $0xbc] sm:$0x1] %vm288, 0
          %336 = vst.msk [vmem:[#allocation2 + $0xc0] sm:$0xf] %vm286, 0
          %337 = vst.msk [vmem:[#allocation2 + $0xc4] sm:$0x1] %vm288, 0
          %338 = vst.msk [vmem:[#allocation2 + $0xc8] sm:$0xf] %vm286, 0
          %339 = vst.msk [vmem:[#allocation2 + $0xcc] sm:$0x1] %vm288, 0
          %340 = vst.msk [vmem:[#allocation2 + $0xd0] sm:$0xf] %vm286, 0
          %341 = vst.msk [vmem:[#allocation2 + $0xd4] sm:$0x1] %vm288, 0
          %342 = vst.msk [vmem:[#allocation2 + $0xd8] sm:$0xf] %vm286, 0
          %343 = vst.msk [vmem:[#allocation2 + $0xdc] sm:$0x1] %vm288, 0
          %344 = vst.msk [vmem:[#allocation2 + $0xe0] sm:$0xf] %vm286, 0
          %345 = vst.msk [vmem:[#allocation2 + $0xe4] sm:$0x1] %vm288, 0
          %346 = vst.msk [vmem:[#allocation2 + $0xe8] sm:$0xf] %vm286, 0
          %347 = vst.msk [vmem:[#allocation2 + $0xec] sm:$0x1] %vm288, 0
          %348 = vst.msk [vmem:[%s254] sm:$0x1] %vm288, 0.0
          %349 = vst.msk [vmem:[%s260] sm:$0x1] %vm288, 0.0
          %vm350 = vcmask 261120
          %351 = vst.msk [vmem:[%s248] sm:$0xff] %vm350, 0.0
          %352 = vst.msk [vmem:[%s248 + $0x8] sm:$0xff] %vm350, 0.0
          %353 = vst.msk [vmem:[%s248 + $0x10] sm:$0xff] %vm350, 0.0
          %354 = vst.msk [vmem:[%s248 + $0x18] sm:$0xff] %vm350, 0.0
          %355 = vst.msk [vmem:[%s248 + $0x20] sm:$0xff] %vm350, 0.0
          %356 = vst.msk [vmem:[%s248 + $0x28] sm:$0xff] %vm350, 0.0
          %357 = vst.msk [vmem:[%s248 + $0x30] sm:$0xff] %vm350, 0.0
          %358 = vst.msk [vmem:[%s248 + $0x38] sm:$0xff] %vm350, 0.0
          $region33: #{unet_decoder_forward.5} parent=31
            #allocation9 [shape = 's32[1]{0}', space=sflag, size = 0x4, scoped, tag = 'scoped memory for unet_decoder_forward.5']
            %p360 = scmp.lt.u32.totalorder 432, 8
            %p361 = pneg %p360
            // Predicated region
            $region34: #{unet_decoder_forward.5} parent=33 // pred_check
              _
            $region35: #{unet_decoder_forward.5} parent=33 // pred_check_branch
              %363 = sbr.rel (%p360) target = $region37
            $region36: #{unet_decoder_forward.5} parent=33 // pred_region
              %s378 = sand.u32 432, 7
              %p379 = scmp.eq.s32.totalorder %s378, 0
              // Predicated region
              $region49: #{unet_decoder_forward.5} parent=36 // pred_check
                %p380 = pneg %p379
              $region50: #{unet_decoder_forward.5} parent=36 // pred_check_branch
                %382 = sbr.rel (%p380) target = $region52
              $region51: #{unet_decoder_forward.5} parent=36 // pred_region
                loop: start=0, step=1, limit=1
                $region53: #{unet_decoder_forward.5} parent=51 // loop_pre_header
                  _
                $region54: #{unet_decoder_forward.5} parent=51 // loop_header
                  %s384 = sphi 0, %s388
                  %p385 = scmp.ge.s32.totalorder %s384, 1
                  %s389 = sphi %s2, %s2
                  %s390 = sphi [#allocation3], [#allocation3]
                $region55: #{unet_decoder_forward.5} parent=51 // loop_header_branch
                  %387 = sbr.rel (%p385) target = $region59
                $region56: #{unet_decoder_forward.5} parent=51 // loop_body
                  %v391 = vld [vmem:[%s389] sm:$0xff]
                  %392 = vst [vmem:[%s390] sm:$0xff] %v391
                  %v393 = vld [vmem:[%s389 + $0x8] sm:$0xff]
                  %394 = vst [vmem:[%s390 + $0x8] sm:$0xff] %v393
                  %v395 = vld [vmem:[%s389 + $0x10] sm:$0xff]
                  %396 = vst [vmem:[%s390 + $0x10] sm:$0xff] %v395
                  %v397 = vld [vmem:[%s389 + $0x18] sm:$0xff]
                  %398 = vst [vmem:[%s390 + $0x18] sm:$0xff] %v397
                  %v399 = vld [vmem:[%s389 + $0x20] sm:$0xff]
                  %400 = vst [vmem:[%s390 + $0x20] sm:$0xff] %v399
                  %v401 = vld [vmem:[%s389 + $0x28] sm:$0xff]
                  %402 = vst [vmem:[%s390 + $0x28] sm:$0xff] %v401
                  %v403 = vld [vmem:[%s389 + $0x30] sm:$0xff]
                  %404 = vst [vmem:[%s390 + $0x30] sm:$0xff] %v403
                  %v405 = vld [vmem:[%s389 + $0x38] sm:$0xff]
                  %406 = vst [vmem:[%s390 + $0x38] sm:$0xff] %v405
                  %v407 = vld [vmem:[%s389 + $0x40] sm:$0xff]
                  %408 = vst [vmem:[%s390 + $0x40] sm:$0xff] %v407
                  %v409 = vld [vmem:[%s389 + $0x48] sm:$0xff]
                  %410 = vst [vmem:[%s390 + $0x48] sm:$0xff] %v409
                  %v411 = vld [vmem:[%s389 + $0x50] sm:$0xff]
                  %412 = vst [vmem:[%s390 + $0x50] sm:$0xff] %v411
                  %v413 = vld [vmem:[%s389 + $0x58] sm:$0xff]
                  %414 = vst [vmem:[%s390 + $0x58] sm:$0xff] %v413
                  %v415 = vld [vmem:[%s389 + $0x60] sm:$0xff]
                  %416 = vst [vmem:[%s390 + $0x60] sm:$0xff] %v415
                  %v417 = vld [vmem:[%s389 + $0x68] sm:$0xff]
                  %418 = vst [vmem:[%s390 + $0x68] sm:$0xff] %v417
                  %v419 = vld [vmem:[%s389 + $0x70] sm:$0xff]
                  %420 = vst [vmem:[%s390 + $0x70] sm:$0xff] %v419
                  %v421 = vld [vmem:[%s389 + $0x78] sm:$0xff]
                  %422 = vst [vmem:[%s390 + $0x78] sm:$0xff] %v421
                  %v423 = vld [vmem:[%s389 + $0x80] sm:$0xff]
                  %424 = vst [vmem:[%s390 + $0x80] sm:$0xff] %v423
                  %v425 = vld [vmem:[%s389 + $0x88] sm:$0xff]
                  %426 = vst [vmem:[%s390 + $0x88] sm:$0xff] %v425
                  %v427 = vld [vmem:[%s389 + $0x90] sm:$0xff]
                  %428 = vst [vmem:[%s390 + $0x90] sm:$0xff] %v427
                  %v429 = vld [vmem:[%s389 + $0x98] sm:$0xff]
                  %430 = vst [vmem:[%s390 + $0x98] sm:$0xff] %v429
                  %v431 = vld [vmem:[%s389 + $0xa0] sm:$0xff]
                  %432 = vst [vmem:[%s390 + $0xa0] sm:$0xff] %v431
                  %v433 = vld [vmem:[%s389 + $0xa8] sm:$0xff]
                  %434 = vst [vmem:[%s390 + $0xa8] sm:$0xff] %v433
                  %v435 = vld [vmem:[%s389 + $0xb0] sm:$0xff]
                  %436 = vst [vmem:[%s390 + $0xb0] sm:$0xff] %v435
                  %v437 = vld [vmem:[%s389 + $0xb8] sm:$0xff]
                  %438 = vst [vmem:[%s390 + $0xb8] sm:$0xff] %v437
                  %v439 = vld [vmem:[%s389 + $0xc0] sm:$0xff]
                  %440 = vst [vmem:[%s390 + $0xc0] sm:$0xff] %v439
                  %v441 = vld [vmem:[%s389 + $0xc8] sm:$0xff]
                  %442 = vst [vmem:[%s390 + $0xc8] sm:$0xff] %v441
                  %v443 = vld [vmem:[%s389 + $0xd0] sm:$0xff]
                  %444 = vst [vmem:[%s390 + $0xd0] sm:$0xff] %v443
                  %v445 = vld [vmem:[%s389 + $0xd8] sm:$0xff]
                  %446 = vst [vmem:[%s390 + $0xd8] sm:$0xff] %v445
                  %v447 = vld [vmem:[%s389 + $0xe0] sm:$0xff]
                  %448 = vst [vmem:[%s390 + $0xe0] sm:$0xff] %v447
                  %v449 = vld [vmem:[%s389 + $0xe8] sm:$0xff]
                  %450 = vst [vmem:[%s390 + $0xe8] sm:$0xff] %v449
                  %v451 = vld [vmem:[%s389 + $0xf0] sm:$0xff]
                  %452 = vst [vmem:[%s390 + $0xf0] sm:$0xff] %v451
                  %v453 = vld [vmem:[%s389 + $0xf8] sm:$0xff]
                  %454 = vst [vmem:[%s390 + $0xf8] sm:$0xff] %v453
                  %v455 = vld [vmem:[%s389 + $0x100] sm:$0xff]
                  %456 = vst [vmem:[%s390 + $0x100] sm:$0xff] %v455
                  %v457 = vld [vmem:[%s389 + $0x108] sm:$0xff]
                  %458 = vst [vmem:[%s390 + $0x108] sm:$0xff] %v457
                  %v459 = vld [vmem:[%s389 + $0x110] sm:$0xff]
                  %460 = vst [vmem:[%s390 + $0x110] sm:$0xff] %v459
                  %v461 = vld [vmem:[%s389 + $0x118] sm:$0xff]
                  %462 = vst [vmem:[%s390 + $0x118] sm:$0xff] %v461
                  %v463 = vld [vmem:[%s389 + $0x120] sm:$0xff]
                  %464 = vst [vmem:[%s390 + $0x120] sm:$0xff] %v463
                  %v465 = vld [vmem:[%s389 + $0x128] sm:$0xff]
                  %466 = vst [vmem:[%s390 + $0x128] sm:$0xff] %v465
                  %v467 = vld [vmem:[%s389 + $0x130] sm:$0xff]
                  %468 = vst [vmem:[%s390 + $0x130] sm:$0xff] %v467
                  %v469 = vld [vmem:[%s389 + $0x138] sm:$0xff]
                  %470 = vst [vmem:[%s390 + $0x138] sm:$0xff] %v469
                  %v471 = vld [vmem:[%s389 + $0x140] sm:$0xff]
                  %472 = vst [vmem:[%s390 + $0x140] sm:$0xff] %v471
                  %v473 = vld [vmem:[%s389 + $0x148] sm:$0xff]
                  %474 = vst [vmem:[%s390 + $0x148] sm:$0xff] %v473
                  %v475 = vld [vmem:[%s389 + $0x150] sm:$0xff]
                  %476 = vst [vmem:[%s390 + $0x150] sm:$0xff] %v475
                  %v477 = vld [vmem:[%s389 + $0x158] sm:$0xff]
                  %478 = vst [vmem:[%s390 + $0x158] sm:$0xff] %v477
                  %v479 = vld [vmem:[%s389 + $0x160] sm:$0xff]
                  %480 = vst [vmem:[%s390 + $0x160] sm:$0xff] %v479
                  %v481 = vld [vmem:[%s389 + $0x168] sm:$0xff]
                  %482 = vst [vmem:[%s390 + $0x168] sm:$0xff] %v481
                  %v483 = vld [vmem:[%s389 + $0x170] sm:$0xff]
                  %484 = vst [vmem:[%s390 + $0x170] sm:$0xff] %v483
                  %v485 = vld [vmem:[%s389 + $0x178] sm:$0xff]
                  %486 = vst [vmem:[%s390 + $0x178] sm:$0xff] %v485
                  %v487 = vld [vmem:[%s389 + $0x180] sm:$0xff]
                  %488 = vst [vmem:[%s390 + $0x180] sm:$0xff] %v487
                  %v489 = vld [vmem:[%s389 + $0x188] sm:$0xff]
                  %490 = vst [vmem:[%s390 + $0x188] sm:$0xff] %v489
                  %v491 = vld [vmem:[%s389 + $0x190] sm:$0xff]
                  %492 = vst [vmem:[%s390 + $0x190] sm:$0xff] %v491
                  %v493 = vld [vmem:[%s389 + $0x198] sm:$0xff]
                  %494 = vst [vmem:[%s390 + $0x198] sm:$0xff] %v493
                  %v495 = vld [vmem:[%s389 + $0x1a0] sm:$0xff]
                  %496 = vst [vmem:[%s390 + $0x1a0] sm:$0xff] %v495
                  %v497 = vld [vmem:[%s389 + $0x1a8] sm:$0xff]
                  %498 = vst [vmem:[%s390 + $0x1a8] sm:$0xff] %v497
                $region57: #{unet_decoder_forward.5} parent=51 // loop_footer
                  %s388 = sadd.s32 1, %s384
                $region58: #{unet_decoder_forward.5} parent=51 // loop_footer_branch
                  %383 = sbr.rel target = $region54
                $region59: #{unet_decoder_forward.5} parent=51 // loop_exit
                  _
              $region52: #{unet_decoder_forward.5} parent=36 // pred_fallthru
                _
              %p499 = pneg %p379
              // Predicated region
              $region60: #{unet_decoder_forward.5} parent=36 // pred_check
                _
              $region61: #{unet_decoder_forward.5} parent=36 // pred_check_branch
                %501 = sbr.rel (%p379) target = $region63
              $region62: #{unet_decoder_forward.5} parent=36 // pred_region
                %s502 = sand.u32 432, 7
              $region63: #{unet_decoder_forward.5} parent=36 // pred_fallthru
                _
            $region37: #{unet_decoder_forward.5} parent=33 // pred_fallthru
              _
            // Predicated region
            $region38: #{unet_decoder_forward.5} parent=33 // pred_check
              %p364 = pneg %p360
            $region39: #{unet_decoder_forward.5} parent=33 // pred_check_branch
              %366 = sbr.rel (%p364) target = $region41
            $region40: #{unet_decoder_forward.5} parent=33 // pred_region
              %s367 = sshllo.u32 0, 432
              loop: start=0, step=1, limit=1
              $region42: #{unet_decoder_forward.5} parent=40 // loop_pre_header
                _
              $region43: #{unet_decoder_forward.5} parent=40 // loop_header
                %s369 = sphi 0, %s373
                %p370 = scmp.ge.s32.totalorder %s369, 1
                %s374 = sphi %s2, %s2
                %s375 = sphi [#allocation3], [#allocation3]
              $region44: #{unet_decoder_forward.5} parent=40 // loop_header_branch
                %372 = sbr.rel (%p370) target = $region48
              $region45: #{unet_decoder_forward.5} parent=40 // loop_body
                %v376 = vld [vmem:[%s374] sm:%s367]
                %377 = vst [vmem:[%s375] sm:%s367] %v376
              $region46: #{unet_decoder_forward.5} parent=40 // loop_footer
                %s373 = sadd.s32 1, %s369
              $region47: #{unet_decoder_forward.5} parent=40 // loop_footer_branch
                %368 = sbr.rel target = $region43
              $region48: #{unet_decoder_forward.5} parent=40 // loop_exit
                _
            $region41: #{unet_decoder_forward.5} parent=33 // pred_fallthru
              _
            // Predicated region
            $region64: #{unet_decoder_forward.5} parent=33 // pred_check
              _
            $region65: #{unet_decoder_forward.5} parent=33 // pred_check_branch
              %505 = sbr.rel (0) target = $region67
            $region66: #{unet_decoder_forward.5} parent=33 // pred_region
              %506 = vsyncadd [#allocation9], 6912
            $region67: #{unet_decoder_forward.5} parent=33 // pred_fallthru
              _
            %s507 = smul.u32 4, 3
            %s508 = smul.u32 %s507, 3
            %s509 = smul.u32 %s508, 12
            %s510 = smul.u32 %s509, 1
            %s511 = sshll.u32 %s510, 4
            %512 = dma.done [#allocation9], %s511
        $region32: #{unet_decoder_forward.5} parent=27 // pred_fallthru
          _
        %p513 = scmp.lt.s32.totalorder %s28, 0
        %s514 = ssub.s32 0, %s28
        %s515 = scalar_select %p513, %s514, %s28
        %s516 = sdiv.u32.pop %s515, 3
        %s517 = srem.u32.pop %s515, 3
        %s518 = ssub.s32 0, %s517
        %s519 = scalar_select %p513, %s518, %s517
        %p520 = scmp.ne.s32.totalorder %s519, 0
        %p521 = scmp.lt.s32.totalorder %s519, 0
        %p522 = pnand %p521, %p520
        %p523 = pneg %p522
        %s524 = sadd.s32 %s519, 3
        %s525 = scalar_select %p523, %s524, %s519
        %p526 = scmp.lt.s32.totalorder %s28, 8
        // Predicated region
        $region68: #{unet_decoder_forward.5} parent=27 // pred_check
          %p527 = pneg %p526
        $region69: #{unet_decoder_forward.5} parent=27 // pred_check_branch
          %529 = sbr.rel (%p527) target = $region71
        $region70: #{unet_decoder_forward.5} parent=27 // pred_region
          %v530 = vld [vmem:[%s277] sm:$0x1]
          %v531 = vld [vmem:[%s277 + $0x1] sm:$0x1]
          %v532 = vld [vmem:[%s271] sm:$0xf]
          %v533 = vld [vmem:[%s271 + $0x4] sm:$0xf]
          %v534 = vld [vmem:[%s271 + $0x8] sm:$0xf]
          %v535 = vld [vmem:[%s271 + $0xc] sm:$0xf]
          %v536 = vld [vmem:[%s271 + $0x10] sm:$0xf]
          %v537 = vld [vmem:[%s271 + $0x14] sm:$0xf]
          %v538 = vld [vmem:[%s271 + $0x18] sm:$0xf]
          %v539 = vld [vmem:[%s271 + $0x1c] sm:$0xf]
          %v540 = vunpack.c.l.bf16 %v532
          %v541 = vunpack.c.l.bf16 %v533
          %v542 = vunpack.c.l.bf16 %v534
          %v543 = vunpack.c.l.bf16 %v535
          %v544 = vunpack.c.l.bf16 %v536
          %v545 = vunpack.c.l.bf16 %v537
          %v546 = vunpack.c.l.bf16 %v538
          %v547 = vunpack.c.l.bf16 %v539
          %v548 = vlaneseq
          %v549 = vshrl.u32 %v548, 7
          %v550 = vsub.s32 0, %v549
          %v551 = vrot.slane %v530, %v550
          %v552 = vmul.f32 %v540, %v551
          %v553 = vmul.f32 %v541, %v551
          %v554 = vmul.f32 %v542, %v551
          %v555 = vmul.f32 %v543, %v551
          %v556 = vmul.f32 %v544, %v551
          %v557 = vmul.f32 %v545, %v551
          %v558 = vmul.f32 %v546, %v551
          %v559 = vmul.f32 %v547, %v551
          %v560 = vlaneseq
          %v561 = vshrl.u32 %v560, 7
          %v562 = vsub.s32 0, %v561
          %v563 = vrot.slane %v531, %v562
          %v564 = vadd.f32 %v552, %v563
          %v565 = vadd.f32 %v553, %v563
          %v566 = vadd.f32 %v554, %v563
          %v567 = vadd.f32 %v555, %v563
          %v568 = vadd.f32 %v556, %v563
          %v569 = vadd.f32 %v557, %v563
          %v570 = vadd.f32 %v558, %v563
          %v571 = vadd.f32 %v559, %v563
          %v572 = vpack.c.bf16 %v564, %v564
          %v573 = vpack.c.bf16 %v565, %v565
          %v574 = vpack.c.bf16 %v566, %v566
          %v575 = vpack.c.bf16 %v567, %v567
          %v576 = vpack.c.bf16 %v568, %v568
          %v577 = vpack.c.bf16 %v569, %v569
          %v578 = vpack.c.bf16 %v570, %v570
          %v579 = vpack.c.bf16 %v571, %v571
          %v588 = vunpack.c.l.b16 %v572
          %v589 = vunpack.c.l.b16 %v573
          %v590 = vunpack.c.l.b16 %v574
          %v591 = vunpack.c.l.b16 %v575
          %v592 = vunpack.c.l.b16 %v576
          %v593 = vunpack.c.l.b16 %v577
          %v594 = vunpack.c.l.b16 %v578
          %v595 = vunpack.c.l.b16 %v579
          %v596 = vpack.c.b16 %v588, %v588
          %v597 = vpack.c.b16 %v589, %v589
          %v598 = vpack.c.b16 %v590, %v590
          %v599 = vpack.c.b16 %v591, %v591
          %v600 = vpack.c.b16 %v592, %v592
          %v601 = vpack.c.b16 %v593, %v593
          %v602 = vpack.c.b16 %v594, %v594
          %v603 = vpack.c.b16 %v595, %v595
          %v605 = vshrl.u32 %v596, 16
          %v607 = vrot.slane %v605, 7
          %v608 = vshll.u32 %v596, 16
          %v610 = vor.u32 %v607, %v608
          %v611 = vrot.slane %v607, 4
          %v613 = vshrl.u32 %v597, 16
          %v615 = vrot.slane %v613, 7
          %v616 = vshll.u32 %v597, 16
          %v618 = vor.u32 %v615, %v616
          %v619 = vrot.slane %v615, 4
          %v621 = vshrl.u32 %v598, 16
          %v623 = vrot.slane %v621, 7
          %v624 = vshll.u32 %v598, 16
          %v626 = vor.u32 %v623, %v624
          %v627 = vrot.slane %v623, 4
          %v629 = vshrl.u32 %v599, 16
          %v631 = vrot.slane %v629, 7
          %v632 = vshll.u32 %v599, 16
          %v634 = vor.u32 %v631, %v632
          %v635 = vrot.slane %v631, 4
          %v637 = vshrl.u32 %v600, 16
          %v639 = vrot.slane %v637, 7
          %v640 = vshll.u32 %v600, 16
          %v642 = vor.u32 %v639, %v640
          %v643 = vrot.slane %v639, 4
          %v645 = vshrl.u32 %v601, 16
          %v647 = vrot.slane %v645, 7
          %v648 = vshll.u32 %v601, 16
          %v650 = vor.u32 %v647, %v648
          %v651 = vrot.slane %v647, 4
          %v653 = vshrl.u32 %v602, 16
          %v655 = vrot.slane %v653, 7
          %v656 = vshll.u32 %v602, 16
          %v658 = vor.u32 %v655, %v656
          %v659 = vrot.slane %v655, 4
          %v661 = vshrl.u32 %v603, 16
          %v663 = vrot.slane %v661, 7
          %v664 = vshll.u32 %v603, 16
          %v666 = vor.u32 %v663, %v664
          %v667 = vrot.slane %v663, 4
          %s684 = smul.u32 %s525, 20
          %s685 = sadd.s32 2, %s684
          %s686 = smul.addr %s685, 4
          %s687 = scalar_lea.vmem [#allocation2], %s686
          %vm688 = vcmask 257024
          %vm689 = vsmask.f32 7938
          %vm690 = vmand %vm688, %vm689
          %v691 = vld [vmem:[%s687] sm:$0xf]
          %v692 = vsel %vm690, %v610, %v691
          %693 = vst [vmem:[%s687] sm:$0xf] %v692
          %vm694 = vcmask 253952
          %vm695 = vsmask.f32 256
          %vm696 = vmand %vm694, %vm695
          %v697 = vld [vmem:[%s687 + $0x4] sm:$0x1]
          %v698 = vsel %vm696, %v611, %v697
          %699 = vst [vmem:[%s687 + $0x4] sm:$0x1] %v698
          %v700 = vld [vmem:[%s687 + $0x8] sm:$0xf]
          %v701 = vsel %vm690, %v618, %v700
          %702 = vst [vmem:[%s687 + $0x8] sm:$0xf] %v701
          %v703 = vld [vmem:[%s687 + $0xc] sm:$0x1]
          %v704 = vsel %vm696, %v619, %v703
          %705 = vst [vmem:[%s687 + $0xc] sm:$0x1] %v704
          %v706 = vld [vmem:[%s687 + $0x10] sm:$0xf]
          %v707 = vsel %vm690, %v626, %v706
          %708 = vst [vmem:[%s687 + $0x10] sm:$0xf] %v707
          %v709 = vld [vmem:[%s687 + $0x14] sm:$0x1]
          %v710 = vsel %vm696, %v627, %v709
          %711 = vst [vmem:[%s687 + $0x14] sm:$0x1] %v710
          %v712 = vld [vmem:[%s687 + $0x18] sm:$0xf]
          %v713 = vsel %vm690, %v634, %v712
          %714 = vst [vmem:[%s687 + $0x18] sm:$0xf] %v713
          %v715 = vld [vmem:[%s687 + $0x1c] sm:$0x1]
          %v716 = vsel %vm696, %v635, %v715
          %717 = vst [vmem:[%s687 + $0x1c] sm:$0x1] %v716
          %v718 = vld [vmem:[%s687 + $0x20] sm:$0xf]
          %v719 = vsel %vm690, %v642, %v718
          %720 = vst [vmem:[%s687 + $0x20] sm:$0xf] %v719
          %v721 = vld [vmem:[%s687 + $0x24] sm:$0x1]
          %v722 = vsel %vm696, %v643, %v721
          %723 = vst [vmem:[%s687 + $0x24] sm:$0x1] %v722
          %v724 = vld [vmem:[%s687 + $0x28] sm:$0xf]
          %v725 = vsel %vm690, %v650, %v724
          %726 = vst [vmem:[%s687 + $0x28] sm:$0xf] %v725
          %v727 = vld [vmem:[%s687 + $0x2c] sm:$0x1]
          %v728 = vsel %vm696, %v651, %v727
          %729 = vst [vmem:[%s687 + $0x2c] sm:$0x1] %v728
          %v730 = vld [vmem:[%s687 + $0x30] sm:$0xf]
          %v731 = vsel %vm690, %v658, %v730
          %732 = vst [vmem:[%s687 + $0x30] sm:$0xf] %v731
          %v733 = vld [vmem:[%s687 + $0x34] sm:$0x1]
          %v734 = vsel %vm696, %v659, %v733
          %735 = vst [vmem:[%s687 + $0x34] sm:$0x1] %v734
          %v736 = vld [vmem:[%s687 + $0x38] sm:$0xf]
          %v737 = vsel %vm690, %v666, %v736
          %738 = vst [vmem:[%s687 + $0x38] sm:$0xf] %v737
          %v739 = vld [vmem:[%s687 + $0x3c] sm:$0x1]
          %v740 = vsel %vm696, %v667, %v739
          %741 = vst [vmem:[%s687 + $0x3c] sm:$0x1] %v740
        $region71: #{unet_decoder_forward.5} parent=27 // pred_fallthru
          _
        %p742 = scmp.ge.s32.totalorder %s28, 8
        // Predicated region
        $region72: #{unet_decoder_forward.5} parent=27 // pred_check
          %p743 = pneg %p742
        $region73: #{unet_decoder_forward.5} parent=27 // pred_check_branch
          %745 = sbr.rel (%p743) target = $region75
        $region74: #{unet_decoder_forward.5} parent=27 // pred_region
          %s746 = smul.u32 %s525, 20
          %s747 = sadd.s32 2, %s746
          %s748 = smul.addr %s747, 4
          %s749 = scalar_lea.vmem [#allocation2], %s748
          %vm750 = vcmask 257024
          %vm751 = vsmask.f32 7938
          %vm752 = vmand %vm750, %vm751
          %v753 = vld [vmem:[%s749] sm:$0xf]
          %v754 = vsel %vm752, 0, %v753
          %755 = vst [vmem:[%s749] sm:$0xf] %v754
          %vm756 = vcmask 253952
          %vm757 = vsmask.f32 256
          %vm758 = vmand %vm756, %vm757
          %v759 = vld [vmem:[%s749 + $0x4] sm:$0x1]
          %v760 = vsel %vm758, 0, %v759
          %761 = vst [vmem:[%s749 + $0x4] sm:$0x1] %v760
          %v762 = vld [vmem:[%s749 + $0x8] sm:$0xf]
          %v763 = vsel %vm752, 0, %v762
          %764 = vst [vmem:[%s749 + $0x8] sm:$0xf] %v763
          %v765 = vld [vmem:[%s749 + $0xc] sm:$0x1]
          %v766 = vsel %vm758, 0, %v765
          %767 = vst [vmem:[%s749 + $0xc] sm:$0x1] %v766
          %v768 = vld [vmem:[%s749 + $0x10] sm:$0xf]
          %v769 = vsel %vm752, 0, %v768
          %770 = vst [vmem:[%s749 + $0x10] sm:$0xf] %v769
          %v771 = vld [vmem:[%s749 + $0x14] sm:$0x1]
          %v772 = vsel %vm758, 0, %v771
          %773 = vst [vmem:[%s749 + $0x14] sm:$0x1] %v772
          %v774 = vld [vmem:[%s749 + $0x18] sm:$0xf]
          %v775 = vsel %vm752, 0, %v774
          %776 = vst [vmem:[%s749 + $0x18] sm:$0xf] %v775
          %v777 = vld [vmem:[%s749 + $0x1c] sm:$0x1]
          %v778 = vsel %vm758, 0, %v777
          %779 = vst [vmem:[%s749 + $0x1c] sm:$0x1] %v778
          %v780 = vld [vmem:[%s749 + $0x20] sm:$0xf]
          %v781 = vsel %vm752, 0, %v780
          %782 = vst [vmem:[%s749 + $0x20] sm:$0xf] %v781
          %v783 = vld [vmem:[%s749 + $0x24] sm:$0x1]
          %v784 = vsel %vm758, 0, %v783
          %785 = vst [vmem:[%s749 + $0x24] sm:$0x1] %v784
          %v786 = vld [vmem:[%s749 + $0x28] sm:$0xf]
          %v787 = vsel %vm752, 0, %v786
          %788 = vst [vmem:[%s749 + $0x28] sm:$0xf] %v787
          %v789 = vld [vmem:[%s749 + $0x2c] sm:$0x1]
          %v790 = vsel %vm758, 0, %v789
          %791 = vst [vmem:[%s749 + $0x2c] sm:$0x1] %v790
          %v792 = vld [vmem:[%s749 + $0x30] sm:$0xf]
          %v793 = vsel %vm752, 0, %v792
          %794 = vst [vmem:[%s749 + $0x30] sm:$0xf] %v793
          %v795 = vld [vmem:[%s749 + $0x34] sm:$0x1]
          %v796 = vsel %vm758, 0, %v795
          %797 = vst [vmem:[%s749 + $0x34] sm:$0x1] %v796
          %v798 = vld [vmem:[%s749 + $0x38] sm:$0xf]
          %v799 = vsel %vm752, 0, %v798
          %800 = vst [vmem:[%s749 + $0x38] sm:$0xf] %v799
          %v801 = vld [vmem:[%s749 + $0x3c] sm:$0x1]
          %v802 = vsel %vm758, 0, %v801
          %803 = vst [vmem:[%s749 + $0x3c] sm:$0x1] %v802
        $region75: #{unet_decoder_forward.5} parent=27 // pred_fallthru
          _
        %p804 = scmp.ge.s32.totalorder %s28, 1
        // Predicated region
        $region76: #{unet_decoder_forward.5} parent=27 // pred_check
          %p805 = pneg %p804
        $region77: #{unet_decoder_forward.5} parent=27 // pred_check_branch
          %807 = sbr.rel (%p805) target = $region79
        $region78: #{unet_decoder_forward.5} parent=27 // pred_region
          %s808 = sadd.s32 %s28, 1
          %p809 = scmp.lt.s32.totalorder %s808, 0
          %s810 = ssub.s32 0, %s808
          %s811 = scalar_select %p809, %s810, %s808
          %s812 = sdiv.u32.pop %s811, 3
          %s813 = srem.u32.pop %s811, 3
          %s814 = ssub.s32 0, %s813
          %s815 = scalar_select %p809, %s814, %s813
          %p816 = scmp.ne.s32.totalorder %s815, 0
          %p817 = scmp.lt.s32.totalorder %s815, 0
          %p818 = pnand %p817, %p816
          %p819 = pneg %p818
          %s820 = sadd.s32 %s815, 3
          %s821 = scalar_select %p819, %s820, %s815
          %s822 = smul.u32 %s821, 20
          %s823 = smul.addr %s822, 4
          %s824 = scalar_lea.vmem [#allocation2], %s823
          %v825 = vld [vmem:[%s824] sm:$0xf]
          %v826 = vld [vmem:[%s824 + $0x4] sm:$0x1]
          %v827 = vld [vmem:[%s824 + $0x8] sm:$0xf]
          %v828 = vld [vmem:[%s824 + $0xc] sm:$0x1]
          %v829 = vld [vmem:[%s824 + $0x10] sm:$0xf]
          %v830 = vld [vmem:[%s824 + $0x14] sm:$0x1]
          %v831 = vld [vmem:[%s824 + $0x18] sm:$0xf]
          %v832 = vld [vmem:[%s824 + $0x1c] sm:$0x1]
          %v833 = vld [vmem:[%s824 + $0x20] sm:$0xf]
          %v834 = vld [vmem:[%s824 + $0x24] sm:$0x1]
          %v835 = vld [vmem:[%s824 + $0x28] sm:$0xf]
          %v836 = vld [vmem:[%s824 + $0x2c] sm:$0x1]
          %v837 = vld [vmem:[%s824 + $0x30] sm:$0xf]
          %v838 = vld [vmem:[%s824 + $0x34] sm:$0x1]
          %v839 = vld [vmem:[%s824 + $0x38] sm:$0xf]
          %v840 = vld [vmem:[%s824 + $0x3c] sm:$0x1]
          %v857 = vunpack.c.l.b16 %v825
          %v858 = vunpack.c.l.b16 %v826
          %v859 = vunpack.c.l.b16 %v827
          %v860 = vunpack.c.l.b16 %v828
          %v861 = vunpack.c.l.b16 %v829
          %v862 = vunpack.c.l.b16 %v830
          %v863 = vunpack.c.l.b16 %v831
          %v864 = vunpack.c.l.b16 %v832
          %v865 = vunpack.c.l.b16 %v833
          %v866 = vunpack.c.l.b16 %v834
          %v867 = vunpack.c.l.b16 %v835
          %v868 = vunpack.c.l.b16 %v836
          %v869 = vunpack.c.l.b16 %v837
          %v870 = vunpack.c.l.b16 %v838
          %v871 = vunpack.c.l.b16 %v839
          %v872 = vunpack.c.l.b16 %v840
          %v873 = vpack.c.b16 %v858, %v857
          %v874 = vpack.c.b16 %v860, %v859
          %v875 = vpack.c.b16 %v862, %v861
          %v876 = vpack.c.b16 %v864, %v863
          %v877 = vpack.c.b16 %v866, %v865
          %v878 = vpack.c.b16 %v868, %v867
          %v879 = vpack.c.b16 %v870, %v869
          %v880 = vpack.c.b16 %v872, %v871
          %v882 = vshrl.u32 %v873, 16
          %v884 = vshll.u32 %v873, 16
          %v886 = vrot.slane %v884, 1
          %v887 = vor.u32 %v882, %v886
          %v889 = vshrl.u32 %v874, 16
          %v891 = vshll.u32 %v874, 16
          %v893 = vrot.slane %v891, 1
          %v894 = vor.u32 %v889, %v893
          %v896 = vshrl.u32 %v875, 16
          %v898 = vshll.u32 %v875, 16
          %v900 = vrot.slane %v898, 1
          %v901 = vor.u32 %v896, %v900
          %v903 = vshrl.u32 %v876, 16
          %v905 = vshll.u32 %v876, 16
          %v907 = vrot.slane %v905, 1
          %v908 = vor.u32 %v903, %v907
          %v910 = vshrl.u32 %v877, 16
          %v912 = vshll.u32 %v877, 16
          %v914 = vrot.slane %v912, 1
          %v915 = vor.u32 %v910, %v914
          %v917 = vshrl.u32 %v878, 16
          %v919 = vshll.u32 %v878, 16
          %v921 = vrot.slane %v919, 1
          %v922 = vor.u32 %v917, %v921
          %v924 = vshrl.u32 %v879, 16
          %v926 = vshll.u32 %v879, 16
          %v928 = vrot.slane %v926, 1
          %v929 = vor.u32 %v924, %v928
          %v931 = vshrl.u32 %v880, 16
          %v933 = vshll.u32 %v880, 16
          %v935 = vrot.slane %v933, 1
          %v936 = vor.u32 %v931, %v935
          %937 = vrot.lane.b32.xlu0 %v887, 32
          %v938 = vpop.permute.xlu0 %937
          %939 = vrot.lane.b32.xlu0 %v894, 32
          %v940 = vpop.permute.xlu0 %939
          %941 = vrot.lane.b32.xlu0 %v901, 32
          %v942 = vpop.permute.xlu0 %941
          %943 = vrot.lane.b32.xlu0 %v908, 32
          %v944 = vpop.permute.xlu0 %943
          %945 = vrot.lane.b32.xlu0 %v915, 32
          %v946 = vpop.permute.xlu0 %945
          %947 = vrot.lane.b32.xlu0 %v922, 32
          %v948 = vpop.permute.xlu0 %947
          %949 = vrot.lane.b32.xlu0 %v929, 32
          %v950 = vpop.permute.xlu0 %949
          %951 = vrot.lane.b32.xlu0 %v936, 32
          %v952 = vpop.permute.xlu0 %951
          %v953 = vrot.slane %v873, 1
          %v954 = vrot.slane %v874, 1
          %v955 = vrot.slane %v875, 1
          %v956 = vrot.slane %v876, 1
          %v957 = vrot.slane %v877, 1
          %v958 = vrot.slane %v878, 1
          %v959 = vrot.slane %v879, 1
          %v960 = vrot.slane %v880, 1
          %961 = vrot.lane.b32.xlu0 %v953, 64
          %v962 = vpop.permute.xlu0 %961
          %963 = vrot.lane.b32.xlu0 %v954, 64
          %v964 = vpop.permute.xlu0 %963
          %965 = vrot.lane.b32.xlu0 %v955, 64
          %v966 = vpop.permute.xlu0 %965
          %967 = vrot.lane.b32.xlu0 %v956, 64
          %v968 = vpop.permute.xlu0 %967
          %969 = vrot.lane.b32.xlu0 %v957, 64
          %v970 = vpop.permute.xlu0 %969
          %971 = vrot.lane.b32.xlu0 %v958, 64
          %v972 = vpop.permute.xlu0 %971
          %973 = vrot.lane.b32.xlu0 %v959, 64
          %v974 = vpop.permute.xlu0 %973
          %975 = vrot.lane.b32.xlu0 %v960, 64
          %v976 = vpop.permute.xlu0 %975
          %vm977 = vcmask 261120
          %v980 = vsel %vm977, %v825, %v938
          %v983 = vsel %vm977, %v827, %v940
          %v986 = vsel %vm977, %v829, %v942
          %v989 = vsel %vm977, %v831, %v944
          %v992 = vsel %vm977, %v833, %v946
          %v995 = vsel %vm977, %v835, %v948
          %v998 = vsel %vm977, %v837, %v950
          %v1001 = vsel %vm977, %v839, %v952
          %vm1002 = vcmask 523264
          %v1004 = vsel %vm1002, %v980, %v962
          %v1006 = vsel %vm1002, %v983, %v964
          %v1008 = vsel %vm1002, %v986, %v966
          %v1010 = vsel %vm1002, %v989, %v968
          %v1012 = vsel %vm1002, %v992, %v970
          %v1014 = vsel %vm1002, %v995, %v972
          %v1016 = vsel %vm1002, %v998, %v974
          %v1018 = vsel %vm1002, %v1001, %v976
          %v1019 = vld [vmem:[#allocation3] sm:$0xff]
          %v1020 = vld [vmem:[#allocation3 + $0x8] sm:$0xff]
          %v1021 = vld [vmem:[#allocation3 + $0x10] sm:$0xff]
          %v1022 = vld [vmem:[#allocation3 + $0x18] sm:$0xff]
          %v1023 = vld [vmem:[#allocation3 + $0x20] sm:$0xff]
          %v1024 = vld [vmem:[#allocation3 + $0x28] sm:$0xff]
          %s1025 = sadd.s32 2, %s822
          %s1026 = smul.addr %s1025, 4
          %s1027 = scalar_lea.vmem [#allocation2], %s1026
          %v1028 = vld [vmem:[%s1027] sm:$0xf]
          %v1029 = vld [vmem:[%s1027 + $0x4] sm:$0x1]
          %v1030 = vld [vmem:[%s1027 + $0x8] sm:$0xf]
          %v1031 = vld [vmem:[%s1027 + $0xc] sm:$0x1]
          %v1032 = vld [vmem:[%s1027 + $0x10] sm:$0xf]
          %v1033 = vld [vmem:[%s1027 + $0x14] sm:$0x1]
          %v1034 = vld [vmem:[%s1027 + $0x18] sm:$0xf]
          %v1035 = vld [vmem:[%s1027 + $0x1c] sm:$0x1]
          %v1036 = vld [vmem:[%s1027 + $0x20] sm:$0xf]
          %v1037 = vld [vmem:[%s1027 + $0x24] sm:$0x1]
          %v1038 = vld [vmem:[%s1027 + $0x28] sm:$0xf]
          %v1039 = vld [vmem:[%s1027 + $0x2c] sm:$0x1]
          %v1040 = vld [vmem:[%s1027 + $0x30] sm:$0xf]
          %v1041 = vld [vmem:[%s1027 + $0x34] sm:$0x1]
          %v1042 = vld [vmem:[%s1027 + $0x38] sm:$0xf]
          %v1043 = vld [vmem:[%s1027 + $0x3c] sm:$0x1]
          %v1060 = vunpack.c.l.b16 %v1028
          %v1061 = vunpack.c.l.b16 %v1029
          %v1062 = vunpack.c.l.b16 %v1030
          %v1063 = vunpack.c.l.b16 %v1031
          %v1064 = vunpack.c.l.b16 %v1032
          %v1065 = vunpack.c.l.b16 %v1033
          %v1066 = vunpack.c.l.b16 %v1034
          %v1067 = vunpack.c.l.b16 %v1035
          %v1068 = vunpack.c.l.b16 %v1036
          %v1069 = vunpack.c.l.b16 %v1037
          %v1070 = vunpack.c.l.b16 %v1038
          %v1071 = vunpack.c.l.b16 %v1039
          %v1072 = vunpack.c.l.b16 %v1040
          %v1073 = vunpack.c.l.b16 %v1041
          %v1074 = vunpack.c.l.b16 %v1042
          %v1075 = vunpack.c.l.b16 %v1043
          %v1076 = vpack.c.b16 %v1061, %v1060
          %v1077 = vpack.c.b16 %v1063, %v1062
          %v1078 = vpack.c.b16 %v1065, %v1064
          %v1079 = vpack.c.b16 %v1067, %v1066
          %v1080 = vpack.c.b16 %v1069, %v1068
          %v1081 = vpack.c.b16 %v1071, %v1070
          %v1082 = vpack.c.b16 %v1073, %v1072
          %v1083 = vpack.c.b16 %v1075, %v1074
          %v1085 = vshrl.u32 %v1076, 16
          %v1087 = vshll.u32 %v1076, 16
          %v1089 = vrot.slane %v1087, 1
          %v1090 = vor.u32 %v1085, %v1089
          %v1092 = vshrl.u32 %v1077, 16
          %v1094 = vshll.u32 %v1077, 16
          %v1096 = vrot.slane %v1094, 1
          %v1097 = vor.u32 %v1092, %v1096
          %v1099 = vshrl.u32 %v1078, 16
          %v1101 = vshll.u32 %v1078, 16
          %v1103 = vrot.slane %v1101, 1
          %v1104 = vor.u32 %v1099, %v1103
          %v1106 = vshrl.u32 %v1079, 16
          %v1108 = vshll.u32 %v1079, 16
          %v1110 = vrot.slane %v1108, 1
          %v1111 = vor.u32 %v1106, %v1110
          %v1113 = vshrl.u32 %v1080, 16
          %v1115 = vshll.u32 %v1080, 16
          %v1117 = vrot.slane %v1115, 1
          %v1118 = vor.u32 %v1113, %v1117
          %v1120 = vshrl.u32 %v1081, 16
          %v1122 = vshll.u32 %v1081, 16
          %v1124 = vrot.slane %v1122, 1
          %v1125 = vor.u32 %v1120, %v1124
          %v1127 = vshrl.u32 %v1082, 16
          %v1129 = vshll.u32 %v1082, 16
          %v1131 = vrot.slane %v1129, 1
          %v1132 = vor.u32 %v1127, %v1131
          %v1134 = vshrl.u32 %v1083, 16
          %v1136 = vshll.u32 %v1083, 16
          %v1138 = vrot.slane %v1136, 1
          %v1139 = vor.u32 %v1134, %v1138
          %1140 = vrot.lane.b32.xlu0 %v1090, 32
          %v1141 = vpop.permute.xlu0 %1140
          %1142 = vrot.lane.b32.xlu0 %v1097, 32
          %v1143 = vpop.permute.xlu0 %1142
          %1144 = vrot.lane.b32.xlu0 %v1104, 32
          %v1145 = vpop.permute.xlu0 %1144
          %1146 = vrot.lane.b32.xlu0 %v1111, 32
          %v1147 = vpop.permute.xlu0 %1146
          %1148 = vrot.lane.b32.xlu0 %v1118, 32
          %v1149 = vpop.permute.xlu0 %1148
          %1150 = vrot.lane.b32.xlu0 %v1125, 32
          %v1151 = vpop.permute.xlu0 %1150
          %1152 = vrot.lane.b32.xlu0 %v1132, 32
          %v1153 = vpop.permute.xlu0 %1152
          %1154 = vrot.lane.b32.xlu0 %v1139, 32
          %v1155 = vpop.permute.xlu0 %1154
          %v1156 = vrot.slane %v1076, 1
          %v1157 = vrot.slane %v1077, 1
          %v1158 = vrot.slane %v1078, 1
          %v1159 = vrot.slane %v1079, 1
          %v1160 = vrot.slane %v1080, 1
          %v1161 = vrot.slane %v1081, 1
          %v1162 = vrot.slane %v1082, 1
          %v1163 = vrot.slane %v1083, 1
          %1164 = vrot.lane.b32.xlu0 %v1156, 64
          %v1165 = vpop.permute.xlu0 %1164
          %1166 = vrot.lane.b32.xlu0 %v1157, 64
          %v1167 = vpop.permute.xlu0 %1166
          %1168 = vrot.lane.b32.xlu0 %v1158, 64
          %v1169 = vpop.permute.xlu0 %1168
          %1170 = vrot.lane.b32.xlu0 %v1159, 64
          %v1171 = vpop.permute.xlu0 %1170
          %1172 = vrot.lane.b32.xlu0 %v1160, 64
          %v1173 = vpop.permute.xlu0 %1172
          %1174 = vrot.lane.b32.xlu0 %v1161, 64
          %v1175 = vpop.permute.xlu0 %1174
          %1176 = vrot.lane.b32.xlu0 %v1162, 64
          %v1177 = vpop.permute.xlu0 %1176
          %1178 = vrot.lane.b32.xlu0 %v1163, 64
          %v1179 = vpop.permute.xlu0 %1178
          %v1182 = vsel %vm977, %v1028, %v1141
          %v1185 = vsel %vm977, %v1030, %v1143
          %v1188 = vsel %vm977, %v1032, %v1145
          %v1191 = vsel %vm977, %v1034, %v1147
          %v1194 = vsel %vm977, %v1036, %v1149
          %v1197 = vsel %vm977, %v1038, %v1151
          %v1200 = vsel %vm977, %v1040, %v1153
          %v1203 = vsel %vm977, %v1042, %v1155
          %v1205 = vsel %vm1002, %v1182, %v1165
          %v1207 = vsel %vm1002, %v1185, %v1167
          %v1209 = vsel %vm1002, %v1188, %v1169
          %v1211 = vsel %vm1002, %v1191, %v1171
          %v1213 = vsel %vm1002, %v1194, %v1173
          %v1215 = vsel %vm1002, %v1197, %v1175
          %v1217 = vsel %vm1002, %v1200, %v1177
          %v1219 = vsel %vm1002, %v1203, %v1179
          %s1220 = scalar_lea.vmem [#allocation3], 48
          %v1221 = vld [vmem:[%s1220] sm:$0xff]
          %v1222 = vld [vmem:[%s1220 + $0x8] sm:$0xff]
          %v1223 = vld [vmem:[%s1220 + $0x10] sm:$0xff]
          %v1224 = vld [vmem:[%s1220 + $0x18] sm:$0xff]
          %v1225 = vld [vmem:[%s1220 + $0x20] sm:$0xff]
          %v1226 = vld [vmem:[%s1220 + $0x28] sm:$0xff]
          %v1235 = vunpack.c.l.b16 %v1205
          %v1236 = vunpack.c.l.b16 %v1207
          %v1237 = vunpack.c.l.b16 %v1209
          %v1238 = vunpack.c.l.b16 %v1211
          %v1239 = vunpack.c.l.b16 %v1213
          %v1240 = vunpack.c.l.b16 %v1215
          %v1241 = vunpack.c.l.b16 %v1217
          %v1242 = vunpack.c.l.b16 %v1219
          %v1243 = vpack.c.b16 %v1236, %v1235
          %v1244 = vpack.c.b16 %v1238, %v1237
          %v1245 = vpack.c.b16 %v1240, %v1239
          %v1246 = vpack.c.b16 %v1242, %v1241
          %vm1247 = vcmask 785408
          %v1249 = vsel %vm1247, %v1243, 0
          %v1252 = vsel %vm1247, %v1244, 0
          %v1255 = vsel %vm1247, %v1245, 0
          %v1258 = vsel %vm1247, %v1246, 0
          %1260 = vmatprep.subr.bf16.mxu0 0
          %1261 = vmatpush1.bf16.msra.mxu0 %v1221
          %1262 = vmatprep.subr.bf16.mxu0 0
          %1263 = vmatpush1.bf16.msra.mxu0 %v1222
          %1264 = vmatprep.subr.bf16.mxu0 0
          %1265 = vmatpush1.bf16.msra.mxu0 %v1223
          %1266 = vmatprep.subr.bf16.mxu0 0
          %1267 = vmatpush1.bf16.msra.mxu0 %v1224
          %1268 = vmatprep.subr.bf16.mxu0 0
          %1269 = vmatpush1.bf16.msra.mxu0 %v1225
          %1270 = vmatprep.subr.bf16.mxu0 0
          %1271 = vmatpush1.bf16.msra.mxu0 %v1226
          %1272 = vmatprep.subr.bf16.mxu0 0
          %1273 = vmatpush1.bf16.msra.mxu0 0
          %1274 = vmatprep.subr.bf16.mxu0 0
          %1275 = vmatpush1.bf16.msra.mxu0 0
          %1276 = vmatprep.subr.bf16.mxu0 0
          %1277 = vmatpush1.bf16.msra.mxu0 0
          %1278 = vmatprep.subr.bf16.mxu0 0
          %1279 = vmatpush1.bf16.msra.mxu0 0
          %1280 = vmatprep.subr.bf16.mxu0 0
          %1281 = vmatpush1.bf16.msra.mxu0 0
          %1282 = vmatprep.subr.bf16.mxu0 0
          %1283 = vmatpush1.bf16.msra.mxu0 0
          %1284 = vmatprep.subr.bf16.mxu0 0
          %1285 = vmatpush1.bf16.msra.mxu0 0
          %1286 = vmatprep.subr.bf16.mxu0 0
          %1287 = vmatpush1.bf16.msra.mxu0 0
          %1288 = vmatprep.subr.bf16.mxu0 0
          %1289 = vmatpush1.bf16.msra.mxu0 0
          %1290 = vmatprep.subr.bf16.mxu0 0
          %1291 = vmatpush1.bf16.msra.mxu0 0
          %1292 = vmatprep.mubr.bf16.mxu0 0
          %1293 = vmatmul.mubr.bf16.gmra.mrb[0].mxu0 %v1249
          %v1294 = vpop.f32.mrb[0].mxu0
          %v1295 = vadd.f32 0.0, %v1294
          %v1296 = vpop.f32.mrb[0].mxu0
          %v1297 = vpop.f32.mrb[0].mxu0
          %v1298 = vadd.f32 0.0, %v1297
          %v1299 = vpop.f32.mrb[0].mxu0
          %1300 = vmatprep.mubr.bf16.mxu0 0
          %1301 = vmatmul.mubr.bf16.gmra.mrb[0].mxu0 %v1252
          %v1302 = vpop.f32.mrb[0].mxu0
          %v1303 = vadd.f32 0.0, %v1302
          %v1304 = vpop.f32.mrb[0].mxu0
          %v1305 = vpop.f32.mrb[0].mxu0
          %v1306 = vadd.f32 0.0, %v1305
          %v1307 = vpop.f32.mrb[0].mxu0
          %1308 = vmatprep.mubr.bf16.mxu0 0
          %1309 = vmatmul.mubr.bf16.gmra.mrb[0].mxu0 %v1255
          %v1310 = vpop.f32.mrb[0].mxu0
          %v1311 = vadd.f32 0.0, %v1310
          %v1312 = vpop.f32.mrb[0].mxu0
          %v1313 = vpop.f32.mrb[0].mxu0
          %v1314 = vadd.f32 0.0, %v1313
          %v1315 = vpop.f32.mrb[0].mxu0
          %1316 = vmatprep.mubr.bf16.mxu0 0
          %1317 = vmatmul.mubr.bf16.gmra.mrb[0].mxu0 %v1258
          %v1318 = vpop.f32.mrb[0].mxu0
          %v1319 = vadd.f32 0.0, %v1318
          %v1320 = vpop.f32.mrb[0].mxu0
          %v1321 = vpop.f32.mrb[0].mxu0
          %v1322 = vadd.f32 0.0, %v1321
          %v1323 = vpop.f32.mrb[0].mxu0
          %1324 = vdwg.mxu0
          %v1333 = vunpack.c.l.b16 %v1004
          %v1334 = vunpack.c.l.b16 %v1006
          %v1335 = vunpack.c.l.b16 %v1008
          %v1336 = vunpack.c.l.b16 %v1010
          %v1337 = vunpack.c.l.b16 %v1012
          %v1338 = vunpack.c.l.b16 %v1014
          %v1339 = vunpack.c.l.b16 %v1016
          %v1340 = vunpack.c.l.b16 %v1018
          %v1341 = vpack.c.b16 %v1334, %v1333
          %v1342 = vpack.c.b16 %v1336, %v1335
          %v1343 = vpack.c.b16 %v1338, %v1337
          %v1344 = vpack.c.b16 %v1340, %v1339
          %v1346 = vsel %vm1247, %v1341, 0
          %v1349 = vsel %vm1247, %v1342, 0
          %v1352 = vsel %vm1247, %v1343, 0
          %v1355 = vsel %vm1247, %v1344, 0
          %1357 = vmatprep.subr.bf16.mxu0 0
          %1358 = vmatpush1.bf16.msra.mxu0 %v1019
          %1359 = vmatprep.subr.bf16.mxu0 0
          %1360 = vmatpush1.bf16.msra.mxu0 %v1020
          %1361 = vmatprep.subr.bf16.mxu0 0
          %1362 = vmatpush1.bf16.msra.mxu0 %v1021
          %1363 = vmatprep.subr.bf16.mxu0 0
          %1364 = vmatpush1.bf16.msra.mxu0 %v1022
          %1365 = vmatprep.subr.bf16.mxu0 0
          %1366 = vmatpush1.bf16.msra.mxu0 %v1023
          %1367 = vmatprep.subr.bf16.mxu0 0
          %1368 = vmatpush1.bf16.msra.mxu0 %v1024
          %1369 = vmatprep.subr.bf16.mxu0 0
          %1370 = vmatpush1.bf16.msra.mxu0 0
          %1371 = vmatprep.subr.bf16.mxu0 0
          %1372 = vmatpush1.bf16.msra.mxu0 0
          %1373 = vmatprep.subr.bf16.mxu0 0
          %1374 = vmatpush1.bf16.msra.mxu0 0
          %1375 = vmatprep.subr.bf16.mxu0 0
          %1376 = vmatpush1.bf16.msra.mxu0 0
          %1377 = vmatprep.subr.bf16.mxu0 0
          %1378 = vmatpush1.bf16.msra.mxu0 0
          %1379 = vmatprep.subr.bf16.mxu0 0
          %1380 = vmatpush1.bf16.msra.mxu0 0
          %1381 = vmatprep.subr.bf16.mxu0 0
          %1382 = vmatpush1.bf16.msra.mxu0 0
          %1383 = vmatprep.subr.bf16.mxu0 0
          %1384 = vmatpush1.bf16.msra.mxu0 0
          %1385 = vmatprep.subr.bf16.mxu0 0
          %1386 = vmatpush1.bf16.msra.mxu0 0
          %1387 = vmatprep.subr.bf16.mxu0 0
          %1388 = vmatpush1.bf16.msra.mxu0 0
          %1389 = vmatprep.mubr.bf16.mxu0 0
          %1390 = vmatmul.mubr.bf16.gmra.mrb[0].mxu0 %v1346
          %v1391 = vpop.f32.mrb[0].mxu0
          %v1392 = vadd.f32 %v1295, %v1391
          %v1393 = vpop.f32.mrb[0].mxu0
          %v1394 = vpop.f32.mrb[0].mxu0
          %v1395 = vadd.f32 %v1298, %v1394
          %v1396 = vpop.f32.mrb[0].mxu0
          %1397 = vmatprep.mubr.bf16.mxu0 0
          %1398 = vmatmul.mubr.bf16.gmra.mrb[0].mxu0 %v1349
          %v1399 = vpop.f32.mrb[0].mxu0
          %v1400 = vadd.f32 %v1303, %v1399
          %v1401 = vpop.f32.mrb[0].mxu0
          %v1402 = vpop.f32.mrb[0].mxu0
          %v1403 = vadd.f32 %v1306, %v1402
          %v1404 = vpop.f32.mrb[0].mxu0
          %1405 = vmatprep.mubr.bf16.mxu0 0
          %1406 = vmatmul.mubr.bf16.gmra.mrb[0].mxu0 %v1352
          %v1407 = vpop.f32.mrb[0].mxu0
          %v1408 = vadd.f32 %v1311, %v1407
          %v1409 = vpop.f32.mrb[0].mxu0
          %v1410 = vpop.f32.mrb[0].mxu0
          %v1411 = vadd.f32 %v1314, %v1410
          %v1412 = vpop.f32.mrb[0].mxu0
          %1413 = vmatprep.mubr.bf16.mxu0 0
          %1414 = vmatmul.mubr.bf16.gmra.mrb[0].mxu0 %v1355
          %v1415 = vpop.f32.mrb[0].mxu0
          %v1416 = vadd.f32 %v1319, %v1415
          %v1417 = vpop.f32.mrb[0].mxu0
          %v1418 = vpop.f32.mrb[0].mxu0
          %v1419 = vadd.f32 %v1322, %v1418
          %v1420 = vpop.f32.mrb[0].mxu0
          %1421 = vdwg.mxu0
          %s1422 = sadd.s32 4, %s822
          %s1423 = smul.addr %s1422, 4
          %s1424 = scalar_lea.vmem [#allocation2], %s1423
          %v1425 = vld [vmem:[%s1424] sm:$0xf]
          %v1426 = vld [vmem:[%s1424 + $0x4] sm:$0x1]
          %v1427 = vld [vmem:[%s1424 + $0x8] sm:$0xf]
          %v1428 = vld [vmem:[%s1424 + $0xc] sm:$0x1]
          %v1429 = vld [vmem:[%s1424 + $0x10] sm:$0xf]
          %v1430 = vld [vmem:[%s1424 + $0x14] sm:$0x1]
          %v1431 = vld [vmem:[%s1424 + $0x18] sm:$0xf]
          %v1432 = vld [vmem:[%s1424 + $0x1c] sm:$0x1]
          %v1433 = vld [vmem:[%s1424 + $0x20] sm:$0xf]
          %v1434 = vld [vmem:[%s1424 + $0x24] sm:$0x1]
          %v1435 = vld [vmem:[%s1424 + $0x28] sm:$0xf]
          %v1436 = vld [vmem:[%s1424 + $0x2c] sm:$0x1]
          %v1437 = vld [vmem:[%s1424 + $0x30] sm:$0xf]
          %v1438 = vld [vmem:[%s1424 + $0x34] sm:$0x1]
          %v1439 = vld [vmem:[%s1424 + $0x38] sm:$0xf]
          %v1440 = vld [vmem:[%s1424 + $0x3c] sm:$0x1]
          %v1457 = vunpack.c.l.b16 %v1425
          %v1458 = vunpack.c.l.b16 %v1426
          %v1459 = vunpack.c.l.b16 %v1427
          %v1460 = vunpack.c.l.b16 %v1428
          %v1461 = vunpack.c.l.b16 %v1429
          %v1462 = vunpack.c.l.b16 %v1430
          %v1463 = vunpack.c.l.b16 %v1431
          %v1464 = vunpack.c.l.b16 %v1432
          %v1465 = vunpack.c.l.b16 %v1433
          %v1466 = vunpack.c.l.b16 %v1434
          %v1467 = vunpack.c.l.b16 %v1435
          %v1468 = vunpack.c.l.b16 %v1436
          %v1469 = vunpack.c.l.b16 %v1437
          %v1470 = vunpack.c.l.b16 %v1438
          %v1471 = vunpack.c.l.b16 %v1439
          %v1472 = vunpack.c.l.b16 %v1440
          %v1473 = vpack.c.b16 %v1458, %v1457
          %v1474 = vpack.c.b16 %v1460, %v1459
          %v1475 = vpack.c.b16 %v1462, %v1461
          %v1476 = vpack.c.b16 %v1464, %v1463
          %v1477 = vpack.c.b16 %v1466, %v1465
          %v1478 = vpack.c.b16 %v1468, %v1467
          %v1479 = vpack.c.b16 %v1470, %v1469
          %v1480 = vpack.c.b16 %v1472, %v1471
          %v1482 = vshrl.u32 %v1473, 16
          %v1484 = vshll.u32 %v1473, 16
          %v1486 = vrot.slane %v1484, 1
          %v1487 = vor.u32 %v1482, %v1486
          %v1489 = vshrl.u32 %v1474, 16
          %v1491 = vshll.u32 %v1474, 16
          %v1493 = vrot.slane %v1491, 1
          %v1494 = vor.u32 %v1489, %v1493
          %v1496 = vshrl.u32 %v1475, 16
          %v1498 = vshll.u32 %v1475, 16
          %v1500 = vrot.slane %v1498, 1
          %v1501 = vor.u32 %v1496, %v1500
          %v1503 = vshrl.u32 %v1476, 16
          %v1505 = vshll.u32 %v1476, 16
          %v1507 = vrot.slane %v1505, 1
          %v1508 = vor.u32 %v1503, %v1507
          %v1510 = vshrl.u32 %v1477, 16
          %v1512 = vshll.u32 %v1477, 16
          %v1514 = vrot.slane %v1512, 1
          %v1515 = vor.u32 %v1510, %v1514
          %v1517 = vshrl.u32 %v1478, 16
          %v1519 = vshll.u32 %v1478, 16
          %v1521 = vrot.slane %v1519, 1
          %v1522 = vor.u32 %v1517, %v1521
          %v1524 = vshrl.u32 %v1479, 16
          %v1526 = vshll.u32 %v1479, 16
          %v1528 = vrot.slane %v1526, 1
          %v1529 = vor.u32 %v1524, %v1528
          %v1531 = vshrl.u32 %v1480, 16
          %v1533 = vshll.u32 %v1480, 16
          %v1535 = vrot.slane %v1533, 1
          %v1536 = vor.u32 %v1531, %v1535
          %1537 = vrot.lane.b32.xlu0 %v1487, 32
          %v1538 = vpop.permute.xlu0 %1537
          %1539 = vrot.lane.b32.xlu0 %v1494, 32
          %v1540 = vpop.permute.xlu0 %1539
          %1541 = vrot.lane.b32.xlu0 %v1501, 32
          %v1542 = vpop.permute.xlu0 %1541
          %1543 = vrot.lane.b32.xlu0 %v1508, 32
          %v1544 = vpop.permute.xlu0 %1543
          %1545 = vrot.lane.b32.xlu0 %v1515, 32
          %v1546 = vpop.permute.xlu0 %1545
          %1547 = vrot.lane.b32.xlu0 %v1522, 32
          %v1548 = vpop.permute.xlu0 %1547
          %1549 = vrot.lane.b32.xlu0 %v1529, 32
          %v1550 = vpop.permute.xlu0 %1549
          %1551 = vrot.lane.b32.xlu0 %v1536, 32
          %v1552 = vpop.permute.xlu0 %1551
          %v1553 = vrot.slane %v1473, 1
          %v1554 = vrot.slane %v1474, 1
          %v1555 = vrot.slane %v1475, 1
          %v1556 = vrot.slane %v1476, 1
          %v1557 = vrot.slane %v1477, 1
          %v1558 = vrot.slane %v1478, 1
          %v1559 = vrot.slane %v1479, 1
          %v1560 = vrot.slane %v1480, 1
          %1561 = vrot.lane.b32.xlu0 %v1553, 64
          %v1562 = vpop.permute.xlu0 %1561
          %1563 = vrot.lane.b32.xlu0 %v1554, 64
          %v1564 = vpop.permute.xlu0 %1563
          %1565 = vrot.lane.b32.xlu0 %v1555, 64
          %v1566 = vpop.permute.xlu0 %1565
          %1567 = vrot.lane.b32.xlu0 %v1556, 64
          %v1568 = vpop.permute.xlu0 %1567
          %1569 = vrot.lane.b32.xlu0 %v1557, 64
          %v1570 = vpop.permute.xlu0 %1569
          %1571 = vrot.lane.b32.xlu0 %v1558, 64
          %v1572 = vpop.permute.xlu0 %1571
          %1573 = vrot.lane.b32.xlu0 %v1559, 64
          %v1574 = vpop.permute.xlu0 %1573
          %1575 = vrot.lane.b32.xlu0 %v1560, 64
          %v1576 = vpop.permute.xlu0 %1575
          %v1579 = vsel %vm977, %v1425, %v1538
          %v1582 = vsel %vm977, %v1427, %v1540
          %v1585 = vsel %vm977, %v1429, %v1542
          %v1588 = vsel %vm977, %v1431, %v1544
          %v1591 = vsel %vm977, %v1433, %v1546
          %v1594 = vsel %vm977, %v1435, %v1548
          %v1597 = vsel %vm977, %v1437, %v1550
          %v1600 = vsel %vm977, %v1439, %v1552
          %v1602 = vsel %vm1002, %v1579, %v1562
          %v1604 = vsel %vm1002, %v1582, %v1564
          %v1606 = vsel %vm1002, %v1585, %v1566
          %v1608 = vsel %vm1002, %v1588, %v1568
          %v1610 = vsel %vm1002, %v1591, %v1570
          %v1612 = vsel %vm1002, %v1594, %v1572
          %v1614 = vsel %vm1002, %v1597, %v1574
          %v1616 = vsel %vm1002, %v1600, %v1576
          %s1617 = scalar_lea.vmem [#allocation3], 96
          %v1618 = vld [vmem:[%s1617] sm:$0xff]
          %v1619 = vld [vmem:[%s1617 + $0x8] sm:$0xff]
          %v1620 = vld [vmem:[%s1617 + $0x10] sm:$0xff]
          %v1621 = vld [vmem:[%s1617 + $0x18] sm:$0xff]
          %v1622 = vld [vmem:[%s1617 + $0x20] sm:$0xff]
          %v1623 = vld [vmem:[%s1617 + $0x28] sm:$0xff]
          %v1632 = vunpack.c.l.b16 %v1602
          %v1633 = vunpack.c.l.b16 %v1604
          %v1634 = vunpack.c.l.b16 %v1606
          %v1635 = vunpack.c.l.b16 %v1608
          %v1636 = vunpack.c.l.b16 %v1610
          %v1637 = vunpack.c.l.b16 %v1612
          %v1638 = vunpack.c.l.b16 %v1614
          %v1639 = vunpack.c.l.b16 %v1616
          %v1640 = vpack.c.b16 %v1633, %v1632
          %v1641 = vpack.c.b16 %v1635, %v1634
          %v1642 = vpack.c.b16 %v1637, %v1636
          %v1643 = vpack.c.b16 %v1639, %v1638
          %v1645 = vsel %vm1247, %v1640, 0
          %v1648 = vsel %vm1247, %v1641, 0
          %v1651 = vsel %vm1247, %v1642, 0
          %v1654 = vsel %vm1247, %v1643, 0
          %1656 = vmatprep.subr.bf16.mxu0 0
          %1657 = vmatpush1.bf16.msra.mxu0 %v1618
          %1658 = vmatprep.subr.bf16.mxu0 0
          %1659 = vmatpush1.bf16.msra.mxu0 %v1619
          %1660 = vmatprep.subr.bf16.mxu0 0
          %1661 = vmatpush1.bf16.msra.mxu0 %v1620
          %1662 = vmatprep.subr.bf16.mxu0 0
          %1663 = vmatpush1.bf16.msra.mxu0 %v1621
          %1664 = vmatprep.subr.bf16.mxu0 0
          %1665 = vmatpush1.bf16.msra.mxu0 %v1622
          %1666 = vmatprep.subr.bf16.mxu0 0
          %1667 = vmatpush1.bf16.msra.mxu0 %v1623
          %1668 = vmatprep.subr.bf16.mxu0 0
          %1669 = vmatpush1.bf16.msra.mxu0 0
          %1670 = vmatprep.subr.bf16.mxu0 0
          %1671 = vmatpush1.bf16.msra.mxu0 0
          %1672 = vmatprep.subr.bf16.mxu0 0
          %1673 = vmatpush1.bf16.msra.mxu0 0
          %1674 = vmatprep.subr.bf16.mxu0 0
          %1675 = vmatpush1.bf16.msra.mxu0 0
          %1676 = vmatprep.subr.bf16.mxu0 0
          %1677 = vmatpush1.bf16.msra.mxu0 0
          %1678 = vmatprep.subr.bf16.mxu0 0
          %1679 = vmatpush1.bf16.msra.mxu0 0
          %1680 = vmatprep.subr.bf16.mxu0 0
          %1681 = vmatpush1.bf16.msra.mxu0 0
          %1682 = vmatprep.subr.bf16.mxu0 0
          %1683 = vmatpush1.bf16.msra.mxu0 0
          %1684 = vmatprep.subr.bf16.mxu0 0
          %1685 = vmatpush1.bf16.msra.mxu0 0
          %1686 = vmatprep.subr.bf16.mxu0 0
          %1687 = vmatpush1.bf16.msra.mxu0 0
          %1688 = vmatprep.mubr.bf16.mxu0 0
          %1689 = vmatmul.mubr.bf16.gmra.mrb[0].mxu0 %v1645
          %v1690 = vpop.f32.mrb[0].mxu0
          %v1691 = vadd.f32 0.0, %v1690
          %v1692 = vpop.f32.mrb[0].mxu0
          %v1693 = vpop.f32.mrb[0].mxu0
          %v1694 = vadd.f32 0.0, %v1693
          %v1695 = vpop.f32.mrb[0].mxu0
          %1696 = vmatprep.mubr.bf16.mxu0 0
          %1697 = vmatmul.mubr.bf16.gmra.mrb[0].mxu0 %v1648
          %v1698 = vpop.f32.mrb[0].mxu0
          %v1699 = vadd.f32 0.0, %v1698
          %v1700 = vpop.f32.mrb[0].mxu0
          %v1701 = vpop.f32.mrb[0].mxu0
          %v1702 = vadd.f32 0.0, %v1701
          %v1703 = vpop.f32.mrb[0].mxu0
          %1704 = vmatprep.mubr.bf16.mxu0 0
          %1705 = vmatmul.mubr.bf16.gmra.mrb[0].mxu0 %v1651
          %v1706 = vpop.f32.mrb[0].mxu0
          %v1707 = vadd.f32 0.0, %v1706
          %v1708 = vpop.f32.mrb[0].mxu0
          %v1709 = vpop.f32.mrb[0].mxu0
          %v1710 = vadd.f32 0.0, %v1709
          %v1711 = vpop.f32.mrb[0].mxu0
          %1712 = vmatprep.mubr.bf16.mxu0 0
          %1713 = vmatmul.mubr.bf16.gmra.mrb[0].mxu0 %v1654
          %v1714 = vpop.f32.mrb[0].mxu0
          %v1715 = vadd.f32 0.0, %v1714
          %v1716 = vpop.f32.mrb[0].mxu0
          %v1717 = vpop.f32.mrb[0].mxu0
          %v1718 = vadd.f32 0.0, %v1717
          %v1719 = vpop.f32.mrb[0].mxu0
          %1720 = vdwg.mxu0
          %v1721 = vadd.f32 %v1392, %v1691
          %v1722 = vadd.f32 %v1395, %v1694
          %v1723 = vadd.f32 %v1400, %v1699
          %v1724 = vadd.f32 %v1403, %v1702
          %v1725 = vadd.f32 %v1408, %v1707
          %v1726 = vadd.f32 %v1411, %v1710
          %v1727 = vadd.f32 %v1416, %v1715
          %v1728 = vadd.f32 %v1419, %v1718
          %s1729 = sadd.s32 %s28, 2
          %p1730 = scmp.lt.s32.totalorder %s1729, 0
          %s1731 = ssub.s32 0, %s1729
          %s1732 = scalar_select %p1730, %s1731, %s1729
          %s1733 = sdiv.u32.pop %s1732, 3
          %s1734 = srem.u32.pop %s1732, 3
          %s1735 = ssub.s32 0, %s1734
          %s1736 = scalar_select %p1730, %s1735, %s1734
          %p1737 = scmp.ne.s32.totalorder %s1736, 0
          %p1738 = scmp.lt.s32.totalorder %s1736, 0
          %p1739 = pnand %p1738, %p1737
          %p1740 = pneg %p1739
          %s1741 = sadd.s32 %s1736, 3
          %s1742 = scalar_select %p1740, %s1741, %s1736
          %s1743 = smul.u32 %s1742, 20
          %s1744 = smul.addr %s1743, 4
          %s1745 = scalar_lea.vmem [#allocation2], %s1744
          %v1746 = vld [vmem:[%s1745] sm:$0xf]
          %v1747 = vld [vmem:[%s1745 + $0x4] sm:$0x1]
          %v1748 = vld [vmem:[%s1745 + $0x8] sm:$0xf]
          %v1749 = vld [vmem:[%s1745 + $0xc] sm:$0x1]
          %v1750 = vld [vmem:[%s1745 + $0x10] sm:$0xf]
          %v1751 = vld [vmem:[%s1745 + $0x14] sm:$0x1]
          %v1752 = vld [vmem:[%s1745 + $0x18] sm:$0xf]
          %v1753 = vld [vmem:[%s1745 + $0x1c] sm:$0x1]
          %v1754 = vld [vmem:[%s1745 + $0x20] sm:$0xf]
          %v1755 = vld [vmem:[%s1745 + $0x24] sm:$0x1]
          %v1756 = vld [vmem:[%s1745 + $0x28] sm:$0xf]
          %v1757 = vld [vmem:[%s1745 + $0x2c] sm:$0x1]
          %v1758 = vld [vmem:[%s1745 + $0x30] sm:$0xf]
          %v1759 = vld [vmem:[%s1745 + $0x34] sm:$0x1]
          %v1760 = vld [vmem:[%s1745 + $0x38] sm:$0xf]
          %v1761 = vld [vmem:[%s1745 + $0x3c] sm:$0x1]
          %v1778 = vunpack.c.l.b16 %v1746
          %v1779 = vunpack.c.l.b16 %v1747
          %v1780 = vunpack.c.l.b16 %v1748
          %v1781 = vunpack.c.l.b16 %v1749
          %v1782 = vunpack.c.l.b16 %v1750
          %v1783 = vunpack.c.l.b16 %v1751
          %v1784 = vunpack.c.l.b16 %v1752
          %v1785 = vunpack.c.l.b16 %v1753
          %v1786 = vunpack.c.l.b16 %v1754
          %v1787 = vunpack.c.l.b16 %v1755
          %v1788 = vunpack.c.l.b16 %v1756
          %v1789 = vunpack.c.l.b16 %v1757
          %v1790 = vunpack.c.l.b16 %v1758
          %v1791 = vunpack.c.l.b16 %v1759
          %v1792 = vunpack.c.l.b16 %v1760
          %v1793 = vunpack.c.l.b16 %v1761
          %v1794 = vpack.c.b16 %v1779, %v1778
          %v1795 = vpack.c.b16 %v1781, %v1780
          %v1796 = vpack.c.b16 %v1783, %v1782
          %v1797 = vpack.c.b16 %v1785, %v1784
          %v1798 = vpack.c.b16 %v1787, %v1786
          %v1799 = vpack.c.b16 %v1789, %v1788
          %v1800 = vpack.c.b16 %v1791, %v1790
          %v1801 = vpack.c.b16 %v1793, %v1792
          %v1803 = vshrl.u32 %v1794, 16
          %v1805 = vshll.u32 %v1794, 16
          %v1807 = vrot.slane %v1805, 1
          %v1808 = vor.u32 %v1803, %v1807
          %v1810 = vshrl.u32 %v1795, 16
          %v1812 = vshll.u32 %v1795, 16
          %v1814 = vrot.slane %v1812, 1
          %v1815 = vor.u32 %v1810, %v1814
          %v1817 = vshrl.u32 %v1796, 16
          %v1819 = vshll.u32 %v1796, 16
          %v1821 = vrot.slane %v1819, 1
          %v1822 = vor.u32 %v1817, %v1821
          %v1824 = vshrl.u32 %v1797, 16
          %v1826 = vshll.u32 %v1797, 16
          %v1828 = vrot.slane %v1826, 1
          %v1829 = vor.u32 %v1824, %v1828
          %v1831 = vshrl.u32 %v1798, 16
          %v1833 = vshll.u32 %v1798, 16
          %v1835 = vrot.slane %v1833, 1
          %v1836 = vor.u32 %v1831, %v1835
          %v1838 = vshrl.u32 %v1799, 16
          %v1840 = vshll.u32 %v1799, 16
          %v1842 = vrot.slane %v1840, 1
          %v1843 = vor.u32 %v1838, %v1842
          %v1845 = vshrl.u32 %v1800, 16
          %v1847 = vshll.u32 %v1800, 16
          %v1849 = vrot.slane %v1847, 1
          %v1850 = vor.u32 %v1845, %v1849
          %v1852 = vshrl.u32 %v1801, 16
          %v1854 = vshll.u32 %v1801, 16
          %v1856 = vrot.slane %v1854, 1
          %v1857 = vor.u32 %v1852, %v1856
          %1858 = vrot.lane.b32.xlu0 %v1808, 32
          %v1859 = vpop.permute.xlu0 %1858
          %1860 = vrot.lane.b32.xlu0 %v1815, 32
          %v1861 = vpop.permute.xlu0 %1860
          %1862 = vrot.lane.b32.xlu0 %v1822, 32
          %v1863 = vpop.permute.xlu0 %1862
          %1864 = vrot.lane.b32.xlu0 %v1829, 32
          %v1865 = vpop.permute.xlu0 %1864
          %1866 = vrot.lane.b32.xlu0 %v1836, 32
          %v1867 = vpop.permute.xlu0 %1866
          %1868 = vrot.lane.b32.xlu0 %v1843, 32
          %v1869 = vpop.permute.xlu0 %1868
          %1870 = vrot.lane.b32.xlu0 %v1850, 32
          %v1871 = vpop.permute.xlu0 %1870
          %1872 = vrot.lane.b32.xlu0 %v1857, 32
          %v1873 = vpop.permute.xlu0 %1872
          %v1874 = vrot.slane %v1794, 1
          %v1875 = vrot.slane %v1795, 1
          %v1876 = vrot.slane %v1796, 1
          %v1877 = vrot.slane %v1797, 1
          %v1878 = vrot.slane %v1798, 1
          %v1879 = vrot.slane %v1799, 1
          %v1880 = vrot.slane %v1800, 1
          %v1881 = vrot.slane %v1801, 1
          %1882 = vrot.lane.b32.xlu0 %v1874, 64
          %v1883 = vpop.permute.xlu0 %1882
          %1884 = vrot.lane.b32.xlu0 %v1875, 64
          %v1885 = vpop.permute.xlu0 %1884
          %1886 = vrot.lane.b32.xlu0 %v1876, 64
          %v1887 = vpop.permute.xlu0 %1886
          %1888 = vrot.lane.b32.xlu0 %v1877, 64
          %v1889 = vpop.permute.xlu0 %1888
          %1890 = vrot.lane.b32.xlu0 %v1878, 64
          %v1891 = vpop.permute.xlu0 %1890
          %1892 = vrot.lane.b32.xlu0 %v1879, 64
          %v1893 = vpop.permute.xlu0 %1892
          %1894 = vrot.lane.b32.xlu0 %v1880, 64
          %v1895 = vpop.permute.xlu0 %1894
          %1896 = vrot.lane.b32.xlu0 %v1881, 64
          %v1897 = vpop.permute.xlu0 %1896
          %v1900 = vsel %vm977, %v1746, %v1859
          %v1903 = vsel %vm977, %v1748, %v1861
          %v1906 = vsel %vm977, %v1750, %v1863
          %v1909 = vsel %vm977, %v1752, %v1865
          %v1912 = vsel %vm977, %v1754, %v1867
          %v1915 = vsel %vm977, %v1756, %v1869
          %v1918 = vsel %vm977, %v1758, %v1871
          %v1921 = vsel %vm977, %v1760, %v1873
          %v1923 = vsel %vm1002, %v1900, %v1883
          %v1925 = vsel %vm1002, %v1903, %v1885
          %v1927 = vsel %vm1002, %v1906, %v1887
          %v1929 = vsel %vm1002, %v1909, %v1889
          %v1931 = vsel %vm1002, %v1912, %v1891
          %v1933 = vsel %vm1002, %v1915, %v1893
          %v1935 = vsel %vm1002, %v1918, %v1895
          %v1937 = vsel %vm1002, %v1921, %v1897
          %s1938 = scalar_lea.vmem [#allocation3], 144
          %v1939 = vld [vmem:[%s1938] sm:$0xff]
          %v1940 = vld [vmem:[%s1938 + $0x8] sm:$0xff]
          %v1941 = vld [vmem:[%s1938 + $0x10] sm:$0xff]
          %v1942 = vld [vmem:[%s1938 + $0x18] sm:$0xff]
          %v1943 = vld [vmem:[%s1938 + $0x20] sm:$0xff]
          %v1944 = vld [vmem:[%s1938 + $0x28] sm:$0xff]
          %v1953 = vunpack.c.l.b16 %v1923
          %v1954 = vunpack.c.l.b16 %v1925
          %v1955 = vunpack.c.l.b16 %v1927
          %v1956 = vunpack.c.l.b16 %v1929
          %v1957 = vunpack.c.l.b16 %v1931
          %v1958 = vunpack.c.l.b16 %v1933
          %v1959 = vunpack.c.l.b16 %v1935
          %v1960 = vunpack.c.l.b16 %v1937
          %v1961 = vpack.c.b16 %v1954, %v1953
          %v1962 = vpack.c.b16 %v1956, %v1955
          %v1963 = vpack.c.b16 %v1958, %v1957
          %v1964 = vpack.c.b16 %v1960, %v1959
          %v1966 = vsel %vm1247, %v1961, 0
          %v1969 = vsel %vm1247, %v1962, 0
          %v1972 = vsel %vm1247, %v1963, 0
          %v1975 = vsel %vm1247, %v1964, 0
          %1977 = vmatprep.subr.bf16.mxu0 0
          %1978 = vmatpush1.bf16.msra.mxu0 %v1939
          %1979 = vmatprep.subr.bf16.mxu0 0
          %1980 = vmatpush1.bf16.msra.mxu0 %v1940
          %1981 = vmatprep.subr.bf16.mxu0 0
          %1982 = vmatpush1.bf16.msra.mxu0 %v1941
          %1983 = vmatprep.subr.bf16.mxu0 0
          %1984 = vmatpush1.bf16.msra.mxu0 %v1942
          %1985 = vmatprep.subr.bf16.mxu0 0
          %1986 = vmatpush1.bf16.msra.mxu0 %v1943
          %1987 = vmatprep.subr.bf16.mxu0 0
          %1988 = vmatpush1.bf16.msra.mxu0 %v1944
          %1989 = vmatprep.subr.bf16.mxu0 0
          %1990 = vmatpush1.bf16.msra.mxu0 0
          %1991 = vmatprep.subr.bf16.mxu0 0
          %1992 = vmatpush1.bf16.msra.mxu0 0
          %1993 = vmatprep.subr.bf16.mxu0 0
          %1994 = vmatpush1.bf16.msra.mxu0 0
          %1995 = vmatprep.subr.bf16.mxu0 0
          %1996 = vmatpush1.bf16.msra.mxu0 0
          %1997 = vmatprep.subr.bf16.mxu0 0
          %1998 = vmatpush1.bf16.msra.mxu0 0
          %1999 = vmatprep.subr.bf16.mxu0 0
          %2000 = vmatpush1.bf16.msra.mxu0 0
          %2001 = vmatprep.subr.bf16.mxu0 0
          %2002 = vmatpush1.bf16.msra.mxu0 0
          %2003 = vmatprep.subr.bf16.mxu0 0
          %2004 = vmatpush1.bf16.msra.mxu0 0
          %2005 = vmatprep.subr.bf16.mxu0 0
          %2006 = vmatpush1.bf16.msra.mxu0 0
          %2007 = vmatprep.subr.bf16.mxu0 0
          %2008 = vmatpush1.bf16.msra.mxu0 0
          %2009 = vmatprep.mubr.bf16.mxu0 0
          %2010 = vmatmul.mubr.bf16.gmra.mrb[0].mxu0 %v1966
          %v2011 = vpop.f32.mrb[0].mxu0
          %v2012 = vadd.f32 0.0, %v2011
          %v2013 = vpop.f32.mrb[0].mxu0
          %v2014 = vpop.f32.mrb[0].mxu0
          %v2015 = vadd.f32 0.0, %v2014
          %v2016 = vpop.f32.mrb[0].mxu0
          %2017 = vmatprep.mubr.bf16.mxu0 0
          %2018 = vmatmul.mubr.bf16.gmra.mrb[0].mxu0 %v1969
          %v2019 = vpop.f32.mrb[0].mxu0
          %v2020 = vadd.f32 0.0, %v2019
          %v2021 = vpop.f32.mrb[0].mxu0
          %v2022 = vpop.f32.mrb[0].mxu0
          %v2023 = vadd.f32 0.0, %v2022
          %v2024 = vpop.f32.mrb[0].mxu0
          %2025 = vmatprep.mubr.bf16.mxu0 0
          %2026 = vmatmul.mubr.bf16.gmra.mrb[0].mxu0 %v1972
          %v2027 = vpop.f32.mrb[0].mxu0
          %v2028 = vadd.f32 0.0, %v2027
          %v2029 = vpop.f32.mrb[0].mxu0
          %v2030 = vpop.f32.mrb[0].mxu0
          %v2031 = vadd.f32 0.0, %v2030
          %v2032 = vpop.f32.mrb[0].mxu0
          %2033 = vmatprep.mubr.bf16.mxu0 0
          %2034 = vmatmul.mubr.bf16.gmra.mrb[0].mxu0 %v1975
          %v2035 = vpop.f32.mrb[0].mxu0
          %v2036 = vadd.f32 0.0, %v2035
          %v2037 = vpop.f32.mrb[0].mxu0
          %v2038 = vpop.f32.mrb[0].mxu0
          %v2039 = vadd.f32 0.0, %v2038
          %v2040 = vpop.f32.mrb[0].mxu0
          %2041 = vdwg.mxu0
          %v2042 = vadd.f32 %v1721, %v2012
          %v2043 = vadd.f32 %v1722, %v2015
          %v2044 = vadd.f32 %v1723, %v2020
          %v2045 = vadd.f32 %v1724, %v2023
          %v2046 = vadd.f32 %v1725, %v2028
          %v2047 = vadd.f32 %v1726, %v2031
          %v2048 = vadd.f32 %v1727, %v2036
          %v2049 = vadd.f32 %v1728, %v2039
          %s2050 = sadd.s32 2, %s1743
          %s2051 = smul.addr %s2050, 4
          %s2052 = scalar_lea.vmem [#allocation2], %s2051
          %v2053 = vld [vmem:[%s2052] sm:$0xf]
          %v2054 = vld [vmem:[%s2052 + $0x4] sm:$0x1]
          %v2055 = vld [vmem:[%s2052 + $0x8] sm:$0xf]
          %v2056 = vld [vmem:[%s2052 + $0xc] sm:$0x1]
          %v2057 = vld [vmem:[%s2052 + $0x10] sm:$0xf]
          %v2058 = vld [vmem:[%s2052 + $0x14] sm:$0x1]
          %v2059 = vld [vmem:[%s2052 + $0x18] sm:$0xf]
          %v2060 = vld [vmem:[%s2052 + $0x1c] sm:$0x1]
          %v2061 = vld [vmem:[%s2052 + $0x20] sm:$0xf]
          %v2062 = vld [vmem:[%s2052 + $0x24] sm:$0x1]
          %v2063 = vld [vmem:[%s2052 + $0x28] sm:$0xf]
          %v2064 = vld [vmem:[%s2052 + $0x2c] sm:$0x1]
          %v2065 = vld [vmem:[%s2052 + $0x30] sm:$0xf]
          %v2066 = vld [vmem:[%s2052 + $0x34] sm:$0x1]
          %v2067 = vld [vmem:[%s2052 + $0x38] sm:$0xf]
          %v2068 = vld [vmem:[%s2052 + $0x3c] sm:$0x1]
          %v2085 = vunpack.c.l.b16 %v2053
          %v2086 = vunpack.c.l.b16 %v2054
          %v2087 = vunpack.c.l.b16 %v2055
          %v2088 = vunpack.c.l.b16 %v2056
          %v2089 = vunpack.c.l.b16 %v2057
          %v2090 = vunpack.c.l.b16 %v2058
          %v2091 = vunpack.c.l.b16 %v2059
          %v2092 = vunpack.c.l.b16 %v2060
          %v2093 = vunpack.c.l.b16 %v2061
          %v2094 = vunpack.c.l.b16 %v2062
          %v2095 = vunpack.c.l.b16 %v2063
          %v2096 = vunpack.c.l.b16 %v2064
          %v2097 = vunpack.c.l.b16 %v2065
          %v2098 = vunpack.c.l.b16 %v2066
          %v2099 = vunpack.c.l.b16 %v2067
          %v2100 = vunpack.c.l.b16 %v2068
          %v2101 = vpack.c.b16 %v2086, %v2085
          %v2102 = vpack.c.b16 %v2088, %v2087
          %v2103 = vpack.c.b16 %v2090, %v2089
          %v2104 = vpack.c.b16 %v2092, %v2091
          %v2105 = vpack.c.b16 %v2094, %v2093
          %v2106 = vpack.c.b16 %v2096, %v2095
          %v2107 = vpack.c.b16 %v2098, %v2097
          %v2108 = vpack.c.b16 %v2100, %v2099
          %v2110 = vshrl.u32 %v2101, 16
          %v2112 = vshll.u32 %v2101, 16
          %v2114 = vrot.slane %v2112, 1
          %v2115 = vor.u32 %v2110, %v2114
          %v2117 = vshrl.u32 %v2102, 16
          %v2119 = vshll.u32 %v2102, 16
          %v2121 = vrot.slane %v2119, 1
          %v2122 = vor.u32 %v2117, %v2121
          %v2124 = vshrl.u32 %v2103, 16
          %v2126 = vshll.u32 %v2103, 16
          %v2128 = vrot.slane %v2126, 1
          %v2129 = vor.u32 %v2124, %v2128
          %v2131 = vshrl.u32 %v2104, 16
          %v2133 = vshll.u32 %v2104, 16
          %v2135 = vrot.slane %v2133, 1
          %v2136 = vor.u32 %v2131, %v2135
          %v2138 = vshrl.u32 %v2105, 16
          %v2140 = vshll.u32 %v2105, 16
          %v2142 = vrot.slane %v2140, 1
          %v2143 = vor.u32 %v2138, %v2142
          %v2145 = vshrl.u32 %v2106, 16
          %v2147 = vshll.u32 %v2106, 16
          %v2149 = vrot.slane %v2147, 1
          %v2150 = vor.u32 %v2145, %v2149
          %v2152 = vshrl.u32 %v2107, 16
          %v2154 = vshll.u32 %v2107, 16
          %v2156 = vrot.slane %v2154, 1
          %v2157 = vor.u32 %v2152, %v2156
          %v2159 = vshrl.u32 %v2108, 16
          %v2161 = vshll.u32 %v2108, 16
          %v2163 = vrot.slane %v2161, 1
          %v2164 = vor.u32 %v2159, %v2163
          %2165 = vrot.lane.b32.xlu0 %v2115, 32
          %v2166 = vpop.permute.xlu0 %2165
          %2167 = vrot.lane.b32.xlu0 %v2122, 32
          %v2168 = vpop.permute.xlu0 %2167
          %2169 = vrot.lane.b32.xlu0 %v2129, 32
          %v2170 = vpop.permute.xlu0 %2169
          %2171 = vrot.lane.b32.xlu0 %v2136, 32
          %v2172 = vpop.permute.xlu0 %2171
          %2173 = vrot.lane.b32.xlu0 %v2143, 32
          %v2174 = vpop.permute.xlu0 %2173
          %2175 = vrot.lane.b32.xlu0 %v2150, 32
          %v2176 = vpop.permute.xlu0 %2175
          %2177 = vrot.lane.b32.xlu0 %v2157, 32
          %v2178 = vpop.permute.xlu0 %2177
          %2179 = vrot.lane.b32.xlu0 %v2164, 32
          %v2180 = vpop.permute.xlu0 %2179
          %v2181 = vrot.slane %v2101, 1
          %v2182 = vrot.slane %v2102, 1
          %v2183 = vrot.slane %v2103, 1
          %v2184 = vrot.slane %v2104, 1
          %v2185 = vrot.slane %v2105, 1
          %v2186 = vrot.slane %v2106, 1
          %v2187 = vrot.slane %v2107, 1
          %v2188 = vrot.slane %v2108, 1
          %2189 = vrot.lane.b32.xlu0 %v2181, 64
          %v2190 = vpop.permute.xlu0 %2189
          %2191 = vrot.lane.b32.xlu0 %v2182, 64
          %v2192 = vpop.permute.xlu0 %2191
          %2193 = vrot.lane.b32.xlu0 %v2183, 64
          %v2194 = vpop.permute.xlu0 %2193
          %2195 = vrot.lane.b32.xlu0 %v2184, 64
          %v2196 = vpop.permute.xlu0 %2195
          %2197 = vrot.lane.b32.xlu0 %v2185, 64
          %v2198 = vpop.permute.xlu0 %2197
          %2199 = vrot.lane.b32.xlu0 %v2186, 64
          %v2200 = vpop.permute.xlu0 %2199
          %2201 = vrot.lane.b32.xlu0 %v2187, 64
          %v2202 = vpop.permute.xlu0 %2201
          %2203 = vrot.lane.b32.xlu0 %v2188, 64
          %v2204 = vpop.permute.xlu0 %2203
          %v2207 = vsel %vm977, %v2053, %v2166
          %v2210 = vsel %vm977, %v2055, %v2168
          %v2213 = vsel %vm977, %v2057, %v2170
          %v2216 = vsel %vm977, %v2059, %v2172
          %v2219 = vsel %vm977, %v2061, %v2174
          %v2222 = vsel %vm977, %v2063, %v2176
          %v2225 = vsel %vm977, %v2065, %v2178
          %v2228 = vsel %vm977, %v2067, %v2180
          %v2230 = vsel %vm1002, %v2207, %v2190
          %v2232 = vsel %vm1002, %v2210, %v2192
          %v2234 = vsel %vm1002, %v2213, %v2194
          %v2236 = vsel %vm1002, %v2216, %v2196
          %v2238 = vsel %vm1002, %v2219, %v2198
          %v2240 = vsel %vm1002, %v2222, %v2200
          %v2242 = vsel %vm1002, %v2225, %v2202
          %v2244 = vsel %vm1002, %v2228, %v2204
          %s2245 = scalar_lea.vmem [#allocation3], 192
          %v2246 = vld [vmem:[%s2245] sm:$0xff]
          %v2247 = vld [vmem:[%s2245 + $0x8] sm:$0xff]
          %v2248 = vld [vmem:[%s2245 + $0x10] sm:$0xff]
          %v2249 = vld [vmem:[%s2245 + $0x18] sm:$0xff]
          %v2250 = vld [vmem:[%s2245 + $0x20] sm:$0xff]
          %v2251 = vld [vmem:[%s2245 + $0x28] sm:$0xff]
          %v2260 = vunpack.c.l.b16 %v2230
          %v2261 = vunpack.c.l.b16 %v2232
          %v2262 = vunpack.c.l.b16 %v2234
          %v2263 = vunpack.c.l.b16 %v2236
          %v2264 = vunpack.c.l.b16 %v2238
          %v2265 = vunpack.c.l.b16 %v2240
          %v2266 = vunpack.c.l.b16 %v2242
          %v2267 = vunpack.c.l.b16 %v2244
          %v2268 = vpack.c.b16 %v2261, %v2260
          %v2269 = vpack.c.b16 %v2263, %v2262
          %v2270 = vpack.c.b16 %v2265, %v2264
          %v2271 = vpack.c.b16 %v2267, %v2266
          %v2273 = vsel %vm1247, %v2268, 0
          %v2276 = vsel %vm1247, %v2269, 0
          %v2279 = vsel %vm1247, %v2270, 0
          %v2282 = vsel %vm1247, %v2271, 0
          %2284 = vmatprep.subr.bf16.mxu0 0
          %2285 = vmatpush1.bf16.msra.mxu0 %v2246
          %2286 = vmatprep.subr.bf16.mxu0 0
          %2287 = vmatpush1.bf16.msra.mxu0 %v2247
          %2288 = vmatprep.subr.bf16.mxu0 0
          %2289 = vmatpush1.bf16.msra.mxu0 %v2248
          %2290 = vmatprep.subr.bf16.mxu0 0
          %2291 = vmatpush1.bf16.msra.mxu0 %v2249
          %2292 = vmatprep.subr.bf16.mxu0 0
          %2293 = vmatpush1.bf16.msra.mxu0 %v2250
          %2294 = vmatprep.subr.bf16.mxu0 0
          %2295 = vmatpush1.bf16.msra.mxu0 %v2251
          %2296 = vmatprep.subr.bf16.mxu0 0
          %2297 = vmatpush1.bf16.msra.mxu0 0
          %2298 = vmatprep.subr.bf16.mxu0 0
          %2299 = vmatpush1.bf16.msra.mxu0 0
          %2300 = vmatprep.subr.bf16.mxu0 0
          %2301 = vmatpush1.bf16.msra.mxu0 0
          %2302 = vmatprep.subr.bf16.mxu0 0
          %2303 = vmatpush1.bf16.msra.mxu0 0
          %2304 = vmatprep.subr.bf16.mxu0 0
          %2305 = vmatpush1.bf16.msra.mxu0 0
          %2306 = vmatprep.subr.bf16.mxu0 0
          %2307 = vmatpush1.bf16.msra.mxu0 0
          %2308 = vmatprep.subr.bf16.mxu0 0
          %2309 = vmatpush1.bf16.msra.mxu0 0
          %2310 = vmatprep.subr.bf16.mxu0 0
          %2311 = vmatpush1.bf16.msra.mxu0 0
          %2312 = vmatprep.subr.bf16.mxu0 0
          %2313 = vmatpush1.bf16.msra.mxu0 0
          %2314 = vmatprep.subr.bf16.mxu0 0
          %2315 = vmatpush1.bf16.msra.mxu0 0
          %2316 = vmatprep.mubr.bf16.mxu0 0
          %2317 = vmatmul.mubr.bf16.gmra.mrb[0].mxu0 %v2273
          %v2318 = vpop.f32.mrb[0].mxu0
          %v2319 = vadd.f32 0.0, %v2318
          %v2320 = vpop.f32.mrb[0].mxu0
          %v2321 = vpop.f32.mrb[0].mxu0
          %v2322 = vadd.f32 0.0, %v2321
          %v2323 = vpop.f32.mrb[0].mxu0
          %2324 = vmatprep.mubr.bf16.mxu0 0
          %2325 = vmatmul.mubr.bf16.gmra.mrb[0].mxu0 %v2276
          %v2326 = vpop.f32.mrb[0].mxu0
          %v2327 = vadd.f32 0.0, %v2326
          %v2328 = vpop.f32.mrb[0].mxu0
          %v2329 = vpop.f32.mrb[0].mxu0
          %v2330 = vadd.f32 0.0, %v2329
          %v2331 = vpop.f32.mrb[0].mxu0
          %2332 = vmatprep.mubr.bf16.mxu0 0
          %2333 = vmatmul.mubr.bf16.gmra.mrb[0].mxu0 %v2279
          %v2334 = vpop.f32.mrb[0].mxu0
          %v2335 = vadd.f32 0.0, %v2334
          %v2336 = vpop.f32.mrb[0].mxu0
          %v2337 = vpop.f32.mrb[0].mxu0
          %v2338 = vadd.f32 0.0, %v2337
          %v2339 = vpop.f32.mrb[0].mxu0
          %2340 = vmatprep.mubr.bf16.mxu0 0
          %2341 = vmatmul.mubr.bf16.gmra.mrb[0].mxu0 %v2282
          %v2342 = vpop.f32.mrb[0].mxu0
          %v2343 = vadd.f32 0.0, %v2342
          %v2344 = vpop.f32.mrb[0].mxu0
          %v2345 = vpop.f32.mrb[0].mxu0
          %v2346 = vadd.f32 0.0, %v2345
          %v2347 = vpop.f32.mrb[0].mxu0
          %2348 = vdwg.mxu0
          %v2349 = vadd.f32 %v2042, %v2319
          %v2350 = vadd.f32 %v2043, %v2322
          %v2351 = vadd.f32 %v2044, %v2327
          %v2352 = vadd.f32 %v2045, %v2330
          %v2353 = vadd.f32 %v2046, %v2335
          %v2354 = vadd.f32 %v2047, %v2338
          %v2355 = vadd.f32 %v2048, %v2343
          %v2356 = vadd.f32 %v2049, %v2346
          %s2357 = sadd.s32 4, %s1743
          %s2358 = smul.addr %s2357, 4
          %s2359 = scalar_lea.vmem [#allocation2], %s2358
          %v2360 = vld [vmem:[%s2359] sm:$0xf]
          %v2361 = vld [vmem:[%s2359 + $0x4] sm:$0x1]
          %v2362 = vld [vmem:[%s2359 + $0x8] sm:$0xf]
          %v2363 = vld [vmem:[%s2359 + $0xc] sm:$0x1]
          %v2364 = vld [vmem:[%s2359 + $0x10] sm:$0xf]
          %v2365 = vld [vmem:[%s2359 + $0x14] sm:$0x1]
          %v2366 = vld [vmem:[%s2359 + $0x18] sm:$0xf]
          %v2367 = vld [vmem:[%s2359 + $0x1c] sm:$0x1]
          %v2368 = vld [vmem:[%s2359 + $0x20] sm:$0xf]
          %v2369 = vld [vmem:[%s2359 + $0x24] sm:$0x1]
          %v2370 = vld [vmem:[%s2359 + $0x28] sm:$0xf]
          %v2371 = vld [vmem:[%s2359 + $0x2c] sm:$0x1]
          %v2372 = vld [vmem:[%s2359 + $0x30] sm:$0xf]
          %v2373 = vld [vmem:[%s2359 + $0x34] sm:$0x1]
          %v2374 = vld [vmem:[%s2359 + $0x38] sm:$0xf]
          %v2375 = vld [vmem:[%s2359 + $0x3c] sm:$0x1]
          %v2392 = vunpack.c.l.b16 %v2360
          %v2393 = vunpack.c.l.b16 %v2361
          %v2394 = vunpack.c.l.b16 %v2362
          %v2395 = vunpack.c.l.b16 %v2363
          %v2396 = vunpack.c.l.b16 %v2364
          %v2397 = vunpack.c.l.b16 %v2365
          %v2398 = vunpack.c.l.b16 %v2366
          %v2399 = vunpack.c.l.b16 %v2367
          %v2400 = vunpack.c.l.b16 %v2368
          %v2401 = vunpack.c.l.b16 %v2369
          %v2402 = vunpack.c.l.b16 %v2370
          %v2403 = vunpack.c.l.b16 %v2371
          %v2404 = vunpack.c.l.b16 %v2372
          %v2405 = vunpack.c.l.b16 %v2373
          %v2406 = vunpack.c.l.b16 %v2374
          %v2407 = vunpack.c.l.b16 %v2375
          %v2408 = vpack.c.b16 %v2393, %v2392
          %v2409 = vpack.c.b16 %v2395, %v2394
          %v2410 = vpack.c.b16 %v2397, %v2396
          %v2411 = vpack.c.b16 %v2399, %v2398
          %v2412 = vpack.c.b16 %v2401, %v2400
          %v2413 = vpack.c.b16 %v2403, %v2402
          %v2414 = vpack.c.b16 %v2405, %v2404
          %v2415 = vpack.c.b16 %v2407, %v2406
          %v2417 = vshrl.u32 %v2408, 16
          %v2419 = vshll.u32 %v2408, 16
          %v2421 = vrot.slane %v2419, 1
          %v2422 = vor.u32 %v2417, %v2421
          %v2424 = vshrl.u32 %v2409, 16
          %v2426 = vshll.u32 %v2409, 16
          %v2428 = vrot.slane %v2426, 1
          %v2429 = vor.u32 %v2424, %v2428
          %v2431 = vshrl.u32 %v2410, 16
          %v2433 = vshll.u32 %v2410, 16
          %v2435 = vrot.slane %v2433, 1
          %v2436 = vor.u32 %v2431, %v2435
          %v2438 = vshrl.u32 %v2411, 16
          %v2440 = vshll.u32 %v2411, 16
          %v2442 = vrot.slane %v2440, 1
          %v2443 = vor.u32 %v2438, %v2442
          %v2445 = vshrl.u32 %v2412, 16
          %v2447 = vshll.u32 %v2412, 16
          %v2449 = vrot.slane %v2447, 1
          %v2450 = vor.u32 %v2445, %v2449
          %v2452 = vshrl.u32 %v2413, 16
          %v2454 = vshll.u32 %v2413, 16
          %v2456 = vrot.slane %v2454, 1
          %v2457 = vor.u32 %v2452, %v2456
          %v2459 = vshrl.u32 %v2414, 16
          %v2461 = vshll.u32 %v2414, 16
          %v2463 = vrot.slane %v2461, 1
          %v2464 = vor.u32 %v2459, %v2463
          %v2466 = vshrl.u32 %v2415, 16
          %v2468 = vshll.u32 %v2415, 16
          %v2470 = vrot.slane %v2468, 1
          %v2471 = vor.u32 %v2466, %v2470
          %2472 = vrot.lane.b32.xlu0 %v2422, 32
          %v2473 = vpop.permute.xlu0 %2472
          %2474 = vrot.lane.b32.xlu0 %v2429, 32
          %v2475 = vpop.permute.xlu0 %2474
          %2476 = vrot.lane.b32.xlu0 %v2436, 32
          %v2477 = vpop.permute.xlu0 %2476
          %2478 = vrot.lane.b32.xlu0 %v2443, 32
          %v2479 = vpop.permute.xlu0 %2478
          %2480 = vrot.lane.b32.xlu0 %v2450, 32
          %v2481 = vpop.permute.xlu0 %2480
          %2482 = vrot.lane.b32.xlu0 %v2457, 32
          %v2483 = vpop.permute.xlu0 %2482
          %2484 = vrot.lane.b32.xlu0 %v2464, 32
          %v2485 = vpop.permute.xlu0 %2484
          %2486 = vrot.lane.b32.xlu0 %v2471, 32
          %v2487 = vpop.permute.xlu0 %2486
          %v2488 = vrot.slane %v2408, 1
          %v2489 = vrot.slane %v2409, 1
          %v2490 = vrot.slane %v2410, 1
          %v2491 = vrot.slane %v2411, 1
          %v2492 = vrot.slane %v2412, 1
          %v2493 = vrot.slane %v2413, 1
          %v2494 = vrot.slane %v2414, 1
          %v2495 = vrot.slane %v2415, 1
          %2496 = vrot.lane.b32.xlu0 %v2488, 64
          %v2497 = vpop.permute.xlu0 %2496
          %2498 = vrot.lane.b32.xlu0 %v2489, 64
          %v2499 = vpop.permute.xlu0 %2498
          %2500 = vrot.lane.b32.xlu0 %v2490, 64
          %v2501 = vpop.permute.xlu0 %2500
          %2502 = vrot.lane.b32.xlu0 %v2491, 64
          %v2503 = vpop.permute.xlu0 %2502
          %2504 = vrot.lane.b32.xlu0 %v2492, 64
          %v2505 = vpop.permute.xlu0 %2504
          %2506 = vrot.lane.b32.xlu0 %v2493, 64
          %v2507 = vpop.permute.xlu0 %2506
          %2508 = vrot.lane.b32.xlu0 %v2494, 64
          %v2509 = vpop.permute.xlu0 %2508
          %2510 = vrot.lane.b32.xlu0 %v2495, 64
          %v2511 = vpop.permute.xlu0 %2510
          %v2514 = vsel %vm977, %v2360, %v2473
          %v2517 = vsel %vm977, %v2362, %v2475
          %v2520 = vsel %vm977, %v2364, %v2477
          %v2523 = vsel %vm977, %v2366, %v2479
          %v2526 = vsel %vm977, %v2368, %v2481
          %v2529 = vsel %vm977, %v2370, %v2483
          %v2532 = vsel %vm977, %v2372, %v2485
          %v2535 = vsel %vm977, %v2374, %v2487
          %v2537 = vsel %vm1002, %v2514, %v2497
          %v2539 = vsel %vm1002, %v2517, %v2499
          %v2541 = vsel %vm1002, %v2520, %v2501
          %v2543 = vsel %vm1002, %v2523, %v2503
          %v2545 = vsel %vm1002, %v2526, %v2505
          %v2547 = vsel %vm1002, %v2529, %v2507
          %v2549 = vsel %vm1002, %v2532, %v2509
          %v2551 = vsel %vm1002, %v2535, %v2511
          %s2552 = scalar_lea.vmem [#allocation3], 240
          %v2553 = vld [vmem:[%s2552] sm:$0xff]
          %v2554 = vld [vmem:[%s2552 + $0x8] sm:$0xff]
          %v2555 = vld [vmem:[%s2552 + $0x10] sm:$0xff]
          %v2556 = vld [vmem:[%s2552 + $0x18] sm:$0xff]
          %v2557 = vld [vmem:[%s2552 + $0x20] sm:$0xff]
          %v2558 = vld [vmem:[%s2552 + $0x28] sm:$0xff]
          %v2567 = vunpack.c.l.b16 %v2537
          %v2568 = vunpack.c.l.b16 %v2539
          %v2569 = vunpack.c.l.b16 %v2541
          %v2570 = vunpack.c.l.b16 %v2543
          %v2571 = vunpack.c.l.b16 %v2545
          %v2572 = vunpack.c.l.b16 %v2547
          %v2573 = vunpack.c.l.b16 %v2549
          %v2574 = vunpack.c.l.b16 %v2551
          %v2575 = vpack.c.b16 %v2568, %v2567
          %v2576 = vpack.c.b16 %v2570, %v2569
          %v2577 = vpack.c.b16 %v2572, %v2571
          %v2578 = vpack.c.b16 %v2574, %v2573
          %v2580 = vsel %vm1247, %v2575, 0
          %v2583 = vsel %vm1247, %v2576, 0
          %v2586 = vsel %vm1247, %v2577, 0
          %v2589 = vsel %vm1247, %v2578, 0
          %2591 = vmatprep.subr.bf16.mxu0 0
          %2592 = vmatpush1.bf16.msra.mxu0 %v2553
          %2593 = vmatprep.subr.bf16.mxu0 0
          %2594 = vmatpush1.bf16.msra.mxu0 %v2554
          %2595 = vmatprep.subr.bf16.mxu0 0
          %2596 = vmatpush1.bf16.msra.mxu0 %v2555
          %2597 = vmatprep.subr.bf16.mxu0 0
          %2598 = vmatpush1.bf16.msra.mxu0 %v2556
          %2599 = vmatprep.subr.bf16.mxu0 0
          %2600 = vmatpush1.bf16.msra.mxu0 %v2557
          %2601 = vmatprep.subr.bf16.mxu0 0
          %2602 = vmatpush1.bf16.msra.mxu0 %v2558
          %2603 = vmatprep.subr.bf16.mxu0 0
          %2604 = vmatpush1.bf16.msra.mxu0 0
          %2605 = vmatprep.subr.bf16.mxu0 0
          %2606 = vmatpush1.bf16.msra.mxu0 0
          %2607 = vmatprep.subr.bf16.mxu0 0
          %2608 = vmatpush1.bf16.msra.mxu0 0
          %2609 = vmatprep.subr.bf16.mxu0 0
          %2610 = vmatpush1.bf16.msra.mxu0 0
          %2611 = vmatprep.subr.bf16.mxu0 0
          %2612 = vmatpush1.bf16.msra.mxu0 0
          %2613 = vmatprep.subr.bf16.mxu0 0
          %2614 = vmatpush1.bf16.msra.mxu0 0
          %2615 = vmatprep.subr.bf16.mxu0 0
          %2616 = vmatpush1.bf16.msra.mxu0 0
          %2617 = vmatprep.subr.bf16.mxu0 0
          %2618 = vmatpush1.bf16.msra.mxu0 0
          %2619 = vmatprep.subr.bf16.mxu0 0
          %2620 = vmatpush1.bf16.msra.mxu0 0
          %2621 = vmatprep.subr.bf16.mxu0 0
          %2622 = vmatpush1.bf16.msra.mxu0 0
          %2623 = vmatprep.mubr.bf16.mxu0 0
          %2624 = vmatmul.mubr.bf16.gmra.mrb[0].mxu0 %v2580
          %v2625 = vpop.f32.mrb[0].mxu0
          %v2626 = vadd.f32 0.0, %v2625
          %v2627 = vpop.f32.mrb[0].mxu0
          %v2628 = vpop.f32.mrb[0].mxu0
          %v2629 = vadd.f32 0.0, %v2628
          %v2630 = vpop.f32.mrb[0].mxu0
          %2631 = vmatprep.mubr.bf16.mxu0 0
          %2632 = vmatmul.mubr.bf16.gmra.mrb[0].mxu0 %v2583
          %v2633 = vpop.f32.mrb[0].mxu0
          %v2634 = vadd.f32 0.0, %v2633
          %v2635 = vpop.f32.mrb[0].mxu0
          %v2636 = vpop.f32.mrb[0].mxu0
          %v2637 = vadd.f32 0.0, %v2636
          %v2638 = vpop.f32.mrb[0].mxu0
          %2639 = vmatprep.mubr.bf16.mxu0 0
          %2640 = vmatmul.mubr.bf16.gmra.mrb[0].mxu0 %v2586
          %v2641 = vpop.f32.mrb[0].mxu0
          %v2642 = vadd.f32 0.0, %v2641
          %v2643 = vpop.f32.mrb[0].mxu0
          %v2644 = vpop.f32.mrb[0].mxu0
          %v2645 = vadd.f32 0.0, %v2644
          %v2646 = vpop.f32.mrb[0].mxu0
          %2647 = vmatprep.mubr.bf16.mxu0 0
          %2648 = vmatmul.mubr.bf16.gmra.mrb[0].mxu0 %v2589
          %v2649 = vpop.f32.mrb[0].mxu0
          %v2650 = vadd.f32 0.0, %v2649
          %v2651 = vpop.f32.mrb[0].mxu0
          %v2652 = vpop.f32.mrb[0].mxu0
          %v2653 = vadd.f32 0.0, %v2652
          %v2654 = vpop.f32.mrb[0].mxu0
          %2655 = vdwg.mxu0
          %v2656 = vadd.f32 %v2349, %v2626
          %v2657 = vadd.f32 %v2350, %v2629
          %v2658 = vadd.f32 %v2351, %v2634
          %v2659 = vadd.f32 %v2352, %v2637
          %v2660 = vadd.f32 %v2353, %v2642
          %v2661 = vadd.f32 %v2354, %v2645
          %v2662 = vadd.f32 %v2355, %v2650
          %v2663 = vadd.f32 %v2356, %v2653
          %s2664 = sadd.s32 %s28, 3
          %p2665 = scmp.lt.s32.totalorder %s2664, 0
          %s2666 = ssub.s32 0, %s2664
          %s2667 = scalar_select %p2665, %s2666, %s2664
          %s2668 = sdiv.u32.pop %s2667, 3
          %s2669 = srem.u32.pop %s2667, 3
          %s2670 = ssub.s32 0, %s2669
          %s2671 = scalar_select %p2665, %s2670, %s2669
          %p2672 = scmp.ne.s32.totalorder %s2671, 0
          %p2673 = scmp.lt.s32.totalorder %s2671, 0
          %p2674 = pnand %p2673, %p2672
          %p2675 = pneg %p2674
          %s2676 = sadd.s32 %s2671, 3
          %s2677 = scalar_select %p2675, %s2676, %s2671
          %s2678 = smul.u32 %s2677, 20
          %s2679 = smul.addr %s2678, 4
          %s2680 = scalar_lea.vmem [#allocation2], %s2679
          %v2681 = vld [vmem:[%s2680] sm:$0xf]
          %v2682 = vld [vmem:[%s2680 + $0x4] sm:$0x1]
          %v2683 = vld [vmem:[%s2680 + $0x8] sm:$0xf]
          %v2684 = vld [vmem:[%s2680 + $0xc] sm:$0x1]
          %v2685 = vld [vmem:[%s2680 + $0x10] sm:$0xf]
          %v2686 = vld [vmem:[%s2680 + $0x14] sm:$0x1]
          %v2687 = vld [vmem:[%s2680 + $0x18] sm:$0xf]
          %v2688 = vld [vmem:[%s2680 + $0x1c] sm:$0x1]
          %v2689 = vld [vmem:[%s2680 + $0x20] sm:$0xf]
          %v2690 = vld [vmem:[%s2680 + $0x24] sm:$0x1]
          %v2691 = vld [vmem:[%s2680 + $0x28] sm:$0xf]
          %v2692 = vld [vmem:[%s2680 + $0x2c] sm:$0x1]
          %v2693 = vld [vmem:[%s2680 + $0x30] sm:$0xf]
          %v2694 = vld [vmem:[%s2680 + $0x34] sm:$0x1]
          %v2695 = vld [vmem:[%s2680 + $0x38] sm:$0xf]
          %v2696 = vld [vmem:[%s2680 + $0x3c] sm:$0x1]
          %v2713 = vunpack.c.l.b16 %v2681
          %v2714 = vunpack.c.l.b16 %v2682
          %v2715 = vunpack.c.l.b16 %v2683
          %v2716 = vunpack.c.l.b16 %v2684
          %v2717 = vunpack.c.l.b16 %v2685
          %v2718 = vunpack.c.l.b16 %v2686
          %v2719 = vunpack.c.l.b16 %v2687
          %v2720 = vunpack.c.l.b16 %v2688
          %v2721 = vunpack.c.l.b16 %v2689
          %v2722 = vunpack.c.l.b16 %v2690
          %v2723 = vunpack.c.l.b16 %v2691
          %v2724 = vunpack.c.l.b16 %v2692
          %v2725 = vunpack.c.l.b16 %v2693
          %v2726 = vunpack.c.l.b16 %v2694
          %v2727 = vunpack.c.l.b16 %v2695
          %v2728 = vunpack.c.l.b16 %v2696
          %v2729 = vpack.c.b16 %v2714, %v2713
          %v2730 = vpack.c.b16 %v2716, %v2715
          %v2731 = vpack.c.b16 %v2718, %v2717
          %v2732 = vpack.c.b16 %v2720, %v2719
          %v2733 = vpack.c.b16 %v2722, %v2721
          %v2734 = vpack.c.b16 %v2724, %v2723
          %v2735 = vpack.c.b16 %v2726, %v2725
          %v2736 = vpack.c.b16 %v2728, %v2727
          %v2738 = vshrl.u32 %v2729, 16
          %v2740 = vshll.u32 %v2729, 16
          %v2742 = vrot.slane %v2740, 1
          %v2743 = vor.u32 %v2738, %v2742
          %v2745 = vshrl.u32 %v2730, 16
          %v2747 = vshll.u32 %v2730, 16
          %v2749 = vrot.slane %v2747, 1
          %v2750 = vor.u32 %v2745, %v2749
          %v2752 = vshrl.u32 %v2731, 16
          %v2754 = vshll.u32 %v2731, 16
          %v2756 = vrot.slane %v2754, 1
          %v2757 = vor.u32 %v2752, %v2756
          %v2759 = vshrl.u32 %v2732, 16
          %v2761 = vshll.u32 %v2732, 16
          %v2763 = vrot.slane %v2761, 1
          %v2764 = vor.u32 %v2759, %v2763
          %v2766 = vshrl.u32 %v2733, 16
          %v2768 = vshll.u32 %v2733, 16
          %v2770 = vrot.slane %v2768, 1
          %v2771 = vor.u32 %v2766, %v2770
          %v2773 = vshrl.u32 %v2734, 16
          %v2775 = vshll.u32 %v2734, 16
          %v2777 = vrot.slane %v2775, 1
          %v2778 = vor.u32 %v2773, %v2777
          %v2780 = vshrl.u32 %v2735, 16
          %v2782 = vshll.u32 %v2735, 16
          %v2784 = vrot.slane %v2782, 1
          %v2785 = vor.u32 %v2780, %v2784
          %v2787 = vshrl.u32 %v2736, 16
          %v2789 = vshll.u32 %v2736, 16
          %v2791 = vrot.slane %v2789, 1
          %v2792 = vor.u32 %v2787, %v2791
          %2793 = vrot.lane.b32.xlu0 %v2743, 32
          %v2794 = vpop.permute.xlu0 %2793
          %2795 = vrot.lane.b32.xlu0 %v2750, 32
          %v2796 = vpop.permute.xlu0 %2795
          %2797 = vrot.lane.b32.xlu0 %v2757, 32
          %v2798 = vpop.permute.xlu0 %2797
          %2799 = vrot.lane.b32.xlu0 %v2764, 32
          %v2800 = vpop.permute.xlu0 %2799
          %2801 = vrot.lane.b32.xlu0 %v2771, 32
          %v2802 = vpop.permute.xlu0 %2801
          %2803 = vrot.lane.b32.xlu0 %v2778, 32
          %v2804 = vpop.permute.xlu0 %2803
          %2805 = vrot.lane.b32.xlu0 %v2785, 32
          %v2806 = vpop.permute.xlu0 %2805
          %2807 = vrot.lane.b32.xlu0 %v2792, 32
          %v2808 = vpop.permute.xlu0 %2807
          %v2809 = vrot.slane %v2729, 1
          %v2810 = vrot.slane %v2730, 1
          %v2811 = vrot.slane %v2731, 1
          %v2812 = vrot.slane %v2732, 1
          %v2813 = vrot.slane %v2733, 1
          %v2814 = vrot.slane %v2734, 1
          %v2815 = vrot.slane %v2735, 1
          %v2816 = vrot.slane %v2736, 1
          %2817 = vrot.lane.b32.xlu0 %v2809, 64
          %v2818 = vpop.permute.xlu0 %2817
          %2819 = vrot.lane.b32.xlu0 %v2810, 64
          %v2820 = vpop.permute.xlu0 %2819
          %2821 = vrot.lane.b32.xlu0 %v2811, 64
          %v2822 = vpop.permute.xlu0 %2821
          %2823 = vrot.lane.b32.xlu0 %v2812, 64
          %v2824 = vpop.permute.xlu0 %2823
          %2825 = vrot.lane.b32.xlu0 %v2813, 64
          %v2826 = vpop.permute.xlu0 %2825
          %2827 = vrot.lane.b32.xlu0 %v2814, 64
          %v2828 = vpop.permute.xlu0 %2827
          %2829 = vrot.lane.b32.xlu0 %v2815, 64
          %v2830 = vpop.permute.xlu0 %2829
          %2831 = vrot.lane.b32.xlu0 %v2816, 64
          %v2832 = vpop.permute.xlu0 %2831
          %v2835 = vsel %vm977, %v2681, %v2794
          %v2838 = vsel %vm977, %v2683, %v2796
          %v2841 = vsel %vm977, %v2685, %v2798
          %v2844 = vsel %vm977, %v2687, %v2800
          %v2847 = vsel %vm977, %v2689, %v2802
          %v2850 = vsel %vm977, %v2691, %v2804
          %v2853 = vsel %vm977, %v2693, %v2806
          %v2856 = vsel %vm977, %v2695, %v2808
          %v2858 = vsel %vm1002, %v2835, %v2818
          %v2860 = vsel %vm1002, %v2838, %v2820
          %v2862 = vsel %vm1002, %v2841, %v2822
          %v2864 = vsel %vm1002, %v2844, %v2824
          %v2866 = vsel %vm1002, %v2847, %v2826
          %v2868 = vsel %vm1002, %v2850, %v2828
          %v2870 = vsel %vm1002, %v2853, %v2830
          %v2872 = vsel %vm1002, %v2856, %v2832
          %s2873 = scalar_lea.vmem [#allocation3], 288
          %v2874 = vld [vmem:[%s2873] sm:$0xff]
          %v2875 = vld [vmem:[%s2873 + $0x8] sm:$0xff]
          %v2876 = vld [vmem:[%s2873 + $0x10] sm:$0xff]
          %v2877 = vld [vmem:[%s2873 + $0x18] sm:$0xff]
          %v2878 = vld [vmem:[%s2873 + $0x20] sm:$0xff]
          %v2879 = vld [vmem:[%s2873 + $0x28] sm:$0xff]
          %v2888 = vunpack.c.l.b16 %v2858
          %v2889 = vunpack.c.l.b16 %v2860
          %v2890 = vunpack.c.l.b16 %v2862
          %v2891 = vunpack.c.l.b16 %v2864
          %v2892 = vunpack.c.l.b16 %v2866
          %v2893 = vunpack.c.l.b16 %v2868
          %v2894 = vunpack.c.l.b16 %v2870
          %v2895 = vunpack.c.l.b16 %v2872
          %v2896 = vpack.c.b16 %v2889, %v2888
          %v2897 = vpack.c.b16 %v2891, %v2890
          %v2898 = vpack.c.b16 %v2893, %v2892
          %v2899 = vpack.c.b16 %v2895, %v2894
          %v2901 = vsel %vm1247, %v2896, 0
          %v2904 = vsel %vm1247, %v2897, 0
          %v2907 = vsel %vm1247, %v2898, 0
          %v2910 = vsel %vm1247, %v2899, 0
          %2912 = vmatprep.subr.bf16.mxu0 0
          %2913 = vmatpush1.bf16.msra.mxu0 %v2874
          %2914 = vmatprep.subr.bf16.mxu0 0
          %2915 = vmatpush1.bf16.msra.mxu0 %v2875
          %2916 = vmatprep.subr.bf16.mxu0 0
          %2917 = vmatpush1.bf16.msra.mxu0 %v2876
          %2918 = vmatprep.subr.bf16.mxu0 0
          %2919 = vmatpush1.bf16.msra.mxu0 %v2877
          %2920 = vmatprep.subr.bf16.mxu0 0
          %2921 = vmatpush1.bf16.msra.mxu0 %v2878
          %2922 = vmatprep.subr.bf16.mxu0 0
          %2923 = vmatpush1.bf16.msra.mxu0 %v2879
          %2924 = vmatprep.subr.bf16.mxu0 0
          %2925 = vmatpush1.bf16.msra.mxu0 0
          %2926 = vmatprep.subr.bf16.mxu0 0
          %2927 = vmatpush1.bf16.msra.mxu0 0
          %2928 = vmatprep.subr.bf16.mxu0 0
          %2929 = vmatpush1.bf16.msra.mxu0 0
          %2930 = vmatprep.subr.bf16.mxu0 0
          %2931 = vmatpush1.bf16.msra.mxu0 0
          %2932 = vmatprep.subr.bf16.mxu0 0
          %2933 = vmatpush1.bf16.msra.mxu0 0
          %2934 = vmatprep.subr.bf16.mxu0 0
          %2935 = vmatpush1.bf16.msra.mxu0 0
          %2936 = vmatprep.subr.bf16.mxu0 0
          %2937 = vmatpush1.bf16.msra.mxu0 0
          %2938 = vmatprep.subr.bf16.mxu0 0
          %2939 = vmatpush1.bf16.msra.mxu0 0
          %2940 = vmatprep.subr.bf16.mxu0 0
          %2941 = vmatpush1.bf16.msra.mxu0 0
          %2942 = vmatprep.subr.bf16.mxu0 0
          %2943 = vmatpush1.bf16.msra.mxu0 0
          %2944 = vmatprep.mubr.bf16.mxu0 0
          %2945 = vmatmul.mubr.bf16.gmra.mrb[0].mxu0 %v2901
          %v2946 = vpop.f32.mrb[0].mxu0
          %v2947 = vadd.f32 0.0, %v2946
          %v2948 = vpop.f32.mrb[0].mxu0
          %v2949 = vpop.f32.mrb[0].mxu0
          %v2950 = vadd.f32 0.0, %v2949
          %v2951 = vpop.f32.mrb[0].mxu0
          %2952 = vmatprep.mubr.bf16.mxu0 0
          %2953 = vmatmul.mubr.bf16.gmra.mrb[0].mxu0 %v2904
          %v2954 = vpop.f32.mrb[0].mxu0
          %v2955 = vadd.f32 0.0, %v2954
          %v2956 = vpop.f32.mrb[0].mxu0
          %v2957 = vpop.f32.mrb[0].mxu0
          %v2958 = vadd.f32 0.0, %v2957
          %v2959 = vpop.f32.mrb[0].mxu0
          %2960 = vmatprep.mubr.bf16.mxu0 0
          %2961 = vmatmul.mubr.bf16.gmra.mrb[0].mxu0 %v2907
          %v2962 = vpop.f32.mrb[0].mxu0
          %v2963 = vadd.f32 0.0, %v2962
          %v2964 = vpop.f32.mrb[0].mxu0
          %v2965 = vpop.f32.mrb[0].mxu0
          %v2966 = vadd.f32 0.0, %v2965
          %v2967 = vpop.f32.mrb[0].mxu0
          %2968 = vmatprep.mubr.bf16.mxu0 0
          %2969 = vmatmul.mubr.bf16.gmra.mrb[0].mxu0 %v2910
          %v2970 = vpop.f32.mrb[0].mxu0
          %v2971 = vadd.f32 0.0, %v2970
          %v2972 = vpop.f32.mrb[0].mxu0
          %v2973 = vpop.f32.mrb[0].mxu0
          %v2974 = vadd.f32 0.0, %v2973
          %v2975 = vpop.f32.mrb[0].mxu0
          %2976 = vdwg.mxu0
          %v2977 = vadd.f32 %v2656, %v2947
          %v2978 = vadd.f32 %v2657, %v2950
          %v2979 = vadd.f32 %v2658, %v2955
          %v2980 = vadd.f32 %v2659, %v2958
          %v2981 = vadd.f32 %v2660, %v2963
          %v2982 = vadd.f32 %v2661, %v2966
          %v2983 = vadd.f32 %v2662, %v2971
          %v2984 = vadd.f32 %v2663, %v2974
          %s2985 = sadd.s32 2, %s2678
          %s2986 = smul.addr %s2985, 4
          %s2987 = scalar_lea.vmem [#allocation2], %s2986
          %v2988 = vld [vmem:[%s2987] sm:$0xf]
          %v2989 = vld [vmem:[%s2987 + $0x4] sm:$0x1]
          %v2990 = vld [vmem:[%s2987 + $0x8] sm:$0xf]
          %v2991 = vld [vmem:[%s2987 + $0xc] sm:$0x1]
          %v2992 = vld [vmem:[%s2987 + $0x10] sm:$0xf]
          %v2993 = vld [vmem:[%s2987 + $0x14] sm:$0x1]
          %v2994 = vld [vmem:[%s2987 + $0x18] sm:$0xf]
          %v2995 = vld [vmem:[%s2987 + $0x1c] sm:$0x1]
          %v2996 = vld [vmem:[%s2987 + $0x20] sm:$0xf]
          %v2997 = vld [vmem:[%s2987 + $0x24] sm:$0x1]
          %v2998 = vld [vmem:[%s2987 + $0x28] sm:$0xf]
          %v2999 = vld [vmem:[%s2987 + $0x2c] sm:$0x1]
          %v3000 = vld [vmem:[%s2987 + $0x30] sm:$0xf]
          %v3001 = vld [vmem:[%s2987 + $0x34] sm:$0x1]
          %v3002 = vld [vmem:[%s2987 + $0x38] sm:$0xf]
          %v3003 = vld [vmem:[%s2987 + $0x3c] sm:$0x1]
          %v3020 = vunpack.c.l.b16 %v2988
          %v3021 = vunpack.c.l.b16 %v2989
          %v3022 = vunpack.c.l.b16 %v2990
          %v3023 = vunpack.c.l.b16 %v2991
          %v3024 = vunpack.c.l.b16 %v2992
          %v3025 = vunpack.c.l.b16 %v2993
          %v3026 = vunpack.c.l.b16 %v2994
          %v3027 = vunpack.c.l.b16 %v2995
          %v3028 = vunpack.c.l.b16 %v2996
          %v3029 = vunpack.c.l.b16 %v2997
          %v3030 = vunpack.c.l.b16 %v2998
          %v3031 = vunpack.c.l.b16 %v2999
          %v3032 = vunpack.c.l.b16 %v3000
          %v3033 = vunpack.c.l.b16 %v3001
          %v3034 = vunpack.c.l.b16 %v3002
          %v3035 = vunpack.c.l.b16 %v3003
          %v3036 = vpack.c.b16 %v3021, %v3020
          %v3037 = vpack.c.b16 %v3023, %v3022
          %v3038 = vpack.c.b16 %v3025, %v3024
          %v3039 = vpack.c.b16 %v3027, %v3026
          %v3040 = vpack.c.b16 %v3029, %v3028
          %v3041 = vpack.c.b16 %v3031, %v3030
          %v3042 = vpack.c.b16 %v3033, %v3032
          %v3043 = vpack.c.b16 %v3035, %v3034
          %v3045 = vshrl.u32 %v3036, 16
          %v3047 = vshll.u32 %v3036, 16
          %v3049 = vrot.slane %v3047, 1
          %v3050 = vor.u32 %v3045, %v3049
          %v3052 = vshrl.u32 %v3037, 16
          %v3054 = vshll.u32 %v3037, 16
          %v3056 = vrot.slane %v3054, 1
          %v3057 = vor.u32 %v3052, %v3056
          %v3059 = vshrl.u32 %v3038, 16
          %v3061 = vshll.u32 %v3038, 16
          %v3063 = vrot.slane %v3061, 1
          %v3064 = vor.u32 %v3059, %v3063
          %v3066 = vshrl.u32 %v3039, 16
          %v3068 = vshll.u32 %v3039, 16
          %v3070 = vrot.slane %v3068, 1
          %v3071 = vor.u32 %v3066, %v3070
          %v3073 = vshrl.u32 %v3040, 16
          %v3075 = vshll.u32 %v3040, 16
          %v3077 = vrot.slane %v3075, 1
          %v3078 = vor.u32 %v3073, %v3077
          %v3080 = vshrl.u32 %v3041, 16
          %v3082 = vshll.u32 %v3041, 16
          %v3084 = vrot.slane %v3082, 1
          %v3085 = vor.u32 %v3080, %v3084
          %v3087 = vshrl.u32 %v3042, 16
          %v3089 = vshll.u32 %v3042, 16
          %v3091 = vrot.slane %v3089, 1
          %v3092 = vor.u32 %v3087, %v3091
          %v3094 = vshrl.u32 %v3043, 16
          %v3096 = vshll.u32 %v3043, 16
          %v3098 = vrot.slane %v3096, 1
          %v3099 = vor.u32 %v3094, %v3098
          %3100 = vrot.lane.b32.xlu0 %v3050, 32
          %v3101 = vpop.permute.xlu0 %3100
          %3102 = vrot.lane.b32.xlu0 %v3057, 32
          %v3103 = vpop.permute.xlu0 %3102
          %3104 = vrot.lane.b32.xlu0 %v3064, 32
          %v3105 = vpop.permute.xlu0 %3104
          %3106 = vrot.lane.b32.xlu0 %v3071, 32
          %v3107 = vpop.permute.xlu0 %3106
          %3108 = vrot.lane.b32.xlu0 %v3078, 32
          %v3109 = vpop.permute.xlu0 %3108
          %3110 = vrot.lane.b32.xlu0 %v3085, 32
          %v3111 = vpop.permute.xlu0 %3110
          %3112 = vrot.lane.b32.xlu0 %v3092, 32
          %v3113 = vpop.permute.xlu0 %3112
          %3114 = vrot.lane.b32.xlu0 %v3099, 32
          %v3115 = vpop.permute.xlu0 %3114
          %v3116 = vrot.slane %v3036, 1
          %v3117 = vrot.slane %v3037, 1
          %v3118 = vrot.slane %v3038, 1
          %v3119 = vrot.slane %v3039, 1
          %v3120 = vrot.slane %v3040, 1
          %v3121 = vrot.slane %v3041, 1
          %v3122 = vrot.slane %v3042, 1
          %v3123 = vrot.slane %v3043, 1
          %3124 = vrot.lane.b32.xlu0 %v3116, 64
          %v3125 = vpop.permute.xlu0 %3124
          %3126 = vrot.lane.b32.xlu0 %v3117, 64
          %v3127 = vpop.permute.xlu0 %3126
          %3128 = vrot.lane.b32.xlu0 %v3118, 64
          %v3129 = vpop.permute.xlu0 %3128
          %3130 = vrot.lane.b32.xlu0 %v3119, 64
          %v3131 = vpop.permute.xlu0 %3130
          %3132 = vrot.lane.b32.xlu0 %v3120, 64
          %v3133 = vpop.permute.xlu0 %3132
          %3134 = vrot.lane.b32.xlu0 %v3121, 64
          %v3135 = vpop.permute.xlu0 %3134
          %3136 = vrot.lane.b32.xlu0 %v3122, 64
          %v3137 = vpop.permute.xlu0 %3136
          %3138 = vrot.lane.b32.xlu0 %v3123, 64
          %v3139 = vpop.permute.xlu0 %3138
          %v3142 = vsel %vm977, %v2988, %v3101
          %v3145 = vsel %vm977, %v2990, %v3103
          %v3148 = vsel %vm977, %v2992, %v3105
          %v3151 = vsel %vm977, %v2994, %v3107
          %v3154 = vsel %vm977, %v2996, %v3109
          %v3157 = vsel %vm977, %v2998, %v3111
          %v3160 = vsel %vm977, %v3000, %v3113
          %v3163 = vsel %vm977, %v3002, %v3115
          %v3165 = vsel %vm1002, %v3142, %v3125
          %v3167 = vsel %vm1002, %v3145, %v3127
          %v3169 = vsel %vm1002, %v3148, %v3129
          %v3171 = vsel %vm1002, %v3151, %v3131
          %v3173 = vsel %vm1002, %v3154, %v3133
          %v3175 = vsel %vm1002, %v3157, %v3135
          %v3177 = vsel %vm1002, %v3160, %v3137
          %v3179 = vsel %vm1002, %v3163, %v3139
          %s3180 = scalar_lea.vmem [#allocation3], 336
          %v3181 = vld [vmem:[%s3180] sm:$0xff]
          %v3182 = vld [vmem:[%s3180 + $0x8] sm:$0xff]
          %v3183 = vld [vmem:[%s3180 + $0x10] sm:$0xff]
          %v3184 = vld [vmem:[%s3180 + $0x18] sm:$0xff]
          %v3185 = vld [vmem:[%s3180 + $0x20] sm:$0xff]
          %v3186 = vld [vmem:[%s3180 + $0x28] sm:$0xff]
          %v3195 = vunpack.c.l.b16 %v3165
          %v3196 = vunpack.c.l.b16 %v3167
          %v3197 = vunpack.c.l.b16 %v3169
          %v3198 = vunpack.c.l.b16 %v3171
          %v3199 = vunpack.c.l.b16 %v3173
          %v3200 = vunpack.c.l.b16 %v3175
          %v3201 = vunpack.c.l.b16 %v3177
          %v3202 = vunpack.c.l.b16 %v3179
          %v3203 = vpack.c.b16 %v3196, %v3195
          %v3204 = vpack.c.b16 %v3198, %v3197
          %v3205 = vpack.c.b16 %v3200, %v3199
          %v3206 = vpack.c.b16 %v3202, %v3201
          %v3208 = vsel %vm1247, %v3203, 0
          %v3211 = vsel %vm1247, %v3204, 0
          %v3214 = vsel %vm1247, %v3205, 0
          %v3217 = vsel %vm1247, %v3206, 0
          %3219 = vmatprep.subr.bf16.mxu0 0
          %3220 = vmatpush1.bf16.msra.mxu0 %v3181
          %3221 = vmatprep.subr.bf16.mxu0 0
          %3222 = vmatpush1.bf16.msra.mxu0 %v3182
          %3223 = vmatprep.subr.bf16.mxu0 0
          %3224 = vmatpush1.bf16.msra.mxu0 %v3183
          %3225 = vmatprep.subr.bf16.mxu0 0
          %3226 = vmatpush1.bf16.msra.mxu0 %v3184
          %3227 = vmatprep.subr.bf16.mxu0 0
          %3228 = vmatpush1.bf16.msra.mxu0 %v3185
          %3229 = vmatprep.subr.bf16.mxu0 0
          %3230 = vmatpush1.bf16.msra.mxu0 %v3186
          %3231 = vmatprep.subr.bf16.mxu0 0
          %3232 = vmatpush1.bf16.msra.mxu0 0
          %3233 = vmatprep.subr.bf16.mxu0 0
          %3234 = vmatpush1.bf16.msra.mxu0 0
          %3235 = vmatprep.subr.bf16.mxu0 0
          %3236 = vmatpush1.bf16.msra.mxu0 0
          %3237 = vmatprep.subr.bf16.mxu0 0
          %3238 = vmatpush1.bf16.msra.mxu0 0
          %3239 = vmatprep.subr.bf16.mxu0 0
          %3240 = vmatpush1.bf16.msra.mxu0 0
          %3241 = vmatprep.subr.bf16.mxu0 0
          %3242 = vmatpush1.bf16.msra.mxu0 0
          %3243 = vmatprep.subr.bf16.mxu0 0
          %3244 = vmatpush1.bf16.msra.mxu0 0
          %3245 = vmatprep.subr.bf16.mxu0 0
          %3246 = vmatpush1.bf16.msra.mxu0 0
          %3247 = vmatprep.subr.bf16.mxu0 0
          %3248 = vmatpush1.bf16.msra.mxu0 0
          %3249 = vmatprep.subr.bf16.mxu0 0
          %3250 = vmatpush1.bf16.msra.mxu0 0
          %3251 = vmatprep.mubr.bf16.mxu0 0
          %3252 = vmatmul.mubr.bf16.gmra.mrb[0].mxu0 %v3208
          %v3253 = vpop.f32.mrb[0].mxu0
          %v3254 = vadd.f32 0.0, %v3253
          %v3255 = vpop.f32.mrb[0].mxu0
          %v3256 = vpop.f32.mrb[0].mxu0
          %v3257 = vadd.f32 0.0, %v3256
          %v3258 = vpop.f32.mrb[0].mxu0
          %3259 = vmatprep.mubr.bf16.mxu0 0
          %3260 = vmatmul.mubr.bf16.gmra.mrb[0].mxu0 %v3211
          %v3261 = vpop.f32.mrb[0].mxu0
          %v3262 = vadd.f32 0.0, %v3261
          %v3263 = vpop.f32.mrb[0].mxu0
          %v3264 = vpop.f32.mrb[0].mxu0
          %v3265 = vadd.f32 0.0, %v3264
          %v3266 = vpop.f32.mrb[0].mxu0
          %3267 = vmatprep.mubr.bf16.mxu0 0
          %3268 = vmatmul.mubr.bf16.gmra.mrb[0].mxu0 %v3214
          %v3269 = vpop.f32.mrb[0].mxu0
          %v3270 = vadd.f32 0.0, %v3269
          %v3271 = vpop.f32.mrb[0].mxu0
          %v3272 = vpop.f32.mrb[0].mxu0
          %v3273 = vadd.f32 0.0, %v3272
          %v3274 = vpop.f32.mrb[0].mxu0
          %3275 = vmatprep.mubr.bf16.mxu0 0
          %3276 = vmatmul.mubr.bf16.gmra.mrb[0].mxu0 %v3217
          %v3277 = vpop.f32.mrb[0].mxu0
          %v3278 = vadd.f32 0.0, %v3277
          %v3279 = vpop.f32.mrb[0].mxu0
          %v3280 = vpop.f32.mrb[0].mxu0
          %v3281 = vadd.f32 0.0, %v3280
          %v3282 = vpop.f32.mrb[0].mxu0
          %3283 = vdwg.mxu0
          %v3284 = vadd.f32 %v2977, %v3254
          %v3285 = vadd.f32 %v2978, %v3257
          %v3286 = vadd.f32 %v2979, %v3262
          %v3287 = vadd.f32 %v2980, %v3265
          %v3288 = vadd.f32 %v2981, %v3270
          %v3289 = vadd.f32 %v2982, %v3273
          %v3290 = vadd.f32 %v2983, %v3278
          %v3291 = vadd.f32 %v2984, %v3281
          %s3292 = sadd.s32 4, %s2678
          %s3293 = smul.addr %s3292, 4
          %s3294 = scalar_lea.vmem [#allocation2], %s3293
          %v3295 = vld [vmem:[%s3294] sm:$0xf]
          %v3296 = vld [vmem:[%s3294 + $0x4] sm:$0x1]
          %v3297 = vld [vmem:[%s3294 + $0x8] sm:$0xf]
          %v3298 = vld [vmem:[%s3294 + $0xc] sm:$0x1]
          %v3299 = vld [vmem:[%s3294 + $0x10] sm:$0xf]
          %v3300 = vld [vmem:[%s3294 + $0x14] sm:$0x1]
          %v3301 = vld [vmem:[%s3294 + $0x18] sm:$0xf]
          %v3302 = vld [vmem:[%s3294 + $0x1c] sm:$0x1]
          %v3303 = vld [vmem:[%s3294 + $0x20] sm:$0xf]
          %v3304 = vld [vmem:[%s3294 + $0x24] sm:$0x1]
          %v3305 = vld [vmem:[%s3294 + $0x28] sm:$0xf]
          %v3306 = vld [vmem:[%s3294 + $0x2c] sm:$0x1]
          %v3307 = vld [vmem:[%s3294 + $0x30] sm:$0xf]
          %v3308 = vld [vmem:[%s3294 + $0x34] sm:$0x1]
          %v3309 = vld [vmem:[%s3294 + $0x38] sm:$0xf]
          %v3310 = vld [vmem:[%s3294 + $0x3c] sm:$0x1]
          %v3327 = vunpack.c.l.b16 %v3295
          %v3328 = vunpack.c.l.b16 %v3296
          %v3329 = vunpack.c.l.b16 %v3297
          %v3330 = vunpack.c.l.b16 %v3298
          %v3331 = vunpack.c.l.b16 %v3299
          %v3332 = vunpack.c.l.b16 %v3300
          %v3333 = vunpack.c.l.b16 %v3301
          %v3334 = vunpack.c.l.b16 %v3302
          %v3335 = vunpack.c.l.b16 %v3303
          %v3336 = vunpack.c.l.b16 %v3304
          %v3337 = vunpack.c.l.b16 %v3305
          %v3338 = vunpack.c.l.b16 %v3306
          %v3339 = vunpack.c.l.b16 %v3307
          %v3340 = vunpack.c.l.b16 %v3308
          %v3341 = vunpack.c.l.b16 %v3309
          %v3342 = vunpack.c.l.b16 %v3310
          %v3343 = vpack.c.b16 %v3328, %v3327
          %v3344 = vpack.c.b16 %v3330, %v3329
          %v3345 = vpack.c.b16 %v3332, %v3331
          %v3346 = vpack.c.b16 %v3334, %v3333
          %v3347 = vpack.c.b16 %v3336, %v3335
          %v3348 = vpack.c.b16 %v3338, %v3337
          %v3349 = vpack.c.b16 %v3340, %v3339
          %v3350 = vpack.c.b16 %v3342, %v3341
          %v3352 = vshrl.u32 %v3343, 16
          %v3354 = vshll.u32 %v3343, 16
          %v3356 = vrot.slane %v3354, 1
          %v3357 = vor.u32 %v3352, %v3356
          %v3359 = vshrl.u32 %v3344, 16
          %v3361 = vshll.u32 %v3344, 16
          %v3363 = vrot.slane %v3361, 1
          %v3364 = vor.u32 %v3359, %v3363
          %v3366 = vshrl.u32 %v3345, 16
          %v3368 = vshll.u32 %v3345, 16
          %v3370 = vrot.slane %v3368, 1
          %v3371 = vor.u32 %v3366, %v3370
          %v3373 = vshrl.u32 %v3346, 16
          %v3375 = vshll.u32 %v3346, 16
          %v3377 = vrot.slane %v3375, 1
          %v3378 = vor.u32 %v3373, %v3377
          %v3380 = vshrl.u32 %v3347, 16
          %v3382 = vshll.u32 %v3347, 16
          %v3384 = vrot.slane %v3382, 1
          %v3385 = vor.u32 %v3380, %v3384
          %v3387 = vshrl.u32 %v3348, 16
          %v3389 = vshll.u32 %v3348, 16
          %v3391 = vrot.slane %v3389, 1
          %v3392 = vor.u32 %v3387, %v3391
          %v3394 = vshrl.u32 %v3349, 16
          %v3396 = vshll.u32 %v3349, 16
          %v3398 = vrot.slane %v3396, 1
          %v3399 = vor.u32 %v3394, %v3398
          %v3401 = vshrl.u32 %v3350, 16
          %v3403 = vshll.u32 %v3350, 16
          %v3405 = vrot.slane %v3403, 1
          %v3406 = vor.u32 %v3401, %v3405
          %3407 = vrot.lane.b32.xlu0 %v3357, 32
          %v3408 = vpop.permute.xlu0 %3407
          %3409 = vrot.lane.b32.xlu0 %v3364, 32
          %v3410 = vpop.permute.xlu0 %3409
          %3411 = vrot.lane.b32.xlu0 %v3371, 32
          %v3412 = vpop.permute.xlu0 %3411
          %3413 = vrot.lane.b32.xlu0 %v3378, 32
          %v3414 = vpop.permute.xlu0 %3413
          %3415 = vrot.lane.b32.xlu0 %v3385, 32
          %v3416 = vpop.permute.xlu0 %3415
          %3417 = vrot.lane.b32.xlu0 %v3392, 32
          %v3418 = vpop.permute.xlu0 %3417
          %3419 = vrot.lane.b32.xlu0 %v3399, 32
          %v3420 = vpop.permute.xlu0 %3419
          %3421 = vrot.lane.b32.xlu0 %v3406, 32
          %v3422 = vpop.permute.xlu0 %3421
          %v3423 = vrot.slane %v3343, 1
          %v3424 = vrot.slane %v3344, 1
          %v3425 = vrot.slane %v3345, 1
          %v3426 = vrot.slane %v3346, 1
          %v3427 = vrot.slane %v3347, 1
          %v3428 = vrot.slane %v3348, 1
          %v3429 = vrot.slane %v3349, 1
          %v3430 = vrot.slane %v3350, 1
          %3431 = vrot.lane.b32.xlu0 %v3423, 64
          %v3432 = vpop.permute.xlu0 %3431
          %3433 = vrot.lane.b32.xlu0 %v3424, 64
          %v3434 = vpop.permute.xlu0 %3433
          %3435 = vrot.lane.b32.xlu0 %v3425, 64
          %v3436 = vpop.permute.xlu0 %3435
          %3437 = vrot.lane.b32.xlu0 %v3426, 64
          %v3438 = vpop.permute.xlu0 %3437
          %3439 = vrot.lane.b32.xlu0 %v3427, 64
          %v3440 = vpop.permute.xlu0 %3439
          %3441 = vrot.lane.b32.xlu0 %v3428, 64
          %v3442 = vpop.permute.xlu0 %3441
          %3443 = vrot.lane.b32.xlu0 %v3429, 64
          %v3444 = vpop.permute.xlu0 %3443
          %3445 = vrot.lane.b32.xlu0 %v3430, 64
          %v3446 = vpop.permute.xlu0 %3445
          %v3449 = vsel %vm977, %v3295, %v3408
          %v3452 = vsel %vm977, %v3297, %v3410
          %v3455 = vsel %vm977, %v3299, %v3412
          %v3458 = vsel %vm977, %v3301, %v3414
          %v3461 = vsel %vm977, %v3303, %v3416
          %v3464 = vsel %vm977, %v3305, %v3418
          %v3467 = vsel %vm977, %v3307, %v3420
          %v3470 = vsel %vm977, %v3309, %v3422
          %v3472 = vsel %vm1002, %v3449, %v3432
          %v3474 = vsel %vm1002, %v3452, %v3434
          %v3476 = vsel %vm1002, %v3455, %v3436
          %v3478 = vsel %vm1002, %v3458, %v3438
          %v3480 = vsel %vm1002, %v3461, %v3440
          %v3482 = vsel %vm1002, %v3464, %v3442
          %v3484 = vsel %vm1002, %v3467, %v3444
          %v3486 = vsel %vm1002, %v3470, %v3446
          %s3487 = scalar_lea.vmem [#allocation3], 384
          %v3488 = vld [vmem:[%s3487] sm:$0xff]
          %v3489 = vld [vmem:[%s3487 + $0x8] sm:$0xff]
          %v3490 = vld [vmem:[%s3487 + $0x10] sm:$0xff]
          %v3491 = vld [vmem:[%s3487 + $0x18] sm:$0xff]
          %v3492 = vld [vmem:[%s3487 + $0x20] sm:$0xff]
          %v3493 = vld [vmem:[%s3487 + $0x28] sm:$0xff]
          %v3502 = vunpack.c.l.b16 %v3472
          %v3503 = vunpack.c.l.b16 %v3474
          %v3504 = vunpack.c.l.b16 %v3476
          %v3505 = vunpack.c.l.b16 %v3478
          %v3506 = vunpack.c.l.b16 %v3480
          %v3507 = vunpack.c.l.b16 %v3482
          %v3508 = vunpack.c.l.b16 %v3484
          %v3509 = vunpack.c.l.b16 %v3486
          %v3510 = vpack.c.b16 %v3503, %v3502
          %v3511 = vpack.c.b16 %v3505, %v3504
          %v3512 = vpack.c.b16 %v3507, %v3506
          %v3513 = vpack.c.b16 %v3509, %v3508
          %v3515 = vsel %vm1247, %v3510, 0
          %v3518 = vsel %vm1247, %v3511, 0
          %v3521 = vsel %vm1247, %v3512, 0
          %v3524 = vsel %vm1247, %v3513, 0
          %3526 = vmatprep.subr.bf16.mxu0 0
          %3527 = vmatpush1.bf16.msra.mxu0 %v3488
          %3528 = vmatprep.subr.bf16.mxu0 0
          %3529 = vmatpush1.bf16.msra.mxu0 %v3489
          %3530 = vmatprep.subr.bf16.mxu0 0
          %3531 = vmatpush1.bf16.msra.mxu0 %v3490
          %3532 = vmatprep.subr.bf16.mxu0 0
          %3533 = vmatpush1.bf16.msra.mxu0 %v3491
          %3534 = vmatprep.subr.bf16.mxu0 0
          %3535 = vmatpush1.bf16.msra.mxu0 %v3492
          %3536 = vmatprep.subr.bf16.mxu0 0
          %3537 = vmatpush1.bf16.msra.mxu0 %v3493
          %3538 = vmatprep.subr.bf16.mxu0 0
          %3539 = vmatpush1.bf16.msra.mxu0 0
          %3540 = vmatprep.subr.bf16.mxu0 0
          %3541 = vmatpush1.bf16.msra.mxu0 0
          %3542 = vmatprep.subr.bf16.mxu0 0
          %3543 = vmatpush1.bf16.msra.mxu0 0
          %3544 = vmatprep.subr.bf16.mxu0 0
          %3545 = vmatpush1.bf16.msra.mxu0 0
          %3546 = vmatprep.subr.bf16.mxu0 0
          %3547 = vmatpush1.bf16.msra.mxu0 0
          %3548 = vmatprep.subr.bf16.mxu0 0
          %3549 = vmatpush1.bf16.msra.mxu0 0
          %3550 = vmatprep.subr.bf16.mxu0 0
          %3551 = vmatpush1.bf16.msra.mxu0 0
          %3552 = vmatprep.subr.bf16.mxu0 0
          %3553 = vmatpush1.bf16.msra.mxu0 0
          %3554 = vmatprep.subr.bf16.mxu0 0
          %3555 = vmatpush1.bf16.msra.mxu0 0
          %3556 = vmatprep.subr.bf16.mxu0 0
          %3557 = vmatpush1.bf16.msra.mxu0 0
          %3558 = vmatprep.mubr.bf16.mxu0 0
          %3559 = vmatmul.mubr.bf16.gmra.mrb[0].mxu0 %v3515
          %v3560 = vpop.f32.mrb[0].mxu0
          %v3561 = vadd.f32 0.0, %v3560
          %v3562 = vpop.f32.mrb[0].mxu0
          %v3563 = vpop.f32.mrb[0].mxu0
          %v3564 = vadd.f32 0.0, %v3563
          %v3565 = vpop.f32.mrb[0].mxu0
          %3566 = vmatprep.mubr.bf16.mxu0 0
          %3567 = vmatmul.mubr.bf16.gmra.mrb[0].mxu0 %v3518
          %v3568 = vpop.f32.mrb[0].mxu0
          %v3569 = vadd.f32 0.0, %v3568
          %v3570 = vpop.f32.mrb[0].mxu0
          %v3571 = vpop.f32.mrb[0].mxu0
          %v3572 = vadd.f32 0.0, %v3571
          %v3573 = vpop.f32.mrb[0].mxu0
          %3574 = vmatprep.mubr.bf16.mxu0 0
          %3575 = vmatmul.mubr.bf16.gmra.mrb[0].mxu0 %v3521
          %v3576 = vpop.f32.mrb[0].mxu0
          %v3577 = vadd.f32 0.0, %v3576
          %v3578 = vpop.f32.mrb[0].mxu0
          %v3579 = vpop.f32.mrb[0].mxu0
          %v3580 = vadd.f32 0.0, %v3579
          %v3581 = vpop.f32.mrb[0].mxu0
          %3582 = vmatprep.mubr.bf16.mxu0 0
          %3583 = vmatmul.mubr.bf16.gmra.mrb[0].mxu0 %v3524
          %v3584 = vpop.f32.mrb[0].mxu0
          %v3585 = vadd.f32 0.0, %v3584
          %v3586 = vpop.f32.mrb[0].mxu0
          %v3587 = vpop.f32.mrb[0].mxu0
          %v3588 = vadd.f32 0.0, %v3587
          %v3589 = vpop.f32.mrb[0].mxu0
          %3590 = vdwg.mxu0
          %v3591 = vadd.f32 %v3284, %v3561
          %v3592 = vadd.f32 %v3285, %v3564
          %v3593 = vadd.f32 %v3286, %v3569
          %v3594 = vadd.f32 %v3287, %v3572
          %v3595 = vadd.f32 %v3288, %v3577
          %v3596 = vadd.f32 %v3289, %v3580
          %v3597 = vadd.f32 %v3290, %v3585
          %v3598 = vadd.f32 %v3291, %v3588
          %v3599 = vmax.f32 %v3591, 0.0
          %v3600 = vmax.f32 %v3592, 0.0
          %v3601 = vmax.f32 %v3593, 0.0
          %v3602 = vmax.f32 %v3594, 0.0
          %v3603 = vmax.f32 %v3595, 0.0
          %v3604 = vmax.f32 %v3596, 0.0
          %v3605 = vmax.f32 %v3597, 0.0
          %v3606 = vmax.f32 %v3598, 0.0
          %3607 = vst.msk [vmem:[%s248] sm:$0xff] %vm977, %v3599
          %3608 = vst.msk [vmem:[%s248 + $0x8] sm:$0xff] %vm977, %v3600
          %3609 = vst.msk [vmem:[%s248 + $0x10] sm:$0xff] %vm977, %v3601
          %3610 = vst.msk [vmem:[%s248 + $0x18] sm:$0xff] %vm977, %v3602
          %3611 = vst.msk [vmem:[%s248 + $0x20] sm:$0xff] %vm977, %v3603
          %3612 = vst.msk [vmem:[%s248 + $0x28] sm:$0xff] %vm977, %v3604
          %3613 = vst.msk [vmem:[%s248 + $0x30] sm:$0xff] %vm977, %v3605
          %3614 = vst.msk [vmem:[%s248 + $0x38] sm:$0xff] %vm977, %v3606
          %v3615 = vld [vmem:[%s254] sm:$0x1]
          %v3616 = vsel %vm977, %v3599, 0.0
          %v3617 = vsel %vm977, %v3600, 0.0
          %v3618 = vadd.f32 %v3616, %v3617
          %v3619 = vsel %vm977, %v3601, 0.0
          %v3620 = vadd.f32 %v3618, %v3619
          %v3621 = vsel %vm977, %v3602, 0.0
          %v3622 = vadd.f32 %v3620, %v3621
          %v3623 = vsel %vm977, %v3603, 0.0
          %v3624 = vadd.f32 %v3622, %v3623
          %v3625 = vsel %vm977, %v3604, 0.0
          %v3626 = vadd.f32 %v3624, %v3625
          %v3627 = vsel %vm977, %v3605, 0.0
          %v3628 = vadd.f32 %v3626, %v3627
          %v3629 = vsel %vm977, %v3606, 0.0
          %v3630 = vadd.f32 %v3628, %v3629
          %v3631 = vrot.slane %v3630, 4
          %v3632 = vadd.f32 %v3630, %v3631
          %v3633 = vrot.slane %v3632, 2
          %v3634 = vadd.f32 %v3632, %v3633
          %v3635 = vrot.slane %v3634, 1
          %v3636 = vadd.f32 %v3634, %v3635
          %v3637 = vadd.f32 %v3615, %v3636
          %vm3638 = vcmask 253952
          %3639 = vst.msk [vmem:[%s254] sm:$0x1] %vm3638, %v3637
          %v3640 = vld [vmem:[%s260] sm:$0x1]
          %v3641 = vmul.f32 %v3599, %v3599
          %v3642 = vmul.f32 %v3600, %v3600
          %v3643 = vmul.f32 %v3601, %v3601
          %v3644 = vmul.f32 %v3602, %v3602
          %v3645 = vmul.f32 %v3603, %v3603
          %v3646 = vmul.f32 %v3604, %v3604
          %v3647 = vmul.f32 %v3605, %v3605
          %v3648 = vmul.f32 %v3606, %v3606
          %v3649 = vsel %vm977, %v3641, 0.0
          %v3650 = vsel %vm977, %v3642, 0.0
          %v3651 = vadd.f32 %v3649, %v3650
          %v3652 = vsel %vm977, %v3643, 0.0
          %v3653 = vadd.f32 %v3651, %v3652
          %v3654 = vsel %vm977, %v3644, 0.0
          %v3655 = vadd.f32 %v3653, %v3654
          %v3656 = vsel %vm977, %v3645, 0.0
          %v3657 = vadd.f32 %v3655, %v3656
          %v3658 = vsel %vm977, %v3646, 0.0
          %v3659 = vadd.f32 %v3657, %v3658
          %v3660 = vsel %vm977, %v3647, 0.0
          %v3661 = vadd.f32 %v3659, %v3660
          %v3662 = vsel %vm977, %v3648, 0.0
          %v3663 = vadd.f32 %v3661, %v3662
          %v3664 = vrot.slane %v3663, 4
          %v3665 = vadd.f32 %v3663, %v3664
          %v3666 = vrot.slane %v3665, 2
          %v3667 = vadd.f32 %v3665, %v3666
          %v3668 = vrot.slane %v3667, 1
          %v3669 = vadd.f32 %v3667, %v3668
          %v3670 = vadd.f32 %v3640, %v3669
          %3671 = vst.msk [vmem:[%s260] sm:$0x1] %vm3638, %v3670
        $region79: #{unet_decoder_forward.5} parent=27 // pred_fallthru
          _
        %s3672 = sand.u32 %s109, 1
        %s3673 = scalar_lea.sflag [#allocation5], %s3672
        %s3674 = sand.u32 %s109, 1
        %s3675 = smul.addr %s3674, 64
        %s3676 = scalar_lea.vmem [#allocation4], %s3675
        %s3677 = sand.u32 %s23, 1
        %s3678 = scalar_lea.sflag [#allocation7], %s3677
        %s3679 = sand.u32 %s135, 1
        %s3680 = scalar_lea.vmem [#allocation6], %s3679
        %s3681 = sand.u32 %s23, 1
        %s3682 = scalar_lea.sflag [#allocation7], %s3681
        %s3683 = sand.u32 %s161, 1
        %s3684 = scalar_lea.vmem [#allocation8], %s3683
        // Predicated region
        $region80: #{unet_decoder_forward.5} parent=27 // pred_check
          %p3685 = pneg %p119
        $region81: #{unet_decoder_forward.5} parent=27 // pred_check_branch
          %3687 = sbr.rel (%p3685) target = $region83
        $region82: #{unet_decoder_forward.5} parent=27 // pred_region
          %s3688 = ssub.s32 %s28, 1
          %p3689 = scmp.gt.s32.totalorder %s3688, 0
          %s3690 = scalar_select %p3689, %s3688, 0
          %s3692 = ssub.s32 1024, 1024
          %3693 = vsyncadd %s3673, %s3692
          %s3694 = smul.addr %s3690, 8
          %s3695 = smul.addr %s27, 64
          %s3696 = sadd.s32 %s3694, %s3695
          %s3697 = smul.addr %s3696, 128
          %s3698 = scalar_lea.hbm %s3, %s3697
          %s3699 = sshll.u32 %s3676, 4
          %s3700 = int_to_ptr.vmem [resolvable:$true] %s3699
          %3705 = dma.vmem_to_hbm [thread:$0]  %s3700, 1024, %s3698, %s3673, 128, 128, 8
        $region83: #{unet_decoder_forward.5} parent=27 // pred_fallthru
          _
        // Predicated region
        $region84: #{unet_decoder_forward.5} parent=27 // pred_check
          %p3706 = pneg %p145
        $region85: #{unet_decoder_forward.5} parent=27 // pred_check_branch
          %3708 = sbr.rel (%p3706) target = $region87
        $region86: #{unet_decoder_forward.5} parent=27 // pred_region
          %s3710 = ssub.s32 16, 16
          %3711 = vsyncadd %s3678, %s3710
          %s3712 = smul.addr %s27, 16
          %s3713 = scalar_lea.hbm %s4, %s3712
          %s3715 = sshll.u32 %s3680, 4
          %s3716 = int_to_ptr.vmem [resolvable:$true] %s3715
          %3718 = dma.vmem_to_hbm [thread:$0]  %s3716, 16, %s3713, %s3678
        $region87: #{unet_decoder_forward.5} parent=27 // pred_fallthru
          _
        // Predicated region
        $region88: #{unet_decoder_forward.5} parent=27 // pred_check
          %p3719 = pneg %p171
        $region89: #{unet_decoder_forward.5} parent=27 // pred_check_branch
          %3721 = sbr.rel (%p3719) target = $region91
        $region90: #{unet_decoder_forward.5} parent=27 // pred_region
          %s3723 = ssub.s32 16, 16
          %3724 = vsyncadd %s3682, %s3723
          %s3725 = smul.addr %s27, 16
          %s3726 = scalar_lea.hbm %s5, %s3725
          %s3728 = sshll.u32 %s3684, 4
          %s3729 = int_to_ptr.vmem [resolvable:$true] %s3728
          %3731 = dma.vmem_to_hbm [thread:$0]  %s3729, 16, %s3726, %s3682
        $region91: #{unet_decoder_forward.5} parent=27 // pred_fallthru
          _
      $region28: #{unet_decoder_forward.5} parent=5 // pred_fallthru
        _
      %p3732 = scmp.le.s32.totalorder 2, %s18
      // Predicated region
      $region92: #{unet_decoder_forward.5} parent=5 // pred_check
        %p3733 = pneg %p3732
      $region93: #{unet_decoder_forward.5} parent=5 // pred_check_branch
        %3735 = sbr.rel (%p3733) target = $region95
      $region94: #{unet_decoder_forward.5} parent=5 // pred_region
        %s3736 = ssub.s32 %s18, 2
        // Predicated region
        $region96: #{unet_decoder_forward.5} parent=94 // pred_check
          %p3737 = pneg %p125
        $region97: #{unet_decoder_forward.5} parent=94 // pred_check_branch
          %3739 = sbr.rel (%p3737) target = $region99
        $region98: #{unet_decoder_forward.5} parent=94 // pred_region
          %s3740 = sand.u32 %s110, 1
          %s3741 = scalar_lea.sflag [#allocation5], %s3740
          %s3742 = sand.u32 %s110, 1
          %s3743 = smul.addr %s3742, 64
          %s3744 = scalar_lea.vmem [#allocation4], %s3743
          %3745 = dma.done %s3741, 1024
        $region99: #{unet_decoder_forward.5} parent=94 // pred_fallthru
          _
        // Predicated region
        $region100: #{unet_decoder_forward.5} parent=94 // pred_check
          %p3746 = pneg %p151
        $region101: #{unet_decoder_forward.5} parent=94 // pred_check_branch
          %3748 = sbr.rel (%p3746) target = $region103
        $region102: #{unet_decoder_forward.5} parent=94 // pred_region
          %s3749 = sand.u32 %s24, 1
          %s3750 = scalar_lea.sflag [#allocation7], %s3749
          %s3751 = sand.u32 %s136, 1
          %s3752 = scalar_lea.vmem [#allocation6], %s3751
          %3753 = dma.done %s3750, 16
        $region103: #{unet_decoder_forward.5} parent=94 // pred_fallthru
          _
        // Predicated region
        $region104: #{unet_decoder_forward.5} parent=94 // pred_check
          %p3754 = pneg %p177
        $region105: #{unet_decoder_forward.5} parent=94 // pred_check_branch
          %3756 = sbr.rel (%p3754) target = $region107
        $region106: #{unet_decoder_forward.5} parent=94 // pred_region
          %s3757 = sand.u32 %s24, 1
          %s3758 = scalar_lea.sflag [#allocation7], %s3757
          %s3759 = sand.u32 %s162, 1
          %s3760 = scalar_lea.vmem [#allocation8], %s3759
          %3761 = dma.done %s3758, 16
        $region107: #{unet_decoder_forward.5} parent=94 // pred_fallthru
          _
      $region95: #{unet_decoder_forward.5} parent=5 // pred_fallthru
        _
    $region6: #{unet_decoder_forward.5} parent=1 // loop_footer
      %s22 = sadd.s32 1, %s18
    $region7: #{unet_decoder_forward.5} parent=1 // loop_footer_branch
      %17 = sbr.rel target = $region3
    $region8: #{unet_decoder_forward.5} parent=1 // loop_exit
      _
    %3762 = vsyncpa [#allocation5], 1
    %s3763 = scalar_lea.sflag [#allocation5], 1
    %3764 = vsyncpa %s3763, 1
    %3765 = vsyncpa [#allocation7], 1
    %s3766 = scalar_lea.sflag [#allocation7], 1
    %3767 = vsyncpa %s3766, 1

// kernel: unet_decoder_forward.4
$region0: #{unet_decoder_forward.4}
  #allocation0 [shape = 'u32[]', space=smem, size = 0x4, offset = 0x4, fixed_abs, tag = 'smem constant byte address 0x4 - core index']
  #allocation1 [shape = 'u32[144,128]{1,0:T(1,128)}', space=vmem, size = 0x12000, scoped, tag = 'internal scratch']
  #allocation2 [shape = 'bf16[3,10,10,32]{3,2,1,0:T(8,128)(2,1)}', space=vmem, size = 0x1e000, scoped, tag = 'scratch operand']
  #allocation3 [shape = 'bf16[3,3,96,32]{3,2,1,0:T(16,128)(2,1)}', space=vmem, size = 0x36000, scoped, tag = 'scratch operand']
  #allocation5 [shape = 's32[]', space=sflag, size = 0x4, offset = 0, fixed_abs, tag = 'sflag constant byte address 0x0 - dummy sync flag']
  %s0 = inlined_call_operand.vmem [shape: bf16[2,8,8,8,32], index: 0, kind: input, shape index: {}]
  %s1 = inlined_call_operand.vmem [shape: f32[2,2,32], index: 1, kind: input, shape index: {}]
  %s2 = inlined_call_operand.vmem [shape: bf16[3,3,96,32], index: 2, kind: input, shape index: {}]
  %s3 = inlined_call_operand.vmem [shape: bf16[2,8,8,8,32], index: 3, kind: output, shape index: {0}]
  %s4 = inlined_call_operand.vmem [shape: f32[2,1,32], index: 4, kind: output, shape index: {1}]
  %s5 = inlined_call_operand.vmem [shape: f32[2,1,32], index: 5, kind: output, shape index: {2}]
  %6 = xla_tuple %s3, %s4, %s5
  %s7 = sld [smem:[#allocation0]]
  $region108: #{unet_decoder_forward.4} parent=0
    _
  %s9 = ssub.s32 1, %s7
  %s10 = scalar_select 0, %s9, %s7
  loop: start=0, step=1, limit=20
  $region2: #{unet_decoder_forward.4} parent=0 // loop_pre_header
    _
  $region3: #{unet_decoder_forward.4} parent=0 // loop_header
    %s12 = sphi 0, %s16
    %p13 = scmp.ge.s32.totalorder %s12, 20
    %s19 = sphi 0, %s31
    %s20 = sphi 0, %s27
    %s21 = sphi 0, %s19
    %s22 = sphi 0, %s20
    %s23 = sphi 0, %s21
    %s24 = sphi 0, %s22
    %s40 = sphi 0, %s42
    %s43 = sphi 0, %s40
    %s44 = sphi 0, %s43
    %s60 = sphi 0, %s44
    %s66 = sphi 0, %s68
    %s69 = sphi 0, %s66
    %s70 = sphi 0, %s69
    %s86 = sphi 0, %s70
    %s100 = sphi 0, %s102
    %s103 = sphi 0, %s100
    %s104 = sphi 0, %s103
    %s120 = sphi 0, %s104
    %s126 = sphi 0, %s128
    %s129 = sphi 0, %s126
    %s130 = sphi 0, %s129
    %s146 = sphi 0, %s130
    %s152 = sphi 0, %s154
    %s155 = sphi 0, %s152
    %s156 = sphi 0, %s155
    %s172 = sphi 0, %s156
  $region4: #{unet_decoder_forward.4} parent=0 // loop_header_branch
    %15 = sbr.rel (%p13) target = $region8
  $region5: #{unet_decoder_forward.4} parent=0 // loop_body
    %s17 = ssub.s32 %s12, 1
    %s18 = ssub.s32 %s12, 2
    %s25 = sadd.s32 1, %s20
    %p26 = scmp.ge.s32.totalorder %s25, 9
    %s27 = scalar_select %p26, 0, %s25
    %s28 = sadd.s32 1, %s19
    %s29 = scalar_select %p26, %s28, %s19
    %p30 = scmp.ge.s32.totalorder %s29, 2
    %s31 = scalar_select %p30, 0, %s29
    %p32 = scmp.lt.s32.totalorder %s20, 7
    %s33 = scalar_select %p32, %s20, 7
    %p34 = scmp.lt.s32.totalorder %s27, 7
    %s35 = scalar_select %p34, %s27, 7
    %s36 = ssub.s32 %s19, %s31
    %s37 = ssub.s32 %s33, %s35
    %s38 = sor.u32 %s36, %s37
    %p39 = scmp.eq.s32.totalorder %s38, 0
    %s41 = sadd.s32 %s40, 1
    %s42 = scalar_select %p39, %s40, %s41
    %p45 = pneg %p39
    %p46 = scmp.eq.s32.totalorder %s12, 17
    %p47 = por %p45, %p46
    %p48 = scmp.ne.s32.totalorder %s40, %s43
    %p49 = scmp.eq.s32.totalorder %s12, 0
    %p50 = por %p48, %p49
    %p51 = scmp.ne.s32.totalorder %s40, %s43
    %p52 = scmp.eq.s32.totalorder %s17, 17
    %p53 = por %p51, %p52
    %p54 = scmp.ne.s32.totalorder %s43, %s44
    %p55 = scmp.eq.s32.totalorder %s17, 0
    %p56 = por %p54, %p55
    %p57 = scmp.ne.s32.totalorder %s43, %s44
    %p58 = scmp.eq.s32.totalorder %s18, 17
    %p59 = por %p57, %p58
    %p61 = scmp.ne.s32.totalorder %s44, %s60
    %p62 = scmp.eq.s32.totalorder %s18, 0
    %p63 = por %p61, %p62
    %s64 = ssub.s32 %s19, %s31
    %p65 = scmp.eq.s32.totalorder %s64, 0
    %s67 = sadd.s32 %s66, 1
    %s68 = scalar_select %p65, %s66, %s67
    %p71 = pneg %p65
    %p72 = scmp.eq.s32.totalorder %s12, 17
    %p73 = por %p71, %p72
    %p74 = scmp.ne.s32.totalorder %s66, %s69
    %p75 = scmp.eq.s32.totalorder %s12, 0
    %p76 = por %p74, %p75
    %p77 = scmp.ne.s32.totalorder %s66, %s69
    %p78 = scmp.eq.s32.totalorder %s17, 17
    %p79 = por %p77, %p78
    %p80 = scmp.ne.s32.totalorder %s69, %s70
    %p81 = scmp.eq.s32.totalorder %s17, 0
    %p82 = por %p80, %p81
    %p83 = scmp.ne.s32.totalorder %s69, %s70
    %p84 = scmp.eq.s32.totalorder %s18, 17
    %p85 = por %p83, %p84
    %p87 = scmp.ne.s32.totalorder %s70, %s86
    %p88 = scmp.eq.s32.totalorder %s18, 0
    %p89 = por %p87, %p88
    %s90 = ssub.s32 %s20, 1
    %p91 = scmp.gt.s32.totalorder %s90, 0
    %s92 = scalar_select %p91, %s90, 0
    %s93 = ssub.s32 %s27, 1
    %p94 = scmp.gt.s32.totalorder %s93, 0
    %s95 = scalar_select %p94, %s93, 0
    %s96 = ssub.s32 %s19, %s31
    %s97 = ssub.s32 %s92, %s95
    %s98 = sor.u32 %s96, %s97
    %p99 = scmp.eq.s32.totalorder %s98, 0
    %s101 = sadd.s32 %s100, 1
    %s102 = scalar_select %p99, %s100, %s101
    %p105 = pneg %p99
    %p106 = scmp.eq.s32.totalorder %s12, 17
    %p107 = por %p105, %p106
    %p108 = scmp.ne.s32.totalorder %s100, %s103
    %p109 = scmp.eq.s32.totalorder %s12, 0
    %p110 = por %p108, %p109
    %p111 = scmp.ne.s32.totalorder %s100, %s103
    %p112 = scmp.eq.s32.totalorder %s17, 17
    %p113 = por %p111, %p112
    %p114 = scmp.ne.s32.totalorder %s103, %s104
    %p115 = scmp.eq.s32.totalorder %s17, 0
    %p116 = por %p114, %p115
    %p117 = scmp.ne.s32.totalorder %s103, %s104
    %p118 = scmp.eq.s32.totalorder %s18, 17
    %p119 = por %p117, %p118
    %p121 = scmp.ne.s32.totalorder %s104, %s120
    %p122 = scmp.eq.s32.totalorder %s18, 0
    %p123 = por %p121, %p122
    %s124 = ssub.s32 %s19, %s31
    %p125 = scmp.eq.s32.totalorder %s124, 0
    %s127 = sadd.s32 %s126, 1
    %s128 = scalar_select %p125, %s126, %s127
    %p131 = pneg %p125
    %p132 = scmp.eq.s32.totalorder %s12, 17
    %p133 = por %p131, %p132
    %p134 = scmp.ne.s32.totalorder %s126, %s129
    %p135 = scmp.eq.s32.totalorder %s12, 0
    %p136 = por %p134, %p135
    %p137 = scmp.ne.s32.totalorder %s126, %s129
    %p138 = scmp.eq.s32.totalorder %s17, 17
    %p139 = por %p137, %p138
    %p140 = scmp.ne.s32.totalorder %s129, %s130
    %p141 = scmp.eq.s32.totalorder %s17, 0
    %p142 = por %p140, %p141
    %p143 = scmp.ne.s32.totalorder %s129, %s130
    %p144 = scmp.eq.s32.totalorder %s18, 17
    %p145 = por %p143, %p144
    %p147 = scmp.ne.s32.totalorder %s130, %s146
    %p148 = scmp.eq.s32.totalorder %s18, 0
    %p149 = por %p147, %p148
    %s150 = ssub.s32 %s19, %s31
    %p151 = scmp.eq.s32.totalorder %s150, 0
    %s153 = sadd.s32 %s152, 1
    %s154 = scalar_select %p151, %s152, %s153
    %p157 = pneg %p151
    %p158 = scmp.eq.s32.totalorder %s12, 17
    %p159 = por %p157, %p158
    %p160 = scmp.ne.s32.totalorder %s152, %s155
    %p161 = scmp.eq.s32.totalorder %s12, 0
    %p162 = por %p160, %p161
    %p163 = scmp.ne.s32.totalorder %s152, %s155
    %p164 = scmp.eq.s32.totalorder %s17, 17
    %p165 = por %p163, %p164
    %p166 = scmp.ne.s32.totalorder %s155, %s156
    %p167 = scmp.eq.s32.totalorder %s17, 0
    %p168 = por %p166, %p167
    %p169 = scmp.ne.s32.totalorder %s155, %s156
    %p170 = scmp.eq.s32.totalorder %s18, 17
    %p171 = por %p169, %p170
    %p173 = scmp.ne.s32.totalorder %s156, %s172
    %p174 = scmp.eq.s32.totalorder %s18, 0
    %p175 = por %p173, %p174
    %p176 = scmp.le.s32.totalorder 1, %s12
    %p177 = scmp.lt.s32.totalorder %s12, 19
    %p178 = pnand %p176, %p177
    %p179 = pneg %p178
    // Predicated region
    $region9: #{unet_decoder_forward.4} parent=5 // pred_check
      _
    $region10: #{unet_decoder_forward.4} parent=5 // pred_check_branch
      %181 = sbr.rel (%p178) target = $region12
    $region11: #{unet_decoder_forward.4} parent=5 // pred_region
      %s182 = ssub.s32 %s12, 1
    $region12: #{unet_decoder_forward.4} parent=5 // pred_fallthru
      _
    %p183 = scmp.lt.s32.totalorder %s12, 18
    // Predicated region
    $region13: #{unet_decoder_forward.4} parent=5 // pred_check
      %p184 = pneg %p183
    $region14: #{unet_decoder_forward.4} parent=5 // pred_check_branch
      %186 = sbr.rel (%p184) target = $region16
    $region15: #{unet_decoder_forward.4} parent=5 // pred_region
      // Predicated region
      $region17: #{unet_decoder_forward.4} parent=15 // pred_check
        %p187 = pneg %p50
      $region18: #{unet_decoder_forward.4} parent=15 // pred_check_branch
        %189 = sbr.rel (%p187) target = $region20
      $region19: #{unet_decoder_forward.4} parent=15 // pred_region
        %p190 = scmp.lt.s32.totalorder %s20, 7
        %s191 = scalar_select %p190, %s20, 7
        %p192 = scmp.lt.s32.totalorder %s19, 1
        %s193 = scalar_select %p192, %s19, 1
        %p194 = scmp.lt.s32.totalorder %s191, 7
        %s195 = scalar_select %p194, %s191, 7
        %s196 = smul.addr %s195, 8
        %s197 = smul.addr %s193, 64
        %s198 = sadd.s32 %s196, %s197
        %s199 = smul.addr %s198, 4
        %s200 = scalar_lea.vmem %s0, %s199
        %p201 = scmp.lt.s32.totalorder %s20, 7
        %s202 = scalar_select %p201, %s20, 7
      $region20: #{unet_decoder_forward.4} parent=15 // pred_fallthru
        _
      // Predicated region
      $region21: #{unet_decoder_forward.4} parent=15 // pred_check
        %p203 = pneg %p76
      $region22: #{unet_decoder_forward.4} parent=15 // pred_check_branch
        %205 = sbr.rel (%p203) target = $region24
      $region23: #{unet_decoder_forward.4} parent=15 // pred_region
        %p206 = scmp.lt.s32.totalorder %s19, 1
        %s207 = scalar_select %p206, %s19, 1
        %s208 = smul.addr %s207, 2
        %s209 = scalar_lea.vmem %s1, %s208
      $region24: #{unet_decoder_forward.4} parent=15 // pred_fallthru
        _
    $region16: #{unet_decoder_forward.4} parent=5 // pred_fallthru
      _
    %p210 = scmp.le.s32.totalorder 1, %s12
    %p211 = scmp.lt.s32.totalorder %s12, 19
    %p212 = pnand %p210, %p211
    %p213 = pneg %p212
    // Predicated region
    $region25: #{unet_decoder_forward.4} parent=5 // pred_check
      _
    $region26: #{unet_decoder_forward.4} parent=5 // pred_check_branch
      %215 = sbr.rel (%p212) target = $region28
    $region27: #{unet_decoder_forward.4} parent=5 // pred_region
      %s216 = ssub.s32 %s12, 1
      %p217 = scmp.lt.s32.totalorder %s22, 7
      %s218 = scalar_select %p217, %s22, 7
      %p219 = scmp.lt.s32.totalorder %s21, 1
      %s220 = scalar_select %p219, %s21, 1
      %p221 = scmp.lt.s32.totalorder %s218, 7
      %s222 = scalar_select %p221, %s218, 7
      %s223 = smul.addr %s222, 8
      %s224 = smul.addr %s220, 64
      %s225 = sadd.s32 %s223, %s224
      %s226 = smul.addr %s225, 4
      %s227 = scalar_lea.vmem %s0, %s226
      %p228 = pneg %p56
      %p229 = pneg %p53
      %p230 = scmp.lt.s32.totalorder %s21, 1
      %s231 = scalar_select %p230, %s21, 1
      %s232 = smul.addr %s231, 2
      %s233 = scalar_lea.vmem %s1, %s232
      %p234 = pneg %p82
      %p235 = pneg %p79
      %p236 = pneg %p116
      %p237 = pneg %p113
      %s238 = ssub.s32 %s22, 1
      %p239 = scmp.gt.s32.totalorder %s238, 0
      %s240 = scalar_select %p239, %s238, 0
      %p241 = scmp.lt.s32.totalorder %s21, 1
      %s242 = scalar_select %p241, %s21, 1
      %p243 = scmp.lt.s32.totalorder %s240, 7
      %s244 = scalar_select %p243, %s240, 7
      %s245 = smul.addr %s244, 8
      %s246 = smul.addr %s242, 64
      %s247 = sadd.s32 %s245, %s246
      %s248 = smul.addr %s247, 4
      %s249 = scalar_lea.vmem %s3, %s248
      %p250 = pneg %p142
      %p251 = pneg %p139
      %p252 = scmp.lt.s32.totalorder %s21, 1
      %s253 = scalar_select %p252, %s21, 1
      %s254 = scalar_lea.vmem %s4, %s253
      %p255 = pneg %p168
      %p256 = pneg %p165
      %p257 = scmp.lt.s32.totalorder %s21, 1
      %s258 = scalar_select %p257, %s21, 1
      %s259 = scalar_lea.vmem %s5, %s258
      %p260 = scmp.lt.s32.totalorder %s22, 7
      %s261 = scalar_select %p260, %s22, 7
      %p262 = scmp.lt.s32.totalorder %s21, 1
      %s263 = scalar_select %p262, %s21, 1
      %p264 = scmp.lt.s32.totalorder %s261, 7
      %s265 = scalar_select %p264, %s261, 7
      %s266 = smul.addr %s265, 8
      %s267 = smul.addr %s263, 64
      %s268 = sadd.s32 %s266, %s267
      %s269 = smul.addr %s268, 4
      %s270 = scalar_lea.vmem %s0, %s269
      %p271 = scmp.lt.s32.totalorder %s22, 7
      %s272 = scalar_select %p271, %s22, 7
      %p273 = scmp.lt.s32.totalorder %s21, 1
      %s274 = scalar_select %p273, %s21, 1
      %s275 = smul.addr %s274, 2
      %s276 = scalar_lea.vmem %s1, %s275
      %s277 = ssub.s32 %s22, 1
      %p278 = scmp.gt.s32.totalorder %s277, 0
      %s279 = scalar_select %p278, %s277, 0
      %p280 = scmp.lt.s32.totalorder %s21, 1
      %s281 = scalar_select %p280, %s21, 1
      %p282 = scmp.lt.s32.totalorder %s279, 7
      %s283 = scalar_select %p282, %s279, 7
      %s284 = smul.addr %s283, 8
      %s285 = smul.addr %s281, 64
      %s286 = sadd.s32 %s284, %s285
      %s287 = smul.addr %s286, 4
      %s288 = scalar_lea.vmem %s3, %s287
      %s289 = ssub.s32 %s22, 1
      %p290 = scmp.gt.s32.totalorder %s289, 0
      %s291 = scalar_select %p290, %s289, 0
      %p292 = scmp.lt.s32.totalorder %s21, 1
      %s293 = scalar_select %p292, %s21, 1
      %s294 = scalar_lea.vmem %s4, %s293
      %p295 = scmp.lt.s32.totalorder %s21, 1
      %s296 = scalar_select %p295, %s21, 1
      %s297 = scalar_lea.vmem %s5, %s296
      %p299 = scmp.eq.s32.totalorder %s22, 0
      // Predicated region
      $region29: #{unet_decoder_forward.4} parent=27 // pred_check
        %p300 = pneg %p299
      $region30: #{unet_decoder_forward.4} parent=27 // pred_check_branch
        %302 = sbr.rel (%p300) target = $region32
      $region31: #{unet_decoder_forward.4} parent=27 // pred_region
        %vm303 = vcmask 257024
        %304 = vst.msk [vmem:[#allocation2] sm:$0xf] %vm303, 0
        %vm305 = vcmask 253952
        %306 = vst.msk [vmem:[#allocation2 + $0x4] sm:$0x1] %vm305, 0
        %307 = vst.msk [vmem:[#allocation2 + $0x8] sm:$0xf] %vm303, 0
        %308 = vst.msk [vmem:[#allocation2 + $0xc] sm:$0x1] %vm305, 0
        %309 = vst.msk [vmem:[#allocation2 + $0x10] sm:$0xf] %vm303, 0
        %310 = vst.msk [vmem:[#allocation2 + $0x14] sm:$0x1] %vm305, 0
        %311 = vst.msk [vmem:[#allocation2 + $0x18] sm:$0xf] %vm303, 0
        %312 = vst.msk [vmem:[#allocation2 + $0x1c] sm:$0x1] %vm305, 0
        %313 = vst.msk [vmem:[#allocation2 + $0x20] sm:$0xf] %vm303, 0
        %314 = vst.msk [vmem:[#allocation2 + $0x24] sm:$0x1] %vm305, 0
        %315 = vst.msk [vmem:[#allocation2 + $0x28] sm:$0xf] %vm303, 0
        %316 = vst.msk [vmem:[#allocation2 + $0x2c] sm:$0x1] %vm305, 0
        %317 = vst.msk [vmem:[#allocation2 + $0x30] sm:$0xf] %vm303, 0
        %318 = vst.msk [vmem:[#allocation2 + $0x34] sm:$0x1] %vm305, 0
        %319 = vst.msk [vmem:[#allocation2 + $0x38] sm:$0xf] %vm303, 0
        %320 = vst.msk [vmem:[#allocation2 + $0x3c] sm:$0x1] %vm305, 0
        %321 = vst.msk [vmem:[#allocation2 + $0x40] sm:$0xf] %vm303, 0
        %322 = vst.msk [vmem:[#allocation2 + $0x44] sm:$0x1] %vm305, 0
        %323 = vst.msk [vmem:[#allocation2 + $0x48] sm:$0xf] %vm303, 0
        %324 = vst.msk [vmem:[#allocation2 + $0x4c] sm:$0x1] %vm305, 0
        %325 = vst.msk [vmem:[#allocation2 + $0x50] sm:$0xf] %vm303, 0
        %326 = vst.msk [vmem:[#allocation2 + $0x54] sm:$0x1] %vm305, 0
        %327 = vst.msk [vmem:[#allocation2 + $0x58] sm:$0xf] %vm303, 0
        %328 = vst.msk [vmem:[#allocation2 + $0x5c] sm:$0x1] %vm305, 0
        %329 = vst.msk [vmem:[#allocation2 + $0x60] sm:$0xf] %vm303, 0
        %330 = vst.msk [vmem:[#allocation2 + $0x64] sm:$0x1] %vm305, 0
        %331 = vst.msk [vmem:[#allocation2 + $0x68] sm:$0xf] %vm303, 0
        %332 = vst.msk [vmem:[#allocation2 + $0x6c] sm:$0x1] %vm305, 0
        %333 = vst.msk [vmem:[#allocation2 + $0x70] sm:$0xf] %vm303, 0
        %334 = vst.msk [vmem:[#allocation2 + $0x74] sm:$0x1] %vm305, 0
        %335 = vst.msk [vmem:[#allocation2 + $0x78] sm:$0xf] %vm303, 0
        %336 = vst.msk [vmem:[#allocation2 + $0x7c] sm:$0x1] %vm305, 0
        %337 = vst.msk [vmem:[#allocation2 + $0x80] sm:$0xf] %vm303, 0
        %338 = vst.msk [vmem:[#allocation2 + $0x84] sm:$0x1] %vm305, 0
        %339 = vst.msk [vmem:[#allocation2 + $0x88] sm:$0xf] %vm303, 0
        %340 = vst.msk [vmem:[#allocation2 + $0x8c] sm:$0x1] %vm305, 0
        %341 = vst.msk [vmem:[#allocation2 + $0x90] sm:$0xf] %vm303, 0
        %342 = vst.msk [vmem:[#allocation2 + $0x94] sm:$0x1] %vm305, 0
        %343 = vst.msk [vmem:[#allocation2 + $0x98] sm:$0xf] %vm303, 0
        %344 = vst.msk [vmem:[#allocation2 + $0x9c] sm:$0x1] %vm305, 0
        %345 = vst.msk [vmem:[#allocation2 + $0xa0] sm:$0xf] %vm303, 0
        %346 = vst.msk [vmem:[#allocation2 + $0xa4] sm:$0x1] %vm305, 0
        %347 = vst.msk [vmem:[#allocation2 + $0xa8] sm:$0xf] %vm303, 0
        %348 = vst.msk [vmem:[#allocation2 + $0xac] sm:$0x1] %vm305, 0
        %349 = vst.msk [vmem:[#allocation2 + $0xb0] sm:$0xf] %vm303, 0
        %350 = vst.msk [vmem:[#allocation2 + $0xb4] sm:$0x1] %vm305, 0
        %351 = vst.msk [vmem:[#allocation2 + $0xb8] sm:$0xf] %vm303, 0
        %352 = vst.msk [vmem:[#allocation2 + $0xbc] sm:$0x1] %vm305, 0
        %353 = vst.msk [vmem:[#allocation2 + $0xc0] sm:$0xf] %vm303, 0
        %354 = vst.msk [vmem:[#allocation2 + $0xc4] sm:$0x1] %vm305, 0
        %355 = vst.msk [vmem:[#allocation2 + $0xc8] sm:$0xf] %vm303, 0
        %356 = vst.msk [vmem:[#allocation2 + $0xcc] sm:$0x1] %vm305, 0
        %357 = vst.msk [vmem:[#allocation2 + $0xd0] sm:$0xf] %vm303, 0
        %358 = vst.msk [vmem:[#allocation2 + $0xd4] sm:$0x1] %vm305, 0
        %359 = vst.msk [vmem:[#allocation2 + $0xd8] sm:$0xf] %vm303, 0
        %360 = vst.msk [vmem:[#allocation2 + $0xdc] sm:$0x1] %vm305, 0
        %361 = vst.msk [vmem:[#allocation2 + $0xe0] sm:$0xf] %vm303, 0
        %362 = vst.msk [vmem:[#allocation2 + $0xe4] sm:$0x1] %vm305, 0
        %363 = vst.msk [vmem:[#allocation2 + $0xe8] sm:$0xf] %vm303, 0
        %364 = vst.msk [vmem:[#allocation2 + $0xec] sm:$0x1] %vm305, 0
        %365 = vst.msk [vmem:[%s294] sm:$0x1] %vm305, 0.0
        %366 = vst.msk [vmem:[%s297] sm:$0x1] %vm305, 0.0
        %367 = vst.msk [vmem:[%s288] sm:$0xf] %vm303, 0
        %368 = vst.msk [vmem:[%s288 + $0x4] sm:$0xf] %vm303, 0
        %369 = vst.msk [vmem:[%s288 + $0x8] sm:$0xf] %vm303, 0
        %370 = vst.msk [vmem:[%s288 + $0xc] sm:$0xf] %vm303, 0
        %371 = vst.msk [vmem:[%s288 + $0x10] sm:$0xf] %vm303, 0
        %372 = vst.msk [vmem:[%s288 + $0x14] sm:$0xf] %vm303, 0
        %373 = vst.msk [vmem:[%s288 + $0x18] sm:$0xf] %vm303, 0
        %374 = vst.msk [vmem:[%s288 + $0x1c] sm:$0xf] %vm303, 0
        $region33: #{unet_decoder_forward.4} parent=31
          #allocation4 [shape = 's32[1]{0}', space=sflag, size = 0x4, scoped, tag = 'scoped memory for unet_decoder_forward.4']
          %p376 = scmp.lt.u32.totalorder 432, 8
          %p377 = pneg %p376
          // Predicated region
          $region34: #{unet_decoder_forward.4} parent=33 // pred_check
            _
          $region35: #{unet_decoder_forward.4} parent=33 // pred_check_branch
            %379 = sbr.rel (%p376) target = $region37
          $region36: #{unet_decoder_forward.4} parent=33 // pred_region
            %s394 = sand.u32 432, 7
            %p395 = scmp.eq.s32.totalorder %s394, 0
            // Predicated region
            $region49: #{unet_decoder_forward.4} parent=36 // pred_check
              %p396 = pneg %p395
            $region50: #{unet_decoder_forward.4} parent=36 // pred_check_branch
              %398 = sbr.rel (%p396) target = $region52
            $region51: #{unet_decoder_forward.4} parent=36 // pred_region
              loop: start=0, step=1, limit=1
              $region53: #{unet_decoder_forward.4} parent=51 // loop_pre_header
                _
              $region54: #{unet_decoder_forward.4} parent=51 // loop_header
                %s400 = sphi 0, %s404
                %p401 = scmp.ge.s32.totalorder %s400, 1
                %s405 = sphi %s2, %s2
                %s406 = sphi [#allocation3], [#allocation3]
              $region55: #{unet_decoder_forward.4} parent=51 // loop_header_branch
                %403 = sbr.rel (%p401) target = $region59
              $region56: #{unet_decoder_forward.4} parent=51 // loop_body
                %v407 = vld [vmem:[%s405] sm:$0xff]
                %408 = vst [vmem:[%s406] sm:$0xff] %v407
                %v409 = vld [vmem:[%s405 + $0x8] sm:$0xff]
                %410 = vst [vmem:[%s406 + $0x8] sm:$0xff] %v409
                %v411 = vld [vmem:[%s405 + $0x10] sm:$0xff]
                %412 = vst [vmem:[%s406 + $0x10] sm:$0xff] %v411
                %v413 = vld [vmem:[%s405 + $0x18] sm:$0xff]
                %414 = vst [vmem:[%s406 + $0x18] sm:$0xff] %v413
                %v415 = vld [vmem:[%s405 + $0x20] sm:$0xff]
                %416 = vst [vmem:[%s406 + $0x20] sm:$0xff] %v415
                %v417 = vld [vmem:[%s405 + $0x28] sm:$0xff]
                %418 = vst [vmem:[%s406 + $0x28] sm:$0xff] %v417
                %v419 = vld [vmem:[%s405 + $0x30] sm:$0xff]
                %420 = vst [vmem:[%s406 + $0x30] sm:$0xff] %v419
                %v421 = vld [vmem:[%s405 + $0x38] sm:$0xff]
                %422 = vst [vmem:[%s406 + $0x38] sm:$0xff] %v421
                %v423 = vld [vmem:[%s405 + $0x40] sm:$0xff]
                %424 = vst [vmem:[%s406 + $0x40] sm:$0xff] %v423
                %v425 = vld [vmem:[%s405 + $0x48] sm:$0xff]
                %426 = vst [vmem:[%s406 + $0x48] sm:$0xff] %v425
                %v427 = vld [vmem:[%s405 + $0x50] sm:$0xff]
                %428 = vst [vmem:[%s406 + $0x50] sm:$0xff] %v427
                %v429 = vld [vmem:[%s405 + $0x58] sm:$0xff]
                %430 = vst [vmem:[%s406 + $0x58] sm:$0xff] %v429
                %v431 = vld [vmem:[%s405 + $0x60] sm:$0xff]
                %432 = vst [vmem:[%s406 + $0x60] sm:$0xff] %v431
                %v433 = vld [vmem:[%s405 + $0x68] sm:$0xff]
                %434 = vst [vmem:[%s406 + $0x68] sm:$0xff] %v433
                %v435 = vld [vmem:[%s405 + $0x70] sm:$0xff]
                %436 = vst [vmem:[%s406 + $0x70] sm:$0xff] %v435
                %v437 = vld [vmem:[%s405 + $0x78] sm:$0xff]
                %438 = vst [vmem:[%s406 + $0x78] sm:$0xff] %v437
                %v439 = vld [vmem:[%s405 + $0x80] sm:$0xff]
                %440 = vst [vmem:[%s406 + $0x80] sm:$0xff] %v439
                %v441 = vld [vmem:[%s405 + $0x88] sm:$0xff]
                %442 = vst [vmem:[%s406 + $0x88] sm:$0xff] %v441
                %v443 = vld [vmem:[%s405 + $0x90] sm:$0xff]
                %444 = vst [vmem:[%s406 + $0x90] sm:$0xff] %v443
                %v445 = vld [vmem:[%s405 + $0x98] sm:$0xff]
                %446 = vst [vmem:[%s406 + $0x98] sm:$0xff] %v445
                %v447 = vld [vmem:[%s405 + $0xa0] sm:$0xff]
                %448 = vst [vmem:[%s406 + $0xa0] sm:$0xff] %v447
                %v449 = vld [vmem:[%s405 + $0xa8] sm:$0xff]
                %450 = vst [vmem:[%s406 + $0xa8] sm:$0xff] %v449
                %v451 = vld [vmem:[%s405 + $0xb0] sm:$0xff]
                %452 = vst [vmem:[%s406 + $0xb0] sm:$0xff] %v451
                %v453 = vld [vmem:[%s405 + $0xb8] sm:$0xff]
                %454 = vst [vmem:[%s406 + $0xb8] sm:$0xff] %v453
                %v455 = vld [vmem:[%s405 + $0xc0] sm:$0xff]
                %456 = vst [vmem:[%s406 + $0xc0] sm:$0xff] %v455
                %v457 = vld [vmem:[%s405 + $0xc8] sm:$0xff]
                %458 = vst [vmem:[%s406 + $0xc8] sm:$0xff] %v457
                %v459 = vld [vmem:[%s405 + $0xd0] sm:$0xff]
                %460 = vst [vmem:[%s406 + $0xd0] sm:$0xff] %v459
                %v461 = vld [vmem:[%s405 + $0xd8] sm:$0xff]
                %462 = vst [vmem:[%s406 + $0xd8] sm:$0xff] %v461
                %v463 = vld [vmem:[%s405 + $0xe0] sm:$0xff]
                %464 = vst [vmem:[%s406 + $0xe0] sm:$0xff] %v463
                %v465 = vld [vmem:[%s405 + $0xe8] sm:$0xff]
                %466 = vst [vmem:[%s406 + $0xe8] sm:$0xff] %v465
                %v467 = vld [vmem:[%s405 + $0xf0] sm:$0xff]
                %468 = vst [vmem:[%s406 + $0xf0] sm:$0xff] %v467
                %v469 = vld [vmem:[%s405 + $0xf8] sm:$0xff]
                %470 = vst [vmem:[%s406 + $0xf8] sm:$0xff] %v469
                %v471 = vld [vmem:[%s405 + $0x100] sm:$0xff]
                %472 = vst [vmem:[%s406 + $0x100] sm:$0xff] %v471
                %v473 = vld [vmem:[%s405 + $0x108] sm:$0xff]
                %474 = vst [vmem:[%s406 + $0x108] sm:$0xff] %v473
                %v475 = vld [vmem:[%s405 + $0x110] sm:$0xff]
                %476 = vst [vmem:[%s406 + $0x110] sm:$0xff] %v475
                %v477 = vld [vmem:[%s405 + $0x118] sm:$0xff]
                %478 = vst [vmem:[%s406 + $0x118] sm:$0xff] %v477
                %v479 = vld [vmem:[%s405 + $0x120] sm:$0xff]
                %480 = vst [vmem:[%s406 + $0x120] sm:$0xff] %v479
                %v481 = vld [vmem:[%s405 + $0x128] sm:$0xff]
                %482 = vst [vmem:[%s406 + $0x128] sm:$0xff] %v481
                %v483 = vld [vmem:[%s405 + $0x130] sm:$0xff]
                %484 = vst [vmem:[%s406 + $0x130] sm:$0xff] %v483
                %v485 = vld [vmem:[%s405 + $0x138] sm:$0xff]
                %486 = vst [vmem:[%s406 + $0x138] sm:$0xff] %v485
                %v487 = vld [vmem:[%s405 + $0x140] sm:$0xff]
                %488 = vst [vmem:[%s406 + $0x140] sm:$0xff] %v487
                %v489 = vld [vmem:[%s405 + $0x148] sm:$0xff]
                %490 = vst [vmem:[%s406 + $0x148] sm:$0xff] %v489
                %v491 = vld [vmem:[%s405 + $0x150] sm:$0xff]
                %492 = vst [vmem:[%s406 + $0x150] sm:$0xff] %v491
                %v493 = vld [vmem:[%s405 + $0x158] sm:$0xff]
                %494 = vst [vmem:[%s406 + $0x158] sm:$0xff] %v493
                %v495 = vld [vmem:[%s405 + $0x160] sm:$0xff]
                %496 = vst [vmem:[%s406 + $0x160] sm:$0xff] %v495
                %v497 = vld [vmem:[%s405 + $0x168] sm:$0xff]
                %498 = vst [vmem:[%s406 + $0x168] sm:$0xff] %v497
                %v499 = vld [vmem:[%s405 + $0x170] sm:$0xff]
                %500 = vst [vmem:[%s406 + $0x170] sm:$0xff] %v499
                %v501 = vld [vmem:[%s405 + $0x178] sm:$0xff]
                %502 = vst [vmem:[%s406 + $0x178] sm:$0xff] %v501
                %v503 = vld [vmem:[%s405 + $0x180] sm:$0xff]
                %504 = vst [vmem:[%s406 + $0x180] sm:$0xff] %v503
                %v505 = vld [vmem:[%s405 + $0x188] sm:$0xff]
                %506 = vst [vmem:[%s406 + $0x188] sm:$0xff] %v505
                %v507 = vld [vmem:[%s405 + $0x190] sm:$0xff]
                %508 = vst [vmem:[%s406 + $0x190] sm:$0xff] %v507
                %v509 = vld [vmem:[%s405 + $0x198] sm:$0xff]
                %510 = vst [vmem:[%s406 + $0x198] sm:$0xff] %v509
                %v511 = vld [vmem:[%s405 + $0x1a0] sm:$0xff]
                %512 = vst [vmem:[%s406 + $0x1a0] sm:$0xff] %v511
                %v513 = vld [vmem:[%s405 + $0x1a8] sm:$0xff]
                %514 = vst [vmem:[%s406 + $0x1a8] sm:$0xff] %v513
              $region57: #{unet_decoder_forward.4} parent=51 // loop_footer
                %s404 = sadd.s32 1, %s400
              $region58: #{unet_decoder_forward.4} parent=51 // loop_footer_branch
                %399 = sbr.rel target = $region54
              $region59: #{unet_decoder_forward.4} parent=51 // loop_exit
                _
            $region52: #{unet_decoder_forward.4} parent=36 // pred_fallthru
              _
            %p515 = pneg %p395
            // Predicated region
            $region60: #{unet_decoder_forward.4} parent=36 // pred_check
              _
            $region61: #{unet_decoder_forward.4} parent=36 // pred_check_branch
              %517 = sbr.rel (%p395) target = $region63
            $region62: #{unet_decoder_forward.4} parent=36 // pred_region
              %s518 = sand.u32 432, 7
            $region63: #{unet_decoder_forward.4} parent=36 // pred_fallthru
              _
          $region37: #{unet_decoder_forward.4} parent=33 // pred_fallthru
            _
          // Predicated region
          $region38: #{unet_decoder_forward.4} parent=33 // pred_check
            %p380 = pneg %p376
          $region39: #{unet_decoder_forward.4} parent=33 // pred_check_branch
            %382 = sbr.rel (%p380) target = $region41
          $region40: #{unet_decoder_forward.4} parent=33 // pred_region
            %s383 = sshllo.u32 0, 432
            loop: start=0, step=1, limit=1
            $region42: #{unet_decoder_forward.4} parent=40 // loop_pre_header
              _
            $region43: #{unet_decoder_forward.4} parent=40 // loop_header
              %s385 = sphi 0, %s389
              %p386 = scmp.ge.s32.totalorder %s385, 1
              %s390 = sphi %s2, %s2
              %s391 = sphi [#allocation3], [#allocation3]
            $region44: #{unet_decoder_forward.4} parent=40 // loop_header_branch
              %388 = sbr.rel (%p386) target = $region48
            $region45: #{unet_decoder_forward.4} parent=40 // loop_body
              %v392 = vld [vmem:[%s390] sm:%s383]
              %393 = vst [vmem:[%s391] sm:%s383] %v392
            $region46: #{unet_decoder_forward.4} parent=40 // loop_footer
              %s389 = sadd.s32 1, %s385
            $region47: #{unet_decoder_forward.4} parent=40 // loop_footer_branch
              %384 = sbr.rel target = $region43
            $region48: #{unet_decoder_forward.4} parent=40 // loop_exit
              _
          $region41: #{unet_decoder_forward.4} parent=33 // pred_fallthru
            _
          // Predicated region
          $region64: #{unet_decoder_forward.4} parent=33 // pred_check
            _
          $region65: #{unet_decoder_forward.4} parent=33 // pred_check_branch
            %521 = sbr.rel (0) target = $region67
          $region66: #{unet_decoder_forward.4} parent=33 // pred_region
            %522 = vsyncadd [#allocation4], 6912
          $region67: #{unet_decoder_forward.4} parent=33 // pred_fallthru
            _
          %s523 = smul.u32 4, 3
          %s524 = smul.u32 %s523, 3
          %s525 = smul.u32 %s524, 12
          %s526 = smul.u32 %s525, 1
          %s527 = sshll.u32 %s526, 4
          %528 = dma.done [#allocation4], %s527
      $region32: #{unet_decoder_forward.4} parent=27 // pred_fallthru
        _
      %p529 = scmp.lt.s32.totalorder %s22, 0
      %s530 = ssub.s32 0, %s22
      %s531 = scalar_select %p529, %s530, %s22
      %s532 = sdiv.u32.pop %s531, 3
      %s533 = srem.u32.pop %s531, 3
      %s534 = ssub.s32 0, %s533
      %s535 = scalar_select %p529, %s534, %s533
      %p536 = scmp.ne.s32.totalorder %s535, 0
      %p537 = scmp.lt.s32.totalorder %s535, 0
      %p538 = pnand %p537, %p536
      %p539 = pneg %p538
      %s540 = sadd.s32 %s535, 3
      %s541 = scalar_select %p539, %s540, %s535
      %p542 = scmp.lt.s32.totalorder %s22, 8
      // Predicated region
      $region68: #{unet_decoder_forward.4} parent=27 // pred_check
        %p543 = pneg %p542
      $region69: #{unet_decoder_forward.4} parent=27 // pred_check_branch
        %545 = sbr.rel (%p543) target = $region71
      $region70: #{unet_decoder_forward.4} parent=27 // pred_region
        %v546 = vld [vmem:[%s276] sm:$0x1]
        %v547 = vld [vmem:[%s276 + $0x1] sm:$0x1]
        %v548 = vld [vmem:[%s270] sm:$0xf]
        %v549 = vld [vmem:[%s270 + $0x4] sm:$0xf]
        %v550 = vld [vmem:[%s270 + $0x8] sm:$0xf]
        %v551 = vld [vmem:[%s270 + $0xc] sm:$0xf]
        %v552 = vld [vmem:[%s270 + $0x10] sm:$0xf]
        %v553 = vld [vmem:[%s270 + $0x14] sm:$0xf]
        %v554 = vld [vmem:[%s270 + $0x18] sm:$0xf]
        %v555 = vld [vmem:[%s270 + $0x1c] sm:$0xf]
        %v556 = vunpack.c.l.bf16 %v548
        %v557 = vunpack.c.l.bf16 %v549
        %v558 = vunpack.c.l.bf16 %v550
        %v559 = vunpack.c.l.bf16 %v551
        %v560 = vunpack.c.l.bf16 %v552
        %v561 = vunpack.c.l.bf16 %v553
        %v562 = vunpack.c.l.bf16 %v554
        %v563 = vunpack.c.l.bf16 %v555
        %v564 = vlaneseq
        %v565 = vshrl.u32 %v564, 7
        %v566 = vsub.s32 0, %v565
        %v567 = vrot.slane %v546, %v566
        %v568 = vmul.f32 %v556, %v567
        %v569 = vmul.f32 %v557, %v567
        %v570 = vmul.f32 %v558, %v567
        %v571 = vmul.f32 %v559, %v567
        %v572 = vmul.f32 %v560, %v567
        %v573 = vmul.f32 %v561, %v567
        %v574 = vmul.f32 %v562, %v567
        %v575 = vmul.f32 %v563, %v567
        %v576 = vlaneseq
        %v577 = vshrl.u32 %v576, 7
        %v578 = vsub.s32 0, %v577
        %v579 = vrot.slane %v547, %v578
        %v580 = vadd.f32 %v568, %v579
        %v581 = vadd.f32 %v569, %v579
        %v582 = vadd.f32 %v570, %v579
        %v583 = vadd.f32 %v571, %v579
        %v584 = vadd.f32 %v572, %v579
        %v585 = vadd.f32 %v573, %v579
        %v586 = vadd.f32 %v574, %v579
        %v587 = vadd.f32 %v575, %v579
        %v588 = vpack.c.bf16 %v580, %v580
        %v589 = vpack.c.bf16 %v581, %v581
        %v590 = vpack.c.bf16 %v582, %v582
        %v591 = vpack.c.bf16 %v583, %v583
        %v592 = vpack.c.bf16 %v584, %v584
        %v593 = vpack.c.bf16 %v585, %v585
        %v594 = vpack.c.bf16 %v586, %v586
        %v595 = vpack.c.bf16 %v587, %v587
        %v604 = vunpack.c.l.b16 %v588
        %v605 = vunpack.c.l.b16 %v589
        %v606 = vunpack.c.l.b16 %v590
        %v607 = vunpack.c.l.b16 %v591
        %v608 = vunpack.c.l.b16 %v592
        %v609 = vunpack.c.l.b16 %v593
        %v610 = vunpack.c.l.b16 %v594
        %v611 = vunpack.c.l.b16 %v595
        %v612 = vpack.c.b16 %v604, %v604
        %v613 = vpack.c.b16 %v605, %v605
        %v614 = vpack.c.b16 %v606, %v606
        %v615 = vpack.c.b16 %v607, %v607
        %v616 = vpack.c.b16 %v608, %v608
        %v617 = vpack.c.b16 %v609, %v609
        %v618 = vpack.c.b16 %v610, %v610
        %v619 = vpack.c.b16 %v611, %v611
        %v621 = vshrl.u32 %v612, 16
        %v623 = vrot.slane %v621, 7
        %v624 = vshll.u32 %v612, 16
        %v626 = vor.u32 %v623, %v624
        %v627 = vrot.slane %v623, 4
        %v629 = vshrl.u32 %v613, 16
        %v631 = vrot.slane %v629, 7
        %v632 = vshll.u32 %v613, 16
        %v634 = vor.u32 %v631, %v632
        %v635 = vrot.slane %v631, 4
        %v637 = vshrl.u32 %v614, 16
        %v639 = vrot.slane %v637, 7
        %v640 = vshll.u32 %v614, 16
        %v642 = vor.u32 %v639, %v640
        %v643 = vrot.slane %v639, 4
        %v645 = vshrl.u32 %v615, 16
        %v647 = vrot.slane %v645, 7
        %v648 = vshll.u32 %v615, 16
        %v650 = vor.u32 %v647, %v648
        %v651 = vrot.slane %v647, 4
        %v653 = vshrl.u32 %v616, 16
        %v655 = vrot.slane %v653, 7
        %v656 = vshll.u32 %v616, 16
        %v658 = vor.u32 %v655, %v656
        %v659 = vrot.slane %v655, 4
        %v661 = vshrl.u32 %v617, 16
        %v663 = vrot.slane %v661, 7
        %v664 = vshll.u32 %v617, 16
        %v666 = vor.u32 %v663, %v664
        %v667 = vrot.slane %v663, 4
        %v669 = vshrl.u32 %v618, 16
        %v671 = vrot.slane %v669, 7
        %v672 = vshll.u32 %v618, 16
        %v674 = vor.u32 %v671, %v672
        %v675 = vrot.slane %v671, 4
        %v677 = vshrl.u32 %v619, 16
        %v679 = vrot.slane %v677, 7
        %v680 = vshll.u32 %v619, 16
        %v682 = vor.u32 %v679, %v680
        %v683 = vrot.slane %v679, 4
        %s700 = smul.u32 %s541, 20
        %s701 = sadd.s32 2, %s700
        %s702 = smul.addr %s701, 4
        %s703 = scalar_lea.vmem [#allocation2], %s702
        %vm704 = vcmask 257024
        %vm705 = vsmask.f32 7938
        %vm706 = vmand %vm704, %vm705
        %v707 = vld [vmem:[%s703] sm:$0xf]
        %v708 = vsel %vm706, %v626, %v707
        %709 = vst [vmem:[%s703] sm:$0xf] %v708
        %vm710 = vcmask 253952
        %vm711 = vsmask.f32 256
        %vm712 = vmand %vm710, %vm711
        %v713 = vld [vmem:[%s703 + $0x4] sm:$0x1]
        %v714 = vsel %vm712, %v627, %v713
        %715 = vst [vmem:[%s703 + $0x4] sm:$0x1] %v714
        %v716 = vld [vmem:[%s703 + $0x8] sm:$0xf]
        %v717 = vsel %vm706, %v634, %v716
        %718 = vst [vmem:[%s703 + $0x8] sm:$0xf] %v717
        %v719 = vld [vmem:[%s703 + $0xc] sm:$0x1]
        %v720 = vsel %vm712, %v635, %v719
        %721 = vst [vmem:[%s703 + $0xc] sm:$0x1] %v720
        %v722 = vld [vmem:[%s703 + $0x10] sm:$0xf]
        %v723 = vsel %vm706, %v642, %v722
        %724 = vst [vmem:[%s703 + $0x10] sm:$0xf] %v723
        %v725 = vld [vmem:[%s703 + $0x14] sm:$0x1]
        %v726 = vsel %vm712, %v643, %v725
        %727 = vst [vmem:[%s703 + $0x14] sm:$0x1] %v726
        %v728 = vld [vmem:[%s703 + $0x18] sm:$0xf]
        %v729 = vsel %vm706, %v650, %v728
        %730 = vst [vmem:[%s703 + $0x18] sm:$0xf] %v729
        %v731 = vld [vmem:[%s703 + $0x1c] sm:$0x1]
        %v732 = vsel %vm712, %v651, %v731
        %733 = vst [vmem:[%s703 + $0x1c] sm:$0x1] %v732
        %v734 = vld [vmem:[%s703 + $0x20] sm:$0xf]
        %v735 = vsel %vm706, %v658, %v734
        %736 = vst [vmem:[%s703 + $0x20] sm:$0xf] %v735
        %v737 = vld [vmem:[%s703 + $0x24] sm:$0x1]
        %v738 = vsel %vm712, %v659, %v737
        %739 = vst [vmem:[%s703 + $0x24] sm:$0x1] %v738
        %v740 = vld [vmem:[%s703 + $0x28] sm:$0xf]
        %v741 = vsel %vm706, %v666, %v740
        %742 = vst [vmem:[%s703 + $0x28] sm:$0xf] %v741
        %v743 = vld [vmem:[%s703 + $0x2c] sm:$0x1]
        %v744 = vsel %vm712, %v667, %v743
        %745 = vst [vmem:[%s703 + $0x2c] sm:$0x1] %v744
        %v746 = vld [vmem:[%s703 + $0x30] sm:$0xf]
        %v747 = vsel %vm706, %v674, %v746
        %748 = vst [vmem:[%s703 + $0x30] sm:$0xf] %v747
        %v749 = vld [vmem:[%s703 + $0x34] sm:$0x1]
        %v750 = vsel %vm712, %v675, %v749
        %751 = vst [vmem:[%s703 + $0x34] sm:$0x1] %v750
        %v752 = vld [vmem:[%s703 + $0x38] sm:$0xf]
        %v753 = vsel %vm706, %v682, %v752
        %754 = vst [vmem:[%s703 + $0x38] sm:$0xf] %v753
        %v755 = vld [vmem:[%s703 + $0x3c] sm:$0x1]
        %v756 = vsel %vm712, %v683, %v755
        %757 = vst [vmem:[%s703 + $0x3c] sm:$0x1] %v756
      $region71: #{unet_decoder_forward.4} parent=27 // pred_fallthru
        _
      %p758 = scmp.ge.s32.totalorder %s22, 8
      // Predicated region
      $region72: #{unet_decoder_forward.4} parent=27 // pred_check
        %p759 = pneg %p758
      $region73: #{unet_decoder_forward.4} parent=27 // pred_check_branch
        %761 = sbr.rel (%p759) target = $region75
      $region74: #{unet_decoder_forward.4} parent=27 // pred_region
        %s762 = smul.u32 %s541, 20
        %s763 = sadd.s32 2, %s762
        %s764 = smul.addr %s763, 4
        %s765 = scalar_lea.vmem [#allocation2], %s764
        %vm766 = vcmask 257024
        %vm767 = vsmask.f32 7938
        %vm768 = vmand %vm766, %vm767
        %v769 = vld [vmem:[%s765] sm:$0xf]
        %v770 = vsel %vm768, 0, %v769
        %771 = vst [vmem:[%s765] sm:$0xf] %v770
        %vm772 = vcmask 253952
        %vm773 = vsmask.f32 256
        %vm774 = vmand %vm772, %vm773
        %v775 = vld [vmem:[%s765 + $0x4] sm:$0x1]
        %v776 = vsel %vm774, 0, %v775
        %777 = vst [vmem:[%s765 + $0x4] sm:$0x1] %v776
        %v778 = vld [vmem:[%s765 + $0x8] sm:$0xf]
        %v779 = vsel %vm768, 0, %v778
        %780 = vst [vmem:[%s765 + $0x8] sm:$0xf] %v779
        %v781 = vld [vmem:[%s765 + $0xc] sm:$0x1]
        %v782 = vsel %vm774, 0, %v781
        %783 = vst [vmem:[%s765 + $0xc] sm:$0x1] %v782
        %v784 = vld [vmem:[%s765 + $0x10] sm:$0xf]
        %v785 = vsel %vm768, 0, %v784
        %786 = vst [vmem:[%s765 + $0x10] sm:$0xf] %v785
        %v787 = vld [vmem:[%s765 + $0x14] sm:$0x1]
        %v788 = vsel %vm774, 0, %v787
        %789 = vst [vmem:[%s765 + $0x14] sm:$0x1] %v788
        %v790 = vld [vmem:[%s765 + $0x18] sm:$0xf]
        %v791 = vsel %vm768, 0, %v790
        %792 = vst [vmem:[%s765 + $0x18] sm:$0xf] %v791
        %v793 = vld [vmem:[%s765 + $0x1c] sm:$0x1]
        %v794 = vsel %vm774, 0, %v793
        %795 = vst [vmem:[%s765 + $0x1c] sm:$0x1] %v794
        %v796 = vld [vmem:[%s765 + $0x20] sm:$0xf]
        %v797 = vsel %vm768, 0, %v796
        %798 = vst [vmem:[%s765 + $0x20] sm:$0xf] %v797
        %v799 = vld [vmem:[%s765 + $0x24] sm:$0x1]
        %v800 = vsel %vm774, 0, %v799
        %801 = vst [vmem:[%s765 + $0x24] sm:$0x1] %v800
        %v802 = vld [vmem:[%s765 + $0x28] sm:$0xf]
        %v803 = vsel %vm768, 0, %v802
        %804 = vst [vmem:[%s765 + $0x28] sm:$0xf] %v803
        %v805 = vld [vmem:[%s765 + $0x2c] sm:$0x1]
        %v806 = vsel %vm774, 0, %v805
        %807 = vst [vmem:[%s765 + $0x2c] sm:$0x1] %v806
        %v808 = vld [vmem:[%s765 + $0x30] sm:$0xf]
        %v809 = vsel %vm768, 0, %v808
        %810 = vst [vmem:[%s765 + $0x30] sm:$0xf] %v809
        %v811 = vld [vmem:[%s765 + $0x34] sm:$0x1]
        %v812 = vsel %vm774, 0, %v811
        %813 = vst [vmem:[%s765 + $0x34] sm:$0x1] %v812
        %v814 = vld [vmem:[%s765 + $0x38] sm:$0xf]
        %v815 = vsel %vm768, 0, %v814
        %816 = vst [vmem:[%s765 + $0x38] sm:$0xf] %v815
        %v817 = vld [vmem:[%s765 + $0x3c] sm:$0x1]
        %v818 = vsel %vm774, 0, %v817
        %819 = vst [vmem:[%s765 + $0x3c] sm:$0x1] %v818
      $region75: #{unet_decoder_forward.4} parent=27 // pred_fallthru
        _
      %p820 = scmp.ge.s32.totalorder %s22, 1
      // Predicated region
      $region76: #{unet_decoder_forward.4} parent=27 // pred_check
        %p821 = pneg %p820
      $region77: #{unet_decoder_forward.4} parent=27 // pred_check_branch
        %823 = sbr.rel (%p821) target = $region79
      $region78: #{unet_decoder_forward.4} parent=27 // pred_region
        %s824 = sadd.s32 %s22, 1
        %p825 = scmp.lt.s32.totalorder %s824, 0
        %s826 = ssub.s32 0, %s824
        %s827 = scalar_select %p825, %s826, %s824
        %s828 = sdiv.u32.pop %s827, 3
        %s829 = srem.u32.pop %s827, 3
        %s830 = ssub.s32 0, %s829
        %s831 = scalar_select %p825, %s830, %s829
        %p832 = scmp.ne.s32.totalorder %s831, 0
        %p833 = scmp.lt.s32.totalorder %s831, 0
        %p834 = pnand %p833, %p832
        %p835 = pneg %p834
        %s836 = sadd.s32 %s831, 3
        %s837 = scalar_select %p835, %s836, %s831
        %s838 = smul.u32 %s837, 20
        %s839 = smul.addr %s838, 4
        %s840 = scalar_lea.vmem [#allocation2], %s839
        %v841 = vld [vmem:[%s840] sm:$0xf]
        %v842 = vld [vmem:[%s840 + $0x4] sm:$0x1]
        %v843 = vld [vmem:[%s840 + $0x8] sm:$0xf]
        %v844 = vld [vmem:[%s840 + $0xc] sm:$0x1]
        %v845 = vld [vmem:[%s840 + $0x10] sm:$0xf]
        %v846 = vld [vmem:[%s840 + $0x14] sm:$0x1]
        %v847 = vld [vmem:[%s840 + $0x18] sm:$0xf]
        %v848 = vld [vmem:[%s840 + $0x1c] sm:$0x1]
        %v849 = vld [vmem:[%s840 + $0x20] sm:$0xf]
        %v850 = vld [vmem:[%s840 + $0x24] sm:$0x1]
        %v851 = vld [vmem:[%s840 + $0x28] sm:$0xf]
        %v852 = vld [vmem:[%s840 + $0x2c] sm:$0x1]
        %v853 = vld [vmem:[%s840 + $0x30] sm:$0xf]
        %v854 = vld [vmem:[%s840 + $0x34] sm:$0x1]
        %v855 = vld [vmem:[%s840 + $0x38] sm:$0xf]
        %v856 = vld [vmem:[%s840 + $0x3c] sm:$0x1]
        %v873 = vunpack.c.l.b16 %v841
        %v874 = vunpack.c.l.b16 %v842
        %v875 = vunpack.c.l.b16 %v843
        %v876 = vunpack.c.l.b16 %v844
        %v877 = vunpack.c.l.b16 %v845
        %v878 = vunpack.c.l.b16 %v846
        %v879 = vunpack.c.l.b16 %v847
        %v880 = vunpack.c.l.b16 %v848
        %v881 = vunpack.c.l.b16 %v849
        %v882 = vunpack.c.l.b16 %v850
        %v883 = vunpack.c.l.b16 %v851
        %v884 = vunpack.c.l.b16 %v852
        %v885 = vunpack.c.l.b16 %v853
        %v886 = vunpack.c.l.b16 %v854
        %v887 = vunpack.c.l.b16 %v855
        %v888 = vunpack.c.l.b16 %v856
        %v889 = vpack.c.b16 %v874, %v873
        %v890 = vpack.c.b16 %v876, %v875
        %v891 = vpack.c.b16 %v878, %v877
        %v892 = vpack.c.b16 %v880, %v879
        %v893 = vpack.c.b16 %v882, %v881
        %v894 = vpack.c.b16 %v884, %v883
        %v895 = vpack.c.b16 %v886, %v885
        %v896 = vpack.c.b16 %v888, %v887
        %v898 = vshrl.u32 %v889, 16
        %v900 = vshll.u32 %v889, 16
        %v902 = vrot.slane %v900, 1
        %v903 = vor.u32 %v898, %v902
        %v905 = vshrl.u32 %v890, 16
        %v907 = vshll.u32 %v890, 16
        %v909 = vrot.slane %v907, 1
        %v910 = vor.u32 %v905, %v909
        %v912 = vshrl.u32 %v891, 16
        %v914 = vshll.u32 %v891, 16
        %v916 = vrot.slane %v914, 1
        %v917 = vor.u32 %v912, %v916
        %v919 = vshrl.u32 %v892, 16
        %v921 = vshll.u32 %v892, 16
        %v923 = vrot.slane %v921, 1
        %v924 = vor.u32 %v919, %v923
        %v926 = vshrl.u32 %v893, 16
        %v928 = vshll.u32 %v893, 16
        %v930 = vrot.slane %v928, 1
        %v931 = vor.u32 %v926, %v930
        %v933 = vshrl.u32 %v894, 16
        %v935 = vshll.u32 %v894, 16
        %v937 = vrot.slane %v935, 1
        %v938 = vor.u32 %v933, %v937
        %v940 = vshrl.u32 %v895, 16
        %v942 = vshll.u32 %v895, 16
        %v944 = vrot.slane %v942, 1
        %v945 = vor.u32 %v940, %v944
        %v947 = vshrl.u32 %v896, 16
        %v949 = vshll.u32 %v896, 16
        %v951 = vrot.slane %v949, 1
        %v952 = vor.u32 %v947, %v951
        %953 = vrot.lane.b32.xlu0 %v903, 32
        %v954 = vpop.permute.xlu0 %953
        %955 = vrot.lane.b32.xlu0 %v910, 32
        %v956 = vpop.permute.xlu0 %955
        %957 = vrot.lane.b32.xlu0 %v917, 32
        %v958 = vpop.permute.xlu0 %957
        %959 = vrot.lane.b32.xlu0 %v924, 32
        %v960 = vpop.permute.xlu0 %959
        %961 = vrot.lane.b32.xlu0 %v931, 32
        %v962 = vpop.permute.xlu0 %961
        %963 = vrot.lane.b32.xlu0 %v938, 32
        %v964 = vpop.permute.xlu0 %963
        %965 = vrot.lane.b32.xlu0 %v945, 32
        %v966 = vpop.permute.xlu0 %965
        %967 = vrot.lane.b32.xlu0 %v952, 32
        %v968 = vpop.permute.xlu0 %967
        %v969 = vrot.slane %v889, 1
        %v970 = vrot.slane %v890, 1
        %v971 = vrot.slane %v891, 1
        %v972 = vrot.slane %v892, 1
        %v973 = vrot.slane %v893, 1
        %v974 = vrot.slane %v894, 1
        %v975 = vrot.slane %v895, 1
        %v976 = vrot.slane %v896, 1
        %977 = vrot.lane.b32.xlu0 %v969, 64
        %v978 = vpop.permute.xlu0 %977
        %979 = vrot.lane.b32.xlu0 %v970, 64
        %v980 = vpop.permute.xlu0 %979
        %981 = vrot.lane.b32.xlu0 %v971, 64
        %v982 = vpop.permute.xlu0 %981
        %983 = vrot.lane.b32.xlu0 %v972, 64
        %v984 = vpop.permute.xlu0 %983
        %985 = vrot.lane.b32.xlu0 %v973, 64
        %v986 = vpop.permute.xlu0 %985
        %987 = vrot.lane.b32.xlu0 %v974, 64
        %v988 = vpop.permute.xlu0 %987
        %989 = vrot.lane.b32.xlu0 %v975, 64
        %v990 = vpop.permute.xlu0 %989
        %991 = vrot.lane.b32.xlu0 %v976, 64
        %v992 = vpop.permute.xlu0 %991
        %vm993 = vcmask 261120
        %v996 = vsel %vm993, %v841, %v954
        %v999 = vsel %vm993, %v843, %v956
        %v1002 = vsel %vm993, %v845, %v958
        %v1005 = vsel %vm993, %v847, %v960
        %v1008 = vsel %vm993, %v849, %v962
        %v1011 = vsel %vm993, %v851, %v964
        %v1014 = vsel %vm993, %v853, %v966
        %v1017 = vsel %vm993, %v855, %v968
        %vm1018 = vcmask 523264
        %v1020 = vsel %vm1018, %v996, %v978
        %v1022 = vsel %vm1018, %v999, %v980
        %v1024 = vsel %vm1018, %v1002, %v982
        %v1026 = vsel %vm1018, %v1005, %v984
        %v1028 = vsel %vm1018, %v1008, %v986
        %v1030 = vsel %vm1018, %v1011, %v988
        %v1032 = vsel %vm1018, %v1014, %v990
        %v1034 = vsel %vm1018, %v1017, %v992
        %v1035 = vld [vmem:[#allocation3] sm:$0xff]
        %v1036 = vld [vmem:[#allocation3 + $0x8] sm:$0xff]
        %v1037 = vld [vmem:[#allocation3 + $0x10] sm:$0xff]
        %v1038 = vld [vmem:[#allocation3 + $0x18] sm:$0xff]
        %v1039 = vld [vmem:[#allocation3 + $0x20] sm:$0xff]
        %v1040 = vld [vmem:[#allocation3 + $0x28] sm:$0xff]
        %s1041 = sadd.s32 2, %s838
        %s1042 = smul.addr %s1041, 4
        %s1043 = scalar_lea.vmem [#allocation2], %s1042
        %v1044 = vld [vmem:[%s1043] sm:$0xf]
        %v1045 = vld [vmem:[%s1043 + $0x4] sm:$0x1]
        %v1046 = vld [vmem:[%s1043 + $0x8] sm:$0xf]
        %v1047 = vld [vmem:[%s1043 + $0xc] sm:$0x1]
        %v1048 = vld [vmem:[%s1043 + $0x10] sm:$0xf]
        %v1049 = vld [vmem:[%s1043 + $0x14] sm:$0x1]
        %v1050 = vld [vmem:[%s1043 + $0x18] sm:$0xf]
        %v1051 = vld [vmem:[%s1043 + $0x1c] sm:$0x1]
        %v1052 = vld [vmem:[%s1043 + $0x20] sm:$0xf]
        %v1053 = vld [vmem:[%s1043 + $0x24] sm:$0x1]
        %v1054 = vld [vmem:[%s1043 + $0x28] sm:$0xf]
        %v1055 = vld [vmem:[%s1043 + $0x2c] sm:$0x1]
        %v1056 = vld [vmem:[%s1043 + $0x30] sm:$0xf]
        %v1057 = vld [vmem:[%s1043 + $0x34] sm:$0x1]
        %v1058 = vld [vmem:[%s1043 + $0x38] sm:$0xf]
        %v1059 = vld [vmem:[%s1043 + $0x3c] sm:$0x1]
        %v1076 = vunpack.c.l.b16 %v1044
        %v1077 = vunpack.c.l.b16 %v1045
        %v1078 = vunpack.c.l.b16 %v1046
        %v1079 = vunpack.c.l.b16 %v1047
        %v1080 = vunpack.c.l.b16 %v1048
        %v1081 = vunpack.c.l.b16 %v1049
        %v1082 = vunpack.c.l.b16 %v1050
        %v1083 = vunpack.c.l.b16 %v1051
        %v1084 = vunpack.c.l.b16 %v1052
        %v1085 = vunpack.c.l.b16 %v1053
        %v1086 = vunpack.c.l.b16 %v1054
        %v1087 = vunpack.c.l.b16 %v1055
        %v1088 = vunpack.c.l.b16 %v1056
        %v1089 = vunpack.c.l.b16 %v1057
        %v1090 = vunpack.c.l.b16 %v1058
        %v1091 = vunpack.c.l.b16 %v1059
        %v1092 = vpack.c.b16 %v1077, %v1076
        %v1093 = vpack.c.b16 %v1079, %v1078
        %v1094 = vpack.c.b16 %v1081, %v1080
        %v1095 = vpack.c.b16 %v1083, %v1082
        %v1096 = vpack.c.b16 %v1085, %v1084
        %v1097 = vpack.c.b16 %v1087, %v1086
        %v1098 = vpack.c.b16 %v1089, %v1088
        %v1099 = vpack.c.b16 %v1091, %v1090
        %v1101 = vshrl.u32 %v1092, 16
        %v1103 = vshll.u32 %v1092, 16
        %v1105 = vrot.slane %v1103, 1
        %v1106 = vor.u32 %v1101, %v1105
        %v1108 = vshrl.u32 %v1093, 16
        %v1110 = vshll.u32 %v1093, 16
        %v1112 = vrot.slane %v1110, 1
        %v1113 = vor.u32 %v1108, %v1112
        %v1115 = vshrl.u32 %v1094, 16
        %v1117 = vshll.u32 %v1094, 16
        %v1119 = vrot.slane %v1117, 1
        %v1120 = vor.u32 %v1115, %v1119
        %v1122 = vshrl.u32 %v1095, 16
        %v1124 = vshll.u32 %v1095, 16
        %v1126 = vrot.slane %v1124, 1
        %v1127 = vor.u32 %v1122, %v1126
        %v1129 = vshrl.u32 %v1096, 16
        %v1131 = vshll.u32 %v1096, 16
        %v1133 = vrot.slane %v1131, 1
        %v1134 = vor.u32 %v1129, %v1133
        %v1136 = vshrl.u32 %v1097, 16
        %v1138 = vshll.u32 %v1097, 16
        %v1140 = vrot.slane %v1138, 1
        %v1141 = vor.u32 %v1136, %v1140
        %v1143 = vshrl.u32 %v1098, 16
        %v1145 = vshll.u32 %v1098, 16
        %v1147 = vrot.slane %v1145, 1
        %v1148 = vor.u32 %v1143, %v1147
        %v1150 = vshrl.u32 %v1099, 16
        %v1152 = vshll.u32 %v1099, 16
        %v1154 = vrot.slane %v1152, 1
        %v1155 = vor.u32 %v1150, %v1154
        %1156 = vrot.lane.b32.xlu0 %v1106, 32
        %v1157 = vpop.permute.xlu0 %1156
        %1158 = vrot.lane.b32.xlu0 %v1113, 32
        %v1159 = vpop.permute.xlu0 %1158
        %1160 = vrot.lane.b32.xlu0 %v1120, 32
        %v1161 = vpop.permute.xlu0 %1160
        %1162 = vrot.lane.b32.xlu0 %v1127, 32
        %v1163 = vpop.permute.xlu0 %1162
        %1164 = vrot.lane.b32.xlu0 %v1134, 32
        %v1165 = vpop.permute.xlu0 %1164
        %1166 = vrot.lane.b32.xlu0 %v1141, 32
        %v1167 = vpop.permute.xlu0 %1166
        %1168 = vrot.lane.b32.xlu0 %v1148, 32
        %v1169 = vpop.permute.xlu0 %1168
        %1170 = vrot.lane.b32.xlu0 %v1155, 32
        %v1171 = vpop.permute.xlu0 %1170
        %v1172 = vrot.slane %v1092, 1
        %v1173 = vrot.slane %v1093, 1
        %v1174 = vrot.slane %v1094, 1
        %v1175 = vrot.slane %v1095, 1
        %v1176 = vrot.slane %v1096, 1
        %v1177 = vrot.slane %v1097, 1
        %v1178 = vrot.slane %v1098, 1
        %v1179 = vrot.slane %v1099, 1
        %1180 = vrot.lane.b32.xlu0 %v1172, 64
        %v1181 = vpop.permute.xlu0 %1180
        %1182 = vrot.lane.b32.xlu0 %v1173, 64
        %v1183 = vpop.permute.xlu0 %1182
        %1184 = vrot.lane.b32.xlu0 %v1174, 64
        %v1185 = vpop.permute.xlu0 %1184
        %1186 = vrot.lane.b32.xlu0 %v1175, 64
        %v1187 = vpop.permute.xlu0 %1186
        %1188 = vrot.lane.b32.xlu0 %v1176, 64
        %v1189 = vpop.permute.xlu0 %1188
        %1190 = vrot.lane.b32.xlu0 %v1177, 64
        %v1191 = vpop.permute.xlu0 %1190
        %1192 = vrot.lane.b32.xlu0 %v1178, 64
        %v1193 = vpop.permute.xlu0 %1192
        %1194 = vrot.lane.b32.xlu0 %v1179, 64
        %v1195 = vpop.permute.xlu0 %1194
        %v1198 = vsel %vm993, %v1044, %v1157
        %v1201 = vsel %vm993, %v1046, %v1159
        %v1204 = vsel %vm993, %v1048, %v1161
        %v1207 = vsel %vm993, %v1050, %v1163
        %v1210 = vsel %vm993, %v1052, %v1165
        %v1213 = vsel %vm993, %v1054, %v1167
        %v1216 = vsel %vm993, %v1056, %v1169
        %v1219 = vsel %vm993, %v1058, %v1171
        %v1221 = vsel %vm1018, %v1198, %v1181
        %v1223 = vsel %vm1018, %v1201, %v1183
        %v1225 = vsel %vm1018, %v1204, %v1185
        %v1227 = vsel %vm1018, %v1207, %v1187
        %v1229 = vsel %vm1018, %v1210, %v1189
        %v1231 = vsel %vm1018, %v1213, %v1191
        %v1233 = vsel %vm1018, %v1216, %v1193
        %v1235 = vsel %vm1018, %v1219, %v1195
        %s1236 = scalar_lea.vmem [#allocation3], 48
        %v1237 = vld [vmem:[%s1236] sm:$0xff]
        %v1238 = vld [vmem:[%s1236 + $0x8] sm:$0xff]
        %v1239 = vld [vmem:[%s1236 + $0x10] sm:$0xff]
        %v1240 = vld [vmem:[%s1236 + $0x18] sm:$0xff]
        %v1241 = vld [vmem:[%s1236 + $0x20] sm:$0xff]
        %v1242 = vld [vmem:[%s1236 + $0x28] sm:$0xff]
        %v1251 = vunpack.c.l.b16 %v1221
        %v1252 = vunpack.c.l.b16 %v1223
        %v1253 = vunpack.c.l.b16 %v1225
        %v1254 = vunpack.c.l.b16 %v1227
        %v1255 = vunpack.c.l.b16 %v1229
        %v1256 = vunpack.c.l.b16 %v1231
        %v1257 = vunpack.c.l.b16 %v1233
        %v1258 = vunpack.c.l.b16 %v1235
        %v1259 = vpack.c.b16 %v1252, %v1251
        %v1260 = vpack.c.b16 %v1254, %v1253
        %v1261 = vpack.c.b16 %v1256, %v1255
        %v1262 = vpack.c.b16 %v1258, %v1257
        %vm1263 = vcmask 785408
        %v1265 = vsel %vm1263, %v1259, 0
        %v1268 = vsel %vm1263, %v1260, 0
        %v1271 = vsel %vm1263, %v1261, 0
        %v1274 = vsel %vm1263, %v1262, 0
        %1276 = vmatprep.subr.bf16.mxu0 0
        %1277 = vmatpush1.bf16.msra.mxu0 %v1237
        %1278 = vmatprep.subr.bf16.mxu0 0
        %1279 = vmatpush1.bf16.msra.mxu0 %v1238
        %1280 = vmatprep.subr.bf16.mxu0 0
        %1281 = vmatpush1.bf16.msra.mxu0 %v1239
        %1282 = vmatprep.subr.bf16.mxu0 0
        %1283 = vmatpush1.bf16.msra.mxu0 %v1240
        %1284 = vmatprep.subr.bf16.mxu0 0
        %1285 = vmatpush1.bf16.msra.mxu0 %v1241
        %1286 = vmatprep.subr.bf16.mxu0 0
        %1287 = vmatpush1.bf16.msra.mxu0 %v1242
        %1288 = vmatprep.subr.bf16.mxu0 0
        %1289 = vmatpush1.bf16.msra.mxu0 0
        %1290 = vmatprep.subr.bf16.mxu0 0
        %1291 = vmatpush1.bf16.msra.mxu0 0
        %1292 = vmatprep.subr.bf16.mxu0 0
        %1293 = vmatpush1.bf16.msra.mxu0 0
        %1294 = vmatprep.subr.bf16.mxu0 0
        %1295 = vmatpush1.bf16.msra.mxu0 0
        %1296 = vmatprep.subr.bf16.mxu0 0
        %1297 = vmatpush1.bf16.msra.mxu0 0
        %1298 = vmatprep.subr.bf16.mxu0 0
        %1299 = vmatpush1.bf16.msra.mxu0 0
        %1300 = vmatprep.subr.bf16.mxu0 0
        %1301 = vmatpush1.bf16.msra.mxu0 0
        %1302 = vmatprep.subr.bf16.mxu0 0
        %1303 = vmatpush1.bf16.msra.mxu0 0
        %1304 = vmatprep.subr.bf16.mxu0 0
        %1305 = vmatpush1.bf16.msra.mxu0 0
        %1306 = vmatprep.subr.bf16.mxu0 0
        %1307 = vmatpush1.bf16.msra.mxu0 0
        %1308 = vmatprep.mubr.bf16.mxu0 0
        %1309 = vmatmul.mubr.bf16.gmra.mrb[0].mxu0 %v1265
        %v1310 = vpop.f32.mrb[0].mxu0
        %v1311 = vadd.f32 0.0, %v1310
        %v1312 = vpop.f32.mrb[0].mxu0
        %v1313 = vpop.f32.mrb[0].mxu0
        %v1314 = vadd.f32 0.0, %v1313
        %v1315 = vpop.f32.mrb[0].mxu0
        %1316 = vmatprep.mubr.bf16.mxu0 0
        %1317 = vmatmul.mubr.bf16.gmra.mrb[0].mxu0 %v1268
        %v1318 = vpop.f32.mrb[0].mxu0
        %v1319 = vadd.f32 0.0, %v1318
        %v1320 = vpop.f32.mrb[0].mxu0
        %v1321 = vpop.f32.mrb[0].mxu0
        %v1322 = vadd.f32 0.0, %v1321
        %v1323 = vpop.f32.mrb[0].mxu0
        %1324 = vmatprep.mubr.bf16.mxu0 0
        %1325 = vmatmul.mubr.bf16.gmra.mrb[0].mxu0 %v1271
        %v1326 = vpop.f32.mrb[0].mxu0
        %v1327 = vadd.f32 0.0, %v1326
        %v1328 = vpop.f32.mrb[0].mxu0
        %v1329 = vpop.f32.mrb[0].mxu0
        %v1330 = vadd.f32 0.0, %v1329
        %v1331 = vpop.f32.mrb[0].mxu0
        %1332 = vmatprep.mubr.bf16.mxu0 0
        %1333 = vmatmul.mubr.bf16.gmra.mrb[0].mxu0 %v1274
        %v1334 = vpop.f32.mrb[0].mxu0
        %v1335 = vadd.f32 0.0, %v1334
        %v1336 = vpop.f32.mrb[0].mxu0
        %v1337 = vpop.f32.mrb[0].mxu0
        %v1338 = vadd.f32 0.0, %v1337
        %v1339 = vpop.f32.mrb[0].mxu0
        %1340 = vdwg.mxu0
        %v1349 = vunpack.c.l.b16 %v1020
        %v1350 = vunpack.c.l.b16 %v1022
        %v1351 = vunpack.c.l.b16 %v1024
        %v1352 = vunpack.c.l.b16 %v1026
        %v1353 = vunpack.c.l.b16 %v1028
        %v1354 = vunpack.c.l.b16 %v1030
        %v1355 = vunpack.c.l.b16 %v1032
        %v1356 = vunpack.c.l.b16 %v1034
        %v1357 = vpack.c.b16 %v1350, %v1349
        %v1358 = vpack.c.b16 %v1352, %v1351
        %v1359 = vpack.c.b16 %v1354, %v1353
        %v1360 = vpack.c.b16 %v1356, %v1355
        %v1362 = vsel %vm1263, %v1357, 0
        %v1365 = vsel %vm1263, %v1358, 0
        %v1368 = vsel %vm1263, %v1359, 0
        %v1371 = vsel %vm1263, %v1360, 0
        %1373 = vmatprep.subr.bf16.mxu0 0
        %1374 = vmatpush1.bf16.msra.mxu0 %v1035
        %1375 = vmatprep.subr.bf16.mxu0 0
        %1376 = vmatpush1.bf16.msra.mxu0 %v1036
        %1377 = vmatprep.subr.bf16.mxu0 0
        %1378 = vmatpush1.bf16.msra.mxu0 %v1037
        %1379 = vmatprep.subr.bf16.mxu0 0
        %1380 = vmatpush1.bf16.msra.mxu0 %v1038
        %1381 = vmatprep.subr.bf16.mxu0 0
        %1382 = vmatpush1.bf16.msra.mxu0 %v1039
        %1383 = vmatprep.subr.bf16.mxu0 0
        %1384 = vmatpush1.bf16.msra.mxu0 %v1040
        %1385 = vmatprep.subr.bf16.mxu0 0
        %1386 = vmatpush1.bf16.msra.mxu0 0
        %1387 = vmatprep.subr.bf16.mxu0 0
        %1388 = vmatpush1.bf16.msra.mxu0 0
        %1389 = vmatprep.subr.bf16.mxu0 0
        %1390 = vmatpush1.bf16.msra.mxu0 0
        %1391 = vmatprep.subr.bf16.mxu0 0
        %1392 = vmatpush1.bf16.msra.mxu0 0
        %1393 = vmatprep.subr.bf16.mxu0 0
        %1394 = vmatpush1.bf16.msra.mxu0 0
        %1395 = vmatprep.subr.bf16.mxu0 0
        %1396 = vmatpush1.bf16.msra.mxu0 0
        %1397 = vmatprep.subr.bf16.mxu0 0
        %1398 = vmatpush1.bf16.msra.mxu0 0
        %1399 = vmatprep.subr.bf16.mxu0 0
        %1400 = vmatpush1.bf16.msra.mxu0 0
        %1401 = vmatprep.subr.bf16.mxu0 0
        %1402 = vmatpush1.bf16.msra.mxu0 0
        %1403 = vmatprep.subr.bf16.mxu0 0
        %1404 = vmatpush1.bf16.msra.mxu0 0
        %1405 = vmatprep.mubr.bf16.mxu0 0
        %1406 = vmatmul.mubr.bf16.gmra.mrb[0].mxu0 %v1362
        %v1407 = vpop.f32.mrb[0].mxu0
        %v1408 = vadd.f32 %v1311, %v1407
        %v1409 = vpop.f32.mrb[0].mxu0
        %v1410 = vpop.f32.mrb[0].mxu0
        %v1411 = vadd.f32 %v1314, %v1410
        %v1412 = vpop.f32.mrb[0].mxu0
        %1413 = vmatprep.mubr.bf16.mxu0 0
        %1414 = vmatmul.mubr.bf16.gmra.mrb[0].mxu0 %v1365
        %v1415 = vpop.f32.mrb[0].mxu0
        %v1416 = vadd.f32 %v1319, %v1415
        %v1417 = vpop.f32.mrb[0].mxu0
        %v1418 = vpop.f32.mrb[0].mxu0
        %v1419 = vadd.f32 %v1322, %v1418
        %v1420 = vpop.f32.mrb[0].mxu0
        %1421 = vmatprep.mubr.bf16.mxu0 0
        %1422 = vmatmul.mubr.bf16.gmra.mrb[0].mxu0 %v1368
        %v1423 = vpop.f32.mrb[0].mxu0
        %v1424 = vadd.f32 %v1327, %v1423
        %v1425 = vpop.f32.mrb[0].mxu0
        %v1426 = vpop.f32.mrb[0].mxu0
        %v1427 = vadd.f32 %v1330, %v1426
        %v1428 = vpop.f32.mrb[0].mxu0
        %1429 = vmatprep.mubr.bf16.mxu0 0
        %1430 = vmatmul.mubr.bf16.gmra.mrb[0].mxu0 %v1371
        %v1431 = vpop.f32.mrb[0].mxu0
        %v1432 = vadd.f32 %v1335, %v1431
        %v1433 = vpop.f32.mrb[0].mxu0
        %v1434 = vpop.f32.mrb[0].mxu0
        %v1435 = vadd.f32 %v1338, %v1434
        %v1436 = vpop.f32.mrb[0].mxu0
        %1437 = vdwg.mxu0
        %s1438 = sadd.s32 4, %s838
        %s1439 = smul.addr %s1438, 4
        %s1440 = scalar_lea.vmem [#allocation2], %s1439
        %v1441 = vld [vmem:[%s1440] sm:$0xf]
        %v1442 = vld [vmem:[%s1440 + $0x4] sm:$0x1]
        %v1443 = vld [vmem:[%s1440 + $0x8] sm:$0xf]
        %v1444 = vld [vmem:[%s1440 + $0xc] sm:$0x1]
        %v1445 = vld [vmem:[%s1440 + $0x10] sm:$0xf]
        %v1446 = vld [vmem:[%s1440 + $0x14] sm:$0x1]
        %v1447 = vld [vmem:[%s1440 + $0x18] sm:$0xf]
        %v1448 = vld [vmem:[%s1440 + $0x1c] sm:$0x1]
        %v1449 = vld [vmem:[%s1440 + $0x20] sm:$0xf]
        %v1450 = vld [vmem:[%s1440 + $0x24] sm:$0x1]
        %v1451 = vld [vmem:[%s1440 + $0x28] sm:$0xf]
        %v1452 = vld [vmem:[%s1440 + $0x2c] sm:$0x1]
        %v1453 = vld [vmem:[%s1440 + $0x30] sm:$0xf]
        %v1454 = vld [vmem:[%s1440 + $0x34] sm:$0x1]
        %v1455 = vld [vmem:[%s1440 + $0x38] sm:$0xf]
        %v1456 = vld [vmem:[%s1440 + $0x3c] sm:$0x1]
        %v1473 = vunpack.c.l.b16 %v1441
        %v1474 = vunpack.c.l.b16 %v1442
        %v1475 = vunpack.c.l.b16 %v1443
        %v1476 = vunpack.c.l.b16 %v1444
        %v1477 = vunpack.c.l.b16 %v1445
        %v1478 = vunpack.c.l.b16 %v1446
        %v1479 = vunpack.c.l.b16 %v1447
        %v1480 = vunpack.c.l.b16 %v1448
        %v1481 = vunpack.c.l.b16 %v1449
        %v1482 = vunpack.c.l.b16 %v1450
        %v1483 = vunpack.c.l.b16 %v1451
        %v1484 = vunpack.c.l.b16 %v1452
        %v1485 = vunpack.c.l.b16 %v1453
        %v1486 = vunpack.c.l.b16 %v1454
        %v1487 = vunpack.c.l.b16 %v1455
        %v1488 = vunpack.c.l.b16 %v1456
        %v1489 = vpack.c.b16 %v1474, %v1473
        %v1490 = vpack.c.b16 %v1476, %v1475
        %v1491 = vpack.c.b16 %v1478, %v1477
        %v1492 = vpack.c.b16 %v1480, %v1479
        %v1493 = vpack.c.b16 %v1482, %v1481
        %v1494 = vpack.c.b16 %v1484, %v1483
        %v1495 = vpack.c.b16 %v1486, %v1485
        %v1496 = vpack.c.b16 %v1488, %v1487
        %v1498 = vshrl.u32 %v1489, 16
        %v1500 = vshll.u32 %v1489, 16
        %v1502 = vrot.slane %v1500, 1
        %v1503 = vor.u32 %v1498, %v1502
        %v1505 = vshrl.u32 %v1490, 16
        %v1507 = vshll.u32 %v1490, 16
        %v1509 = vrot.slane %v1507, 1
        %v1510 = vor.u32 %v1505, %v1509
        %v1512 = vshrl.u32 %v1491, 16
        %v1514 = vshll.u32 %v1491, 16
        %v1516 = vrot.slane %v1514, 1
        %v1517 = vor.u32 %v1512, %v1516
        %v1519 = vshrl.u32 %v1492, 16
        %v1521 = vshll.u32 %v1492, 16
        %v1523 = vrot.slane %v1521, 1
        %v1524 = vor.u32 %v1519, %v1523
        %v1526 = vshrl.u32 %v1493, 16
        %v1528 = vshll.u32 %v1493, 16
        %v1530 = vrot.slane %v1528, 1
        %v1531 = vor.u32 %v1526, %v1530
        %v1533 = vshrl.u32 %v1494, 16
        %v1535 = vshll.u32 %v1494, 16
        %v1537 = vrot.slane %v1535, 1
        %v1538 = vor.u32 %v1533, %v1537
        %v1540 = vshrl.u32 %v1495, 16
        %v1542 = vshll.u32 %v1495, 16
        %v1544 = vrot.slane %v1542, 1
        %v1545 = vor.u32 %v1540, %v1544
        %v1547 = vshrl.u32 %v1496, 16
        %v1549 = vshll.u32 %v1496, 16
        %v1551 = vrot.slane %v1549, 1
        %v1552 = vor.u32 %v1547, %v1551
        %1553 = vrot.lane.b32.xlu0 %v1503, 32
        %v1554 = vpop.permute.xlu0 %1553
        %1555 = vrot.lane.b32.xlu0 %v1510, 32
        %v1556 = vpop.permute.xlu0 %1555
        %1557 = vrot.lane.b32.xlu0 %v1517, 32
        %v1558 = vpop.permute.xlu0 %1557
        %1559 = vrot.lane.b32.xlu0 %v1524, 32
        %v1560 = vpop.permute.xlu0 %1559
        %1561 = vrot.lane.b32.xlu0 %v1531, 32
        %v1562 = vpop.permute.xlu0 %1561
        %1563 = vrot.lane.b32.xlu0 %v1538, 32
        %v1564 = vpop.permute.xlu0 %1563
        %1565 = vrot.lane.b32.xlu0 %v1545, 32
        %v1566 = vpop.permute.xlu0 %1565
        %1567 = vrot.lane.b32.xlu0 %v1552, 32
        %v1568 = vpop.permute.xlu0 %1567
        %v1569 = vrot.slane %v1489, 1
        %v1570 = vrot.slane %v1490, 1
        %v1571 = vrot.slane %v1491, 1
        %v1572 = vrot.slane %v1492, 1
        %v1573 = vrot.slane %v1493, 1
        %v1574 = vrot.slane %v1494, 1
        %v1575 = vrot.slane %v1495, 1
        %v1576 = vrot.slane %v1496, 1
        %1577 = vrot.lane.b32.xlu0 %v1569, 64
        %v1578 = vpop.permute.xlu0 %1577
        %1579 = vrot.lane.b32.xlu0 %v1570, 64
        %v1580 = vpop.permute.xlu0 %1579
        %1581 = vrot.lane.b32.xlu0 %v1571, 64
        %v1582 = vpop.permute.xlu0 %1581
        %1583 = vrot.lane.b32.xlu0 %v1572, 64
        %v1584 = vpop.permute.xlu0 %1583
        %1585 = vrot.lane.b32.xlu0 %v1573, 64
        %v1586 = vpop.permute.xlu0 %1585
        %1587 = vrot.lane.b32.xlu0 %v1574, 64
        %v1588 = vpop.permute.xlu0 %1587
        %1589 = vrot.lane.b32.xlu0 %v1575, 64
        %v1590 = vpop.permute.xlu0 %1589
        %1591 = vrot.lane.b32.xlu0 %v1576, 64
        %v1592 = vpop.permute.xlu0 %1591
        %v1595 = vsel %vm993, %v1441, %v1554
        %v1598 = vsel %vm993, %v1443, %v1556
        %v1601 = vsel %vm993, %v1445, %v1558
        %v1604 = vsel %vm993, %v1447, %v1560
        %v1607 = vsel %vm993, %v1449, %v1562
        %v1610 = vsel %vm993, %v1451, %v1564
        %v1613 = vsel %vm993, %v1453, %v1566
        %v1616 = vsel %vm993, %v1455, %v1568
        %v1618 = vsel %vm1018, %v1595, %v1578
        %v1620 = vsel %vm1018, %v1598, %v1580
        %v1622 = vsel %vm1018, %v1601, %v1582
        %v1624 = vsel %vm1018, %v1604, %v1584
        %v1626 = vsel %vm1018, %v1607, %v1586
        %v1628 = vsel %vm1018, %v1610, %v1588
        %v1630 = vsel %vm1018, %v1613, %v1590
        %v1632 = vsel %vm1018, %v1616, %v1592
        %s1633 = scalar_lea.vmem [#allocation3], 96
        %v1634 = vld [vmem:[%s1633] sm:$0xff]
        %v1635 = vld [vmem:[%s1633 + $0x8] sm:$0xff]
        %v1636 = vld [vmem:[%s1633 + $0x10] sm:$0xff]
        %v1637 = vld [vmem:[%s1633 + $0x18] sm:$0xff]
        %v1638 = vld [vmem:[%s1633 + $0x20] sm:$0xff]
        %v1639 = vld [vmem:[%s1633 + $0x28] sm:$0xff]
        %v1648 = vunpack.c.l.b16 %v1618
        %v1649 = vunpack.c.l.b16 %v1620
        %v1650 = vunpack.c.l.b16 %v1622
        %v1651 = vunpack.c.l.b16 %v1624
        %v1652 = vunpack.c.l.b16 %v1626
        %v1653 = vunpack.c.l.b16 %v1628
        %v1654 = vunpack.c.l.b16 %v1630
        %v1655 = vunpack.c.l.b16 %v1632
        %v1656 = vpack.c.b16 %v1649, %v1648
        %v1657 = vpack.c.b16 %v1651, %v1650
        %v1658 = vpack.c.b16 %v1653, %v1652
        %v1659 = vpack.c.b16 %v1655, %v1654
        %v1661 = vsel %vm1263, %v1656, 0
        %v1664 = vsel %vm1263, %v1657, 0
        %v1667 = vsel %vm1263, %v1658, 0
        %v1670 = vsel %vm1263, %v1659, 0
        %1672 = vmatprep.subr.bf16.mxu0 0
        %1673 = vmatpush1.bf16.msra.mxu0 %v1634
        %1674 = vmatprep.subr.bf16.mxu0 0
        %1675 = vmatpush1.bf16.msra.mxu0 %v1635
        %1676 = vmatprep.subr.bf16.mxu0 0
        %1677 = vmatpush1.bf16.msra.mxu0 %v1636
        %1678 = vmatprep.subr.bf16.mxu0 0
        %1679 = vmatpush1.bf16.msra.mxu0 %v1637
        %1680 = vmatprep.subr.bf16.mxu0 0
        %1681 = vmatpush1.bf16.msra.mxu0 %v1638
        %1682 = vmatprep.subr.bf16.mxu0 0
        %1683 = vmatpush1.bf16.msra.mxu0 %v1639
        %1684 = vmatprep.subr.bf16.mxu0 0
        %1685 = vmatpush1.bf16.msra.mxu0 0
        %1686 = vmatprep.subr.bf16.mxu0 0
        %1687 = vmatpush1.bf16.msra.mxu0 0
        %1688 = vmatprep.subr.bf16.mxu0 0
        %1689 = vmatpush1.bf16.msra.mxu0 0
        %1690 = vmatprep.subr.bf16.mxu0 0
        %1691 = vmatpush1.bf16.msra.mxu0 0
        %1692 = vmatprep.subr.bf16.mxu0 0
        %1693 = vmatpush1.bf16.msra.mxu0 0
        %1694 = vmatprep.subr.bf16.mxu0 0
        %1695 = vmatpush1.bf16.msra.mxu0 0
        %1696 = vmatprep.subr.bf16.mxu0 0
        %1697 = vmatpush1.bf16.msra.mxu0 0
        %1698 = vmatprep.subr.bf16.mxu0 0
        %1699 = vmatpush1.bf16.msra.mxu0 0
        %1700 = vmatprep.subr.bf16.mxu0 0
        %1701 = vmatpush1.bf16.msra.mxu0 0
        %1702 = vmatprep.subr.bf16.mxu0 0
        %1703 = vmatpush1.bf16.msra.mxu0 0
        %1704 = vmatprep.mubr.bf16.mxu0 0
        %1705 = vmatmul.mubr.bf16.gmra.mrb[0].mxu0 %v1661
        %v1706 = vpop.f32.mrb[0].mxu0
        %v1707 = vadd.f32 0.0, %v1706
        %v1708 = vpop.f32.mrb[0].mxu0
        %v1709 = vpop.f32.mrb[0].mxu0
        %v1710 = vadd.f32 0.0, %v1709
        %v1711 = vpop.f32.mrb[0].mxu0
        %1712 = vmatprep.mubr.bf16.mxu0 0
        %1713 = vmatmul.mubr.bf16.gmra.mrb[0].mxu0 %v1664
        %v1714 = vpop.f32.mrb[0].mxu0
        %v1715 = vadd.f32 0.0, %v1714
        %v1716 = vpop.f32.mrb[0].mxu0
        %v1717 = vpop.f32.mrb[0].mxu0
        %v1718 = vadd.f32 0.0, %v1717
        %v1719 = vpop.f32.mrb[0].mxu0
        %1720 = vmatprep.mubr.bf16.mxu0 0
        %1721 = vmatmul.mubr.bf16.gmra.mrb[0].mxu0 %v1667
        %v1722 = vpop.f32.mrb[0].mxu0
        %v1723 = vadd.f32 0.0, %v1722
        %v1724 = vpop.f32.mrb[0].mxu0
        %v1725 = vpop.f32.mrb[0].mxu0
        %v1726 = vadd.f32 0.0, %v1725
        %v1727 = vpop.f32.mrb[0].mxu0
        %1728 = vmatprep.mubr.bf16.mxu0 0
        %1729 = vmatmul.mubr.bf16.gmra.mrb[0].mxu0 %v1670
        %v1730 = vpop.f32.mrb[0].mxu0
        %v1731 = vadd.f32 0.0, %v1730
        %v1732 = vpop.f32.mrb[0].mxu0
        %v1733 = vpop.f32.mrb[0].mxu0
        %v1734 = vadd.f32 0.0, %v1733
        %v1735 = vpop.f32.mrb[0].mxu0
        %1736 = vdwg.mxu0
        %v1737 = vadd.f32 %v1408, %v1707
        %v1738 = vadd.f32 %v1411, %v1710
        %v1739 = vadd.f32 %v1416, %v1715
        %v1740 = vadd.f32 %v1419, %v1718
        %v1741 = vadd.f32 %v1424, %v1723
        %v1742 = vadd.f32 %v1427, %v1726
        %v1743 = vadd.f32 %v1432, %v1731
        %v1744 = vadd.f32 %v1435, %v1734
        %s1745 = sadd.s32 %s22, 2
        %p1746 = scmp.lt.s32.totalorder %s1745, 0
        %s1747 = ssub.s32 0, %s1745
        %s1748 = scalar_select %p1746, %s1747, %s1745
        %s1749 = sdiv.u32.pop %s1748, 3
        %s1750 = srem.u32.pop %s1748, 3
        %s1751 = ssub.s32 0, %s1750
        %s1752 = scalar_select %p1746, %s1751, %s1750
        %p1753 = scmp.ne.s32.totalorder %s1752, 0
        %p1754 = scmp.lt.s32.totalorder %s1752, 0
        %p1755 = pnand %p1754, %p1753
        %p1756 = pneg %p1755
        %s1757 = sadd.s32 %s1752, 3
        %s1758 = scalar_select %p1756, %s1757, %s1752
        %s1759 = smul.u32 %s1758, 20
        %s1760 = smul.addr %s1759, 4
        %s1761 = scalar_lea.vmem [#allocation2], %s1760
        %v1762 = vld [vmem:[%s1761] sm:$0xf]
        %v1763 = vld [vmem:[%s1761 + $0x4] sm:$0x1]
        %v1764 = vld [vmem:[%s1761 + $0x8] sm:$0xf]
        %v1765 = vld [vmem:[%s1761 + $0xc] sm:$0x1]
        %v1766 = vld [vmem:[%s1761 + $0x10] sm:$0xf]
        %v1767 = vld [vmem:[%s1761 + $0x14] sm:$0x1]
        %v1768 = vld [vmem:[%s1761 + $0x18] sm:$0xf]
        %v1769 = vld [vmem:[%s1761 + $0x1c] sm:$0x1]
        %v1770 = vld [vmem:[%s1761 + $0x20] sm:$0xf]
        %v1771 = vld [vmem:[%s1761 + $0x24] sm:$0x1]
        %v1772 = vld [vmem:[%s1761 + $0x28] sm:$0xf]
        %v1773 = vld [vmem:[%s1761 + $0x2c] sm:$0x1]
        %v1774 = vld [vmem:[%s1761 + $0x30] sm:$0xf]
        %v1775 = vld [vmem:[%s1761 + $0x34] sm:$0x1]
        %v1776 = vld [vmem:[%s1761 + $0x38] sm:$0xf]
        %v1777 = vld [vmem:[%s1761 + $0x3c] sm:$0x1]
        %v1794 = vunpack.c.l.b16 %v1762
        %v1795 = vunpack.c.l.b16 %v1763
        %v1796 = vunpack.c.l.b16 %v1764
        %v1797 = vunpack.c.l.b16 %v1765
        %v1798 = vunpack.c.l.b16 %v1766
        %v1799 = vunpack.c.l.b16 %v1767
        %v1800 = vunpack.c.l.b16 %v1768
        %v1801 = vunpack.c.l.b16 %v1769
        %v1802 = vunpack.c.l.b16 %v1770
        %v1803 = vunpack.c.l.b16 %v1771
        %v1804 = vunpack.c.l.b16 %v1772
        %v1805 = vunpack.c.l.b16 %v1773
        %v1806 = vunpack.c.l.b16 %v1774
        %v1807 = vunpack.c.l.b16 %v1775
        %v1808 = vunpack.c.l.b16 %v1776
        %v1809 = vunpack.c.l.b16 %v1777
        %v1810 = vpack.c.b16 %v1795, %v1794
        %v1811 = vpack.c.b16 %v1797, %v1796
        %v1812 = vpack.c.b16 %v1799, %v1798
        %v1813 = vpack.c.b16 %v1801, %v1800
        %v1814 = vpack.c.b16 %v1803, %v1802
        %v1815 = vpack.c.b16 %v1805, %v1804
        %v1816 = vpack.c.b16 %v1807, %v1806
        %v1817 = vpack.c.b16 %v1809, %v1808
        %v1819 = vshrl.u32 %v1810, 16
        %v1821 = vshll.u32 %v1810, 16
        %v1823 = vrot.slane %v1821, 1
        %v1824 = vor.u32 %v1819, %v1823
        %v1826 = vshrl.u32 %v1811, 16
        %v1828 = vshll.u32 %v1811, 16
        %v1830 = vrot.slane %v1828, 1
        %v1831 = vor.u32 %v1826, %v1830
        %v1833 = vshrl.u32 %v1812, 16
        %v1835 = vshll.u32 %v1812, 16
        %v1837 = vrot.slane %v1835, 1
        %v1838 = vor.u32 %v1833, %v1837
        %v1840 = vshrl.u32 %v1813, 16
        %v1842 = vshll.u32 %v1813, 16
        %v1844 = vrot.slane %v1842, 1
        %v1845 = vor.u32 %v1840, %v1844
        %v1847 = vshrl.u32 %v1814, 16
        %v1849 = vshll.u32 %v1814, 16
        %v1851 = vrot.slane %v1849, 1
        %v1852 = vor.u32 %v1847, %v1851
        %v1854 = vshrl.u32 %v1815, 16
        %v1856 = vshll.u32 %v1815, 16
        %v1858 = vrot.slane %v1856, 1
        %v1859 = vor.u32 %v1854, %v1858
        %v1861 = vshrl.u32 %v1816, 16
        %v1863 = vshll.u32 %v1816, 16
        %v1865 = vrot.slane %v1863, 1
        %v1866 = vor.u32 %v1861, %v1865
        %v1868 = vshrl.u32 %v1817, 16
        %v1870 = vshll.u32 %v1817, 16
        %v1872 = vrot.slane %v1870, 1
        %v1873 = vor.u32 %v1868, %v1872
        %1874 = vrot.lane.b32.xlu0 %v1824, 32
        %v1875 = vpop.permute.xlu0 %1874
        %1876 = vrot.lane.b32.xlu0 %v1831, 32
        %v1877 = vpop.permute.xlu0 %1876
        %1878 = vrot.lane.b32.xlu0 %v1838, 32
        %v1879 = vpop.permute.xlu0 %1878
        %1880 = vrot.lane.b32.xlu0 %v1845, 32
        %v1881 = vpop.permute.xlu0 %1880
        %1882 = vrot.lane.b32.xlu0 %v1852, 32
        %v1883 = vpop.permute.xlu0 %1882
        %1884 = vrot.lane.b32.xlu0 %v1859, 32
        %v1885 = vpop.permute.xlu0 %1884
        %1886 = vrot.lane.b32.xlu0 %v1866, 32
        %v1887 = vpop.permute.xlu0 %1886
        %1888 = vrot.lane.b32.xlu0 %v1873, 32
        %v1889 = vpop.permute.xlu0 %1888
        %v1890 = vrot.slane %v1810, 1
        %v1891 = vrot.slane %v1811, 1
        %v1892 = vrot.slane %v1812, 1
        %v1893 = vrot.slane %v1813, 1
        %v1894 = vrot.slane %v1814, 1
        %v1895 = vrot.slane %v1815, 1
        %v1896 = vrot.slane %v1816, 1
        %v1897 = vrot.slane %v1817, 1
        %1898 = vrot.lane.b32.xlu0 %v1890, 64
        %v1899 = vpop.permute.xlu0 %1898
        %1900 = vrot.lane.b32.xlu0 %v1891, 64
        %v1901 = vpop.permute.xlu0 %1900
        %1902 = vrot.lane.b32.xlu0 %v1892, 64
        %v1903 = vpop.permute.xlu0 %1902
        %1904 = vrot.lane.b32.xlu0 %v1893, 64
        %v1905 = vpop.permute.xlu0 %1904
        %1906 = vrot.lane.b32.xlu0 %v1894, 64
        %v1907 = vpop.permute.xlu0 %1906
        %1908 = vrot.lane.b32.xlu0 %v1895, 64
        %v1909 = vpop.permute.xlu0 %1908
        %1910 = vrot.lane.b32.xlu0 %v1896, 64
        %v1911 = vpop.permute.xlu0 %1910
        %1912 = vrot.lane.b32.xlu0 %v1897, 64
        %v1913 = vpop.permute.xlu0 %1912
        %v1916 = vsel %vm993, %v1762, %v1875
        %v1919 = vsel %vm993, %v1764, %v1877
        %v1922 = vsel %vm993, %v1766, %v1879
        %v1925 = vsel %vm993, %v1768, %v1881
        %v1928 = vsel %vm993, %v1770, %v1883
        %v1931 = vsel %vm993, %v1772, %v1885
        %v1934 = vsel %vm993, %v1774, %v1887
        %v1937 = vsel %vm993, %v1776, %v1889
        %v1939 = vsel %vm1018, %v1916, %v1899
        %v1941 = vsel %vm1018, %v1919, %v1901
        %v1943 = vsel %vm1018, %v1922, %v1903
        %v1945 = vsel %vm1018, %v1925, %v1905
        %v1947 = vsel %vm1018, %v1928, %v1907
        %v1949 = vsel %vm1018, %v1931, %v1909
        %v1951 = vsel %vm1018, %v1934, %v1911
        %v1953 = vsel %vm1018, %v1937, %v1913
        %s1954 = scalar_lea.vmem [#allocation3], 144
        %v1955 = vld [vmem:[%s1954] sm:$0xff]
        %v1956 = vld [vmem:[%s1954 + $0x8] sm:$0xff]
        %v1957 = vld [vmem:[%s1954 + $0x10] sm:$0xff]
        %v1958 = vld [vmem:[%s1954 + $0x18] sm:$0xff]
        %v1959 = vld [vmem:[%s1954 + $0x20] sm:$0xff]
        %v1960 = vld [vmem:[%s1954 + $0x28] sm:$0xff]
        %v1969 = vunpack.c.l.b16 %v1939
        %v1970 = vunpack.c.l.b16 %v1941
        %v1971 = vunpack.c.l.b16 %v1943
        %v1972 = vunpack.c.l.b16 %v1945
        %v1973 = vunpack.c.l.b16 %v1947
        %v1974 = vunpack.c.l.b16 %v1949
        %v1975 = vunpack.c.l.b16 %v1951
        %v1976 = vunpack.c.l.b16 %v1953
        %v1977 = vpack.c.b16 %v1970, %v1969
        %v1978 = vpack.c.b16 %v1972, %v1971
        %v1979 = vpack.c.b16 %v1974, %v1973
        %v1980 = vpack.c.b16 %v1976, %v1975
        %v1982 = vsel %vm1263, %v1977, 0
        %v1985 = vsel %vm1263, %v1978, 0
        %v1988 = vsel %vm1263, %v1979, 0
        %v1991 = vsel %vm1263, %v1980, 0
        %1993 = vmatprep.subr.bf16.mxu0 0
        %1994 = vmatpush1.bf16.msra.mxu0 %v1955
        %1995 = vmatprep.subr.bf16.mxu0 0
        %1996 = vmatpush1.bf16.msra.mxu0 %v1956
        %1997 = vmatprep.subr.bf16.mxu0 0
        %1998 = vmatpush1.bf16.msra.mxu0 %v1957
        %1999 = vmatprep.subr.bf16.mxu0 0
        %2000 = vmatpush1.bf16.msra.mxu0 %v1958
        %2001 = vmatprep.subr.bf16.mxu0 0
        %2002 = vmatpush1.bf16.msra.mxu0 %v1959
        %2003 = vmatprep.subr.bf16.mxu0 0
        %2004 = vmatpush1.bf16.msra.mxu0 %v1960
        %2005 = vmatprep.subr.bf16.mxu0 0
        %2006 = vmatpush1.bf16.msra.mxu0 0
        %2007 = vmatprep.subr.bf16.mxu0 0
        %2008 = vmatpush1.bf16.msra.mxu0 0
        %2009 = vmatprep.subr.bf16.mxu0 0
        %2010 = vmatpush1.bf16.msra.mxu0 0
        %2011 = vmatprep.subr.bf16.mxu0 0
        %2012 = vmatpush1.bf16.msra.mxu0 0
        %2013 = vmatprep.subr.bf16.mxu0 0
        %2014 = vmatpush1.bf16.msra.mxu0 0
        %2015 = vmatprep.subr.bf16.mxu0 0
        %2016 = vmatpush1.bf16.msra.mxu0 0
        %2017 = vmatprep.subr.bf16.mxu0 0
        %2018 = vmatpush1.bf16.msra.mxu0 0
        %2019 = vmatprep.subr.bf16.mxu0 0
        %2020 = vmatpush1.bf16.msra.mxu0 0
        %2021 = vmatprep.subr.bf16.mxu0 0
        %2022 = vmatpush1.bf16.msra.mxu0 0
        %2023 = vmatprep.subr.bf16.mxu0 0
        %2024 = vmatpush1.bf16.msra.mxu0 0
        %2025 = vmatprep.mubr.bf16.mxu0 0
        %2026 = vmatmul.mubr.bf16.gmra.mrb[0].mxu0 %v1982
        %v2027 = vpop.f32.mrb[0].mxu0
        %v2028 = vadd.f32 0.0, %v2027
        %v2029 = vpop.f32.mrb[0].mxu0
        %v2030 = vpop.f32.mrb[0].mxu0
        %v2031 = vadd.f32 0.0, %v2030
        %v2032 = vpop.f32.mrb[0].mxu0
        %2033 = vmatprep.mubr.bf16.mxu0 0
        %2034 = vmatmul.mubr.bf16.gmra.mrb[0].mxu0 %v1985
        %v2035 = vpop.f32.mrb[0].mxu0
        %v2036 = vadd.f32 0.0, %v2035
        %v2037 = vpop.f32.mrb[0].mxu0
        %v2038 = vpop.f32.mrb[0].mxu0
        %v2039 = vadd.f32 0.0, %v2038
        %v2040 = vpop.f32.mrb[0].mxu0
        %2041 = vmatprep.mubr.bf16.mxu0 0
        %2042 = vmatmul.mubr.bf16.gmra.mrb[0].mxu0 %v1988
        %v2043 = vpop.f32.mrb[0].mxu0
        %v2044 = vadd.f32 0.0, %v2043
        %v2045 = vpop.f32.mrb[0].mxu0
        %v2046 = vpop.f32.mrb[0].mxu0
        %v2047 = vadd.f32 0.0, %v2046
        %v2048 = vpop.f32.mrb[0].mxu0
        %2049 = vmatprep.mubr.bf16.mxu0 0
        %2050 = vmatmul.mubr.bf16.gmra.mrb[0].mxu0 %v1991
        %v2051 = vpop.f32.mrb[0].mxu0
        %v2052 = vadd.f32 0.0, %v2051
        %v2053 = vpop.f32.mrb[0].mxu0
        %v2054 = vpop.f32.mrb[0].mxu0
        %v2055 = vadd.f32 0.0, %v2054
        %v2056 = vpop.f32.mrb[0].mxu0
        %2057 = vdwg.mxu0
        %v2058 = vadd.f32 %v1737, %v2028
        %v2059 = vadd.f32 %v1738, %v2031
        %v2060 = vadd.f32 %v1739, %v2036
        %v2061 = vadd.f32 %v1740, %v2039
        %v2062 = vadd.f32 %v1741, %v2044
        %v2063 = vadd.f32 %v1742, %v2047
        %v2064 = vadd.f32 %v1743, %v2052
        %v2065 = vadd.f32 %v1744, %v2055
        %s2066 = sadd.s32 2, %s1759
        %s2067 = smul.addr %s2066, 4
        %s2068 = scalar_lea.vmem [#allocation2], %s2067
        %v2069 = vld [vmem:[%s2068] sm:$0xf]
        %v2070 = vld [vmem:[%s2068 + $0x4] sm:$0x1]
        %v2071 = vld [vmem:[%s2068 + $0x8] sm:$0xf]
        %v2072 = vld [vmem:[%s2068 + $0xc] sm:$0x1]
        %v2073 = vld [vmem:[%s2068 + $0x10] sm:$0xf]
        %v2074 = vld [vmem:[%s2068 + $0x14] sm:$0x1]
        %v2075 = vld [vmem:[%s2068 + $0x18] sm:$0xf]
        %v2076 = vld [vmem:[%s2068 + $0x1c] sm:$0x1]
        %v2077 = vld [vmem:[%s2068 + $0x20] sm:$0xf]
        %v2078 = vld [vmem:[%s2068 + $0x24] sm:$0x1]
        %v2079 = vld [vmem:[%s2068 + $0x28] sm:$0xf]
        %v2080 = vld [vmem:[%s2068 + $0x2c] sm:$0x1]
        %v2081 = vld [vmem:[%s2068 + $0x30] sm:$0xf]
        %v2082 = vld [vmem:[%s2068 + $0x34] sm:$0x1]
        %v2083 = vld [vmem:[%s2068 + $0x38] sm:$0xf]
        %v2084 = vld [vmem:[%s2068 + $0x3c] sm:$0x1]
        %v2101 = vunpack.c.l.b16 %v2069
        %v2102 = vunpack.c.l.b16 %v2070
        %v2103 = vunpack.c.l.b16 %v2071
        %v2104 = vunpack.c.l.b16 %v2072
        %v2105 = vunpack.c.l.b16 %v2073
        %v2106 = vunpack.c.l.b16 %v2074
        %v2107 = vunpack.c.l.b16 %v2075
        %v2108 = vunpack.c.l.b16 %v2076
        %v2109 = vunpack.c.l.b16 %v2077
        %v2110 = vunpack.c.l.b16 %v2078
        %v2111 = vunpack.c.l.b16 %v2079
        %v2112 = vunpack.c.l.b16 %v2080
        %v2113 = vunpack.c.l.b16 %v2081
        %v2114 = vunpack.c.l.b16 %v2082
        %v2115 = vunpack.c.l.b16 %v2083
        %v2116 = vunpack.c.l.b16 %v2084
        %v2117 = vpack.c.b16 %v2102, %v2101
        %v2118 = vpack.c.b16 %v2104, %v2103
        %v2119 = vpack.c.b16 %v2106, %v2105
        %v2120 = vpack.c.b16 %v2108, %v2107
        %v2121 = vpack.c.b16 %v2110, %v2109
        %v2122 = vpack.c.b16 %v2112, %v2111
        %v2123 = vpack.c.b16 %v2114, %v2113
        %v2124 = vpack.c.b16 %v2116, %v2115
        %v2126 = vshrl.u32 %v2117, 16
        %v2128 = vshll.u32 %v2117, 16
        %v2130 = vrot.slane %v2128, 1
        %v2131 = vor.u32 %v2126, %v2130
        %v2133 = vshrl.u32 %v2118, 16
        %v2135 = vshll.u32 %v2118, 16
        %v2137 = vrot.slane %v2135, 1
        %v2138 = vor.u32 %v2133, %v2137
        %v2140 = vshrl.u32 %v2119, 16
        %v2142 = vshll.u32 %v2119, 16
        %v2144 = vrot.slane %v2142, 1
        %v2145 = vor.u32 %v2140, %v2144
        %v2147 = vshrl.u32 %v2120, 16
        %v2149 = vshll.u32 %v2120, 16
        %v2151 = vrot.slane %v2149, 1
        %v2152 = vor.u32 %v2147, %v2151
        %v2154 = vshrl.u32 %v2121, 16
        %v2156 = vshll.u32 %v2121, 16
        %v2158 = vrot.slane %v2156, 1
        %v2159 = vor.u32 %v2154, %v2158
        %v2161 = vshrl.u32 %v2122, 16
        %v2163 = vshll.u32 %v2122, 16
        %v2165 = vrot.slane %v2163, 1
        %v2166 = vor.u32 %v2161, %v2165
        %v2168 = vshrl.u32 %v2123, 16
        %v2170 = vshll.u32 %v2123, 16
        %v2172 = vrot.slane %v2170, 1
        %v2173 = vor.u32 %v2168, %v2172
        %v2175 = vshrl.u32 %v2124, 16
        %v2177 = vshll.u32 %v2124, 16
        %v2179 = vrot.slane %v2177, 1
        %v2180 = vor.u32 %v2175, %v2179
        %2181 = vrot.lane.b32.xlu0 %v2131, 32
        %v2182 = vpop.permute.xlu0 %2181
        %2183 = vrot.lane.b32.xlu0 %v2138, 32
        %v2184 = vpop.permute.xlu0 %2183
        %2185 = vrot.lane.b32.xlu0 %v2145, 32
        %v2186 = vpop.permute.xlu0 %2185
        %2187 = vrot.lane.b32.xlu0 %v2152, 32
        %v2188 = vpop.permute.xlu0 %2187
        %2189 = vrot.lane.b32.xlu0 %v2159, 32
        %v2190 = vpop.permute.xlu0 %2189
        %2191 = vrot.lane.b32.xlu0 %v2166, 32
        %v2192 = vpop.permute.xlu0 %2191
        %2193 = vrot.lane.b32.xlu0 %v2173, 32
        %v2194 = vpop.permute.xlu0 %2193
        %2195 = vrot.lane.b32.xlu0 %v2180, 32
        %v2196 = vpop.permute.xlu0 %2195
        %v2197 = vrot.slane %v2117, 1
        %v2198 = vrot.slane %v2118, 1
        %v2199 = vrot.slane %v2119, 1
        %v2200 = vrot.slane %v2120, 1
        %v2201 = vrot.slane %v2121, 1
        %v2202 = vrot.slane %v2122, 1
        %v2203 = vrot.slane %v2123, 1
        %v2204 = vrot.slane %v2124, 1
        %2205 = vrot.lane.b32.xlu0 %v2197, 64
        %v2206 = vpop.permute.xlu0 %2205
        %2207 = vrot.lane.b32.xlu0 %v2198, 64
        %v2208 = vpop.permute.xlu0 %2207
        %2209 = vrot.lane.b32.xlu0 %v2199, 64
        %v2210 = vpop.permute.xlu0 %2209
        %2211 = vrot.lane.b32.xlu0 %v2200, 64
        %v2212 = vpop.permute.xlu0 %2211
        %2213 = vrot.lane.b32.xlu0 %v2201, 64
        %v2214 = vpop.permute.xlu0 %2213
        %2215 = vrot.lane.b32.xlu0 %v2202, 64
        %v2216 = vpop.permute.xlu0 %2215
        %2217 = vrot.lane.b32.xlu0 %v2203, 64
        %v2218 = vpop.permute.xlu0 %2217
        %2219 = vrot.lane.b32.xlu0 %v2204, 64
        %v2220 = vpop.permute.xlu0 %2219
        %v2223 = vsel %vm993, %v2069, %v2182
        %v2226 = vsel %vm993, %v2071, %v2184
        %v2229 = vsel %vm993, %v2073, %v2186
        %v2232 = vsel %vm993, %v2075, %v2188
        %v2235 = vsel %vm993, %v2077, %v2190
        %v2238 = vsel %vm993, %v2079, %v2192
        %v2241 = vsel %vm993, %v2081, %v2194
        %v2244 = vsel %vm993, %v2083, %v2196
        %v2246 = vsel %vm1018, %v2223, %v2206
        %v2248 = vsel %vm1018, %v2226, %v2208
        %v2250 = vsel %vm1018, %v2229, %v2210
        %v2252 = vsel %vm1018, %v2232, %v2212
        %v2254 = vsel %vm1018, %v2235, %v2214
        %v2256 = vsel %vm1018, %v2238, %v2216
        %v2258 = vsel %vm1018, %v2241, %v2218
        %v2260 = vsel %vm1018, %v2244, %v2220
        %s2261 = scalar_lea.vmem [#allocation3], 192
        %v2262 = vld [vmem:[%s2261] sm:$0xff]
        %v2263 = vld [vmem:[%s2261 + $0x8] sm:$0xff]
        %v2264 = vld [vmem:[%s2261 + $0x10] sm:$0xff]
        %v2265 = vld [vmem:[%s2261 + $0x18] sm:$0xff]
        %v2266 = vld [vmem:[%s2261 + $0x20] sm:$0xff]
        %v2267 = vld [vmem:[%s2261 + $0x28] sm:$0xff]
        %v2276 = vunpack.c.l.b16 %v2246
        %v2277 = vunpack.c.l.b16 %v2248
        %v2278 = vunpack.c.l.b16 %v2250
        %v2279 = vunpack.c.l.b16 %v2252
        %v2280 = vunpack.c.l.b16 %v2254
        %v2281 = vunpack.c.l.b16 %v2256
        %v2282 = vunpack.c.l.b16 %v2258
        %v2283 = vunpack.c.l.b16 %v2260
        %v2284 = vpack.c.b16 %v2277, %v2276
        %v2285 = vpack.c.b16 %v2279, %v2278
        %v2286 = vpack.c.b16 %v2281, %v2280
        %v2287 = vpack.c.b16 %v2283, %v2282
        %v2289 = vsel %vm1263, %v2284, 0
        %v2292 = vsel %vm1263, %v2285, 0
        %v2295 = vsel %vm1263, %v2286, 0
        %v2298 = vsel %vm1263, %v2287, 0
        %2300 = vmatprep.subr.bf16.mxu0 0
        %2301 = vmatpush1.bf16.msra.mxu0 %v2262
        %2302 = vmatprep.subr.bf16.mxu0 0
        %2303 = vmatpush1.bf16.msra.mxu0 %v2263
        %2304 = vmatprep.subr.bf16.mxu0 0
        %2305 = vmatpush1.bf16.msra.mxu0 %v2264
        %2306 = vmatprep.subr.bf16.mxu0 0
        %2307 = vmatpush1.bf16.msra.mxu0 %v2265
        %2308 = vmatprep.subr.bf16.mxu0 0
        %2309 = vmatpush1.bf16.msra.mxu0 %v2266
        %2310 = vmatprep.subr.bf16.mxu0 0
        %2311 = vmatpush1.bf16.msra.mxu0 %v2267
        %2312 = vmatprep.subr.bf16.mxu0 0
        %2313 = vmatpush1.bf16.msra.mxu0 0
        %2314 = vmatprep.subr.bf16.mxu0 0
        %2315 = vmatpush1.bf16.msra.mxu0 0
        %2316 = vmatprep.subr.bf16.mxu0 0
        %2317 = vmatpush1.bf16.msra.mxu0 0
        %2318 = vmatprep.subr.bf16.mxu0 0
        %2319 = vmatpush1.bf16.msra.mxu0 0
        %2320 = vmatprep.subr.bf16.mxu0 0
        %2321 = vmatpush1.bf16.msra.mxu0 0
        %2322 = vmatprep.subr.bf16.mxu0 0
        %2323 = vmatpush1.bf16.msra.mxu0 0
        %2324 = vmatprep.subr.bf16.mxu0 0
        %2325 = vmatpush1.bf16.msra.mxu0 0
        %2326 = vmatprep.subr.bf16.mxu0 0
        %2327 = vmatpush1.bf16.msra.mxu0 0
        %2328 = vmatprep.subr.bf16.mxu0 0
        %2329 = vmatpush1.bf16.msra.mxu0 0
        %2330 = vmatprep.subr.bf16.mxu0 0
        %2331 = vmatpush1.bf16.msra.mxu0 0
        %2332 = vmatprep.mubr.bf16.mxu0 0
        %2333 = vmatmul.mubr.bf16.gmra.mrb[0].mxu0 %v2289
        %v2334 = vpop.f32.mrb[0].mxu0
        %v2335 = vadd.f32 0.0, %v2334
        %v2336 = vpop.f32.mrb[0].mxu0
        %v2337 = vpop.f32.mrb[0].mxu0
        %v2338 = vadd.f32 0.0, %v2337
        %v2339 = vpop.f32.mrb[0].mxu0
        %2340 = vmatprep.mubr.bf16.mxu0 0
        %2341 = vmatmul.mubr.bf16.gmra.mrb[0].mxu0 %v2292
        %v2342 = vpop.f32.mrb[0].mxu0
        %v2343 = vadd.f32 0.0, %v2342
        %v2344 = vpop.f32.mrb[0].mxu0
        %v2345 = vpop.f32.mrb[0].mxu0
        %v2346 = vadd.f32 0.0, %v2345
        %v2347 = vpop.f32.mrb[0].mxu0
        %2348 = vmatprep.mubr.bf16.mxu0 0
        %2349 = vmatmul.mubr.bf16.gmra.mrb[0].mxu0 %v2295
        %v2350 = vpop.f32.mrb[0].mxu0
        %v2351 = vadd.f32 0.0, %v2350
        %v2352 = vpop.f32.mrb[0].mxu0
        %v2353 = vpop.f32.mrb[0].mxu0
        %v2354 = vadd.f32 0.0, %v2353
        %v2355 = vpop.f32.mrb[0].mxu0
        %2356 = vmatprep.mubr.bf16.mxu0 0
        %2357 = vmatmul.mubr.bf16.gmra.mrb[0].mxu0 %v2298
        %v2358 = vpop.f32.mrb[0].mxu0
        %v2359 = vadd.f32 0.0, %v2358
        %v2360 = vpop.f32.mrb[0].mxu0
        %v2361 = vpop.f32.mrb[0].mxu0
        %v2362 = vadd.f32 0.0, %v2361
        %v2363 = vpop.f32.mrb[0].mxu0
        %2364 = vdwg.mxu0
        %v2365 = vadd.f32 %v2058, %v2335
        %v2366 = vadd.f32 %v2059, %v2338
        %v2367 = vadd.f32 %v2060, %v2343
        %v2368 = vadd.f32 %v2061, %v2346
        %v2369 = vadd.f32 %v2062, %v2351
        %v2370 = vadd.f32 %v2063, %v2354
        %v2371 = vadd.f32 %v2064, %v2359
        %v2372 = vadd.f32 %v2065, %v2362
        %s2373 = sadd.s32 4, %s1759
        %s2374 = smul.addr %s2373, 4
        %s2375 = scalar_lea.vmem [#allocation2], %s2374
        %v2376 = vld [vmem:[%s2375] sm:$0xf]
        %v2377 = vld [vmem:[%s2375 + $0x4] sm:$0x1]
        %v2378 = vld [vmem:[%s2375 + $0x8] sm:$0xf]
        %v2379 = vld [vmem:[%s2375 + $0xc] sm:$0x1]
        %v2380 = vld [vmem:[%s2375 + $0x10] sm:$0xf]
        %v2381 = vld [vmem:[%s2375 + $0x14] sm:$0x1]
        %v2382 = vld [vmem:[%s2375 + $0x18] sm:$0xf]
        %v2383 = vld [vmem:[%s2375 + $0x1c] sm:$0x1]
        %v2384 = vld [vmem:[%s2375 + $0x20] sm:$0xf]
        %v2385 = vld [vmem:[%s2375 + $0x24] sm:$0x1]
        %v2386 = vld [vmem:[%s2375 + $0x28] sm:$0xf]
        %v2387 = vld [vmem:[%s2375 + $0x2c] sm:$0x1]
        %v2388 = vld [vmem:[%s2375 + $0x30] sm:$0xf]
        %v2389 = vld [vmem:[%s2375 + $0x34] sm:$0x1]
        %v2390 = vld [vmem:[%s2375 + $0x38] sm:$0xf]
        %v2391 = vld [vmem:[%s2375 + $0x3c] sm:$0x1]
        %v2408 = vunpack.c.l.b16 %v2376
        %v2409 = vunpack.c.l.b16 %v2377
        %v2410 = vunpack.c.l.b16 %v2378
        %v2411 = vunpack.c.l.b16 %v2379
        %v2412 = vunpack.c.l.b16 %v2380
        %v2413 = vunpack.c.l.b16 %v2381
        %v2414 = vunpack.c.l.b16 %v2382
        %v2415 = vunpack.c.l.b16 %v2383
        %v2416 = vunpack.c.l.b16 %v2384
        %v2417 = vunpack.c.l.b16 %v2385
        %v2418 = vunpack.c.l.b16 %v2386
        %v2419 = vunpack.c.l.b16 %v2387
        %v2420 = vunpack.c.l.b16 %v2388
        %v2421 = vunpack.c.l.b16 %v2389
        %v2422 = vunpack.c.l.b16 %v2390
        %v2423 = vunpack.c.l.b16 %v2391
        %v2424 = vpack.c.b16 %v2409, %v2408
        %v2425 = vpack.c.b16 %v2411, %v2410
        %v2426 = vpack.c.b16 %v2413, %v2412
        %v2427 = vpack.c.b16 %v2415, %v2414
        %v2428 = vpack.c.b16 %v2417, %v2416
        %v2429 = vpack.c.b16 %v2419, %v2418
        %v2430 = vpack.c.b16 %v2421, %v2420
        %v2431 = vpack.c.b16 %v2423, %v2422
        %v2433 = vshrl.u32 %v2424, 16
        %v2435 = vshll.u32 %v2424, 16
        %v2437 = vrot.slane %v2435, 1
        %v2438 = vor.u32 %v2433, %v2437
        %v2440 = vshrl.u32 %v2425, 16
        %v2442 = vshll.u32 %v2425, 16
        %v2444 = vrot.slane %v2442, 1
        %v2445 = vor.u32 %v2440, %v2444
        %v2447 = vshrl.u32 %v2426, 16
        %v2449 = vshll.u32 %v2426, 16
        %v2451 = vrot.slane %v2449, 1
        %v2452 = vor.u32 %v2447, %v2451
        %v2454 = vshrl.u32 %v2427, 16
        %v2456 = vshll.u32 %v2427, 16
        %v2458 = vrot.slane %v2456, 1
        %v2459 = vor.u32 %v2454, %v2458
        %v2461 = vshrl.u32 %v2428, 16
        %v2463 = vshll.u32 %v2428, 16
        %v2465 = vrot.slane %v2463, 1
        %v2466 = vor.u32 %v2461, %v2465
        %v2468 = vshrl.u32 %v2429, 16
        %v2470 = vshll.u32 %v2429, 16
        %v2472 = vrot.slane %v2470, 1
        %v2473 = vor.u32 %v2468, %v2472
        %v2475 = vshrl.u32 %v2430, 16
        %v2477 = vshll.u32 %v2430, 16
        %v2479 = vrot.slane %v2477, 1
        %v2480 = vor.u32 %v2475, %v2479
        %v2482 = vshrl.u32 %v2431, 16
        %v2484 = vshll.u32 %v2431, 16
        %v2486 = vrot.slane %v2484, 1
        %v2487 = vor.u32 %v2482, %v2486
        %2488 = vrot.lane.b32.xlu0 %v2438, 32
        %v2489 = vpop.permute.xlu0 %2488
        %2490 = vrot.lane.b32.xlu0 %v2445, 32
        %v2491 = vpop.permute.xlu0 %2490
        %2492 = vrot.lane.b32.xlu0 %v2452, 32
        %v2493 = vpop.permute.xlu0 %2492
        %2494 = vrot.lane.b32.xlu0 %v2459, 32
        %v2495 = vpop.permute.xlu0 %2494
        %2496 = vrot.lane.b32.xlu0 %v2466, 32
        %v2497 = vpop.permute.xlu0 %2496
        %2498 = vrot.lane.b32.xlu0 %v2473, 32
        %v2499 = vpop.permute.xlu0 %2498
        %2500 = vrot.lane.b32.xlu0 %v2480, 32
        %v2501 = vpop.permute.xlu0 %2500
        %2502 = vrot.lane.b32.xlu0 %v2487, 32
        %v2503 = vpop.permute.xlu0 %2502
        %v2504 = vrot.slane %v2424, 1
        %v2505 = vrot.slane %v2425, 1
        %v2506 = vrot.slane %v2426, 1
        %v2507 = vrot.slane %v2427, 1
        %v2508 = vrot.slane %v2428, 1
        %v2509 = vrot.slane %v2429, 1
        %v2510 = vrot.slane %v2430, 1
        %v2511 = vrot.slane %v2431, 1
        %2512 = vrot.lane.b32.xlu0 %v2504, 64
        %v2513 = vpop.permute.xlu0 %2512
        %2514 = vrot.lane.b32.xlu0 %v2505, 64
        %v2515 = vpop.permute.xlu0 %2514
        %2516 = vrot.lane.b32.xlu0 %v2506, 64
        %v2517 = vpop.permute.xlu0 %2516
        %2518 = vrot.lane.b32.xlu0 %v2507, 64
        %v2519 = vpop.permute.xlu0 %2518
        %2520 = vrot.lane.b32.xlu0 %v2508, 64
        %v2521 = vpop.permute.xlu0 %2520
        %2522 = vrot.lane.b32.xlu0 %v2509, 64
        %v2523 = vpop.permute.xlu0 %2522
        %2524 = vrot.lane.b32.xlu0 %v2510, 64
        %v2525 = vpop.permute.xlu0 %2524
        %2526 = vrot.lane.b32.xlu0 %v2511, 64
        %v2527 = vpop.permute.xlu0 %2526
        %v2530 = vsel %vm993, %v2376, %v2489
        %v2533 = vsel %vm993, %v2378, %v2491
        %v2536 = vsel %vm993, %v2380, %v2493
        %v2539 = vsel %vm993, %v2382, %v2495
        %v2542 = vsel %vm993, %v2384, %v2497
        %v2545 = vsel %vm993, %v2386, %v2499
        %v2548 = vsel %vm993, %v2388, %v2501
        %v2551 = vsel %vm993, %v2390, %v2503
        %v2553 = vsel %vm1018, %v2530, %v2513
        %v2555 = vsel %vm1018, %v2533, %v2515
        %v2557 = vsel %vm1018, %v2536, %v2517
        %v2559 = vsel %vm1018, %v2539, %v2519
        %v2561 = vsel %vm1018, %v2542, %v2521
        %v2563 = vsel %vm1018, %v2545, %v2523
        %v2565 = vsel %vm1018, %v2548, %v2525
        %v2567 = vsel %vm1018, %v2551, %v2527
        %s2568 = scalar_lea.vmem [#allocation3], 240
        %v2569 = vld [vmem:[%s2568] sm:$0xff]
        %v2570 = vld [vmem:[%s2568 + $0x8] sm:$0xff]
        %v2571 = vld [vmem:[%s2568 + $0x10] sm:$0xff]
        %v2572 = vld [vmem:[%s2568 + $0x18] sm:$0xff]
        %v2573 = vld [vmem:[%s2568 + $0x20] sm:$0xff]
        %v2574 = vld [vmem:[%s2568 + $0x28] sm:$0xff]
        %v2583 = vunpack.c.l.b16 %v2553
        %v2584 = vunpack.c.l.b16 %v2555
        %v2585 = vunpack.c.l.b16 %v2557
        %v2586 = vunpack.c.l.b16 %v2559
        %v2587 = vunpack.c.l.b16 %v2561
        %v2588 = vunpack.c.l.b16 %v2563
        %v2589 = vunpack.c.l.b16 %v2565
        %v2590 = vunpack.c.l.b16 %v2567
        %v2591 = vpack.c.b16 %v2584, %v2583
        %v2592 = vpack.c.b16 %v2586, %v2585
        %v2593 = vpack.c.b16 %v2588, %v2587
        %v2594 = vpack.c.b16 %v2590, %v2589
        %v2596 = vsel %vm1263, %v2591, 0
        %v2599 = vsel %vm1263, %v2592, 0
        %v2602 = vsel %vm1263, %v2593, 0
        %v2605 = vsel %vm1263, %v2594, 0
        %2607 = vmatprep.subr.bf16.mxu0 0
        %2608 = vmatpush1.bf16.msra.mxu0 %v2569
        %2609 = vmatprep.subr.bf16.mxu0 0
        %2610 = vmatpush1.bf16.msra.mxu0 %v2570
        %2611 = vmatprep.subr.bf16.mxu0 0
        %2612 = vmatpush1.bf16.msra.mxu0 %v2571
        %2613 = vmatprep.subr.bf16.mxu0 0
        %2614 = vmatpush1.bf16.msra.mxu0 %v2572
        %2615 = vmatprep.subr.bf16.mxu0 0
        %2616 = vmatpush1.bf16.msra.mxu0 %v2573
        %2617 = vmatprep.subr.bf16.mxu0 0
        %2618 = vmatpush1.bf16.msra.mxu0 %v2574
        %2619 = vmatprep.subr.bf16.mxu0 0
        %2620 = vmatpush1.bf16.msra.mxu0 0
        %2621 = vmatprep.subr.bf16.mxu0 0
        %2622 = vmatpush1.bf16.msra.mxu0 0
        %2623 = vmatprep.subr.bf16.mxu0 0
        %2624 = vmatpush1.bf16.msra.mxu0 0
        %2625 = vmatprep.subr.bf16.mxu0 0
        %2626 = vmatpush1.bf16.msra.mxu0 0
        %2627 = vmatprep.subr.bf16.mxu0 0
        %2628 = vmatpush1.bf16.msra.mxu0 0
        %2629 = vmatprep.subr.bf16.mxu0 0
        %2630 = vmatpush1.bf16.msra.mxu0 0
        %2631 = vmatprep.subr.bf16.mxu0 0
        %2632 = vmatpush1.bf16.msra.mxu0 0
        %2633 = vmatprep.subr.bf16.mxu0 0
        %2634 = vmatpush1.bf16.msra.mxu0 0
        %2635 = vmatprep.subr.bf16.mxu0 0
        %2636 = vmatpush1.bf16.msra.mxu0 0
        %2637 = vmatprep.subr.bf16.mxu0 0
        %2638 = vmatpush1.bf16.msra.mxu0 0
        %2639 = vmatprep.mubr.bf16.mxu0 0
        %2640 = vmatmul.mubr.bf16.gmra.mrb[0].mxu0 %v2596
        %v2641 = vpop.f32.mrb[0].mxu0
        %v2642 = vadd.f32 0.0, %v2641
        %v2643 = vpop.f32.mrb[0].mxu0
        %v2644 = vpop.f32.mrb[0].mxu0
        %v2645 = vadd.f32 0.0, %v2644
        %v2646 = vpop.f32.mrb[0].mxu0
        %2647 = vmatprep.mubr.bf16.mxu0 0
        %2648 = vmatmul.mubr.bf16.gmra.mrb[0].mxu0 %v2599
        %v2649 = vpop.f32.mrb[0].mxu0
        %v2650 = vadd.f32 0.0, %v2649
        %v2651 = vpop.f32.mrb[0].mxu0
        %v2652 = vpop.f32.mrb[0].mxu0
        %v2653 = vadd.f32 0.0, %v2652
        %v2654 = vpop.f32.mrb[0].mxu0
        %2655 = vmatprep.mubr.bf16.mxu0 0
        %2656 = vmatmul.mubr.bf16.gmra.mrb[0].mxu0 %v2602
        %v2657 = vpop.f32.mrb[0].mxu0
        %v2658 = vadd.f32 0.0, %v2657
        %v2659 = vpop.f32.mrb[0].mxu0
        %v2660 = vpop.f32.mrb[0].mxu0
        %v2661 = vadd.f32 0.0, %v2660
        %v2662 = vpop.f32.mrb[0].mxu0
        %2663 = vmatprep.mubr.bf16.mxu0 0
        %2664 = vmatmul.mubr.bf16.gmra.mrb[0].mxu0 %v2605
        %v2665 = vpop.f32.mrb[0].mxu0
        %v2666 = vadd.f32 0.0, %v2665
        %v2667 = vpop.f32.mrb[0].mxu0
        %v2668 = vpop.f32.mrb[0].mxu0
        %v2669 = vadd.f32 0.0, %v2668
        %v2670 = vpop.f32.mrb[0].mxu0
        %2671 = vdwg.mxu0
        %v2672 = vadd.f32 %v2365, %v2642
        %v2673 = vadd.f32 %v2366, %v2645
        %v2674 = vadd.f32 %v2367, %v2650
        %v2675 = vadd.f32 %v2368, %v2653
        %v2676 = vadd.f32 %v2369, %v2658
        %v2677 = vadd.f32 %v2370, %v2661
        %v2678 = vadd.f32 %v2371, %v2666
        %v2679 = vadd.f32 %v2372, %v2669
        %s2680 = sadd.s32 %s22, 3
        %p2681 = scmp.lt.s32.totalorder %s2680, 0
        %s2682 = ssub.s32 0, %s2680
        %s2683 = scalar_select %p2681, %s2682, %s2680
        %s2684 = sdiv.u32.pop %s2683, 3
        %s2685 = srem.u32.pop %s2683, 3
        %s2686 = ssub.s32 0, %s2685
        %s2687 = scalar_select %p2681, %s2686, %s2685
        %p2688 = scmp.ne.s32.totalorder %s2687, 0
        %p2689 = scmp.lt.s32.totalorder %s2687, 0
        %p2690 = pnand %p2689, %p2688
        %p2691 = pneg %p2690
        %s2692 = sadd.s32 %s2687, 3
        %s2693 = scalar_select %p2691, %s2692, %s2687
        %s2694 = smul.u32 %s2693, 20
        %s2695 = smul.addr %s2694, 4
        %s2696 = scalar_lea.vmem [#allocation2], %s2695
        %v2697 = vld [vmem:[%s2696] sm:$0xf]
        %v2698 = vld [vmem:[%s2696 + $0x4] sm:$0x1]
        %v2699 = vld [vmem:[%s2696 + $0x8] sm:$0xf]
        %v2700 = vld [vmem:[%s2696 + $0xc] sm:$0x1]
        %v2701 = vld [vmem:[%s2696 + $0x10] sm:$0xf]
        %v2702 = vld [vmem:[%s2696 + $0x14] sm:$0x1]
        %v2703 = vld [vmem:[%s2696 + $0x18] sm:$0xf]
        %v2704 = vld [vmem:[%s2696 + $0x1c] sm:$0x1]
        %v2705 = vld [vmem:[%s2696 + $0x20] sm:$0xf]
        %v2706 = vld [vmem:[%s2696 + $0x24] sm:$0x1]
        %v2707 = vld [vmem:[%s2696 + $0x28] sm:$0xf]
        %v2708 = vld [vmem:[%s2696 + $0x2c] sm:$0x1]
        %v2709 = vld [vmem:[%s2696 + $0x30] sm:$0xf]
        %v2710 = vld [vmem:[%s2696 + $0x34] sm:$0x1]
        %v2711 = vld [vmem:[%s2696 + $0x38] sm:$0xf]
        %v2712 = vld [vmem:[%s2696 + $0x3c] sm:$0x1]
        %v2729 = vunpack.c.l.b16 %v2697
        %v2730 = vunpack.c.l.b16 %v2698
        %v2731 = vunpack.c.l.b16 %v2699
        %v2732 = vunpack.c.l.b16 %v2700
        %v2733 = vunpack.c.l.b16 %v2701
        %v2734 = vunpack.c.l.b16 %v2702
        %v2735 = vunpack.c.l.b16 %v2703
        %v2736 = vunpack.c.l.b16 %v2704
        %v2737 = vunpack.c.l.b16 %v2705
        %v2738 = vunpack.c.l.b16 %v2706
        %v2739 = vunpack.c.l.b16 %v2707
        %v2740 = vunpack.c.l.b16 %v2708
        %v2741 = vunpack.c.l.b16 %v2709
        %v2742 = vunpack.c.l.b16 %v2710
        %v2743 = vunpack.c.l.b16 %v2711
        %v2744 = vunpack.c.l.b16 %v2712
        %v2745 = vpack.c.b16 %v2730, %v2729
        %v2746 = vpack.c.b16 %v2732, %v2731
        %v2747 = vpack.c.b16 %v2734, %v2733
        %v2748 = vpack.c.b16 %v2736, %v2735
        %v2749 = vpack.c.b16 %v2738, %v2737
        %v2750 = vpack.c.b16 %v2740, %v2739
        %v2751 = vpack.c.b16 %v2742, %v2741
        %v2752 = vpack.c.b16 %v2744, %v2743
        %v2754 = vshrl.u32 %v2745, 16
        %v2756 = vshll.u32 %v2745, 16
        %v2758 = vrot.slane %v2756, 1
        %v2759 = vor.u32 %v2754, %v2758
        %v2761 = vshrl.u32 %v2746, 16
        %v2763 = vshll.u32 %v2746, 16
        %v2765 = vrot.slane %v2763, 1
        %v2766 = vor.u32 %v2761, %v2765
        %v2768 = vshrl.u32 %v2747, 16
        %v2770 = vshll.u32 %v2747, 16
        %v2772 = vrot.slane %v2770, 1
        %v2773 = vor.u32 %v2768, %v2772
        %v2775 = vshrl.u32 %v2748, 16
        %v2777 = vshll.u32 %v2748, 16
        %v2779 = vrot.slane %v2777, 1
        %v2780 = vor.u32 %v2775, %v2779
        %v2782 = vshrl.u32 %v2749, 16
        %v2784 = vshll.u32 %v2749, 16
        %v2786 = vrot.slane %v2784, 1
        %v2787 = vor.u32 %v2782, %v2786
        %v2789 = vshrl.u32 %v2750, 16
        %v2791 = vshll.u32 %v2750, 16
        %v2793 = vrot.slane %v2791, 1
        %v2794 = vor.u32 %v2789, %v2793
        %v2796 = vshrl.u32 %v2751, 16
        %v2798 = vshll.u32 %v2751, 16
        %v2800 = vrot.slane %v2798, 1
        %v2801 = vor.u32 %v2796, %v2800
        %v2803 = vshrl.u32 %v2752, 16
        %v2805 = vshll.u32 %v2752, 16
        %v2807 = vrot.slane %v2805, 1
        %v2808 = vor.u32 %v2803, %v2807
        %2809 = vrot.lane.b32.xlu0 %v2759, 32
        %v2810 = vpop.permute.xlu0 %2809
        %2811 = vrot.lane.b32.xlu0 %v2766, 32
        %v2812 = vpop.permute.xlu0 %2811
        %2813 = vrot.lane.b32.xlu0 %v2773, 32
        %v2814 = vpop.permute.xlu0 %2813
        %2815 = vrot.lane.b32.xlu0 %v2780, 32
        %v2816 = vpop.permute.xlu0 %2815
        %2817 = vrot.lane.b32.xlu0 %v2787, 32
        %v2818 = vpop.permute.xlu0 %2817
        %2819 = vrot.lane.b32.xlu0 %v2794, 32
        %v2820 = vpop.permute.xlu0 %2819
        %2821 = vrot.lane.b32.xlu0 %v2801, 32
        %v2822 = vpop.permute.xlu0 %2821
        %2823 = vrot.lane.b32.xlu0 %v2808, 32
        %v2824 = vpop.permute.xlu0 %2823
        %v2825 = vrot.slane %v2745, 1
        %v2826 = vrot.slane %v2746, 1
        %v2827 = vrot.slane %v2747, 1
        %v2828 = vrot.slane %v2748, 1
        %v2829 = vrot.slane %v2749, 1
        %v2830 = vrot.slane %v2750, 1
        %v2831 = vrot.slane %v2751, 1
        %v2832 = vrot.slane %v2752, 1
        %2833 = vrot.lane.b32.xlu0 %v2825, 64
        %v2834 = vpop.permute.xlu0 %2833
        %2835 = vrot.lane.b32.xlu0 %v2826, 64
        %v2836 = vpop.permute.xlu0 %2835
        %2837 = vrot.lane.b32.xlu0 %v2827, 64
        %v2838 = vpop.permute.xlu0 %2837
        %2839 = vrot.lane.b32.xlu0 %v2828, 64
        %v2840 = vpop.permute.xlu0 %2839
        %2841 = vrot.lane.b32.xlu0 %v2829, 64
        %v2842 = vpop.permute.xlu0 %2841
        %2843 = vrot.lane.b32.xlu0 %v2830, 64
        %v2844 = vpop.permute.xlu0 %2843
        %2845 = vrot.lane.b32.xlu0 %v2831, 64
        %v2846 = vpop.permute.xlu0 %2845
        %2847 = vrot.lane.b32.xlu0 %v2832, 64
        %v2848 = vpop.permute.xlu0 %2847
        %v2851 = vsel %vm993, %v2697, %v2810
        %v2854 = vsel %vm993, %v2699, %v2812
        %v2857 = vsel %vm993, %v2701, %v2814
        %v2860 = vsel %vm993, %v2703, %v2816
        %v2863 = vsel %vm993, %v2705, %v2818
        %v2866 = vsel %vm993, %v2707, %v2820
        %v2869 = vsel %vm993, %v2709, %v2822
        %v2872 = vsel %vm993, %v2711, %v2824
        %v2874 = vsel %vm1018, %v2851, %v2834
        %v2876 = vsel %vm1018, %v2854, %v2836
        %v2878 = vsel %vm1018, %v2857, %v2838
        %v2880 = vsel %vm1018, %v2860, %v2840
        %v2882 = vsel %vm1018, %v2863, %v2842
        %v2884 = vsel %vm1018, %v2866, %v2844
        %v2886 = vsel %vm1018, %v2869, %v2846
        %v2888 = vsel %vm1018, %v2872, %v2848
        %s2889 = scalar_lea.vmem [#allocation3], 288
        %v2890 = vld [vmem:[%s2889] sm:$0xff]
        %v2891 = vld [vmem:[%s2889 + $0x8] sm:$0xff]
        %v2892 = vld [vmem:[%s2889 + $0x10] sm:$0xff]
        %v2893 = vld [vmem:[%s2889 + $0x18] sm:$0xff]
        %v2894 = vld [vmem:[%s2889 + $0x20] sm:$0xff]
        %v2895 = vld [vmem:[%s2889 + $0x28] sm:$0xff]
        %v2904 = vunpack.c.l.b16 %v2874
        %v2905 = vunpack.c.l.b16 %v2876
        %v2906 = vunpack.c.l.b16 %v2878
        %v2907 = vunpack.c.l.b16 %v2880
        %v2908 = vunpack.c.l.b16 %v2882
        %v2909 = vunpack.c.l.b16 %v2884
        %v2910 = vunpack.c.l.b16 %v2886
        %v2911 = vunpack.c.l.b16 %v2888
        %v2912 = vpack.c.b16 %v2905, %v2904
        %v2913 = vpack.c.b16 %v2907, %v2906
        %v2914 = vpack.c.b16 %v2909, %v2908
        %v2915 = vpack.c.b16 %v2911, %v2910
        %v2917 = vsel %vm1263, %v2912, 0
        %v2920 = vsel %vm1263, %v2913, 0
        %v2923 = vsel %vm1263, %v2914, 0
        %v2926 = vsel %vm1263, %v2915, 0
        %2928 = vmatprep.subr.bf16.mxu0 0
        %2929 = vmatpush1.bf16.msra.mxu0 %v2890
        %2930 = vmatprep.subr.bf16.mxu0 0
        %2931 = vmatpush1.bf16.msra.mxu0 %v2891
        %2932 = vmatprep.subr.bf16.mxu0 0
        %2933 = vmatpush1.bf16.msra.mxu0 %v2892
        %2934 = vmatprep.subr.bf16.mxu0 0
        %2935 = vmatpush1.bf16.msra.mxu0 %v2893
        %2936 = vmatprep.subr.bf16.mxu0 0
        %2937 = vmatpush1.bf16.msra.mxu0 %v2894
        %2938 = vmatprep.subr.bf16.mxu0 0
        %2939 = vmatpush1.bf16.msra.mxu0 %v2895
        %2940 = vmatprep.subr.bf16.mxu0 0
        %2941 = vmatpush1.bf16.msra.mxu0 0
        %2942 = vmatprep.subr.bf16.mxu0 0
        %2943 = vmatpush1.bf16.msra.mxu0 0
        %2944 = vmatprep.subr.bf16.mxu0 0
        %2945 = vmatpush1.bf16.msra.mxu0 0
        %2946 = vmatprep.subr.bf16.mxu0 0
        %2947 = vmatpush1.bf16.msra.mxu0 0
        %2948 = vmatprep.subr.bf16.mxu0 0
        %2949 = vmatpush1.bf16.msra.mxu0 0
        %2950 = vmatprep.subr.bf16.mxu0 0
        %2951 = vmatpush1.bf16.msra.mxu0 0
        %2952 = vmatprep.subr.bf16.mxu0 0
        %2953 = vmatpush1.bf16.msra.mxu0 0
        %2954 = vmatprep.subr.bf16.mxu0 0
        %2955 = vmatpush1.bf16.msra.mxu0 0
        %2956 = vmatprep.subr.bf16.mxu0 0
        %2957 = vmatpush1.bf16.msra.mxu0 0
        %2958 = vmatprep.subr.bf16.mxu0 0
        %2959 = vmatpush1.bf16.msra.mxu0 0
        %2960 = vmatprep.mubr.bf16.mxu0 0
        %2961 = vmatmul.mubr.bf16.gmra.mrb[0].mxu0 %v2917
        %v2962 = vpop.f32.mrb[0].mxu0
        %v2963 = vadd.f32 0.0, %v2962
        %v2964 = vpop.f32.mrb[0].mxu0
        %v2965 = vpop.f32.mrb[0].mxu0
        %v2966 = vadd.f32 0.0, %v2965
        %v2967 = vpop.f32.mrb[0].mxu0
        %2968 = vmatprep.mubr.bf16.mxu0 0
        %2969 = vmatmul.mubr.bf16.gmra.mrb[0].mxu0 %v2920
        %v2970 = vpop.f32.mrb[0].mxu0
        %v2971 = vadd.f32 0.0, %v2970
        %v2972 = vpop.f32.mrb[0].mxu0
        %v2973 = vpop.f32.mrb[0].mxu0
        %v2974 = vadd.f32 0.0, %v2973
        %v2975 = vpop.f32.mrb[0].mxu0
        %2976 = vmatprep.mubr.bf16.mxu0 0
        %2977 = vmatmul.mubr.bf16.gmra.mrb[0].mxu0 %v2923
        %v2978 = vpop.f32.mrb[0].mxu0
        %v2979 = vadd.f32 0.0, %v2978
        %v2980 = vpop.f32.mrb[0].mxu0
        %v2981 = vpop.f32.mrb[0].mxu0
        %v2982 = vadd.f32 0.0, %v2981
        %v2983 = vpop.f32.mrb[0].mxu0
        %2984 = vmatprep.mubr.bf16.mxu0 0
        %2985 = vmatmul.mubr.bf16.gmra.mrb[0].mxu0 %v2926
        %v2986 = vpop.f32.mrb[0].mxu0
        %v2987 = vadd.f32 0.0, %v2986
        %v2988 = vpop.f32.mrb[0].mxu0
        %v2989 = vpop.f32.mrb[0].mxu0
        %v2990 = vadd.f32 0.0, %v2989
        %v2991 = vpop.f32.mrb[0].mxu0
        %2992 = vdwg.mxu0
        %v2993 = vadd.f32 %v2672, %v2963
        %v2994 = vadd.f32 %v2673, %v2966
        %v2995 = vadd.f32 %v2674, %v2971
        %v2996 = vadd.f32 %v2675, %v2974
        %v2997 = vadd.f32 %v2676, %v2979
        %v2998 = vadd.f32 %v2677, %v2982
        %v2999 = vadd.f32 %v2678, %v2987
        %v3000 = vadd.f32 %v2679, %v2990
        %s3001 = sadd.s32 2, %s2694
        %s3002 = smul.addr %s3001, 4
        %s3003 = scalar_lea.vmem [#allocation2], %s3002
        %v3004 = vld [vmem:[%s3003] sm:$0xf]
        %v3005 = vld [vmem:[%s3003 + $0x4] sm:$0x1]
        %v3006 = vld [vmem:[%s3003 + $0x8] sm:$0xf]
        %v3007 = vld [vmem:[%s3003 + $0xc] sm:$0x1]
        %v3008 = vld [vmem:[%s3003 + $0x10] sm:$0xf]
        %v3009 = vld [vmem:[%s3003 + $0x14] sm:$0x1]
        %v3010 = vld [vmem:[%s3003 + $0x18] sm:$0xf]
        %v3011 = vld [vmem:[%s3003 + $0x1c] sm:$0x1]
        %v3012 = vld [vmem:[%s3003 + $0x20] sm:$0xf]
        %v3013 = vld [vmem:[%s3003 + $0x24] sm:$0x1]
        %v3014 = vld [vmem:[%s3003 + $0x28] sm:$0xf]
        %v3015 = vld [vmem:[%s3003 + $0x2c] sm:$0x1]
        %v3016 = vld [vmem:[%s3003 + $0x30] sm:$0xf]
        %v3017 = vld [vmem:[%s3003 + $0x34] sm:$0x1]
        %v3018 = vld [vmem:[%s3003 + $0x38] sm:$0xf]
        %v3019 = vld [vmem:[%s3003 + $0x3c] sm:$0x1]
        %v3036 = vunpack.c.l.b16 %v3004
        %v3037 = vunpack.c.l.b16 %v3005
        %v3038 = vunpack.c.l.b16 %v3006
        %v3039 = vunpack.c.l.b16 %v3007
        %v3040 = vunpack.c.l.b16 %v3008
        %v3041 = vunpack.c.l.b16 %v3009
        %v3042 = vunpack.c.l.b16 %v3010
        %v3043 = vunpack.c.l.b16 %v3011
        %v3044 = vunpack.c.l.b16 %v3012
        %v3045 = vunpack.c.l.b16 %v3013
        %v3046 = vunpack.c.l.b16 %v3014
        %v3047 = vunpack.c.l.b16 %v3015
        %v3048 = vunpack.c.l.b16 %v3016
        %v3049 = vunpack.c.l.b16 %v3017
        %v3050 = vunpack.c.l.b16 %v3018
        %v3051 = vunpack.c.l.b16 %v3019
        %v3052 = vpack.c.b16 %v3037, %v3036
        %v3053 = vpack.c.b16 %v3039, %v3038
        %v3054 = vpack.c.b16 %v3041, %v3040
        %v3055 = vpack.c.b16 %v3043, %v3042
        %v3056 = vpack.c.b16 %v3045, %v3044
        %v3057 = vpack.c.b16 %v3047, %v3046
        %v3058 = vpack.c.b16 %v3049, %v3048
        %v3059 = vpack.c.b16 %v3051, %v3050
        %v3061 = vshrl.u32 %v3052, 16
        %v3063 = vshll.u32 %v3052, 16
        %v3065 = vrot.slane %v3063, 1
        %v3066 = vor.u32 %v3061, %v3065
        %v3068 = vshrl.u32 %v3053, 16
        %v3070 = vshll.u32 %v3053, 16
        %v3072 = vrot.slane %v3070, 1
        %v3073 = vor.u32 %v3068, %v3072
        %v3075 = vshrl.u32 %v3054, 16
        %v3077 = vshll.u32 %v3054, 16
        %v3079 = vrot.slane %v3077, 1
        %v3080 = vor.u32 %v3075, %v3079
        %v3082 = vshrl.u32 %v3055, 16
        %v3084 = vshll.u32 %v3055, 16
        %v3086 = vrot.slane %v3084, 1
        %v3087 = vor.u32 %v3082, %v3086
        %v3089 = vshrl.u32 %v3056, 16
        %v3091 = vshll.u32 %v3056, 16
        %v3093 = vrot.slane %v3091, 1
        %v3094 = vor.u32 %v3089, %v3093
        %v3096 = vshrl.u32 %v3057, 16
        %v3098 = vshll.u32 %v3057, 16
        %v3100 = vrot.slane %v3098, 1
        %v3101 = vor.u32 %v3096, %v3100
        %v3103 = vshrl.u32 %v3058, 16
        %v3105 = vshll.u32 %v3058, 16
        %v3107 = vrot.slane %v3105, 1
        %v3108 = vor.u32 %v3103, %v3107
        %v3110 = vshrl.u32 %v3059, 16
        %v3112 = vshll.u32 %v3059, 16
        %v3114 = vrot.slane %v3112, 1
        %v3115 = vor.u32 %v3110, %v3114
        %3116 = vrot.lane.b32.xlu0 %v3066, 32
        %v3117 = vpop.permute.xlu0 %3116
        %3118 = vrot.lane.b32.xlu0 %v3073, 32
        %v3119 = vpop.permute.xlu0 %3118
        %3120 = vrot.lane.b32.xlu0 %v3080, 32
        %v3121 = vpop.permute.xlu0 %3120
        %3122 = vrot.lane.b32.xlu0 %v3087, 32
        %v3123 = vpop.permute.xlu0 %3122
        %3124 = vrot.lane.b32.xlu0 %v3094, 32
        %v3125 = vpop.permute.xlu0 %3124
        %3126 = vrot.lane.b32.xlu0 %v3101, 32
        %v3127 = vpop.permute.xlu0 %3126
        %3128 = vrot.lane.b32.xlu0 %v3108, 32
        %v3129 = vpop.permute.xlu0 %3128
        %3130 = vrot.lane.b32.xlu0 %v3115, 32
        %v3131 = vpop.permute.xlu0 %3130
        %v3132 = vrot.slane %v3052, 1
        %v3133 = vrot.slane %v3053, 1
        %v3134 = vrot.slane %v3054, 1
        %v3135 = vrot.slane %v3055, 1
        %v3136 = vrot.slane %v3056, 1
        %v3137 = vrot.slane %v3057, 1
        %v3138 = vrot.slane %v3058, 1
        %v3139 = vrot.slane %v3059, 1
        %3140 = vrot.lane.b32.xlu0 %v3132, 64
        %v3141 = vpop.permute.xlu0 %3140
        %3142 = vrot.lane.b32.xlu0 %v3133, 64
        %v3143 = vpop.permute.xlu0 %3142
        %3144 = vrot.lane.b32.xlu0 %v3134, 64
        %v3145 = vpop.permute.xlu0 %3144
        %3146 = vrot.lane.b32.xlu0 %v3135, 64
        %v3147 = vpop.permute.xlu0 %3146
        %3148 = vrot.lane.b32.xlu0 %v3136, 64
        %v3149 = vpop.permute.xlu0 %3148
        %3150 = vrot.lane.b32.xlu0 %v3137, 64
        %v3151 = vpop.permute.xlu0 %3150
        %3152 = vrot.lane.b32.xlu0 %v3138, 64
        %v3153 = vpop.permute.xlu0 %3152
        %3154 = vrot.lane.b32.xlu0 %v3139, 64
        %v3155 = vpop.permute.xlu0 %3154
        %v3158 = vsel %vm993, %v3004, %v3117
        %v3161 = vsel %vm993, %v3006, %v3119
        %v3164 = vsel %vm993, %v3008, %v3121
        %v3167 = vsel %vm993, %v3010, %v3123
        %v3170 = vsel %vm993, %v3012, %v3125
        %v3173 = vsel %vm993, %v3014, %v3127
        %v3176 = vsel %vm993, %v3016, %v3129
        %v3179 = vsel %vm993, %v3018, %v3131
        %v3181 = vsel %vm1018, %v3158, %v3141
        %v3183 = vsel %vm1018, %v3161, %v3143
        %v3185 = vsel %vm1018, %v3164, %v3145
        %v3187 = vsel %vm1018, %v3167, %v3147
        %v3189 = vsel %vm1018, %v3170, %v3149
        %v3191 = vsel %vm1018, %v3173, %v3151
        %v3193 = vsel %vm1018, %v3176, %v3153
        %v3195 = vsel %vm1018, %v3179, %v3155
        %s3196 = scalar_lea.vmem [#allocation3], 336
        %v3197 = vld [vmem:[%s3196] sm:$0xff]
        %v3198 = vld [vmem:[%s3196 + $0x8] sm:$0xff]
        %v3199 = vld [vmem:[%s3196 + $0x10] sm:$0xff]
        %v3200 = vld [vmem:[%s3196 + $0x18] sm:$0xff]
        %v3201 = vld [vmem:[%s3196 + $0x20] sm:$0xff]
        %v3202 = vld [vmem:[%s3196 + $0x28] sm:$0xff]
        %v3211 = vunpack.c.l.b16 %v3181
        %v3212 = vunpack.c.l.b16 %v3183
        %v3213 = vunpack.c.l.b16 %v3185
        %v3214 = vunpack.c.l.b16 %v3187
        %v3215 = vunpack.c.l.b16 %v3189
        %v3216 = vunpack.c.l.b16 %v3191
        %v3217 = vunpack.c.l.b16 %v3193
        %v3218 = vunpack.c.l.b16 %v3195
        %v3219 = vpack.c.b16 %v3212, %v3211
        %v3220 = vpack.c.b16 %v3214, %v3213
        %v3221 = vpack.c.b16 %v3216, %v3215
        %v3222 = vpack.c.b16 %v3218, %v3217
        %v3224 = vsel %vm1263, %v3219, 0
        %v3227 = vsel %vm1263, %v3220, 0
        %v3230 = vsel %vm1263, %v3221, 0
        %v3233 = vsel %vm1263, %v3222, 0
        %3235 = vmatprep.subr.bf16.mxu0 0
        %3236 = vmatpush1.bf16.msra.mxu0 %v3197
        %3237 = vmatprep.subr.bf16.mxu0 0
        %3238 = vmatpush1.bf16.msra.mxu0 %v3198
        %3239 = vmatprep.subr.bf16.mxu0 0
        %3240 = vmatpush1.bf16.msra.mxu0 %v3199
        %3241 = vmatprep.subr.bf16.mxu0 0
        %3242 = vmatpush1.bf16.msra.mxu0 %v3200
        %3243 = vmatprep.subr.bf16.mxu0 0
        %3244 = vmatpush1.bf16.msra.mxu0 %v3201
        %3245 = vmatprep.subr.bf16.mxu0 0
        %3246 = vmatpush1.bf16.msra.mxu0 %v3202
        %3247 = vmatprep.subr.bf16.mxu0 0
        %3248 = vmatpush1.bf16.msra.mxu0 0
        %3249 = vmatprep.subr.bf16.mxu0 0
        %3250 = vmatpush1.bf16.msra.mxu0 0
        %3251 = vmatprep.subr.bf16.mxu0 0
        %3252 = vmatpush1.bf16.msra.mxu0 0
        %3253 = vmatprep.subr.bf16.mxu0 0
        %3254 = vmatpush1.bf16.msra.mxu0 0
        %3255 = vmatprep.subr.bf16.mxu0 0
        %3256 = vmatpush1.bf16.msra.mxu0 0
        %3257 = vmatprep.subr.bf16.mxu0 0
        %3258 = vmatpush1.bf16.msra.mxu0 0
        %3259 = vmatprep.subr.bf16.mxu0 0
        %3260 = vmatpush1.bf16.msra.mxu0 0
        %3261 = vmatprep.subr.bf16.mxu0 0
        %3262 = vmatpush1.bf16.msra.mxu0 0
        %3263 = vmatprep.subr.bf16.mxu0 0
        %3264 = vmatpush1.bf16.msra.mxu0 0
        %3265 = vmatprep.subr.bf16.mxu0 0
        %3266 = vmatpush1.bf16.msra.mxu0 0
        %3267 = vmatprep.mubr.bf16.mxu0 0
        %3268 = vmatmul.mubr.bf16.gmra.mrb[0].mxu0 %v3224
        %v3269 = vpop.f32.mrb[0].mxu0
        %v3270 = vadd.f32 0.0, %v3269
        %v3271 = vpop.f32.mrb[0].mxu0
        %v3272 = vpop.f32.mrb[0].mxu0
        %v3273 = vadd.f32 0.0, %v3272
        %v3274 = vpop.f32.mrb[0].mxu0
        %3275 = vmatprep.mubr.bf16.mxu0 0
        %3276 = vmatmul.mubr.bf16.gmra.mrb[0].mxu0 %v3227
        %v3277 = vpop.f32.mrb[0].mxu0
        %v3278 = vadd.f32 0.0, %v3277
        %v3279 = vpop.f32.mrb[0].mxu0
        %v3280 = vpop.f32.mrb[0].mxu0
        %v3281 = vadd.f32 0.0, %v3280
        %v3282 = vpop.f32.mrb[0].mxu0
        %3283 = vmatprep.mubr.bf16.mxu0 0
        %3284 = vmatmul.mubr.bf16.gmra.mrb[0].mxu0 %v3230
        %v3285 = vpop.f32.mrb[0].mxu0
        %v3286 = vadd.f32 0.0, %v3285
        %v3287 = vpop.f32.mrb[0].mxu0
        %v3288 = vpop.f32.mrb[0].mxu0
        %v3289 = vadd.f32 0.0, %v3288
        %v3290 = vpop.f32.mrb[0].mxu0
        %3291 = vmatprep.mubr.bf16.mxu0 0
        %3292 = vmatmul.mubr.bf16.gmra.mrb[0].mxu0 %v3233
        %v3293 = vpop.f32.mrb[0].mxu0
        %v3294 = vadd.f32 0.0, %v3293
        %v3295 = vpop.f32.mrb[0].mxu0
        %v3296 = vpop.f32.mrb[0].mxu0
        %v3297 = vadd.f32 0.0, %v3296
        %v3298 = vpop.f32.mrb[0].mxu0
        %3299 = vdwg.mxu0
        %v3300 = vadd.f32 %v2993, %v3270
        %v3301 = vadd.f32 %v2994, %v3273
        %v3302 = vadd.f32 %v2995, %v3278
        %v3303 = vadd.f32 %v2996, %v3281
        %v3304 = vadd.f32 %v2997, %v3286
        %v3305 = vadd.f32 %v2998, %v3289
        %v3306 = vadd.f32 %v2999, %v3294
        %v3307 = vadd.f32 %v3000, %v3297
        %s3308 = sadd.s32 4, %s2694
        %s3309 = smul.addr %s3308, 4
        %s3310 = scalar_lea.vmem [#allocation2], %s3309
        %v3311 = vld [vmem:[%s3310] sm:$0xf]
        %v3312 = vld [vmem:[%s3310 + $0x4] sm:$0x1]
        %v3313 = vld [vmem:[%s3310 + $0x8] sm:$0xf]
        %v3314 = vld [vmem:[%s3310 + $0xc] sm:$0x1]
        %v3315 = vld [vmem:[%s3310 + $0x10] sm:$0xf]
        %v3316 = vld [vmem:[%s3310 + $0x14] sm:$0x1]
        %v3317 = vld [vmem:[%s3310 + $0x18] sm:$0xf]
        %v3318 = vld [vmem:[%s3310 + $0x1c] sm:$0x1]
        %v3319 = vld [vmem:[%s3310 + $0x20] sm:$0xf]
        %v3320 = vld [vmem:[%s3310 + $0x24] sm:$0x1]
        %v3321 = vld [vmem:[%s3310 + $0x28] sm:$0xf]
        %v3322 = vld [vmem:[%s3310 + $0x2c] sm:$0x1]
        %v3323 = vld [vmem:[%s3310 + $0x30] sm:$0xf]
        %v3324 = vld [vmem:[%s3310 + $0x34] sm:$0x1]
        %v3325 = vld [vmem:[%s3310 + $0x38] sm:$0xf]
        %v3326 = vld [vmem:[%s3310 + $0x3c] sm:$0x1]
        %v3343 = vunpack.c.l.b16 %v3311
        %v3344 = vunpack.c.l.b16 %v3312
        %v3345 = vunpack.c.l.b16 %v3313
        %v3346 = vunpack.c.l.b16 %v3314
        %v3347 = vunpack.c.l.b16 %v3315
        %v3348 = vunpack.c.l.b16 %v3316
        %v3349 = vunpack.c.l.b16 %v3317
        %v3350 = vunpack.c.l.b16 %v3318
        %v3351 = vunpack.c.l.b16 %v3319
        %v3352 = vunpack.c.l.b16 %v3320
        %v3353 = vunpack.c.l.b16 %v3321
        %v3354 = vunpack.c.l.b16 %v3322
        %v3355 = vunpack.c.l.b16 %v3323
        %v3356 = vunpack.c.l.b16 %v3324
        %v3357 = vunpack.c.l.b16 %v3325
        %v3358 = vunpack.c.l.b16 %v3326
        %v3359 = vpack.c.b16 %v3344, %v3343
        %v3360 = vpack.c.b16 %v3346, %v3345
        %v3361 = vpack.c.b16 %v3348, %v3347
        %v3362 = vpack.c.b16 %v3350, %v3349
        %v3363 = vpack.c.b16 %v3352, %v3351
        %v3364 = vpack.c.b16 %v3354, %v3353
        %v3365 = vpack.c.b16 %v3356, %v3355
        %v3366 = vpack.c.b16 %v3358, %v3357
        %v3368 = vshrl.u32 %v3359, 16
        %v3370 = vshll.u32 %v3359, 16
        %v3372 = vrot.slane %v3370, 1
        %v3373 = vor.u32 %v3368, %v3372
        %v3375 = vshrl.u32 %v3360, 16
        %v3377 = vshll.u32 %v3360, 16
        %v3379 = vrot.slane %v3377, 1
        %v3380 = vor.u32 %v3375, %v3379
        %v3382 = vshrl.u32 %v3361, 16
        %v3384 = vshll.u32 %v3361, 16
        %v3386 = vrot.slane %v3384, 1
        %v3387 = vor.u32 %v3382, %v3386
        %v3389 = vshrl.u32 %v3362, 16
        %v3391 = vshll.u32 %v3362, 16
        %v3393 = vrot.slane %v3391, 1
        %v3394 = vor.u32 %v3389, %v3393
        %v3396 = vshrl.u32 %v3363, 16
        %v3398 = vshll.u32 %v3363, 16
        %v3400 = vrot.slane %v3398, 1
        %v3401 = vor.u32 %v3396, %v3400
        %v3403 = vshrl.u32 %v3364, 16
        %v3405 = vshll.u32 %v3364, 16
        %v3407 = vrot.slane %v3405, 1
        %v3408 = vor.u32 %v3403, %v3407
        %v3410 = vshrl.u32 %v3365, 16
        %v3412 = vshll.u32 %v3365, 16
        %v3414 = vrot.slane %v3412, 1
        %v3415 = vor.u32 %v3410, %v3414
        %v3417 = vshrl.u32 %v3366, 16
        %v3419 = vshll.u32 %v3366, 16
        %v3421 = vrot.slane %v3419, 1
        %v3422 = vor.u32 %v3417, %v3421
        %3423 = vrot.lane.b32.xlu0 %v3373, 32
        %v3424 = vpop.permute.xlu0 %3423
        %3425 = vrot.lane.b32.xlu0 %v3380, 32
        %v3426 = vpop.permute.xlu0 %3425
        %3427 = vrot.lane.b32.xlu0 %v3387, 32
        %v3428 = vpop.permute.xlu0 %3427
        %3429 = vrot.lane.b32.xlu0 %v3394, 32
        %v3430 = vpop.permute.xlu0 %3429
        %3431 = vrot.lane.b32.xlu0 %v3401, 32
        %v3432 = vpop.permute.xlu0 %3431
        %3433 = vrot.lane.b32.xlu0 %v3408, 32
        %v3434 = vpop.permute.xlu0 %3433
        %3435 = vrot.lane.b32.xlu0 %v3415, 32
        %v3436 = vpop.permute.xlu0 %3435
        %3437 = vrot.lane.b32.xlu0 %v3422, 32
        %v3438 = vpop.permute.xlu0 %3437
        %v3439 = vrot.slane %v3359, 1
        %v3440 = vrot.slane %v3360, 1
        %v3441 = vrot.slane %v3361, 1
        %v3442 = vrot.slane %v3362, 1
        %v3443 = vrot.slane %v3363, 1
        %v3444 = vrot.slane %v3364, 1
        %v3445 = vrot.slane %v3365, 1
        %v3446 = vrot.slane %v3366, 1
        %3447 = vrot.lane.b32.xlu0 %v3439, 64
        %v3448 = vpop.permute.xlu0 %3447
        %3449 = vrot.lane.b32.xlu0 %v3440, 64
        %v3450 = vpop.permute.xlu0 %3449
        %3451 = vrot.lane.b32.xlu0 %v3441, 64
        %v3452 = vpop.permute.xlu0 %3451
        %3453 = vrot.lane.b32.xlu0 %v3442, 64
        %v3454 = vpop.permute.xlu0 %3453
        %3455 = vrot.lane.b32.xlu0 %v3443, 64
        %v3456 = vpop.permute.xlu0 %3455
        %3457 = vrot.lane.b32.xlu0 %v3444, 64
        %v3458 = vpop.permute.xlu0 %3457
        %3459 = vrot.lane.b32.xlu0 %v3445, 64
        %v3460 = vpop.permute.xlu0 %3459
        %3461 = vrot.lane.b32.xlu0 %v3446, 64
        %v3462 = vpop.permute.xlu0 %3461
        %v3465 = vsel %vm993, %v3311, %v3424
        %v3468 = vsel %vm993, %v3313, %v3426
        %v3471 = vsel %vm993, %v3315, %v3428
        %v3474 = vsel %vm993, %v3317, %v3430
        %v3477 = vsel %vm993, %v3319, %v3432
        %v3480 = vsel %vm993, %v3321, %v3434
        %v3483 = vsel %vm993, %v3323, %v3436
        %v3486 = vsel %vm993, %v3325, %v3438
        %v3488 = vsel %vm1018, %v3465, %v3448
        %v3490 = vsel %vm1018, %v3468, %v3450
        %v3492 = vsel %vm1018, %v3471, %v3452
        %v3494 = vsel %vm1018, %v3474, %v3454
        %v3496 = vsel %vm1018, %v3477, %v3456
        %v3498 = vsel %vm1018, %v3480, %v3458
        %v3500 = vsel %vm1018, %v3483, %v3460
        %v3502 = vsel %vm1018, %v3486, %v3462
        %s3503 = scalar_lea.vmem [#allocation3], 384
        %v3504 = vld [vmem:[%s3503] sm:$0xff]
        %v3505 = vld [vmem:[%s3503 + $0x8] sm:$0xff]
        %v3506 = vld [vmem:[%s3503 + $0x10] sm:$0xff]
        %v3507 = vld [vmem:[%s3503 + $0x18] sm:$0xff]
        %v3508 = vld [vmem:[%s3503 + $0x20] sm:$0xff]
        %v3509 = vld [vmem:[%s3503 + $0x28] sm:$0xff]
        %v3518 = vunpack.c.l.b16 %v3488
        %v3519 = vunpack.c.l.b16 %v3490
        %v3520 = vunpack.c.l.b16 %v3492
        %v3521 = vunpack.c.l.b16 %v3494
        %v3522 = vunpack.c.l.b16 %v3496
        %v3523 = vunpack.c.l.b16 %v3498
        %v3524 = vunpack.c.l.b16 %v3500
        %v3525 = vunpack.c.l.b16 %v3502
        %v3526 = vpack.c.b16 %v3519, %v3518
        %v3527 = vpack.c.b16 %v3521, %v3520
        %v3528 = vpack.c.b16 %v3523, %v3522
        %v3529 = vpack.c.b16 %v3525, %v3524
        %v3531 = vsel %vm1263, %v3526, 0
        %v3534 = vsel %vm1263, %v3527, 0
        %v3537 = vsel %vm1263, %v3528, 0
        %v3540 = vsel %vm1263, %v3529, 0
        %3542 = vmatprep.subr.bf16.mxu0 0
        %3543 = vmatpush1.bf16.msra.mxu0 %v3504
        %3544 = vmatprep.subr.bf16.mxu0 0
        %3545 = vmatpush1.bf16.msra.mxu0 %v3505
        %3546 = vmatprep.subr.bf16.mxu0 0
        %3547 = vmatpush1.bf16.msra.mxu0 %v3506
        %3548 = vmatprep.subr.bf16.mxu0 0
        %3549 = vmatpush1.bf16.msra.mxu0 %v3507
        %3550 = vmatprep.subr.bf16.mxu0 0
        %3551 = vmatpush1.bf16.msra.mxu0 %v3508
        %3552 = vmatprep.subr.bf16.mxu0 0
        %3553 = vmatpush1.bf16.msra.mxu0 %v3509
        %3554 = vmatprep.subr.bf16.mxu0 0
        %3555 = vmatpush1.bf16.msra.mxu0 0
        %3556 = vmatprep.subr.bf16.mxu0 0
        %3557 = vmatpush1.bf16.msra.mxu0 0
        %3558 = vmatprep.subr.bf16.mxu0 0
        %3559 = vmatpush1.bf16.msra.mxu0 0
        %3560 = vmatprep.subr.bf16.mxu0 0
        %3561 = vmatpush1.bf16.msra.mxu0 0
        %3562 = vmatprep.subr.bf16.mxu0 0
        %3563 = vmatpush1.bf16.msra.mxu0 0
        %3564 = vmatprep.subr.bf16.mxu0 0
        %3565 = vmatpush1.bf16.msra.mxu0 0
        %3566 = vmatprep.subr.bf16.mxu0 0
        %3567 = vmatpush1.bf16.msra.mxu0 0
        %3568 = vmatprep.subr.bf16.mxu0 0
        %3569 = vmatpush1.bf16.msra.mxu0 0
        %3570 = vmatprep.subr.bf16.mxu0 0
        %3571 = vmatpush1.bf16.msra.mxu0 0
        %3572 = vmatprep.subr.bf16.mxu0 0
        %3573 = vmatpush1.bf16.msra.mxu0 0
        %3574 = vmatprep.mubr.bf16.mxu0 0
        %3575 = vmatmul.mubr.bf16.gmra.mrb[0].mxu0 %v3531
        %v3576 = vpop.f32.mrb[0].mxu0
        %v3577 = vadd.f32 0.0, %v3576
        %v3578 = vpop.f32.mrb[0].mxu0
        %v3579 = vpop.f32.mrb[0].mxu0
        %v3580 = vadd.f32 0.0, %v3579
        %v3581 = vpop.f32.mrb[0].mxu0
        %3582 = vmatprep.mubr.bf16.mxu0 0
        %3583 = vmatmul.mubr.bf16.gmra.mrb[0].mxu0 %v3534
        %v3584 = vpop.f32.mrb[0].mxu0
        %v3585 = vadd.f32 0.0, %v3584
        %v3586 = vpop.f32.mrb[0].mxu0
        %v3587 = vpop.f32.mrb[0].mxu0
        %v3588 = vadd.f32 0.0, %v3587
        %v3589 = vpop.f32.mrb[0].mxu0
        %3590 = vmatprep.mubr.bf16.mxu0 0
        %3591 = vmatmul.mubr.bf16.gmra.mrb[0].mxu0 %v3537
        %v3592 = vpop.f32.mrb[0].mxu0
        %v3593 = vadd.f32 0.0, %v3592
        %v3594 = vpop.f32.mrb[0].mxu0
        %v3595 = vpop.f32.mrb[0].mxu0
        %v3596 = vadd.f32 0.0, %v3595
        %v3597 = vpop.f32.mrb[0].mxu0
        %3598 = vmatprep.mubr.bf16.mxu0 0
        %3599 = vmatmul.mubr.bf16.gmra.mrb[0].mxu0 %v3540
        %v3600 = vpop.f32.mrb[0].mxu0
        %v3601 = vadd.f32 0.0, %v3600
        %v3602 = vpop.f32.mrb[0].mxu0
        %v3603 = vpop.f32.mrb[0].mxu0
        %v3604 = vadd.f32 0.0, %v3603
        %v3605 = vpop.f32.mrb[0].mxu0
        %3606 = vdwg.mxu0
        %v3607 = vadd.f32 %v3300, %v3577
        %v3608 = vadd.f32 %v3301, %v3580
        %v3609 = vadd.f32 %v3302, %v3585
        %v3610 = vadd.f32 %v3303, %v3588
        %v3611 = vadd.f32 %v3304, %v3593
        %v3612 = vadd.f32 %v3305, %v3596
        %v3613 = vadd.f32 %v3306, %v3601
        %v3614 = vadd.f32 %v3307, %v3604
        %v3615 = vmax.f32 %v3607, 0.0
        %v3616 = vmax.f32 %v3608, 0.0
        %v3617 = vmax.f32 %v3609, 0.0
        %v3618 = vmax.f32 %v3610, 0.0
        %v3619 = vmax.f32 %v3611, 0.0
        %v3620 = vmax.f32 %v3612, 0.0
        %v3621 = vmax.f32 %v3613, 0.0
        %v3622 = vmax.f32 %v3614, 0.0
        %v3623 = vpack.c.bf16 %v3616, %v3615
        %v3624 = vpack.c.bf16 %v3618, %v3617
        %v3625 = vpack.c.bf16 %v3620, %v3619
        %v3626 = vpack.c.bf16 %v3622, %v3621
        %v3631 = vunpack.c.l.b16 %v3623
        %v3632 = vunpack.c.h.b16 %v3623
        %v3633 = vunpack.c.l.b16 %v3624
        %v3634 = vunpack.c.h.b16 %v3624
        %v3635 = vunpack.c.l.b16 %v3625
        %v3636 = vunpack.c.h.b16 %v3625
        %v3637 = vunpack.c.l.b16 %v3626
        %v3638 = vunpack.c.h.b16 %v3626
        %v3639 = vpack.c.b16 %v3631, %v3631
        %v3640 = vpack.c.b16 %v3632, %v3632
        %v3641 = vpack.c.b16 %v3633, %v3633
        %v3642 = vpack.c.b16 %v3634, %v3634
        %v3643 = vpack.c.b16 %v3635, %v3635
        %v3644 = vpack.c.b16 %v3636, %v3636
        %v3645 = vpack.c.b16 %v3637, %v3637
        %v3646 = vpack.c.b16 %v3638, %v3638
        %vm3655 = vcmask 257024
        %3656 = vst.msk [vmem:[%s288] sm:$0xf] %vm3655, %v3639
        %3657 = vst.msk [vmem:[%s288 + $0x4] sm:$0xf] %vm3655, %v3640
        %3658 = vst.msk [vmem:[%s288 + $0x8] sm:$0xf] %vm3655, %v3641
        %3659 = vst.msk [vmem:[%s288 + $0xc] sm:$0xf] %vm3655, %v3642
        %3660 = vst.msk [vmem:[%s288 + $0x10] sm:$0xf] %vm3655, %v3643
        %3661 = vst.msk [vmem:[%s288 + $0x14] sm:$0xf] %vm3655, %v3644
        %3662 = vst.msk [vmem:[%s288 + $0x18] sm:$0xf] %vm3655, %v3645
        %3663 = vst.msk [vmem:[%s288 + $0x1c] sm:$0xf] %vm3655, %v3646
        %v3664 = vunpack.c.l.bf16 %v3639
        %v3665 = vunpack.c.l.bf16 %v3640
        %v3666 = vunpack.c.l.bf16 %v3641
        %v3667 = vunpack.c.l.bf16 %v3642
        %v3668 = vunpack.c.l.bf16 %v3643
        %v3669 = vunpack.c.l.bf16 %v3644
        %v3670 = vunpack.c.l.bf16 %v3645
        %v3671 = vunpack.c.l.bf16 %v3646
        %v3672 = vld [vmem:[%s294] sm:$0x1]
        %v3673 = vsel %vm993, %v3664, 0.0
        %v3674 = vsel %vm993, %v3665, 0.0
        %v3675 = vadd.f32 %v3673, %v3674
        %v3676 = vsel %vm993, %v3666, 0.0
        %v3677 = vadd.f32 %v3675, %v3676
        %v3678 = vsel %vm993, %v3667, 0.0
        %v3679 = vadd.f32 %v3677, %v3678
        %v3680 = vsel %vm993, %v3668, 0.0
        %v3681 = vadd.f32 %v3679, %v3680
        %v3682 = vsel %vm993, %v3669, 0.0
        %v3683 = vadd.f32 %v3681, %v3682
        %v3684 = vsel %vm993, %v3670, 0.0
        %v3685 = vadd.f32 %v3683, %v3684
        %v3686 = vsel %vm993, %v3671, 0.0
        %v3687 = vadd.f32 %v3685, %v3686
        %v3688 = vrot.slane %v3687, 4
        %v3689 = vadd.f32 %v3687, %v3688
        %v3690 = vrot.slane %v3689, 2
        %v3691 = vadd.f32 %v3689, %v3690
        %v3692 = vrot.slane %v3691, 1
        %v3693 = vadd.f32 %v3691, %v3692
        %v3694 = vadd.f32 %v3672, %v3693
        %vm3695 = vcmask 253952
        %3696 = vst.msk [vmem:[%s294] sm:$0x1] %vm3695, %v3694
        %v3697 = vld [vmem:[%s297] sm:$0x1]
        %v3698 = vmul.f32 %v3664, %v3664
        %v3699 = vmul.f32 %v3665, %v3665
        %v3700 = vmul.f32 %v3666, %v3666
        %v3701 = vmul.f32 %v3667, %v3667
        %v3702 = vmul.f32 %v3668, %v3668
        %v3703 = vmul.f32 %v3669, %v3669
        %v3704 = vmul.f32 %v3670, %v3670
        %v3705 = vmul.f32 %v3671, %v3671
        %v3706 = vsel %vm993, %v3698, 0.0
        %v3707 = vsel %vm993, %v3699, 0.0
        %v3708 = vadd.f32 %v3706, %v3707
        %v3709 = vsel %vm993, %v3700, 0.0
        %v3710 = vadd.f32 %v3708, %v3709
        %v3711 = vsel %vm993, %v3701, 0.0
        %v3712 = vadd.f32 %v3710, %v3711
        %v3713 = vsel %vm993, %v3702, 0.0
        %v3714 = vadd.f32 %v3712, %v3713
        %v3715 = vsel %vm993, %v3703, 0.0
        %v3716 = vadd.f32 %v3714, %v3715
        %v3717 = vsel %vm993, %v3704, 0.0
        %v3718 = vadd.f32 %v3716, %v3717
        %v3719 = vsel %vm993, %v3705, 0.0
        %v3720 = vadd.f32 %v3718, %v3719
        %v3721 = vrot.slane %v3720, 4
        %v3722 = vadd.f32 %v3720, %v3721
        %v3723 = vrot.slane %v3722, 2
        %v3724 = vadd.f32 %v3722, %v3723
        %v3725 = vrot.slane %v3724, 1
        %v3726 = vadd.f32 %v3724, %v3725
        %v3727 = vadd.f32 %v3697, %v3726
        %3728 = vst.msk [vmem:[%s297] sm:$0x1] %vm3695, %v3727
      $region79: #{unet_decoder_forward.4} parent=27 // pred_fallthru
        _
      %s3729 = ssub.s32 %s22, 1
      %p3730 = scmp.gt.s32.totalorder %s3729, 0
      %s3731 = scalar_select %p3730, %s3729, 0
      %p3732 = scmp.lt.s32.totalorder %s21, 1
      %s3733 = scalar_select %p3732, %s21, 1
      %p3734 = scmp.lt.s32.totalorder %s3731, 7
      %s3735 = scalar_select %p3734, %s3731, 7
      %s3736 = smul.addr %s3735, 8
      %s3737 = smul.addr %s3733, 64
      %s3738 = sadd.s32 %s3736, %s3737
      %s3739 = smul.addr %s3738, 4
      %s3740 = scalar_lea.vmem %s3, %s3739
      %p3741 = scmp.lt.s32.totalorder %s21, 1
      %s3742 = scalar_select %p3741, %s21, 1
      %s3743 = scalar_lea.vmem %s4, %s3742
      %p3744 = scmp.lt.s32.totalorder %s21, 1
      %s3745 = scalar_select %p3744, %s21, 1
      %s3746 = scalar_lea.vmem %s5, %s3745
      // Predicated region
      $region80: #{unet_decoder_forward.4} parent=27 // pred_check
        %p3747 = pneg %p113
      $region81: #{unet_decoder_forward.4} parent=27 // pred_check_branch
        %3749 = sbr.rel (%p3747) target = $region83
      $region82: #{unet_decoder_forward.4} parent=27 // pred_region
        %s3750 = ssub.s32 %s22, 1
        %p3751 = scmp.gt.s32.totalorder %s3750, 0
        %s3752 = scalar_select %p3751, %s3750, 0
      $region83: #{unet_decoder_forward.4} parent=27 // pred_fallthru
        _
      // Predicated region
      $region84: #{unet_decoder_forward.4} parent=27 // pred_check
        %p3753 = pneg %p139
      $region85: #{unet_decoder_forward.4} parent=27 // pred_check_branch
        %3755 = sbr.rel (%p3753) target = $region87
      $region86: #{unet_decoder_forward.4} parent=27 // pred_region
        _
      $region87: #{unet_decoder_forward.4} parent=27 // pred_fallthru
        _
      // Predicated region
      $region88: #{unet_decoder_forward.4} parent=27 // pred_check
        %p3756 = pneg %p165
      $region89: #{unet_decoder_forward.4} parent=27 // pred_check_branch
        %3758 = sbr.rel (%p3756) target = $region91
      $region90: #{unet_decoder_forward.4} parent=27 // pred_region
        _
      $region91: #{unet_decoder_forward.4} parent=27 // pred_fallthru
        _
    $region28: #{unet_decoder_forward.4} parent=5 // pred_fallthru
      _
    %p3759 = scmp.le.s32.totalorder 2, %s12
    // Predicated region
    $region92: #{unet_decoder_forward.4} parent=5 // pred_check
      %p3760 = pneg %p3759
    $region93: #{unet_decoder_forward.4} parent=5 // pred_check_branch
      %3762 = sbr.rel (%p3760) target = $region95
    $region94: #{unet_decoder_forward.4} parent=5 // pred_region
      %s3763 = ssub.s32 %s12, 2
      // Predicated region
      $region96: #{unet_decoder_forward.4} parent=94 // pred_check
        %p3764 = pneg %p119
      $region97: #{unet_decoder_forward.4} parent=94 // pred_check_branch
        %3766 = sbr.rel (%p3764) target = $region99
      $region98: #{unet_decoder_forward.4} parent=94 // pred_region
        %s3767 = ssub.s32 %s24, 1
        %p3768 = scmp.gt.s32.totalorder %s3767, 0
        %s3769 = scalar_select %p3768, %s3767, 0
        %p3770 = scmp.lt.s32.totalorder %s23, 1
        %s3771 = scalar_select %p3770, %s23, 1
        %p3772 = scmp.lt.s32.totalorder %s3769, 7
        %s3773 = scalar_select %p3772, %s3769, 7
        %s3774 = smul.addr %s3773, 8
        %s3775 = smul.addr %s3771, 64
        %s3776 = sadd.s32 %s3774, %s3775
        %s3777 = smul.addr %s3776, 4
        %s3778 = scalar_lea.vmem %s3, %s3777
      $region99: #{unet_decoder_forward.4} parent=94 // pred_fallthru
        _
      // Predicated region
      $region100: #{unet_decoder_forward.4} parent=94 // pred_check
        %p3779 = pneg %p145
      $region101: #{unet_decoder_forward.4} parent=94 // pred_check_branch
        %3781 = sbr.rel (%p3779) target = $region103
      $region102: #{unet_decoder_forward.4} parent=94 // pred_region
        %p3782 = scmp.lt.s32.totalorder %s23, 1
        %s3783 = scalar_select %p3782, %s23, 1
        %s3784 = scalar_lea.vmem %s4, %s3783
      $region103: #{unet_decoder_forward.4} parent=94 // pred_fallthru
        _
      // Predicated region
      $region104: #{unet_decoder_forward.4} parent=94 // pred_check
        %p3785 = pneg %p171
      $region105: #{unet_decoder_forward.4} parent=94 // pred_check_branch
        %3787 = sbr.rel (%p3785) target = $region107
      $region106: #{unet_decoder_forward.4} parent=94 // pred_region
        %p3788 = scmp.lt.s32.totalorder %s23, 1
        %s3789 = scalar_select %p3788, %s23, 1
        %s3790 = scalar_lea.vmem %s5, %s3789
      $region107: #{unet_decoder_forward.4} parent=94 // pred_fallthru
        _
    $region95: #{unet_decoder_forward.4} parent=5 // pred_fallthru
      _
  $region6: #{unet_decoder_forward.4} parent=0 // loop_footer
    %s16 = sadd.s32 1, %s12
  $region7: #{unet_decoder_forward.4} parent=0 // loop_footer_branch
    %11 = sbr.rel target = $region3
  $region8: #{unet_decoder_forward.4} parent=0 // loop_exit
    _

</llo_original>
